<compile_context>
chip_gen: v5e
topology: v5e:2x2
jax: 0.10.0
libtpu: 0.0.40
codegen_flags: <defaults>
</compile_context>

<pallas_src>
import functools

import numpy as np
import jax
import jax.numpy as jnp
from jax.experimental import pallas as pl
from jax.experimental.pallas import tpu as pltpu


def _round_up(a, b):
    return (a + b - 1) // b * b


def _conv_plan(wb, p):
    """Static plan for a 3x3 SAME conv on the folded flat layout.

    taps          : [(ky, kx, sigma, tau)] for the 9 taps, where the tap's flat
                    offset is s = (dy+1)*Wb + dx = sigma*P + tau.
    slab_offsets  : sorted distinct folded-row offsets whose slabs feed the
                    per-layer matmuls.
    """
    taps = []
    for dy in (-1, 0, 1):
        for dx in (-1, 0, 1):
            s = (dy + 1) * wb + dx
            taps.append((dy + 1, dx + 1, s // p, s % p))
    slabs = {sig for (_, _, sig, _tau) in taps}
    slabs |= {sig + 1 for (_, _, sig, tau) in taps if tau != 0}
    return taps, sorted(slabs)


def _geometry(h, w, p):
    wb = _round_up(w + 2, p)                       # padded row width (halo + W + pad)
    halo = wb // p                                 # folded rows per padded image row
    guard_front = _round_up(1 + halo, 16) - halo   # align interior store to 16 rows
    n_rows = h * wb // p                           # folded interior rows per image
    r_scratch = guard_front + halo + n_rows + halo + 1
    return wb, halo, guard_front, n_rows, r_scratch


def _dncnn_kernel(x_ref, w_ref, scale_ref, shift_ref, mask_ref, o_ref,
                  buf_a, buf_b, *, pc, n_rows, halo, guard_front, n_layers,
                  slab_offsets):
    """Whole DnCNN forward for one batch item, activations VMEM-resident.

    x_ref     : (1, n_rows, pc) f32   folded lane-dense input image
    w_ref     : (L, S, pc, pc)  bf16  block-structured slab weights
    scale_ref : (L, 1, pc)      f32   folded BN scale (tiled P times over lanes)
    shift_ref : (L, 1, pc)      f32   folded BN shift + conv bias (tiled)
    mask_ref  : (n_rows, pc)    f32   1.0 on real pixels, 0.0 on halo columns
    o_ref     : (1, n_rows, pc) f32   folded residual x - model(x)
    buf_a/b   : (R, pc) bf16          ping-pong activation scratch
    """
    n = n_rows
    top = guard_front + halo          # first interior folded row (16-aligned)
    bot = top + n

    # Zero only the halo ring (front guard + top halo row, bottom halo row +
    # back guard) of BOTH buffers; interiors are fully rewritten every layer.
    # Runs every grid step (never gated on program_id) -> megacore safe.
    zf = jnp.zeros((top, pc), jnp.bfloat16)
    zb = jnp.zeros((halo + 1, pc), jnp.bfloat16)
    buf_a[0:top, :] = zf
    buf_b[0:top, :] = zf
    buf_a[bot:bot + halo + 1, :] = zb
    buf_b[bot:bot + halo + 1, :] = zb

    # Input image (halo columns / padded channels are already zero).
    buf_a[top:bot, :] = x_ref[0].astype(jnp.bfloat16)

    mask = mask_ref[...]

    def conv_layer(src, l):
        # 3x3 conv == sum over a few sublane-shifted lane-dense slabs, each
        # multiplied by a block-structured (pc, pc) weight on the MXU.
        acc = jnp.zeros((n, pc), jnp.float32)
        for j, sig in enumerate(slab_offsets):
            slab = src[guard_front + sig:guard_front + sig + n, :]
            acc = acc + jnp.dot(slab, w_ref[l, j],
                                preferred_element_type=jnp.float32)
        return acc * scale_ref[l] + shift_ref[l]     # folded BN + conv bias

    # TODO(synk): switch to lax.fori_loop over layers for depth >= 17.
    bufs = (buf_a, buf_b)
    for l in range(n_layers - 1):
        src, dst = bufs[l % 2], bufs[(l + 1) % 2]
        y = jnp.maximum(conv_layer(src, l), 0.0) * mask   # ReLU; keep halo cols 0
        dst[top:bot, :] = y.astype(jnp.bfloat16)

    # Last layer (no ReLU) + fused residual; lane-dense folded writeback.
    y_last = conv_layer(bufs[(n_layers - 1) % 2], n_layers - 1)
    o_ref[0] = ((x_ref[0] - y_last) * mask).astype(o_ref.dtype)


def pack_params(layers, c_max, wb, p):
    """Stack per-layer conv weights into block-structured slab matmul weights.

    For each distinct slab offset sigma, the (P*C, P*C) matrix holds at block
    (u_i, u_o) the (C, C) kernel tap whose flat offset maps fold-slot u_i of
    that slab onto fold-slot u_o of the output.  A layer is then just
    sum_sigma slab_sigma @ W[sigma].
    """
    taps, slabs = _conv_plan(wb, p)
    pos = {s: i for i, s in enumerate(slabs)}
    n_l, n_s, pc = len(layers), len(slabs), p * c_max
    w_all = np.zeros((n_l, n_s, pc, pc), np.float32)
    scale_all = np.zeros((n_l, 1, pc), np.float32)
    shift_all = np.zeros((n_l, 1, pc), np.float32)
    for l, (w, scale, shift, _relu) in enumerate(layers):
        kh, kw, cin, cout = w.shape
        kp = np.zeros((3, 3, c_max, c_max), np.float32)
        kp[:, :, :cin, :cout] = np.asarray(w)
        for (ky, kx, sig, tau) in taps:
            blk = kp[ky, kx]
            for uo in range(p):
                ui = uo + tau
                if ui < p:
                    w_all[l, pos[sig],
                          ui * c_max:(ui + 1) * c_max,
                          uo * c_max:(uo + 1) * c_max] += blk
                else:
                    ui -= p
                    w_all[l, pos[sig + 1],
                          ui * c_max:(ui + 1) * c_max,
                          uo * c_max:(uo + 1) * c_max] += blk
        sc = np.ones((c_max,), np.float32)
        sc[:cout] = np.asarray(scale)
        sh = np.zeros((c_max,), np.float32)
        sh[:cout] = np.asarray(shift)
        scale_all[l, 0] = np.tile(sc, p)
        shift_all[l, 0] = np.tile(sh, p)
    return (jnp.asarray(w_all, jnp.bfloat16), jnp.asarray(scale_all),
            jnp.asarray(shift_all))


def build_mask(h, w, wb, p, c_max):
    """(n_rows, pc) f32 mask: 1.0 on real image columns, 0.0 on halo columns."""
    n, pc = h * wb // p, p * c_max
    rows = np.arange(n)[:, None]
    lanes = np.arange(pc)[None, :]
    xcol = (rows * p + lanes // c_max) % wb
    return jnp.asarray(((xcol >= 1) & (xcol <= w)).astype(np.float32))


@functools.partial(jax.jit, static_argnames=("c_max",))
def dncnn_forward(x_nchw, w_all, scale_all, shift_all, mask, *, c_max):
    """DnCNN forward: x - model(x).  Input/output layout: NCHW (PyTorch)."""
    N, C, H, W = x_nchw.shape
    L = w_all.shape[0]
    pc = w_all.shape[-1]
    p = pc // c_max
    wb, halo, guard_front, n_rows, r_scratch = _geometry(H, W, p)
    _, slabs = _conv_plan(wb, p)
    assert w_all.shape[1] == len(slabs)
    assert mask.shape == (n_rows, pc)

    # NCHW -> folded lane-dense (N, H*Wb/P, P*C_max); tiny one-time XLA ops.
    x_nhwc = jnp.transpose(x_nchw, (0, 2, 3, 1))
    x_pad = jnp.pad(x_nhwc, ((0, 0), (0, 0), (1, wb - W - 1), (0, c_max - C)))
    x_folded = x_pad.reshape(N, n_rows, pc)

    kernel = functools.partial(
        _dncnn_kernel, pc=pc, n_rows=n_rows, halo=halo,
        guard_front=guard_front, n_layers=L, slab_offsets=tuple(slabs))

    # Scoped-VMEM budget from the true footprint (defaults are 16/32 MiB).
    bytes_blocks = 2 * (2 * n_rows * pc * 4            # x + out blocks (dbl buf)
                        + n_rows * pc * 4              # mask
                        + L * len(slabs) * pc * pc * 2  # bf16 weights
                        + 2 * L * pc * 4)              # scale + shift
    bytes_scratch = 2 * r_scratch * pc * 2
    vmem_limit = int(min(64 << 20,
                         max(16 << 20, bytes_blocks + bytes_scratch + (4 << 20))))

    out_folded = pl.pallas_call(
        kernel,
        out_shape=jax.ShapeDtypeStruct((N, n_rows, pc), x_nchw.dtype),
        grid=(N,),
        in_specs=[
            pl.BlockSpec((1, n_rows, pc), lambda i: (i, 0, 0)),
            pl.BlockSpec((L, len(slabs), pc, pc), lambda i: (0, 0, 0, 0)),
            pl.BlockSpec((L, 1, pc), lambda i: (0, 0, 0)),
            pl.BlockSpec((L, 1, pc), lambda i: (0, 0, 0)),
            pl.BlockSpec((n_rows, pc), lambda i: (0, 0)),
        ],
        out_specs=pl.BlockSpec((1, n_rows, pc), lambda i: (i, 0, 0)),
        scratch_shapes=[
            pltpu.VMEM((r_scratch, pc), jnp.bfloat16),
            pltpu.VMEM((r_scratch, pc), jnp.bfloat16),
        ],
        compiler_params=pltpu.CompilerParams(
            dimension_semantics=("parallel",),
            vmem_limit_bytes=vmem_limit),
    )(x_folded, w_all, scale_all, shift_all, mask)

    # folded (N, H*Wb/P, P*C_max) -> NCHW; trivial reshape/slice/transpose.
    out = out_folded.reshape(N, H, wb, c_max)[:, :, 1:W + 1, :C]
    return jnp.transpose(out, (0, 3, 1, 2))


def init_dncnn_params(key, channels=3, depth=5, filters=32):
    """Deterministic synthetic parameters, BN folded into (scale, shift).

    Returns a list of (w_hwio, scale, shift, relu) tuples, one per conv layer.
    """
    layers = []
    eps = 1e-5

    def conv_w(k, cin, cout):
        fan_in = cin * 9
        return jax.random.uniform(
            k, (3, 3, cin, cout), jnp.float32,
            minval=-1.0, maxval=1.0) * (1.0 / jnp.sqrt(fan_in))

    keys = jax.random.split(key, depth * 4)
    ki = 0

    # first layer: conv(channels -> filters) + ReLU
    w = conv_w(keys[ki], channels, filters); ki += 1
    b = 0.01 * jax.random.normal(keys[ki], (filters,), jnp.float32); ki += 1
    layers.append((w, jnp.ones((filters,), jnp.float32), b, True))

    # middle layers: conv + BN + ReLU
    for _ in range(depth - 2):
        w = conv_w(keys[ki], filters, filters); ki += 1
        b = 0.01 * jax.random.normal(keys[ki], (filters,), jnp.float32); ki += 1
        gamma = 1.0 + 0.1 * jax.random.normal(keys[ki], (filters,), jnp.float32); ki += 1
        sub = jax.random.split(keys[ki], 3); ki += 1
        beta = 0.1 * jax.random.normal(sub[0], (filters,), jnp.float32)
        rmean = 0.1 * jax.random.normal(sub[1], (filters,), jnp.float32)
        rvar = 1.0 + 0.1 * jax.random.uniform(sub[2], (filters,), jnp.float32)
        scale = gamma / jnp.sqrt(rvar + eps)
        shift = beta + (b - rmean) * scale  # fold conv bias + BN
        layers.append((w, scale, shift, True))

    # last layer: conv(filters -> channels), no ReLU
    w = conv_w(keys[ki], filters, channels); ki += 1
    b = 0.01 * jax.random.normal(keys[ki], (channels,), jnp.float32); ki += 1
    layers.append((w, jnp.ones((channels,), jnp.float32), b, False))
    return layers


def dncnn_reference(x_nchw, layers):
    """Pure-JAX reference (lax conv), mirroring the kernel's bf16-in / f32-acc."""
    y = x_nchw
    for (w, scale, shift, relu) in layers:
        conv = jax.lax.conv_general_dilated(
            y.astype(jnp.bfloat16), w.astype(jnp.bfloat16),
            window_strides=(1, 1), padding="SAME",
            dimension_numbers=("NCHW", "HWIO", "NCHW"),
            preferred_element_type=jnp.float32)
        y = conv * scale[None, :, None, None] + shift[None, :, None, None]
        if relu:
            y = jnp.maximum(y, 0.0)
    return x_nchw - y


if __name__ == "__main__":
    key = jax.random.PRNGKey(0)
    k_x, k_p = jax.random.split(key)

    N, C, H, W = 2, 3, 16, 16          # small DnCNN config
    DEPTH, FILTERS = 5, 32

    x = jax.random.normal(k_x, (N, C, H, W), jnp.float32)
    layers = init_dncnn_params(k_p, channels=C, depth=DEPTH, filters=FILTERS)

    c_max = FILTERS                    # channel padding; 128 % c_max must be 0
    assert 128 % c_max == 0 and c_max >= C
    p = 128 // c_max
    wb = _geometry(H, W, p)[0]

    w_all, scale_all, shift_all = pack_params(layers, c_max=c_max, wb=wb, p=p)
    mask = build_mask(H, W, wb=wb, p=p, c_max=c_max)

    out = dncnn_forward(x, w_all, scale_all, shift_all, mask, c_max=c_max)
    out = jax.block_until_ready(out)

    ref = dncnn_reference(x, layers)
    assert out.shape == (N, C, H, W)
    # bf16 matmul inputs in both paths; residual mismatch comes only from f32
    # accumulation order and rare bf16 rounding flips -> well under 5e-3.
    err = float(jnp.max(jnp.abs(out - ref)))
    assert err < 5e-3, f"mismatch vs reference: {err}"

    print("KERNEL_OK")
</pallas_src>

<mosaic_0001>
module attributes {stable_mosaic.version = 11 : i64} {
  func.func @_dncnn_kernel(%arg0: i32, %arg1: memref<1x80x128xf32, #tpu.memory_space<vmem>>, %arg2: memref<5x9x128x128xbf16, #tpu.memory_space<vmem>>, %arg3: memref<5x1x128xf32, #tpu.memory_space<vmem>>, %arg4: memref<5x1x128xf32, #tpu.memory_space<vmem>>, %arg5: memref<80x128xf32, #tpu.memory_space<vmem>>, %arg6: memref<1x80x128xf32, #tpu.memory_space<vmem>>, %arg7: memref<102x128xbf16, #tpu.memory_space<vmem>>, %arg8: memref<102x128xbf16, #tpu.memory_space<vmem>>) attributes {dimension_semantics = [#tpu.dimension_semantics<parallel>], iteration_bounds = array<i64: 2>, scalar_prefetch = 0 : i64, scratch_operands = 2 : i64, tpu.core_type = #tpu.core_type<tc>, window_params = [{transform_indices = @transform_0, window_bounds = array<i64: 1, 80, 128>}, {pipeline_mode = #tpu.pipeline_mode<synchronous>, transform_indices = @transform_1, window_bounds = array<i64: 5, 9, 128, 128>}, {pipeline_mode = #tpu.pipeline_mode<synchronous>, transform_indices = @transform_2, window_bounds = array<i64: 5, 1, 128>}, {pipeline_mode = #tpu.pipeline_mode<synchronous>, transform_indices = @transform_3, window_bounds = array<i64: 5, 1, 128>}, {pipeline_mode = #tpu.pipeline_mode<synchronous>, transform_indices = @transform_4, window_bounds = array<i64: 80, 128>}, {transform_indices = @transform_5, window_bounds = array<i64: 1, 80, 128>}]} {
    %cst = arith.constant 0.000000e+00 : bf16
    %0 = vector.broadcast %cst : bf16 to vector<16x128xbf16>
    %cst_0 = arith.constant 0.000000e+00 : bf16
    %1 = vector.broadcast %cst_0 : bf16 to vector<6x128xbf16>
    %c0 = arith.constant 0 : index
    %c0_1 = arith.constant 0 : index
    %2 = vector.load %arg7[%c0, %c0_1] : memref<102x128xbf16, #tpu.memory_space<vmem>>, vector<16x128xbf16>
    tpu.vector_store %arg7[%c0, %c0_1], %0 {strides = array<i32>} : memref<102x128xbf16, #tpu.memory_space<vmem>>, vector<16x128xbf16>,
    %c0_2 = arith.constant 0 : index
    %c0_3 = arith.constant 0 : index
    %3 = vector.load %arg8[%c0_2, %c0_3] : memref<102x128xbf16, #tpu.memory_space<vmem>>, vector<16x128xbf16>
    tpu.vector_store %arg8[%c0_2, %c0_3], %0 {strides = array<i32>} : memref<102x128xbf16, #tpu.memory_space<vmem>>, vector<16x128xbf16>,
    %c96 = arith.constant 96 : index
    %c0_4 = arith.constant 0 : index
    %4 = vector.load %arg7[%c96, %c0_4] : memref<102x128xbf16, #tpu.memory_space<vmem>>, vector<6x128xbf16>
    tpu.vector_store %arg7[%c96, %c0_4], %1 {strides = array<i32>} : memref<102x128xbf16, #tpu.memory_space<vmem>>, vector<6x128xbf16>,
    %c96_5 = arith.constant 96 : index
    %c0_6 = arith.constant 0 : index
    %5 = vector.load %arg8[%c96_5, %c0_6] : memref<102x128xbf16, #tpu.memory_space<vmem>>, vector<6x128xbf16>
    tpu.vector_store %arg8[%c96_5, %c0_6], %1 {strides = array<i32>} : memref<102x128xbf16, #tpu.memory_space<vmem>>, vector<6x128xbf16>,
    %c0_7 = arith.constant 0 : index
    %c0_8 = arith.constant 0 : index
    %c0_9 = arith.constant 0 : index
    %6 = vector.load %arg1[%c0_7, %c0_8, %c0_9] : memref<1x80x128xf32, #tpu.memory_space<vmem>>, vector<1x80x128xf32>
    %7 = vector.shape_cast %6 : vector<1x80x128xf32> to vector<80x128xf32>
    %8 = arith.truncf %7 : vector<80x128xf32> to vector<80x128xbf16>
    %c16 = arith.constant 16 : index
    %c0_10 = arith.constant 0 : index
    %9 = vector.load %arg7[%c16, %c0_10] : memref<102x128xbf16, #tpu.memory_space<vmem>>, vector<80x128xbf16>
    tpu.vector_store %arg7[%c16, %c0_10], %8 {strides = array<i32>} : memref<102x128xbf16, #tpu.memory_space<vmem>>, vector<80x128xbf16>,
    %c0_11 = arith.constant 0 : index
    %c0_12 = arith.constant 0 : index
    %10 = vector.load %arg5[%c0_11, %c0_12] : memref<80x128xf32, #tpu.memory_space<vmem>>, vector<80x128xf32>
    %cst_13 = arith.constant 0.000000e+00 : f32
    %11 = vector.broadcast %cst_13 : f32 to vector<80x128xf32>
    %c10 = arith.constant 10 : index
    %c0_14 = arith.constant 0 : index
    %12 = vector.load %arg7[%c10, %c0_14] : memref<102x128xbf16, #tpu.memory_space<vmem>>, vector<80x128xbf16>
    %c0_15 = arith.constant 0 : index
    %c0_16 = arith.constant 0 : index
    %c0_17 = arith.constant 0 : index
    %c0_18 = arith.constant 0 : index
    %13 = vector.load %arg2[%c0_15, %c0_16, %c0_17, %c0_18] : memref<5x9x128x128xbf16, #tpu.memory_space<vmem>>, vector<1x1x128x128xbf16>
    %14 = vector.shape_cast %13 : vector<1x1x128x128xbf16> to vector<128x128xbf16>
    %cst_19 = arith.constant dense<0.000000e+00> : vector<80x128xf32>
    %15 = tpu.matmul %12, %14, %cst_19 {dimension_numbers = #tpu.dot_dimension_numbers<[1], [0], [0], [1], [0, 0, 1, 1], [], []>} : vector<80x128xbf16>, vector<128x128xbf16>, vector<80x128xf32> -> vector<80x128xf32>
    %16 = arith.addf %11, %15 : vector<80x128xf32>
    %c11 = arith.constant 11 : index
    %c0_20 = arith.constant 0 : index
    %17 = vector.load %arg7[%c11, %c0_20] : memref<102x128xbf16, #tpu.memory_space<vmem>>, vector<80x128xbf16>
    %c0_21 = arith.constant 0 : index
    %c1 = arith.constant 1 : index
    %c0_22 = arith.constant 0 : index
    %c0_23 = arith.constant 0 : index
    %18 = vector.load %arg2[%c0_21, %c1, %c0_22, %c0_23] : memref<5x9x128x128xbf16, #tpu.memory_space<vmem>>, vector<1x1x128x128xbf16>
    %19 = vector.shape_cast %18 : vector<1x1x128x128xbf16> to vector<128x128xbf16>
    %cst_24 = arith.constant dense<0.000000e+00> : vector<80x128xf32>
    %20 = tpu.matmul %17, %19, %cst_24 {dimension_numbers = #tpu.dot_dimension_numbers<[1], [0], [0], [1], [0, 0, 1, 1], [], []>} : vector<80x128xbf16>, vector<128x128xbf16>, vector<80x128xf32> -> vector<80x128xf32>
    %21 = arith.addf %16, %20 : vector<80x128xf32>
    %c12 = arith.constant 12 : index
    %c0_25 = arith.constant 0 : index
    %22 = vector.load %arg7[%c12, %c0_25] : memref<102x128xbf16, #tpu.memory_space<vmem>>, vector<80x128xbf16>
    %c0_26 = arith.constant 0 : index
    %c2 = arith.constant 2 : index
    %c0_27 = arith.constant 0 : index
    %c0_28 = arith.constant 0 : index
    %23 = vector.load %arg2[%c0_26, %c2, %c0_27, %c0_28] : memref<5x9x128x128xbf16, #tpu.memory_space<vmem>>, vector<1x1x128x128xbf16>
    %24 = vector.shape_cast %23 : vector<1x1x128x128xbf16> to vector<128x128xbf16>
    %cst_29 = arith.constant dense<0.000000e+00> : vector<80x128xf32>
    %25 = tpu.matmul %22, %24, %cst_29 {dimension_numbers = #tpu.dot_dimension_numbers<[1], [0], [0], [1], [0, 0, 1, 1], [], []>} : vector<80x128xbf16>, vector<128x128xbf16>, vector<80x128xf32> -> vector<80x128xf32>
    %26 = arith.addf %21, %25 : vector<80x128xf32>
    %c15 = arith.constant 15 : index
    %c0_30 = arith.constant 0 : index
    %27 = vector.load %arg7[%c15, %c0_30] : memref<102x128xbf16, #tpu.memory_space<vmem>>, vector<80x128xbf16>
    %c0_31 = arith.constant 0 : index
    %c3 = arith.constant 3 : index
    %c0_32 = arith.constant 0 : index
    %c0_33 = arith.constant 0 : index
    %28 = vector.load %arg2[%c0_31, %c3, %c0_32, %c0_33] : memref<5x9x128x128xbf16, #tpu.memory_space<vmem>>, vector<1x1x128x128xbf16>
    %29 = vector.shape_cast %28 : vector<1x1x128x128xbf16> to vector<128x128xbf16>
    %cst_34 = arith.constant dense<0.000000e+00> : vector<80x128xf32>
    %30 = tpu.matmul %27, %29, %cst_34 {dimension_numbers = #tpu.dot_dimension_numbers<[1], [0], [0], [1], [0, 0, 1, 1], [], []>} : vector<80x128xbf16>, vector<128x128xbf16>, vector<80x128xf32> -> vector<80x128xf32>
    %31 = arith.addf %26, %30 : vector<80x128xf32>
    %c16_35 = arith.constant 16 : index
    %c0_36 = arith.constant 0 : index
    %32 = vector.load %arg7[%c16_35, %c0_36] : memref<102x128xbf16, #tpu.memory_space<vmem>>, vector<80x128xbf16>
    %c0_37 = arith.constant 0 : index
    %c4 = arith.constant 4 : index
    %c0_38 = arith.constant 0 : index
    %c0_39 = arith.constant 0 : index
    %33 = vector.load %arg2[%c0_37, %c4, %c0_38, %c0_39] : memref<5x9x128x128xbf16, #tpu.memory_space<vmem>>, vector<1x1x128x128xbf16>
    %34 = vector.shape_cast %33 : vector<1x1x128x128xbf16> to vector<128x128xbf16>
    %cst_40 = arith.constant dense<0.000000e+00> : vector<80x128xf32>
    %35 = tpu.matmul %32, %34, %cst_40 {dimension_numbers = #tpu.dot_dimension_numbers<[1], [0], [0], [1], [0, 0, 1, 1], [], []>} : vector<80x128xbf16>, vector<128x128xbf16>, vector<80x128xf32> -> vector<80x128xf32>
    %36 = arith.addf %31, %35 : vector<80x128xf32>
    %c17 = arith.constant 17 : index
    %c0_41 = arith.constant 0 : index
    %37 = vector.load %arg7[%c17, %c0_41] : memref<102x128xbf16, #tpu.memory_space<vmem>>, vector<80x128xbf16>
    %c0_42 = arith.constant 0 : index
    %c5 = arith.constant 5 : index
    %c0_43 = arith.constant 0 : index
    %c0_44 = arith.constant 0 : index
    %38 = vector.load %arg2[%c0_42, %c5, %c0_43, %c0_44] : memref<5x9x128x128xbf16, #tpu.memory_space<vmem>>, vector<1x1x128x128xbf16>
    %39 = vector.shape_cast %38 : vector<1x1x128x128xbf16> to vector<128x128xbf16>
    %cst_45 = arith.constant dense<0.000000e+00> : vector<80x128xf32>
    %40 = tpu.matmul %37, %39, %cst_45 {dimension_numbers = #tpu.dot_dimension_numbers<[1], [0], [0], [1], [0, 0, 1, 1], [], []>} : vector<80x128xbf16>, vector<128x128xbf16>, vector<80x128xf32> -> vector<80x128xf32>
    %41 = arith.addf %36, %40 : vector<80x128xf32>
    %c20 = arith.constant 20 : index
    %c0_46 = arith.constant 0 : index
    %42 = vector.load %arg7[%c20, %c0_46] : memref<102x128xbf16, #tpu.memory_space<vmem>>, vector<80x128xbf16>
    %c0_47 = arith.constant 0 : index
    %c6 = arith.constant 6 : index
    %c0_48 = arith.constant 0 : index
    %c0_49 = arith.constant 0 : index
    %43 = vector.load %arg2[%c0_47, %c6, %c0_48, %c0_49] : memref<5x9x128x128xbf16, #tpu.memory_space<vmem>>, vector<1x1x128x128xbf16>
    %44 = vector.shape_cast %43 : vector<1x1x128x128xbf16> to vector<128x128xbf16>
    %cst_50 = arith.constant dense<0.000000e+00> : vector<80x128xf32>
    %45 = tpu.matmul %42, %44, %cst_50 {dimension_numbers = #tpu.dot_dimension_numbers<[1], [0], [0], [1], [0, 0, 1, 1], [], []>} : vector<80x128xbf16>, vector<128x128xbf16>, vector<80x128xf32> -> vector<80x128xf32>
    %46 = arith.addf %41, %45 : vector<80x128xf32>
    %c21 = arith.constant 21 : index
    %c0_51 = arith.constant 0 : index
    %47 = vector.load %arg7[%c21, %c0_51] : memref<102x128xbf16, #tpu.memory_space<vmem>>, vector<80x128xbf16>
    %c0_52 = arith.constant 0 : index
    %c7 = arith.constant 7 : index
    %c0_53 = arith.constant 0 : index
    %c0_54 = arith.constant 0 : index
    %48 = vector.load %arg2[%c0_52, %c7, %c0_53, %c0_54] : memref<5x9x128x128xbf16, #tpu.memory_space<vmem>>, vector<1x1x128x128xbf16>
    %49 = vector.shape_cast %48 : vector<1x1x128x128xbf16> to vector<128x128xbf16>
    %cst_55 = arith.constant dense<0.000000e+00> : vector<80x128xf32>
    %50 = tpu.matmul %47, %49, %cst_55 {dimension_numbers = #tpu.dot_dimension_numbers<[1], [0], [0], [1], [0, 0, 1, 1], [], []>} : vector<80x128xbf16>, vector<128x128xbf16>, vector<80x128xf32> -> vector<80x128xf32>
    %51 = arith.addf %46, %50 : vector<80x128xf32>
    %c22 = arith.constant 22 : index
    %c0_56 = arith.constant 0 : index
    %52 = vector.load %arg7[%c22, %c0_56] : memref<102x128xbf16, #tpu.memory_space<vmem>>, vector<80x128xbf16>
    %c0_57 = arith.constant 0 : index
    %c8 = arith.constant 8 : index
    %c0_58 = arith.constant 0 : index
    %c0_59 = arith.constant 0 : index
    %53 = vector.load %arg2[%c0_57, %c8, %c0_58, %c0_59] : memref<5x9x128x128xbf16, #tpu.memory_space<vmem>>, vector<1x1x128x128xbf16>
    %54 = vector.shape_cast %53 : vector<1x1x128x128xbf16> to vector<128x128xbf16>
    %cst_60 = arith.constant dense<0.000000e+00> : vector<80x128xf32>
    %55 = tpu.matmul %52, %54, %cst_60 {dimension_numbers = #tpu.dot_dimension_numbers<[1], [0], [0], [1], [0, 0, 1, 1], [], []>} : vector<80x128xbf16>, vector<128x128xbf16>, vector<80x128xf32> -> vector<80x128xf32>
    %56 = arith.addf %51, %55 : vector<80x128xf32>
    %c0_61 = arith.constant 0 : index
    %c0_62 = arith.constant 0 : index
    %c0_63 = arith.constant 0 : index
    %57 = vector.load %arg3[%c0_61, %c0_62, %c0_63] : memref<5x1x128xf32, #tpu.memory_space<vmem>>, vector<1x1x128xf32>
    %58 = vector.shape_cast %57 : vector<1x1x128xf32> to vector<1x128xf32>
    %59 = vector.broadcast %58 : vector<1x128xf32> to vector<80x128xf32>
    %60 = arith.mulf %56, %59 : vector<80x128xf32>
    %c0_64 = arith.constant 0 : index
    %c0_65 = arith.constant 0 : index
    %c0_66 = arith.constant 0 : index
    %61 = vector.load %arg4[%c0_64, %c0_65, %c0_66] : memref<5x1x128xf32, #tpu.memory_space<vmem>>, vector<1x1x128xf32>
    %62 = vector.shape_cast %61 : vector<1x1x128xf32> to vector<1x128xf32>
    %63 = vector.broadcast %62 : vector<1x128xf32> to vector<80x128xf32>
    %64 = arith.addf %60, %63 : vector<80x128xf32>
    %cst_67 = arith.constant 0.000000e+00 : f32
    %65 = vector.broadcast %cst_67 : f32 to vector<80x128xf32>
    %66 = arith.maximumf %64, %65 : vector<80x128xf32>
    %67 = arith.mulf %66, %10 : vector<80x128xf32>
    %68 = arith.truncf %67 : vector<80x128xf32> to vector<80x128xbf16>
    %c16_68 = arith.constant 16 : index
    %c0_69 = arith.constant 0 : index
    %69 = vector.load %arg8[%c16_68, %c0_69] : memref<102x128xbf16, #tpu.memory_space<vmem>>, vector<80x128xbf16>
    tpu.vector_store %arg8[%c16_68, %c0_69], %68 {strides = array<i32>} : memref<102x128xbf16, #tpu.memory_space<vmem>>, vector<80x128xbf16>,
    %cst_70 = arith.constant 0.000000e+00 : f32
    %70 = vector.broadcast %cst_70 : f32 to vector<80x128xf32>
    %c10_71 = arith.constant 10 : index
    %c0_72 = arith.constant 0 : index
    %71 = vector.load %arg8[%c10_71, %c0_72] : memref<102x128xbf16, #tpu.memory_space<vmem>>, vector<80x128xbf16>
    %c1_73 = arith.constant 1 : index
    %c0_74 = arith.constant 0 : index
    %c0_75 = arith.constant 0 : index
    %c0_76 = arith.constant 0 : index
    %72 = vector.load %arg2[%c1_73, %c0_74, %c0_75, %c0_76] : memref<5x9x128x128xbf16, #tpu.memory_space<vmem>>, vector<1x1x128x128xbf16>
    %73 = vector.shape_cast %72 : vector<1x1x128x128xbf16> to vector<128x128xbf16>
    %cst_77 = arith.constant dense<0.000000e+00> : vector<80x128xf32>
    %74 = tpu.matmul %71, %73, %cst_77 {dimension_numbers = #tpu.dot_dimension_numbers<[1], [0], [0], [1], [0, 0, 1, 1], [], []>} : vector<80x128xbf16>, vector<128x128xbf16>, vector<80x128xf32> -> vector<80x128xf32>
    %75 = arith.addf %70, %74 : vector<80x128xf32>
    %c11_78 = arith.constant 11 : index
    %c0_79 = arith.constant 0 : index
    %76 = vector.load %arg8[%c11_78, %c0_79] : memref<102x128xbf16, #tpu.memory_space<vmem>>, vector<80x128xbf16>
    %c1_80 = arith.constant 1 : index
    %c1_81 = arith.constant 1 : index
    %c0_82 = arith.constant 0 : index
    %c0_83 = arith.constant 0 : index
    %77 = vector.load %arg2[%c1_80, %c1_81, %c0_82, %c0_83] : memref<5x9x128x128xbf16, #tpu.memory_space<vmem>>, vector<1x1x128x128xbf16>
    %78 = vector.shape_cast %77 : vector<1x1x128x128xbf16> to vector<128x128xbf16>
    %cst_84 = arith.constant dense<0.000000e+00> : vector<80x128xf32>
    %79 = tpu.matmul %76, %78, %cst_84 {dimension_numbers = #tpu.dot_dimension_numbers<[1], [0], [0], [1], [0, 0, 1, 1], [], []>} : vector<80x128xbf16>, vector<128x128xbf16>, vector<80x128xf32> -> vector<80x128xf32>
    %80 = arith.addf %75, %79 : vector<80x128xf32>
    %c12_85 = arith.constant 12 : index
    %c0_86 = arith.constant 0 : index
    %81 = vector.load %arg8[%c12_85, %c0_86] : memref<102x128xbf16, #tpu.memory_space<vmem>>, vector<80x128xbf16>
    %c1_87 = arith.constant 1 : index
    %c2_88 = arith.constant 2 : index
    %c0_89 = arith.constant 0 : index
    %c0_90 = arith.constant 0 : index
    %82 = vector.load %arg2[%c1_87, %c2_88, %c0_89, %c0_90] : memref<5x9x128x128xbf16, #tpu.memory_space<vmem>>, vector<1x1x128x128xbf16>
    %83 = vector.shape_cast %82 : vector<1x1x128x128xbf16> to vector<128x128xbf16>
    %cst_91 = arith.constant dense<0.000000e+00> : vector<80x128xf32>
    %84 = tpu.matmul %81, %83, %cst_91 {dimension_numbers = #tpu.dot_dimension_numbers<[1], [0], [0], [1], [0, 0, 1, 1], [], []>} : vector<80x128xbf16>, vector<128x128xbf16>, vector<80x128xf32> -> vector<80x128xf32>
    %85 = arith.addf %80, %84 : vector<80x128xf32>
    %c15_92 = arith.constant 15 : index
    %c0_93 = arith.constant 0 : index
    %86 = vector.load %arg8[%c15_92, %c0_93] : memref<102x128xbf16, #tpu.memory_space<vmem>>, vector<80x128xbf16>
    %c1_94 = arith.constant 1 : index
    %c3_95 = arith.constant 3 : index
    %c0_96 = arith.constant 0 : index
    %c0_97 = arith.constant 0 : index
    %87 = vector.load %arg2[%c1_94, %c3_95, %c0_96, %c0_97] : memref<5x9x128x128xbf16, #tpu.memory_space<vmem>>, vector<1x1x128x128xbf16>
    %88 = vector.shape_cast %87 : vector<1x1x128x128xbf16> to vector<128x128xbf16>
    %cst_98 = arith.constant dense<0.000000e+00> : vector<80x128xf32>
    %89 = tpu.matmul %86, %88, %cst_98 {dimension_numbers = #tpu.dot_dimension_numbers<[1], [0], [0], [1], [0, 0, 1, 1], [], []>} : vector<80x128xbf16>, vector<128x128xbf16>, vector<80x128xf32> -> vector<80x128xf32>
    %90 = arith.addf %85, %89 : vector<80x128xf32>
    %c16_99 = arith.constant 16 : index
    %c0_100 = arith.constant 0 : index
    %91 = vector.load %arg8[%c16_99, %c0_100] : memref<102x128xbf16, #tpu.memory_space<vmem>>, vector<80x128xbf16>
    %c1_101 = arith.constant 1 : index
    %c4_102 = arith.constant 4 : index
    %c0_103 = arith.constant 0 : index
    %c0_104 = arith.constant 0 : index
    %92 = vector.load %arg2[%c1_101, %c4_102, %c0_103, %c0_104] : memref<5x9x128x128xbf16, #tpu.memory_space<vmem>>, vector<1x1x128x128xbf16>
    %93 = vector.shape_cast %92 : vector<1x1x128x128xbf16> to vector<128x128xbf16>
    %cst_105 = arith.constant dense<0.000000e+00> : vector<80x128xf32>
    %94 = tpu.matmul %91, %93, %cst_105 {dimension_numbers = #tpu.dot_dimension_numbers<[1], [0], [0], [1], [0, 0, 1, 1], [], []>} : vector<80x128xbf16>, vector<128x128xbf16>, vector<80x128xf32> -> vector<80x128xf32>
    %95 = arith.addf %90, %94 : vector<80x128xf32>
    %c17_106 = arith.constant 17 : index
    %c0_107 = arith.constant 0 : index
    %96 = vector.load %arg8[%c17_106, %c0_107] : memref<102x128xbf16, #tpu.memory_space<vmem>>, vector<80x128xbf16>
    %c1_108 = arith.constant 1 : index
    %c5_109 = arith.constant 5 : index
    %c0_110 = arith.constant 0 : index
    %c0_111 = arith.constant 0 : index
    %97 = vector.load %arg2[%c1_108, %c5_109, %c0_110, %c0_111] : memref<5x9x128x128xbf16, #tpu.memory_space<vmem>>, vector<1x1x128x128xbf16>
    %98 = vector.shape_cast %97 : vector<1x1x128x128xbf16> to vector<128x128xbf16>
    %cst_112 = arith.constant dense<0.000000e+00> : vector<80x128xf32>
    %99 = tpu.matmul %96, %98, %cst_112 {dimension_numbers = #tpu.dot_dimension_numbers<[1], [0], [0], [1], [0, 0, 1, 1], [], []>} : vector<80x128xbf16>, vector<128x128xbf16>, vector<80x128xf32> -> vector<80x128xf32>
    %100 = arith.addf %95, %99 : vector<80x128xf32>
    %c20_113 = arith.constant 20 : index
    %c0_114 = arith.constant 0 : index
    %101 = vector.load %arg8[%c20_113, %c0_114] : memref<102x128xbf16, #tpu.memory_space<vmem>>, vector<80x128xbf16>
    %c1_115 = arith.constant 1 : index
    %c6_116 = arith.constant 6 : index
    %c0_117 = arith.constant 0 : index
    %c0_118 = arith.constant 0 : index
    %102 = vector.load %arg2[%c1_115, %c6_116, %c0_117, %c0_118] : memref<5x9x128x128xbf16, #tpu.memory_space<vmem>>, vector<1x1x128x128xbf16>
    %103 = vector.shape_cast %102 : vector<1x1x128x128xbf16> to vector<128x128xbf16>
    %cst_119 = arith.constant dense<0.000000e+00> : vector<80x128xf32>
    %104 = tpu.matmul %101, %103, %cst_119 {dimension_numbers = #tpu.dot_dimension_numbers<[1], [0], [0], [1], [0, 0, 1, 1], [], []>} : vector<80x128xbf16>, vector<128x128xbf16>, vector<80x128xf32> -> vector<80x128xf32>
    %105 = arith.addf %100, %104 : vector<80x128xf32>
    %c21_120 = arith.constant 21 : index
    %c0_121 = arith.constant 0 : index
    %106 = vector.load %arg8[%c21_120, %c0_121] : memref<102x128xbf16, #tpu.memory_space<vmem>>, vector<80x128xbf16>
    %c1_122 = arith.constant 1 : index
    %c7_123 = arith.constant 7 : index
    %c0_124 = arith.constant 0 : index
    %c0_125 = arith.constant 0 : index
    %107 = vector.load %arg2[%c1_122, %c7_123, %c0_124, %c0_125] : memref<5x9x128x128xbf16, #tpu.memory_space<vmem>>, vector<1x1x128x128xbf16>
    %108 = vector.shape_cast %107 : vector<1x1x128x128xbf16> to vector<128x128xbf16>
    %cst_126 = arith.constant dense<0.000000e+00> : vector<80x128xf32>
    %109 = tpu.matmul %106, %108, %cst_126 {dimension_numbers = #tpu.dot_dimension_numbers<[1], [0], [0], [1], [0, 0, 1, 1], [], []>} : vector<80x128xbf16>, vector<128x128xbf16>, vector<80x128xf32> -> vector<80x128xf32>
    %110 = arith.addf %105, %109 : vector<80x128xf32>
    %c22_127 = arith.constant 22 : index
    %c0_128 = arith.constant 0 : index
    %111 = vector.load %arg8[%c22_127, %c0_128] : memref<102x128xbf16, #tpu.memory_space<vmem>>, vector<80x128xbf16>
    %c1_129 = arith.constant 1 : index
    %c8_130 = arith.constant 8 : index
    %c0_131 = arith.constant 0 : index
    %c0_132 = arith.constant 0 : index
    %112 = vector.load %arg2[%c1_129, %c8_130, %c0_131, %c0_132] : memref<5x9x128x128xbf16, #tpu.memory_space<vmem>>, vector<1x1x128x128xbf16>
    %113 = vector.shape_cast %112 : vector<1x1x128x128xbf16> to vector<128x128xbf16>
    %cst_133 = arith.constant dense<0.000000e+00> : vector<80x128xf32>
    %114 = tpu.matmul %111, %113, %cst_133 {dimension_numbers = #tpu.dot_dimension_numbers<[1], [0], [0], [1], [0, 0, 1, 1], [], []>} : vector<80x128xbf16>, vector<128x128xbf16>, vector<80x128xf32> -> vector<80x128xf32>
    %115 = arith.addf %110, %114 : vector<80x128xf32>
    %c1_134 = arith.constant 1 : index
    %c0_135 = arith.constant 0 : index
    %c0_136 = arith.constant 0 : index
    %116 = vector.load %arg3[%c1_134, %c0_135, %c0_136] : memref<5x1x128xf32, #tpu.memory_space<vmem>>, vector<1x1x128xf32>
    %117 = vector.shape_cast %116 : vector<1x1x128xf32> to vector<1x128xf32>
    %118 = vector.broadcast %117 : vector<1x128xf32> to vector<80x128xf32>
    %119 = arith.mulf %115, %118 : vector<80x128xf32>
    %c1_137 = arith.constant 1 : index
    %c0_138 = arith.constant 0 : index
    %c0_139 = arith.constant 0 : index
    %120 = vector.load %arg4[%c1_137, %c0_138, %c0_139] : memref<5x1x128xf32, #tpu.memory_space<vmem>>, vector<1x1x128xf32>
    %121 = vector.shape_cast %120 : vector<1x1x128xf32> to vector<1x128xf32>
    %122 = vector.broadcast %121 : vector<1x128xf32> to vector<80x128xf32>
    %123 = arith.addf %119, %122 : vector<80x128xf32>
    %cst_140 = arith.constant 0.000000e+00 : f32
    %124 = vector.broadcast %cst_140 : f32 to vector<80x128xf32>
    %125 = arith.maximumf %123, %124 : vector<80x128xf32>
    %126 = arith.mulf %125, %10 : vector<80x128xf32>
    %127 = arith.truncf %126 : vector<80x128xf32> to vector<80x128xbf16>
    %c16_141 = arith.constant 16 : index
    %c0_142 = arith.constant 0 : index
    %128 = vector.load %arg7[%c16_141, %c0_142] : memref<102x128xbf16, #tpu.memory_space<vmem>>, vector<80x128xbf16>
    tpu.vector_store %arg7[%c16_141, %c0_142], %127 {strides = array<i32>} : memref<102x128xbf16, #tpu.memory_space<vmem>>, vector<80x128xbf16>,
    %cst_143 = arith.constant 0.000000e+00 : f32
    %129 = vector.broadcast %cst_143 : f32 to vector<80x128xf32>
    %c10_144 = arith.constant 10 : index
    %c0_145 = arith.constant 0 : index
    %130 = vector.load %arg7[%c10_144, %c0_145] : memref<102x128xbf16, #tpu.memory_space<vmem>>, vector<80x128xbf16>
    %c2_146 = arith.constant 2 : index
    %c0_147 = arith.constant 0 : index
    %c0_148 = arith.constant 0 : index
    %c0_149 = arith.constant 0 : index
    %131 = vector.load %arg2[%c2_146, %c0_147, %c0_148, %c0_149] : memref<5x9x128x128xbf16, #tpu.memory_space<vmem>>, vector<1x1x128x128xbf16>
    %132 = vector.shape_cast %131 : vector<1x1x128x128xbf16> to vector<128x128xbf16>
    %cst_150 = arith.constant dense<0.000000e+00> : vector<80x128xf32>
    %133 = tpu.matmul %130, %132, %cst_150 {dimension_numbers = #tpu.dot_dimension_numbers<[1], [0], [0], [1], [0, 0, 1, 1], [], []>} : vector<80x128xbf16>, vector<128x128xbf16>, vector<80x128xf32> -> vector<80x128xf32>
    %134 = arith.addf %129, %133 : vector<80x128xf32>
    %c11_151 = arith.constant 11 : index
    %c0_152 = arith.constant 0 : index
    %135 = vector.load %arg7[%c11_151, %c0_152] : memref<102x128xbf16, #tpu.memory_space<vmem>>, vector<80x128xbf16>
    %c2_153 = arith.constant 2 : index
    %c1_154 = arith.constant 1 : index
    %c0_155 = arith.constant 0 : index
    %c0_156 = arith.constant 0 : index
    %136 = vector.load %arg2[%c2_153, %c1_154, %c0_155, %c0_156] : memref<5x9x128x128xbf16, #tpu.memory_space<vmem>>, vector<1x1x128x128xbf16>
    %137 = vector.shape_cast %136 : vector<1x1x128x128xbf16> to vector<128x128xbf16>
    %cst_157 = arith.constant dense<0.000000e+00> : vector<80x128xf32>
    %138 = tpu.matmul %135, %137, %cst_157 {dimension_numbers = #tpu.dot_dimension_numbers<[1], [0], [0], [1], [0, 0, 1, 1], [], []>} : vector<80x128xbf16>, vector<128x128xbf16>, vector<80x128xf32> -> vector<80x128xf32>
    %139 = arith.addf %134, %138 : vector<80x128xf32>
    %c12_158 = arith.constant 12 : index
    %c0_159 = arith.constant 0 : index
    %140 = vector.load %arg7[%c12_158, %c0_159] : memref<102x128xbf16, #tpu.memory_space<vmem>>, vector<80x128xbf16>
    %c2_160 = arith.constant 2 : index
    %c2_161 = arith.constant 2 : index
    %c0_162 = arith.constant 0 : index
    %c0_163 = arith.constant 0 : index
    %141 = vector.load %arg2[%c2_160, %c2_161, %c0_162, %c0_163] : memref<5x9x128x128xbf16, #tpu.memory_space<vmem>>, vector<1x1x128x128xbf16>
    %142 = vector.shape_cast %141 : vector<1x1x128x128xbf16> to vector<128x128xbf16>
    %cst_164 = arith.constant dense<0.000000e+00> : vector<80x128xf32>
    %143 = tpu.matmul %140, %142, %cst_164 {dimension_numbers = #tpu.dot_dimension_numbers<[1], [0], [0], [1], [0, 0, 1, 1], [], []>} : vector<80x128xbf16>, vector<128x128xbf16>, vector<80x128xf32> -> vector<80x128xf32>
    %144 = arith.addf %139, %143 : vector<80x128xf32>
    %c15_165 = arith.constant 15 : index
    %c0_166 = arith.constant 0 : index
    %145 = vector.load %arg7[%c15_165, %c0_166] : memref<102x128xbf16, #tpu.memory_space<vmem>>, vector<80x128xbf16>
    %c2_167 = arith.constant 2 : index
    %c3_168 = arith.constant 3 : index
    %c0_169 = arith.constant 0 : index
    %c0_170 = arith.constant 0 : index
    %146 = vector.load %arg2[%c2_167, %c3_168, %c0_169, %c0_170] : memref<5x9x128x128xbf16, #tpu.memory_space<vmem>>, vector<1x1x128x128xbf16>
    %147 = vector.shape_cast %146 : vector<1x1x128x128xbf16> to vector<128x128xbf16>
    %cst_171 = arith.constant dense<0.000000e+00> : vector<80x128xf32>
    %148 = tpu.matmul %145, %147, %cst_171 {dimension_numbers = #tpu.dot_dimension_numbers<[1], [0], [0], [1], [0, 0, 1, 1], [], []>} : vector<80x128xbf16>, vector<128x128xbf16>, vector<80x128xf32> -> vector<80x128xf32>
    %149 = arith.addf %144, %148 : vector<80x128xf32>
    %c16_172 = arith.constant 16 : index
    %c0_173 = arith.constant 0 : index
    %150 = vector.load %arg7[%c16_172, %c0_173] : memref<102x128xbf16, #tpu.memory_space<vmem>>, vector<80x128xbf16>
    %c2_174 = arith.constant 2 : index
    %c4_175 = arith.constant 4 : index
    %c0_176 = arith.constant 0 : index
    %c0_177 = arith.constant 0 : index
    %151 = vector.load %arg2[%c2_174, %c4_175, %c0_176, %c0_177] : memref<5x9x128x128xbf16, #tpu.memory_space<vmem>>, vector<1x1x128x128xbf16>
    %152 = vector.shape_cast %151 : vector<1x1x128x128xbf16> to vector<128x128xbf16>
    %cst_178 = arith.constant dense<0.000000e+00> : vector<80x128xf32>
    %153 = tpu.matmul %150, %152, %cst_178 {dimension_numbers = #tpu.dot_dimension_numbers<[1], [0], [0], [1], [0, 0, 1, 1], [], []>} : vector<80x128xbf16>, vector<128x128xbf16>, vector<80x128xf32> -> vector<80x128xf32>
    %154 = arith.addf %149, %153 : vector<80x128xf32>
    %c17_179 = arith.constant 17 : index
    %c0_180 = arith.constant 0 : index
    %155 = vector.load %arg7[%c17_179, %c0_180] : memref<102x128xbf16, #tpu.memory_space<vmem>>, vector<80x128xbf16>
    %c2_181 = arith.constant 2 : index
    %c5_182 = arith.constant 5 : index
    %c0_183 = arith.constant 0 : index
    %c0_184 = arith.constant 0 : index
    %156 = vector.load %arg2[%c2_181, %c5_182, %c0_183, %c0_184] : memref<5x9x128x128xbf16, #tpu.memory_space<vmem>>, vector<1x1x128x128xbf16>
    %157 = vector.shape_cast %156 : vector<1x1x128x128xbf16> to vector<128x128xbf16>
    %cst_185 = arith.constant dense<0.000000e+00> : vector<80x128xf32>
    %158 = tpu.matmul %155, %157, %cst_185 {dimension_numbers = #tpu.dot_dimension_numbers<[1], [0], [0], [1], [0, 0, 1, 1], [], []>} : vector<80x128xbf16>, vector<128x128xbf16>, vector<80x128xf32> -> vector<80x128xf32>
    %159 = arith.addf %154, %158 : vector<80x128xf32>
    %c20_186 = arith.constant 20 : index
    %c0_187 = arith.constant 0 : index
    %160 = vector.load %arg7[%c20_186, %c0_187] : memref<102x128xbf16, #tpu.memory_space<vmem>>, vector<80x128xbf16>
    %c2_188 = arith.constant 2 : index
    %c6_189 = arith.constant 6 : index
    %c0_190 = arith.constant 0 : index
    %c0_191 = arith.constant 0 : index
    %161 = vector.load %arg2[%c2_188, %c6_189, %c0_190, %c0_191] : memref<5x9x128x128xbf16, #tpu.memory_space<vmem>>, vector<1x1x128x128xbf16>
    %162 = vector.shape_cast %161 : vector<1x1x128x128xbf16> to vector<128x128xbf16>
    %cst_192 = arith.constant dense<0.000000e+00> : vector<80x128xf32>
    %163 = tpu.matmul %160, %162, %cst_192 {dimension_numbers = #tpu.dot_dimension_numbers<[1], [0], [0], [1], [0, 0, 1, 1], [], []>} : vector<80x128xbf16>, vector<128x128xbf16>, vector<80x128xf32> -> vector<80x128xf32>
    %164 = arith.addf %159, %163 : vector<80x128xf32>
    %c21_193 = arith.constant 21 : index
    %c0_194 = arith.constant 0 : index
    %165 = vector.load %arg7[%c21_193, %c0_194] : memref<102x128xbf16, #tpu.memory_space<vmem>>, vector<80x128xbf16>
    %c2_195 = arith.constant 2 : index
    %c7_196 = arith.constant 7 : index
    %c0_197 = arith.constant 0 : index
    %c0_198 = arith.constant 0 : index
    %166 = vector.load %arg2[%c2_195, %c7_196, %c0_197, %c0_198] : memref<5x9x128x128xbf16, #tpu.memory_space<vmem>>, vector<1x1x128x128xbf16>
    %167 = vector.shape_cast %166 : vector<1x1x128x128xbf16> to vector<128x128xbf16>
    %cst_199 = arith.constant dense<0.000000e+00> : vector<80x128xf32>
    %168 = tpu.matmul %165, %167, %cst_199 {dimension_numbers = #tpu.dot_dimension_numbers<[1], [0], [0], [1], [0, 0, 1, 1], [], []>} : vector<80x128xbf16>, vector<128x128xbf16>, vector<80x128xf32> -> vector<80x128xf32>
    %169 = arith.addf %164, %168 : vector<80x128xf32>
    %c22_200 = arith.constant 22 : index
    %c0_201 = arith.constant 0 : index
    %170 = vector.load %arg7[%c22_200, %c0_201] : memref<102x128xbf16, #tpu.memory_space<vmem>>, vector<80x128xbf16>
    %c2_202 = arith.constant 2 : index
    %c8_203 = arith.constant 8 : index
    %c0_204 = arith.constant 0 : index
    %c0_205 = arith.constant 0 : index
    %171 = vector.load %arg2[%c2_202, %c8_203, %c0_204, %c0_205] : memref<5x9x128x128xbf16, #tpu.memory_space<vmem>>, vector<1x1x128x128xbf16>
    %172 = vector.shape_cast %171 : vector<1x1x128x128xbf16> to vector<128x128xbf16>
    %cst_206 = arith.constant dense<0.000000e+00> : vector<80x128xf32>
    %173 = tpu.matmul %170, %172, %cst_206 {dimension_numbers = #tpu.dot_dimension_numbers<[1], [0], [0], [1], [0, 0, 1, 1], [], []>} : vector<80x128xbf16>, vector<128x128xbf16>, vector<80x128xf32> -> vector<80x128xf32>
    %174 = arith.addf %169, %173 : vector<80x128xf32>
    %c2_207 = arith.constant 2 : index
    %c0_208 = arith.constant 0 : index
    %c0_209 = arith.constant 0 : index
    %175 = vector.load %arg3[%c2_207, %c0_208, %c0_209] : memref<5x1x128xf32, #tpu.memory_space<vmem>>, vector<1x1x128xf32>
    %176 = vector.shape_cast %175 : vector<1x1x128xf32> to vector<1x128xf32>
    %177 = vector.broadcast %176 : vector<1x128xf32> to vector<80x128xf32>
    %178 = arith.mulf %174, %177 : vector<80x128xf32>
    %c2_210 = arith.constant 2 : index
    %c0_211 = arith.constant 0 : index
    %c0_212 = arith.constant 0 : index
    %179 = vector.load %arg4[%c2_210, %c0_211, %c0_212] : memref<5x1x128xf32, #tpu.memory_space<vmem>>, vector<1x1x128xf32>
    %180 = vector.shape_cast %179 : vector<1x1x128xf32> to vector<1x128xf32>
    %181 = vector.broadcast %180 : vector<1x128xf32> to vector<80x128xf32>
    %182 = arith.addf %178, %181 : vector<80x128xf32>
    %cst_213 = arith.constant 0.000000e+00 : f32
    %183 = vector.broadcast %cst_213 : f32 to vector<80x128xf32>
    %184 = arith.maximumf %182, %183 : vector<80x128xf32>
    %185 = arith.mulf %184, %10 : vector<80x128xf32>
    %186 = arith.truncf %185 : vector<80x128xf32> to vector<80x128xbf16>
    %c16_214 = arith.constant 16 : index
    %c0_215 = arith.constant 0 : index
    %187 = vector.load %arg8[%c16_214, %c0_215] : memref<102x128xbf16, #tpu.memory_space<vmem>>, vector<80x128xbf16>
    tpu.vector_store %arg8[%c16_214, %c0_215], %186 {strides = array<i32>} : memref<102x128xbf16, #tpu.memory_space<vmem>>, vector<80x128xbf16>,
    %cst_216 = arith.constant 0.000000e+00 : f32
    %188 = vector.broadcast %cst_216 : f32 to vector<80x128xf32>
    %c10_217 = arith.constant 10 : index
    %c0_218 = arith.constant 0 : index
    %189 = vector.load %arg8[%c10_217, %c0_218] : memref<102x128xbf16, #tpu.memory_space<vmem>>, vector<80x128xbf16>
    %c3_219 = arith.constant 3 : index
    %c0_220 = arith.constant 0 : index
    %c0_221 = arith.constant 0 : index
    %c0_222 = arith.constant 0 : index
    %190 = vector.load %arg2[%c3_219, %c0_220, %c0_221, %c0_222] : memref<5x9x128x128xbf16, #tpu.memory_space<vmem>>, vector<1x1x128x128xbf16>
    %191 = vector.shape_cast %190 : vector<1x1x128x128xbf16> to vector<128x128xbf16>
    %cst_223 = arith.constant dense<0.000000e+00> : vector<80x128xf32>
    %192 = tpu.matmul %189, %191, %cst_223 {dimension_numbers = #tpu.dot_dimension_numbers<[1], [0], [0], [1], [0, 0, 1, 1], [], []>} : vector<80x128xbf16>, vector<128x128xbf16>, vector<80x128xf32> -> vector<80x128xf32>
    %193 = arith.addf %188, %192 : vector<80x128xf32>
    %c11_224 = arith.constant 11 : index
    %c0_225 = arith.constant 0 : index
    %194 = vector.load %arg8[%c11_224, %c0_225] : memref<102x128xbf16, #tpu.memory_space<vmem>>, vector<80x128xbf16>
    %c3_226 = arith.constant 3 : index
    %c1_227 = arith.constant 1 : index
    %c0_228 = arith.constant 0 : index
    %c0_229 = arith.constant 0 : index
    %195 = vector.load %arg2[%c3_226, %c1_227, %c0_228, %c0_229] : memref<5x9x128x128xbf16, #tpu.memory_space<vmem>>, vector<1x1x128x128xbf16>
    %196 = vector.shape_cast %195 : vector<1x1x128x128xbf16> to vector<128x128xbf16>
    %cst_230 = arith.constant dense<0.000000e+00> : vector<80x128xf32>
    %197 = tpu.matmul %194, %196, %cst_230 {dimension_numbers = #tpu.dot_dimension_numbers<[1], [0], [0], [1], [0, 0, 1, 1], [], []>} : vector<80x128xbf16>, vector<128x128xbf16>, vector<80x128xf32> -> vector<80x128xf32>
    %198 = arith.addf %193, %197 : vector<80x128xf32>
    %c12_231 = arith.constant 12 : index
    %c0_232 = arith.constant 0 : index
    %199 = vector.load %arg8[%c12_231, %c0_232] : memref<102x128xbf16, #tpu.memory_space<vmem>>, vector<80x128xbf16>
    %c3_233 = arith.constant 3 : index
    %c2_234 = arith.constant 2 : index
    %c0_235 = arith.constant 0 : index
    %c0_236 = arith.constant 0 : index
    %200 = vector.load %arg2[%c3_233, %c2_234, %c0_235, %c0_236] : memref<5x9x128x128xbf16, #tpu.memory_space<vmem>>, vector<1x1x128x128xbf16>
    %201 = vector.shape_cast %200 : vector<1x1x128x128xbf16> to vector<128x128xbf16>
    %cst_237 = arith.constant dense<0.000000e+00> : vector<80x128xf32>
    %202 = tpu.matmul %199, %201, %cst_237 {dimension_numbers = #tpu.dot_dimension_numbers<[1], [0], [0], [1], [0, 0, 1, 1], [], []>} : vector<80x128xbf16>, vector<128x128xbf16>, vector<80x128xf32> -> vector<80x128xf32>
    %203 = arith.addf %198, %202 : vector<80x128xf32>
    %c15_238 = arith.constant 15 : index
    %c0_239 = arith.constant 0 : index
    %204 = vector.load %arg8[%c15_238, %c0_239] : memref<102x128xbf16, #tpu.memory_space<vmem>>, vector<80x128xbf16>
    %c3_240 = arith.constant 3 : index
    %c3_241 = arith.constant 3 : index
    %c0_242 = arith.constant 0 : index
    %c0_243 = arith.constant 0 : index
    %205 = vector.load %arg2[%c3_240, %c3_241, %c0_242, %c0_243] : memref<5x9x128x128xbf16, #tpu.memory_space<vmem>>, vector<1x1x128x128xbf16>
    %206 = vector.shape_cast %205 : vector<1x1x128x128xbf16> to vector<128x128xbf16>
    %cst_244 = arith.constant dense<0.000000e+00> : vector<80x128xf32>
    %207 = tpu.matmul %204, %206, %cst_244 {dimension_numbers = #tpu.dot_dimension_numbers<[1], [0], [0], [1], [0, 0, 1, 1], [], []>} : vector<80x128xbf16>, vector<128x128xbf16>, vector<80x128xf32> -> vector<80x128xf32>
    %208 = arith.addf %203, %207 : vector<80x128xf32>
    %c16_245 = arith.constant 16 : index
    %c0_246 = arith.constant 0 : index
    %209 = vector.load %arg8[%c16_245, %c0_246] : memref<102x128xbf16, #tpu.memory_space<vmem>>, vector<80x128xbf16>
    %c3_247 = arith.constant 3 : index
    %c4_248 = arith.constant 4 : index
    %c0_249 = arith.constant 0 : index
    %c0_250 = arith.constant 0 : index
    %210 = vector.load %arg2[%c3_247, %c4_248, %c0_249, %c0_250] : memref<5x9x128x128xbf16, #tpu.memory_space<vmem>>, vector<1x1x128x128xbf16>
    %211 = vector.shape_cast %210 : vector<1x1x128x128xbf16> to vector<128x128xbf16>
    %cst_251 = arith.constant dense<0.000000e+00> : vector<80x128xf32>
    %212 = tpu.matmul %209, %211, %cst_251 {dimension_numbers = #tpu.dot_dimension_numbers<[1], [0], [0], [1], [0, 0, 1, 1], [], []>} : vector<80x128xbf16>, vector<128x128xbf16>, vector<80x128xf32> -> vector<80x128xf32>
    %213 = arith.addf %208, %212 : vector<80x128xf32>
    %c17_252 = arith.constant 17 : index
    %c0_253 = arith.constant 0 : index
    %214 = vector.load %arg8[%c17_252, %c0_253] : memref<102x128xbf16, #tpu.memory_space<vmem>>, vector<80x128xbf16>
    %c3_254 = arith.constant 3 : index
    %c5_255 = arith.constant 5 : index
    %c0_256 = arith.constant 0 : index
    %c0_257 = arith.constant 0 : index
    %215 = vector.load %arg2[%c3_254, %c5_255, %c0_256, %c0_257] : memref<5x9x128x128xbf16, #tpu.memory_space<vmem>>, vector<1x1x128x128xbf16>
    %216 = vector.shape_cast %215 : vector<1x1x128x128xbf16> to vector<128x128xbf16>
    %cst_258 = arith.constant dense<0.000000e+00> : vector<80x128xf32>
    %217 = tpu.matmul %214, %216, %cst_258 {dimension_numbers = #tpu.dot_dimension_numbers<[1], [0], [0], [1], [0, 0, 1, 1], [], []>} : vector<80x128xbf16>, vector<128x128xbf16>, vector<80x128xf32> -> vector<80x128xf32>
    %218 = arith.addf %213, %217 : vector<80x128xf32>
    %c20_259 = arith.constant 20 : index
    %c0_260 = arith.constant 0 : index
    %219 = vector.load %arg8[%c20_259, %c0_260] : memref<102x128xbf16, #tpu.memory_space<vmem>>, vector<80x128xbf16>
    %c3_261 = arith.constant 3 : index
    %c6_262 = arith.constant 6 : index
    %c0_263 = arith.constant 0 : index
    %c0_264 = arith.constant 0 : index
    %220 = vector.load %arg2[%c3_261, %c6_262, %c0_263, %c0_264] : memref<5x9x128x128xbf16, #tpu.memory_space<vmem>>, vector<1x1x128x128xbf16>
    %221 = vector.shape_cast %220 : vector<1x1x128x128xbf16> to vector<128x128xbf16>
    %cst_265 = arith.constant dense<0.000000e+00> : vector<80x128xf32>
    %222 = tpu.matmul %219, %221, %cst_265 {dimension_numbers = #tpu.dot_dimension_numbers<[1], [0], [0], [1], [0, 0, 1, 1], [], []>} : vector<80x128xbf16>, vector<128x128xbf16>, vector<80x128xf32> -> vector<80x128xf32>
    %223 = arith.addf %218, %222 : vector<80x128xf32>
    %c21_266 = arith.constant 21 : index
    %c0_267 = arith.constant 0 : index
    %224 = vector.load %arg8[%c21_266, %c0_267] : memref<102x128xbf16, #tpu.memory_space<vmem>>, vector<80x128xbf16>
    %c3_268 = arith.constant 3 : index
    %c7_269 = arith.constant 7 : index
    %c0_270 = arith.constant 0 : index
    %c0_271 = arith.constant 0 : index
    %225 = vector.load %arg2[%c3_268, %c7_269, %c0_270, %c0_271] : memref<5x9x128x128xbf16, #tpu.memory_space<vmem>>, vector<1x1x128x128xbf16>
    %226 = vector.shape_cast %225 : vector<1x1x128x128xbf16> to vector<128x128xbf16>
    %cst_272 = arith.constant dense<0.000000e+00> : vector<80x128xf32>
    %227 = tpu.matmul %224, %226, %cst_272 {dimension_numbers = #tpu.dot_dimension_numbers<[1], [0], [0], [1], [0, 0, 1, 1], [], []>} : vector<80x128xbf16>, vector<128x128xbf16>, vector<80x128xf32> -> vector<80x128xf32>
    %228 = arith.addf %223, %227 : vector<80x128xf32>
    %c22_273 = arith.constant 22 : index
    %c0_274 = arith.constant 0 : index
    %229 = vector.load %arg8[%c22_273, %c0_274] : memref<102x128xbf16, #tpu.memory_space<vmem>>, vector<80x128xbf16>
    %c3_275 = arith.constant 3 : index
    %c8_276 = arith.constant 8 : index
    %c0_277 = arith.constant 0 : index
    %c0_278 = arith.constant 0 : index
    %230 = vector.load %arg2[%c3_275, %c8_276, %c0_277, %c0_278] : memref<5x9x128x128xbf16, #tpu.memory_space<vmem>>, vector<1x1x128x128xbf16>
    %231 = vector.shape_cast %230 : vector<1x1x128x128xbf16> to vector<128x128xbf16>
    %cst_279 = arith.constant dense<0.000000e+00> : vector<80x128xf32>
    %232 = tpu.matmul %229, %231, %cst_279 {dimension_numbers = #tpu.dot_dimension_numbers<[1], [0], [0], [1], [0, 0, 1, 1], [], []>} : vector<80x128xbf16>, vector<128x128xbf16>, vector<80x128xf32> -> vector<80x128xf32>
    %233 = arith.addf %228, %232 : vector<80x128xf32>
    %c3_280 = arith.constant 3 : index
    %c0_281 = arith.constant 0 : index
    %c0_282 = arith.constant 0 : index
    %234 = vector.load %arg3[%c3_280, %c0_281, %c0_282] : memref<5x1x128xf32, #tpu.memory_space<vmem>>, vector<1x1x128xf32>
    %235 = vector.shape_cast %234 : vector<1x1x128xf32> to vector<1x128xf32>
    %236 = vector.broadcast %235 : vector<1x128xf32> to vector<80x128xf32>
    %237 = arith.mulf %233, %236 : vector<80x128xf32>
    %c3_283 = arith.constant 3 : index
    %c0_284 = arith.constant 0 : index
    %c0_285 = arith.constant 0 : index
    %238 = vector.load %arg4[%c3_283, %c0_284, %c0_285] : memref<5x1x128xf32, #tpu.memory_space<vmem>>, vector<1x1x128xf32>
    %239 = vector.shape_cast %238 : vector<1x1x128xf32> to vector<1x128xf32>
    %240 = vector.broadcast %239 : vector<1x128xf32> to vector<80x128xf32>
    %241 = arith.addf %237, %240 : vector<80x128xf32>
    %cst_286 = arith.constant 0.000000e+00 : f32
    %242 = vector.broadcast %cst_286 : f32 to vector<80x128xf32>
    %243 = arith.maximumf %241, %242 : vector<80x128xf32>
    %244 = arith.mulf %243, %10 : vector<80x128xf32>
    %245 = arith.truncf %244 : vector<80x128xf32> to vector<80x128xbf16>
    %c16_287 = arith.constant 16 : index
    %c0_288 = arith.constant 0 : index
    %246 = vector.load %arg7[%c16_287, %c0_288] : memref<102x128xbf16, #tpu.memory_space<vmem>>, vector<80x128xbf16>
    tpu.vector_store %arg7[%c16_287, %c0_288], %245 {strides = array<i32>} : memref<102x128xbf16, #tpu.memory_space<vmem>>, vector<80x128xbf16>,
    %cst_289 = arith.constant 0.000000e+00 : f32
    %247 = vector.broadcast %cst_289 : f32 to vector<80x128xf32>
    %c10_290 = arith.constant 10 : index
    %c0_291 = arith.constant 0 : index
    %248 = vector.load %arg7[%c10_290, %c0_291] : memref<102x128xbf16, #tpu.memory_space<vmem>>, vector<80x128xbf16>
    %c4_292 = arith.constant 4 : index
    %c0_293 = arith.constant 0 : index
    %c0_294 = arith.constant 0 : index
    %c0_295 = arith.constant 0 : index
    %249 = vector.load %arg2[%c4_292, %c0_293, %c0_294, %c0_295] : memref<5x9x128x128xbf16, #tpu.memory_space<vmem>>, vector<1x1x128x128xbf16>
    %250 = vector.shape_cast %249 : vector<1x1x128x128xbf16> to vector<128x128xbf16>
    %cst_296 = arith.constant dense<0.000000e+00> : vector<80x128xf32>
    %251 = tpu.matmul %248, %250, %cst_296 {dimension_numbers = #tpu.dot_dimension_numbers<[1], [0], [0], [1], [0, 0, 1, 1], [], []>} : vector<80x128xbf16>, vector<128x128xbf16>, vector<80x128xf32> -> vector<80x128xf32>
    %252 = arith.addf %247, %251 : vector<80x128xf32>
    %c11_297 = arith.constant 11 : index
    %c0_298 = arith.constant 0 : index
    %253 = vector.load %arg7[%c11_297, %c0_298] : memref<102x128xbf16, #tpu.memory_space<vmem>>, vector<80x128xbf16>
    %c4_299 = arith.constant 4 : index
    %c1_300 = arith.constant 1 : index
    %c0_301 = arith.constant 0 : index
    %c0_302 = arith.constant 0 : index
    %254 = vector.load %arg2[%c4_299, %c1_300, %c0_301, %c0_302] : memref<5x9x128x128xbf16, #tpu.memory_space<vmem>>, vector<1x1x128x128xbf16>
    %255 = vector.shape_cast %254 : vector<1x1x128x128xbf16> to vector<128x128xbf16>
    %cst_303 = arith.constant dense<0.000000e+00> : vector<80x128xf32>
    %256 = tpu.matmul %253, %255, %cst_303 {dimension_numbers = #tpu.dot_dimension_numbers<[1], [0], [0], [1], [0, 0, 1, 1], [], []>} : vector<80x128xbf16>, vector<128x128xbf16>, vector<80x128xf32> -> vector<80x128xf32>
    %257 = arith.addf %252, %256 : vector<80x128xf32>
    %c12_304 = arith.constant 12 : index
    %c0_305 = arith.constant 0 : index
    %258 = vector.load %arg7[%c12_304, %c0_305] : memref<102x128xbf16, #tpu.memory_space<vmem>>, vector<80x128xbf16>
    %c4_306 = arith.constant 4 : index
    %c2_307 = arith.constant 2 : index
    %c0_308 = arith.constant 0 : index
    %c0_309 = arith.constant 0 : index
    %259 = vector.load %arg2[%c4_306, %c2_307, %c0_308, %c0_309] : memref<5x9x128x128xbf16, #tpu.memory_space<vmem>>, vector<1x1x128x128xbf16>
    %260 = vector.shape_cast %259 : vector<1x1x128x128xbf16> to vector<128x128xbf16>
    %cst_310 = arith.constant dense<0.000000e+00> : vector<80x128xf32>
    %261 = tpu.matmul %258, %260, %cst_310 {dimension_numbers = #tpu.dot_dimension_numbers<[1], [0], [0], [1], [0, 0, 1, 1], [], []>} : vector<80x128xbf16>, vector<128x128xbf16>, vector<80x128xf32> -> vector<80x128xf32>
    %262 = arith.addf %257, %261 : vector<80x128xf32>
    %c15_311 = arith.constant 15 : index
    %c0_312 = arith.constant 0 : index
    %263 = vector.load %arg7[%c15_311, %c0_312] : memref<102x128xbf16, #tpu.memory_space<vmem>>, vector<80x128xbf16>
    %c4_313 = arith.constant 4 : index
    %c3_314 = arith.constant 3 : index
    %c0_315 = arith.constant 0 : index
    %c0_316 = arith.constant 0 : index
    %264 = vector.load %arg2[%c4_313, %c3_314, %c0_315, %c0_316] : memref<5x9x128x128xbf16, #tpu.memory_space<vmem>>, vector<1x1x128x128xbf16>
    %265 = vector.shape_cast %264 : vector<1x1x128x128xbf16> to vector<128x128xbf16>
    %cst_317 = arith.constant dense<0.000000e+00> : vector<80x128xf32>
    %266 = tpu.matmul %263, %265, %cst_317 {dimension_numbers = #tpu.dot_dimension_numbers<[1], [0], [0], [1], [0, 0, 1, 1], [], []>} : vector<80x128xbf16>, vector<128x128xbf16>, vector<80x128xf32> -> vector<80x128xf32>
    %267 = arith.addf %262, %266 : vector<80x128xf32>
    %c16_318 = arith.constant 16 : index
    %c0_319 = arith.constant 0 : index
    %268 = vector.load %arg7[%c16_318, %c0_319] : memref<102x128xbf16, #tpu.memory_space<vmem>>, vector<80x128xbf16>
    %c4_320 = arith.constant 4 : index
    %c4_321 = arith.constant 4 : index
    %c0_322 = arith.constant 0 : index
    %c0_323 = arith.constant 0 : index
    %269 = vector.load %arg2[%c4_320, %c4_321, %c0_322, %c0_323] : memref<5x9x128x128xbf16, #tpu.memory_space<vmem>>, vector<1x1x128x128xbf16>
    %270 = vector.shape_cast %269 : vector<1x1x128x128xbf16> to vector<128x128xbf16>
    %cst_324 = arith.constant dense<0.000000e+00> : vector<80x128xf32>
    %271 = tpu.matmul %268, %270, %cst_324 {dimension_numbers = #tpu.dot_dimension_numbers<[1], [0], [0], [1], [0, 0, 1, 1], [], []>} : vector<80x128xbf16>, vector<128x128xbf16>, vector<80x128xf32> -> vector<80x128xf32>
    %272 = arith.addf %267, %271 : vector<80x128xf32>
    %c17_325 = arith.constant 17 : index
    %c0_326 = arith.constant 0 : index
    %273 = vector.load %arg7[%c17_325, %c0_326] : memref<102x128xbf16, #tpu.memory_space<vmem>>, vector<80x128xbf16>
    %c4_327 = arith.constant 4 : index
    %c5_328 = arith.constant 5 : index
    %c0_329 = arith.constant 0 : index
    %c0_330 = arith.constant 0 : index
    %274 = vector.load %arg2[%c4_327, %c5_328, %c0_329, %c0_330] : memref<5x9x128x128xbf16, #tpu.memory_space<vmem>>, vector<1x1x128x128xbf16>
    %275 = vector.shape_cast %274 : vector<1x1x128x128xbf16> to vector<128x128xbf16>
    %cst_331 = arith.constant dense<0.000000e+00> : vector<80x128xf32>
    %276 = tpu.matmul %273, %275, %cst_331 {dimension_numbers = #tpu.dot_dimension_numbers<[1], [0], [0], [1], [0, 0, 1, 1], [], []>} : vector<80x128xbf16>, vector<128x128xbf16>, vector<80x128xf32> -> vector<80x128xf32>
    %277 = arith.addf %272, %276 : vector<80x128xf32>
    %c20_332 = arith.constant 20 : index
    %c0_333 = arith.constant 0 : index
    %278 = vector.load %arg7[%c20_332, %c0_333] : memref<102x128xbf16, #tpu.memory_space<vmem>>, vector<80x128xbf16>
    %c4_334 = arith.constant 4 : index
    %c6_335 = arith.constant 6 : index
    %c0_336 = arith.constant 0 : index
    %c0_337 = arith.constant 0 : index
    %279 = vector.load %arg2[%c4_334, %c6_335, %c0_336, %c0_337] : memref<5x9x128x128xbf16, #tpu.memory_space<vmem>>, vector<1x1x128x128xbf16>
    %280 = vector.shape_cast %279 : vector<1x1x128x128xbf16> to vector<128x128xbf16>
    %cst_338 = arith.constant dense<0.000000e+00> : vector<80x128xf32>
    %281 = tpu.matmul %278, %280, %cst_338 {dimension_numbers = #tpu.dot_dimension_numbers<[1], [0], [0], [1], [0, 0, 1, 1], [], []>} : vector<80x128xbf16>, vector<128x128xbf16>, vector<80x128xf32> -> vector<80x128xf32>
    %282 = arith.addf %277, %281 : vector<80x128xf32>
    %c21_339 = arith.constant 21 : index
    %c0_340 = arith.constant 0 : index
    %283 = vector.load %arg7[%c21_339, %c0_340] : memref<102x128xbf16, #tpu.memory_space<vmem>>, vector<80x128xbf16>
    %c4_341 = arith.constant 4 : index
    %c7_342 = arith.constant 7 : index
    %c0_343 = arith.constant 0 : index
    %c0_344 = arith.constant 0 : index
    %284 = vector.load %arg2[%c4_341, %c7_342, %c0_343, %c0_344] : memref<5x9x128x128xbf16, #tpu.memory_space<vmem>>, vector<1x1x128x128xbf16>
    %285 = vector.shape_cast %284 : vector<1x1x128x128xbf16> to vector<128x128xbf16>
    %cst_345 = arith.constant dense<0.000000e+00> : vector<80x128xf32>
    %286 = tpu.matmul %283, %285, %cst_345 {dimension_numbers = #tpu.dot_dimension_numbers<[1], [0], [0], [1], [0, 0, 1, 1], [], []>} : vector<80x128xbf16>, vector<128x128xbf16>, vector<80x128xf32> -> vector<80x128xf32>
    %287 = arith.addf %282, %286 : vector<80x128xf32>
    %c22_346 = arith.constant 22 : index
    %c0_347 = arith.constant 0 : index
    %288 = vector.load %arg7[%c22_346, %c0_347] : memref<102x128xbf16, #tpu.memory_space<vmem>>, vector<80x128xbf16>
    %c4_348 = arith.constant 4 : index
    %c8_349 = arith.constant 8 : index
    %c0_350 = arith.constant 0 : index
    %c0_351 = arith.constant 0 : index
    %289 = vector.load %arg2[%c4_348, %c8_349, %c0_350, %c0_351] : memref<5x9x128x128xbf16, #tpu.memory_space<vmem>>, vector<1x1x128x128xbf16>
    %290 = vector.shape_cast %289 : vector<1x1x128x128xbf16> to vector<128x128xbf16>
    %cst_352 = arith.constant dense<0.000000e+00> : vector<80x128xf32>
    %291 = tpu.matmul %288, %290, %cst_352 {dimension_numbers = #tpu.dot_dimension_numbers<[1], [0], [0], [1], [0, 0, 1, 1], [], []>} : vector<80x128xbf16>, vector<128x128xbf16>, vector<80x128xf32> -> vector<80x128xf32>
    %292 = arith.addf %287, %291 : vector<80x128xf32>
    %c4_353 = arith.constant 4 : index
    %c0_354 = arith.constant 0 : index
    %c0_355 = arith.constant 0 : index
    %293 = vector.load %arg3[%c4_353, %c0_354, %c0_355] : memref<5x1x128xf32, #tpu.memory_space<vmem>>, vector<1x1x128xf32>
    %294 = vector.shape_cast %293 : vector<1x1x128xf32> to vector<1x128xf32>
    %295 = vector.broadcast %294 : vector<1x128xf32> to vector<80x128xf32>
    %296 = arith.mulf %292, %295 : vector<80x128xf32>
    %c4_356 = arith.constant 4 : index
    %c0_357 = arith.constant 0 : index
    %c0_358 = arith.constant 0 : index
    %297 = vector.load %arg4[%c4_356, %c0_357, %c0_358] : memref<5x1x128xf32, #tpu.memory_space<vmem>>, vector<1x1x128xf32>
    %298 = vector.shape_cast %297 : vector<1x1x128xf32> to vector<1x128xf32>
    %299 = vector.broadcast %298 : vector<1x128xf32> to vector<80x128xf32>
    %300 = arith.addf %296, %299 : vector<80x128xf32>
    %c0_359 = arith.constant 0 : index
    %c0_360 = arith.constant 0 : index
    %c0_361 = arith.constant 0 : index
    %301 = vector.load %arg1[%c0_359, %c0_360, %c0_361] : memref<1x80x128xf32, #tpu.memory_space<vmem>>, vector<1x80x128xf32>
    %302 = vector.shape_cast %301 : vector<1x80x128xf32> to vector<80x128xf32>
    %303 = arith.subf %302, %300 : vector<80x128xf32>
    %304 = arith.mulf %303, %10 : vector<80x128xf32>
    %c0_362 = arith.constant 0 : index
    %c0_363 = arith.constant 0 : index
    %c0_364 = arith.constant 0 : index
    %305 = vector.load %arg6[%c0_362, %c0_363, %c0_364] : memref<1x80x128xf32, #tpu.memory_space<vmem>>, vector<1x80x128xf32>
    %306 = vector.shape_cast %305 : vector<1x80x128xf32> to vector<80x128xf32>
    %307 = vector.shape_cast %304 : vector<80x128xf32> to vector<1x80x128xf32>
    tpu.vector_store %arg6[%c0_362, %c0_363, %c0_364], %307 {strides = array<i32>} : memref<1x80x128xf32, #tpu.memory_space<vmem>>, vector<1x80x128xf32>,
    return
  }
  func.func @transform_0(%arg0: i32) -> (i32, i32, i32) {
    %c0_i32 = arith.constant 0 : i32
    %c0_i32_0 = arith.constant 0 : i32
    %c0_i32_1 = arith.constant 0 : i32
    return %arg0, %c0_i32, %c0_i32_0 : i32, i32, i32
  }
  func.func @transform_1(%arg0: i32) -> (i32, i32, i32, i32) {
    %c0_i32 = arith.constant 0 : i32
    %c0_i32_0 = arith.constant 0 : i32
    %c0_i32_1 = arith.constant 0 : i32
    %c0_i32_2 = arith.constant 0 : i32
    %c0_i32_3 = arith.constant 0 : i32
    return %c0_i32, %c0_i32_0, %c0_i32_1, %c0_i32_2 : i32, i32, i32, i32
  }
  func.func @transform_2(%arg0: i32) -> (i32, i32, i32) {
    %c0_i32 = arith.constant 0 : i32
    %c0_i32_0 = arith.constant 0 : i32
    %c0_i32_1 = arith.constant 0 : i32
    %c0_i32_2 = arith.constant 0 : i32
    return %c0_i32, %c0_i32_0, %c0_i32_1 : i32, i32, i32
  }
  func.func @transform_3(%arg0: i32) -> (i32, i32, i32) {
    %c0_i32 = arith.constant 0 : i32
    %c0_i32_0 = arith.constant 0 : i32
    %c0_i32_1 = arith.constant 0 : i32
    %c0_i32_2 = arith.constant 0 : i32
    return %c0_i32, %c0_i32_0, %c0_i32_1 : i32, i32, i32
  }
  func.func @transform_4(%arg0: i32) -> (i32, i32) {
    %c0_i32 = arith.constant 0 : i32
    %c0_i32_0 = arith.constant 0 : i32
    %c0_i32_1 = arith.constant 0 : i32
    return %c0_i32, %c0_i32_0 : i32, i32
  }
  func.func @transform_5(%arg0: i32) -> (i32, i32, i32) {
    %c0_i32 = arith.constant 0 : i32
    %c0_i32_0 = arith.constant 0 : i32
    %c0_i32_1 = arith.constant 0 : i32
    return %arg0, %c0_i32, %c0_i32_0 : i32, i32, i32
  }
}

</mosaic_0001>

<llo_original>
// kernel: dncnn_forward.1
$region0: #{dncnn_forward.1}
  #allocation0 [shape = 'u32[]', space=smem, size = 0x4, offset = 0x4, fixed_abs, tag = 'smem constant byte address 0x4 - core index']
  #allocation1 [shape = 'u32[72,128]{1,0:T(1,128)}', space=vmem, size = 0x9000, scoped, tag = 'internal scratch']
  #allocation2 [shape = 'bf16[102,128]{1,0:T(8,128)(2,1)}', space=vmem, size = 0x6800, scoped, tag = 'scratch operand']
  #allocation3 [shape = 'bf16[102,128]{1,0:T(8,128)(2,1)}', space=vmem, size = 0x6800, scoped, tag = 'scratch operand']
  %s0 = inlined_call_operand.vmem [shape: f32[2,80,128], index: 0, kind: input, shape index: {}]
  %s1 = inlined_call_operand.hbm [shape: bf16[5,9,128,128], index: 1, kind: input, shape index: {}]
  %s2 = inlined_call_operand.hbm [shape: f32[5,1,128], index: 2, kind: input, shape index: {}]
  %s3 = inlined_call_operand.hbm [shape: f32[5,1,128], index: 3, kind: input, shape index: {}]
  %s4 = inlined_call_operand.hbm [shape: f32[80,128], index: 4, kind: input, shape index: {}]
  %s5 = inlined_call_operand.vmem [shape: f32[2,80,128], index: 5, kind: output, shape index: {}]
  %s6 = sld [smem:[#allocation0]]
  $region69: #{dncnn_forward.1} parent=0
    _
  %s8 = ssub.s32 1, %s6
  %s9 = scalar_select 0, %s8, %s6
  $region1: #{dncnn_forward.1} parent=0
    #allocation4 [shape = 'u8[1474560]{0}', space=vmem, size = 0x168000, scoped, tag = 'input window, operand 1, single buffered']
    #allocation5 [shape = 's32[2]{0}', space=sflag, size = 0x8, scoped, tag = 'scoped memory for dncnn_forward.1']
    #allocation6 [shape = 'u8[2560]{0}', space=vmem, size = 0xc00, scoped, tag = 'input window, operand 2, single buffered']
    #allocation7 [shape = 's32[1]{0}', space=sflag, size = 0x4, scoped, tag = 'scoped memory for dncnn_forward.1']
    #allocation8 [shape = 'u8[2560]{0}', space=vmem, size = 0xc00, scoped, tag = 'input window, operand 3, single buffered']
    #allocation9 [shape = 'u8[40960]{0}', space=vmem, size = 0xa000, scoped, tag = 'input window, operand 4, single buffered']
    #allocation10 [shape = 's32[1]{0}', space=sflag, size = 0x4, scoped, tag = 'scoped memory for dncnn_forward.1']
    %10 = vsyncpa [#allocation5], 0
    %11 = vsyncpa [#allocation7], 0
    %12 = vsyncpa [#allocation10], 0
    loop: start=0, step=1, limit=4
    $region2: #{dncnn_forward.1} parent=1 // loop_pre_header
      _
    $region3: #{dncnn_forward.1} parent=1 // loop_header
      %s14 = sphi 0, %s18
      %p15 = scmp.ge.s32.totalorder %s14, 4
      %s24 = sphi 0, %s26
      %s27 = sphi 0, %s24
      %s28 = sphi 0, %s27
      %s44 = sphi 0, %s28
      %s48 = sphi 0, %s48
      %s50 = sphi 0, %s48
      %s51 = sphi 0, %s50
      %s65 = sphi 0, %s51
      %s69 = sphi 0, %s69
      %s71 = sphi 0, %s69
      %s72 = sphi 0, %s71
      %s86 = sphi 0, %s72
      %s90 = sphi 0, %s90
      %s92 = sphi 0, %s90
      %s93 = sphi 0, %s92
      %s107 = sphi 0, %s93
      %s111 = sphi 0, %s111
      %s113 = sphi 0, %s111
      %s114 = sphi 0, %s113
      %s128 = sphi 0, %s114
      %s134 = sphi 0, %s136
      %s137 = sphi 0, %s134
      %s138 = sphi 0, %s137
      %s154 = sphi 0, %s138
    $region4: #{dncnn_forward.1} parent=1 // loop_header_branch
      %17 = sbr.rel (%p15) target = $region8
    $region5: #{dncnn_forward.1} parent=1 // loop_body
      %s19 = ssub.s32 %s14, 1
      %s20 = ssub.s32 %s14, 2
      %s21 = sadd.s32 %s14, 1
      %s22 = ssub.s32 %s14, %s21
      %p23 = scmp.eq.s32.totalorder %s22, 0
      %s25 = sadd.s32 %s24, 1
      %s26 = scalar_select %p23, %s24, %s25
      %p29 = pneg %p23
      %p30 = scmp.eq.s32.totalorder %s14, 1
      %p31 = por %p29, %p30
      %p32 = scmp.ne.s32.totalorder %s24, %s27
      %p33 = scmp.eq.s32.totalorder %s14, 0
      %p34 = por %p32, %p33
      %p35 = scmp.ne.s32.totalorder %s24, %s27
      %p36 = scmp.eq.s32.totalorder %s19, 1
      %p37 = por %p35, %p36
      %p38 = scmp.ne.s32.totalorder %s27, %s28
      %p39 = scmp.eq.s32.totalorder %s19, 0
      %p40 = por %p38, %p39
      %p41 = scmp.ne.s32.totalorder %s27, %s28
      %p42 = scmp.eq.s32.totalorder %s20, 1
      %p43 = por %p41, %p42
      %p45 = scmp.ne.s32.totalorder %s28, %s44
      %p46 = scmp.eq.s32.totalorder %s20, 0
      %p47 = por %p45, %p46
      %s49 = sadd.s32 %s48, 1
      %p52 = scmp.eq.s32.totalorder %s14, 1
      %p53 = scmp.ne.s32.totalorder %s48, %s50
      %p54 = scmp.eq.s32.totalorder %s14, 0
      %p55 = por %p53, %p54
      %p56 = scmp.ne.s32.totalorder %s48, %s50
      %p57 = scmp.eq.s32.totalorder %s19, 1
      %p58 = por %p56, %p57
      %p59 = scmp.ne.s32.totalorder %s50, %s51
      %p60 = scmp.eq.s32.totalorder %s19, 0
      %p61 = por %p59, %p60
      %p62 = scmp.ne.s32.totalorder %s50, %s51
      %p63 = scmp.eq.s32.totalorder %s20, 1
      %p64 = por %p62, %p63
      %p66 = scmp.ne.s32.totalorder %s51, %s65
      %p67 = scmp.eq.s32.totalorder %s20, 0
      %p68 = por %p66, %p67
      %s70 = sadd.s32 %s69, 1
      %p73 = scmp.eq.s32.totalorder %s14, 1
      %p74 = scmp.ne.s32.totalorder %s69, %s71
      %p75 = scmp.eq.s32.totalorder %s14, 0
      %p76 = por %p74, %p75
      %p77 = scmp.ne.s32.totalorder %s69, %s71
      %p78 = scmp.eq.s32.totalorder %s19, 1
      %p79 = por %p77, %p78
      %p80 = scmp.ne.s32.totalorder %s71, %s72
      %p81 = scmp.eq.s32.totalorder %s19, 0
      %p82 = por %p80, %p81
      %p83 = scmp.ne.s32.totalorder %s71, %s72
      %p84 = scmp.eq.s32.totalorder %s20, 1
      %p85 = por %p83, %p84
      %p87 = scmp.ne.s32.totalorder %s72, %s86
      %p88 = scmp.eq.s32.totalorder %s20, 0
      %p89 = por %p87, %p88
      %s91 = sadd.s32 %s90, 1
      %p94 = scmp.eq.s32.totalorder %s14, 1
      %p95 = scmp.ne.s32.totalorder %s90, %s92
      %p96 = scmp.eq.s32.totalorder %s14, 0
      %p97 = por %p95, %p96
      %p98 = scmp.ne.s32.totalorder %s90, %s92
      %p99 = scmp.eq.s32.totalorder %s19, 1
      %p100 = por %p98, %p99
      %p101 = scmp.ne.s32.totalorder %s92, %s93
      %p102 = scmp.eq.s32.totalorder %s19, 0
      %p103 = por %p101, %p102
      %p104 = scmp.ne.s32.totalorder %s92, %s93
      %p105 = scmp.eq.s32.totalorder %s20, 1
      %p106 = por %p104, %p105
      %p108 = scmp.ne.s32.totalorder %s93, %s107
      %p109 = scmp.eq.s32.totalorder %s20, 0
      %p110 = por %p108, %p109
      %s112 = sadd.s32 %s111, 1
      %p115 = scmp.eq.s32.totalorder %s14, 1
      %p116 = scmp.ne.s32.totalorder %s111, %s113
      %p117 = scmp.eq.s32.totalorder %s14, 0
      %p118 = por %p116, %p117
      %p119 = scmp.ne.s32.totalorder %s111, %s113
      %p120 = scmp.eq.s32.totalorder %s19, 1
      %p121 = por %p119, %p120
      %p122 = scmp.ne.s32.totalorder %s113, %s114
      %p123 = scmp.eq.s32.totalorder %s19, 0
      %p124 = por %p122, %p123
      %p125 = scmp.ne.s32.totalorder %s113, %s114
      %p126 = scmp.eq.s32.totalorder %s20, 1
      %p127 = por %p125, %p126
      %p129 = scmp.ne.s32.totalorder %s114, %s128
      %p130 = scmp.eq.s32.totalorder %s20, 0
      %p131 = por %p129, %p130
      %s132 = ssub.s32 %s14, %s21
      %p133 = scmp.eq.s32.totalorder %s132, 0
      %s135 = sadd.s32 %s134, 1
      %s136 = scalar_select %p133, %s134, %s135
      %p139 = pneg %p133
      %p140 = scmp.eq.s32.totalorder %s14, 1
      %p141 = por %p139, %p140
      %p142 = scmp.ne.s32.totalorder %s134, %s137
      %p143 = scmp.eq.s32.totalorder %s14, 0
      %p144 = por %p142, %p143
      %p145 = scmp.ne.s32.totalorder %s134, %s137
      %p146 = scmp.eq.s32.totalorder %s19, 1
      %p147 = por %p145, %p146
      %p148 = scmp.ne.s32.totalorder %s137, %s138
      %p149 = scmp.eq.s32.totalorder %s19, 0
      %p150 = por %p148, %p149
      %p151 = scmp.ne.s32.totalorder %s137, %s138
      %p152 = scmp.eq.s32.totalorder %s20, 1
      %p153 = por %p151, %p152
      %p155 = scmp.ne.s32.totalorder %s138, %s154
      %p156 = scmp.eq.s32.totalorder %s20, 0
      %p157 = por %p155, %p156
      %p158 = scmp.le.s32.totalorder 1, %s14
      %p159 = scmp.lt.s32.totalorder %s14, 3
      %p160 = pnand %p158, %p159
      %p161 = pneg %p160
      // Predicated region
      $region9: #{dncnn_forward.1} parent=5 // pred_check
        _
      $region10: #{dncnn_forward.1} parent=5 // pred_check_branch
        %163 = sbr.rel (%p160) target = $region12
      $region11: #{dncnn_forward.1} parent=5 // pred_region
        %s164 = ssub.s32 %s14, 1
        // Predicated region
        $region13: #{dncnn_forward.1} parent=11 // pred_check
          %p165 = pneg %p61
        $region14: #{dncnn_forward.1} parent=11 // pred_check_branch
          %167 = sbr.rel (%p165) target = $region16
        $region15: #{dncnn_forward.1} parent=11 // pred_region
          %169 = vsyncadd [#allocation5], 0
          %s170 = sshll.u32 %s1, 4
          %s171 = int_to_ptr.hbm [resolvable:$true] %s170
          %s172 = sshll.u32 [#allocation4], 4
          %s173 = int_to_ptr.vmem [resolvable:$true] %s172
          %178 = dma.hbm_to_vmem [thread:$0]  %s171, 46080, %s173, [#allocation5], 64, 64, 4
        $region16: #{dncnn_forward.1} parent=11 // pred_fallthru
          _
        // Predicated region
        $region17: #{dncnn_forward.1} parent=11 // pred_check
          %p179 = pneg %p82
        $region18: #{dncnn_forward.1} parent=11 // pred_check_branch
          %181 = sbr.rel (%p179) target = $region20
        $region19: #{dncnn_forward.1} parent=11 // pred_region
          %183 = vsyncadd [#allocation7], 0
          %s184 = sshll.u32 %s2, 4
          %s185 = int_to_ptr.hbm [resolvable:$true] %s184
          %s186 = sshll.u32 [#allocation6], 4
          %s187 = int_to_ptr.vmem [resolvable:$true] %s186
          %192 = dma.hbm_to_vmem [thread:$0]  %s185, 80, %s187, [#allocation7], 16, 16, 1
        $region20: #{dncnn_forward.1} parent=11 // pred_fallthru
          _
        // Predicated region
        $region21: #{dncnn_forward.1} parent=11 // pred_check
          %p193 = pneg %p103
        $region22: #{dncnn_forward.1} parent=11 // pred_check_branch
          %195 = sbr.rel (%p193) target = $region24
        $region23: #{dncnn_forward.1} parent=11 // pred_region
          %197 = vsyncadd [#allocation7], 0
          %s198 = sshll.u32 %s3, 4
          %s199 = int_to_ptr.hbm [resolvable:$true] %s198
          %s200 = sshll.u32 [#allocation8], 4
          %s201 = int_to_ptr.vmem [resolvable:$true] %s200
          %206 = dma.hbm_to_vmem [thread:$0]  %s199, 80, %s201, [#allocation7], 16, 16, 1
        $region24: #{dncnn_forward.1} parent=11 // pred_fallthru
          _
        // Predicated region
        $region25: #{dncnn_forward.1} parent=11 // pred_check
          %p207 = pneg %p124
        $region26: #{dncnn_forward.1} parent=11 // pred_check_branch
          %209 = sbr.rel (%p207) target = $region28
        $region27: #{dncnn_forward.1} parent=11 // pred_region
          %211 = vsyncadd [#allocation10], 0
          %s212 = sshll.u32 %s4, 4
          %s213 = int_to_ptr.hbm [resolvable:$true] %s212
          %s214 = sshll.u32 [#allocation9], 4
          %s215 = int_to_ptr.vmem [resolvable:$true] %s214
          %220 = dma.hbm_to_vmem [thread:$0]  %s213, 1280, %s215, [#allocation10], 128, 128, 8
        $region28: #{dncnn_forward.1} parent=11 // pred_fallthru
          _
      $region12: #{dncnn_forward.1} parent=5 // pred_fallthru
        _
      %p221 = scmp.lt.s32.totalorder %s14, 2
      // Predicated region
      $region29: #{dncnn_forward.1} parent=5 // pred_check
        %p222 = pneg %p221
      $region30: #{dncnn_forward.1} parent=5 // pred_check_branch
        %224 = sbr.rel (%p222) target = $region32
      $region31: #{dncnn_forward.1} parent=5 // pred_region
        // Predicated region
        $region33: #{dncnn_forward.1} parent=31 // pred_check
          %p225 = pneg %p34
        $region34: #{dncnn_forward.1} parent=31 // pred_check_branch
          %227 = sbr.rel (%p225) target = $region36
        $region35: #{dncnn_forward.1} parent=31 // pred_region
          %p228 = scmp.lt.s32.totalorder %s14, 1
          %s229 = scalar_select %p228, %s14, 1
          %s230 = smul.addr %s229, 10
          %s231 = smul.addr %s230, 8
          %s232 = scalar_lea.vmem %s0, %s231
        $region36: #{dncnn_forward.1} parent=31 // pred_fallthru
          _
      $region32: #{dncnn_forward.1} parent=5 // pred_fallthru
        _
      %p233 = scmp.le.s32.totalorder 1, %s14
      %p234 = scmp.lt.s32.totalorder %s14, 3
      %p235 = pnand %p233, %p234
      %p236 = pneg %p235
      // Predicated region
      $region37: #{dncnn_forward.1} parent=5 // pred_check
        _
      $region38: #{dncnn_forward.1} parent=5 // pred_check_branch
        %238 = sbr.rel (%p235) target = $region40
      $region39: #{dncnn_forward.1} parent=5 // pred_region
        %s239 = ssub.s32 %s14, 1
        // Predicated region
        $region41: #{dncnn_forward.1} parent=39 // pred_check
          %p240 = pneg %p61
        $region42: #{dncnn_forward.1} parent=39 // pred_check_branch
          %242 = sbr.rel (%p240) target = $region44
        $region43: #{dncnn_forward.1} parent=39 // pred_region
          %244 = dma.done [#allocation5], 46080
        $region44: #{dncnn_forward.1} parent=39 // pred_fallthru
          _
        // Predicated region
        $region45: #{dncnn_forward.1} parent=39 // pred_check
          %p245 = pneg %p82
        $region46: #{dncnn_forward.1} parent=39 // pred_check_branch
          %247 = sbr.rel (%p245) target = $region48
        $region47: #{dncnn_forward.1} parent=39 // pred_region
          %249 = dma.done [#allocation7], 80
        $region48: #{dncnn_forward.1} parent=39 // pred_fallthru
          _
        // Predicated region
        $region49: #{dncnn_forward.1} parent=39 // pred_check
          %p250 = pneg %p103
        $region50: #{dncnn_forward.1} parent=39 // pred_check_branch
          %252 = sbr.rel (%p250) target = $region52
        $region51: #{dncnn_forward.1} parent=39 // pred_region
          %254 = dma.done [#allocation7], 80
        $region52: #{dncnn_forward.1} parent=39 // pred_fallthru
          _
        // Predicated region
        $region53: #{dncnn_forward.1} parent=39 // pred_check
          %p255 = pneg %p124
        $region54: #{dncnn_forward.1} parent=39 // pred_check_branch
          %257 = sbr.rel (%p255) target = $region56
        $region55: #{dncnn_forward.1} parent=39 // pred_region
          %259 = dma.done [#allocation10], 1280
        $region56: #{dncnn_forward.1} parent=39 // pred_fallthru
          _
        %p260 = scmp.lt.s32.totalorder %s19, 1
        %s261 = scalar_select %p260, %s19, 1
        %s262 = smul.addr %s261, 10
        %s263 = smul.addr %s262, 8
        %s264 = scalar_lea.vmem %s0, %s263
        %p265 = pneg %p40
        %p266 = pneg %p37
        %p267 = pneg %p61
        %p268 = pneg %p58
        %p269 = pneg %p82
        %p270 = pneg %p79
        %p271 = pneg %p103
        %p272 = pneg %p100
        %p273 = pneg %p124
        %p274 = pneg %p121
        %p275 = pneg %p150
        %p276 = pneg %p147
        %p277 = scmp.lt.s32.totalorder %s19, 1
        %s278 = scalar_select %p277, %s19, 1
        %s279 = smul.addr %s278, 10
        %s280 = smul.addr %s279, 8
        %s281 = scalar_lea.vmem %s5, %s280
        %p282 = scmp.lt.s32.totalorder %s19, 1
        %s283 = scalar_select %p282, %s19, 1
        %s284 = smul.addr %s283, 10
        %s285 = smul.addr %s284, 8
        %s286 = scalar_lea.vmem %s0, %s285
        %p287 = scmp.lt.s32.totalorder %s19, 1
        %s288 = scalar_select %p287, %s19, 1
        %s289 = smul.addr %s288, 10
        %s290 = smul.addr %s289, 8
        %s291 = scalar_lea.vmem %s5, %s290
        %293 = vst [vmem:[#allocation2] sm:$0xf] 0
        %294 = vst [vmem:[#allocation2 + $0x4] sm:$0xf] 0
        %295 = vst [vmem:[#allocation3] sm:$0xf] 0
        %296 = vst [vmem:[#allocation3 + $0x4] sm:$0xf] 0
        %297 = vst [vmem:[#allocation2 + $0x30] sm:$0x7] 0
        %298 = vst [vmem:[#allocation3 + $0x30] sm:$0x7] 0
        %v299 = vld [vmem:[%s286] sm:$0xff]
        %v300 = vld [vmem:[%s286 + $0x8] sm:$0xff]
        %v301 = vld [vmem:[%s286 + $0x10] sm:$0xff]
        %v302 = vld [vmem:[%s286 + $0x18] sm:$0xff]
        %v303 = vld [vmem:[%s286 + $0x20] sm:$0xff]
        %v304 = vld [vmem:[%s286 + $0x28] sm:$0xff]
        %v305 = vld [vmem:[%s286 + $0x30] sm:$0xff]
        %v306 = vld [vmem:[%s286 + $0x38] sm:$0xff]
        %v307 = vld [vmem:[%s286 + $0x40] sm:$0xff]
        %v308 = vld [vmem:[%s286 + $0x48] sm:$0xff]
        %v309 = vpack.c.bf16 %v299, %v299
        %v310 = vpack.c.bf16 %v300, %v300
        %v311 = vpack.c.bf16 %v301, %v301
        %v312 = vpack.c.bf16 %v302, %v302
        %v313 = vpack.c.bf16 %v303, %v303
        %v314 = vpack.c.bf16 %v304, %v304
        %v315 = vpack.c.bf16 %v305, %v305
        %v316 = vpack.c.bf16 %v306, %v306
        %v317 = vpack.c.bf16 %v307, %v307
        %v318 = vpack.c.bf16 %v308, %v308
        %319 = vst [vmem:[#allocation2 + $0x8] sm:$0xf] %v309
        %320 = vst [vmem:[#allocation2 + $0xc] sm:$0xf] %v310
        %321 = vst [vmem:[#allocation2 + $0x10] sm:$0xf] %v311
        %322 = vst [vmem:[#allocation2 + $0x14] sm:$0xf] %v312
        %323 = vst [vmem:[#allocation2 + $0x18] sm:$0xf] %v313
        %324 = vst [vmem:[#allocation2 + $0x1c] sm:$0xf] %v314
        %325 = vst [vmem:[#allocation2 + $0x20] sm:$0xf] %v315
        %326 = vst [vmem:[#allocation2 + $0x24] sm:$0xf] %v316
        %327 = vst [vmem:[#allocation2 + $0x28] sm:$0xf] %v317
        %328 = vst [vmem:[#allocation2 + $0x2c] sm:$0xf] %v318
        %v329 = vld [vmem:[#allocation9] sm:$0xff]
        %v330 = vld [vmem:[#allocation9 + $0x8] sm:$0xff]
        %v331 = vld [vmem:[#allocation9 + $0x10] sm:$0xff]
        %v332 = vld [vmem:[#allocation9 + $0x18] sm:$0xff]
        %v333 = vld [vmem:[#allocation9 + $0x20] sm:$0xff]
        %v334 = vld [vmem:[#allocation9 + $0x28] sm:$0xff]
        %v335 = vld [vmem:[#allocation9 + $0x30] sm:$0xff]
        %v336 = vld [vmem:[#allocation9 + $0x38] sm:$0xff]
        %v337 = vld [vmem:[#allocation9 + $0x40] sm:$0xff]
        %v338 = vld [vmem:[#allocation9 + $0x48] sm:$0xff]
        %v339 = vld [vmem:[#allocation2 + $0x4] sm:$0xe]
        %v340 = vld [vmem:[#allocation2 + $0x8] sm:$0xf]
        %v341 = vld [vmem:[#allocation2 + $0xc] sm:$0xf]
        %v342 = vld [vmem:[#allocation2 + $0x10] sm:$0xf]
        %v343 = vld [vmem:[#allocation2 + $0x14] sm:$0xf]
        %v344 = vld [vmem:[#allocation2 + $0x18] sm:$0xf]
        %v345 = vld [vmem:[#allocation2 + $0x1c] sm:$0xf]
        %v346 = vld [vmem:[#allocation2 + $0x20] sm:$0xf]
        %v347 = vld [vmem:[#allocation2 + $0x24] sm:$0xf]
        %v348 = vld [vmem:[#allocation2 + $0x28] sm:$0xf]
        %v349 = vld [vmem:[#allocation2 + $0x2c] sm:$0x1]
        %v350 = vld [vmem:[#allocation4] sm:$0xf]
        %v351 = vld [vmem:[#allocation4 + $0x4] sm:$0xf]
        %v352 = vld [vmem:[#allocation4 + $0x8] sm:$0xf]
        %v353 = vld [vmem:[#allocation4 + $0xc] sm:$0xf]
        %v354 = vld [vmem:[#allocation4 + $0x10] sm:$0xf]
        %v355 = vld [vmem:[#allocation4 + $0x14] sm:$0xf]
        %v356 = vld [vmem:[#allocation4 + $0x18] sm:$0xf]
        %v357 = vld [vmem:[#allocation4 + $0x1c] sm:$0xf]
        %v358 = vld [vmem:[#allocation4 + $0x20] sm:$0xf]
        %v359 = vld [vmem:[#allocation4 + $0x24] sm:$0xf]
        %v360 = vld [vmem:[#allocation4 + $0x28] sm:$0xf]
        %v361 = vld [vmem:[#allocation4 + $0x2c] sm:$0xf]
        %v362 = vld [vmem:[#allocation4 + $0x30] sm:$0xf]
        %v363 = vld [vmem:[#allocation4 + $0x34] sm:$0xf]
        %v364 = vld [vmem:[#allocation4 + $0x38] sm:$0xf]
        %v365 = vld [vmem:[#allocation4 + $0x3c] sm:$0xf]
        %v366 = vld [vmem:[#allocation2 + $0x2c] sm:$0x3]
        %s367 = scalar_lea.vmem [#allocation4], 64
        %v368 = vld [vmem:[%s367] sm:$0xf]
        %v369 = vld [vmem:[%s367 + $0x4] sm:$0xf]
        %v370 = vld [vmem:[%s367 + $0x8] sm:$0xf]
        %v371 = vld [vmem:[%s367 + $0xc] sm:$0xf]
        %v372 = vld [vmem:[%s367 + $0x10] sm:$0xf]
        %v373 = vld [vmem:[%s367 + $0x14] sm:$0xf]
        %v374 = vld [vmem:[%s367 + $0x18] sm:$0xf]
        %v375 = vld [vmem:[%s367 + $0x1c] sm:$0xf]
        %v376 = vld [vmem:[%s367 + $0x20] sm:$0xf]
        %v377 = vld [vmem:[%s367 + $0x24] sm:$0xf]
        %v378 = vld [vmem:[%s367 + $0x28] sm:$0xf]
        %v379 = vld [vmem:[%s367 + $0x2c] sm:$0xf]
        %v380 = vld [vmem:[%s367 + $0x30] sm:$0xf]
        %v381 = vld [vmem:[%s367 + $0x34] sm:$0xf]
        %v382 = vld [vmem:[%s367 + $0x38] sm:$0xf]
        %v383 = vld [vmem:[%s367 + $0x3c] sm:$0xf]
        %v395 = vunpack.c.l.b16 %v339
        %v396 = vunpack.c.l.b16 %v340
        %v397 = vunpack.c.l.b16 %v341
        %v398 = vunpack.c.l.b16 %v342
        %v399 = vunpack.c.l.b16 %v343
        %v400 = vunpack.c.l.b16 %v344
        %v401 = vunpack.c.l.b16 %v345
        %v402 = vunpack.c.l.b16 %v346
        %v403 = vunpack.c.l.b16 %v347
        %v404 = vunpack.c.l.b16 %v348
        %v405 = vunpack.c.l.b16 %v366
        %v406 = vpack.c.b16 %v396, %v395
        %v407 = vpack.c.b16 %v398, %v397
        %v408 = vpack.c.b16 %v400, %v399
        %v409 = vpack.c.b16 %v402, %v401
        %v410 = vpack.c.b16 %v404, %v403
        %v411 = vpack.c.b16 %v405, %v405
        %vm412 = vsmask.f32 6400
        %v414 = vshrl.u32 %v406, 16
        %v416 = vrot.slane %v414, 1
        %v417 = vshll.u32 %v406, 16
        %v419 = vrot.slane %v417, 2
        %v420 = vor.u32 %v416, %v419
        %v422 = vshrl.u32 %v407, 16
        %v424 = vrot.slane %v422, 1
        %v425 = vshll.u32 %v407, 16
        %v427 = vrot.slane %v425, 2
        %v428 = vor.u32 %v424, %v427
        %v429 = vsel %vm412, %v420, %v428
        %v431 = vshrl.u32 %v408, 16
        %v433 = vrot.slane %v431, 1
        %v434 = vshll.u32 %v408, 16
        %v436 = vrot.slane %v434, 2
        %v437 = vor.u32 %v433, %v436
        %v438 = vsel %vm412, %v428, %v437
        %v440 = vshrl.u32 %v409, 16
        %v442 = vrot.slane %v440, 1
        %v443 = vshll.u32 %v409, 16
        %v445 = vrot.slane %v443, 2
        %v446 = vor.u32 %v442, %v445
        %v447 = vsel %vm412, %v437, %v446
        %v449 = vshrl.u32 %v410, 16
        %v451 = vrot.slane %v449, 1
        %v452 = vshll.u32 %v410, 16
        %v454 = vrot.slane %v452, 2
        %v455 = vor.u32 %v451, %v454
        %v456 = vsel %vm412, %v446, %v455
        %v458 = vshrl.u32 %v411, 16
        %v460 = vrot.slane %v458, 1
        %v461 = vshll.u32 %v411, 16
        %v463 = vrot.slane %v461, 2
        %v464 = vor.u32 %v460, %v463
        %v465 = vsel %vm412, %v455, %v464
        %v487 = vunpack.c.l.b16 %v368
        %v488 = vunpack.c.l.b16 %v369
        %v489 = vunpack.c.l.b16 %v370
        %v490 = vunpack.c.l.b16 %v371
        %v491 = vunpack.c.l.b16 %v372
        %v492 = vunpack.c.l.b16 %v373
        %v493 = vunpack.c.l.b16 %v374
        %v494 = vunpack.c.l.b16 %v375
        %v495 = vunpack.c.l.b16 %v376
        %v496 = vunpack.c.l.b16 %v377
        %v497 = vunpack.c.l.b16 %v378
        %v498 = vunpack.c.l.b16 %v379
        %v499 = vunpack.c.l.b16 %v380
        %v500 = vunpack.c.l.b16 %v381
        %v501 = vunpack.c.l.b16 %v382
        %v502 = vunpack.c.l.b16 %v383
        %v503 = vpack.c.b16 %v488, %v487
        %v504 = vpack.c.b16 %v490, %v489
        %v505 = vpack.c.b16 %v492, %v491
        %v506 = vpack.c.b16 %v494, %v493
        %v507 = vpack.c.b16 %v496, %v495
        %v508 = vpack.c.b16 %v498, %v497
        %v509 = vpack.c.b16 %v500, %v499
        %v510 = vpack.c.b16 %v502, %v501
        %519 = vmatpush.bf16.msra.mxu0 %v510
        %520 = vmatpush.bf16.msra.mxu0 %v509
        %521 = vmatpush.bf16.msra.mxu0 %v508
        %522 = vmatpush.bf16.msra.mxu0 %v507
        %523 = vmatpush.bf16.msra.mxu0 %v506
        %524 = vmatpush.bf16.msra.mxu0 %v505
        %525 = vmatpush.bf16.msra.mxu0 %v504
        %526 = vmatpush.bf16.msra.mxu0 %v503
        %527 = vmatmul.bf16.gmra.mxu0 %v429
        %v528 = vpop.f32.mrf.mxu0
        %v529 = vadd.f32 0.0, %v528
        %v530 = vpop.f32.mrf.mxu0
        %v531 = vadd.f32 0.0, %v530
        %532 = vmatmul.bf16.gmra.mxu0 %v438
        %v533 = vpop.f32.mrf.mxu0
        %v534 = vadd.f32 0.0, %v533
        %v535 = vpop.f32.mrf.mxu0
        %v536 = vadd.f32 0.0, %v535
        %537 = vmatmul.bf16.gmra.mxu0 %v447
        %v538 = vpop.f32.mrf.mxu0
        %v539 = vadd.f32 0.0, %v538
        %v540 = vpop.f32.mrf.mxu0
        %v541 = vadd.f32 0.0, %v540
        %542 = vmatmul.bf16.gmra.mxu0 %v456
        %v543 = vpop.f32.mrf.mxu0
        %v544 = vadd.f32 0.0, %v543
        %v545 = vpop.f32.mrf.mxu0
        %v546 = vadd.f32 0.0, %v545
        %547 = vmatmul.bf16.gmra.mxu0 %v465
        %v548 = vpop.f32.mrf.mxu0
        %v549 = vadd.f32 0.0, %v548
        %v550 = vpop.f32.mrf.mxu0
        %v551 = vadd.f32 0.0, %v550
        %552 = vdwg.mxu0
        %v554 = vunpack.c.l.b16 %v349
        %v555 = vpack.c.b16 %v554, %v554
        %vm556 = vcmask 1046528
        %v557 = vrot.slane %v406, 1
        %v558 = vrot.slane %v407, 1
        %v559 = vsel %vm556, %v557, %v558
        %v560 = vrot.slane %v408, 1
        %v561 = vsel %vm556, %v558, %v560
        %v562 = vrot.slane %v409, 1
        %v563 = vsel %vm556, %v560, %v562
        %v564 = vrot.slane %v410, 1
        %v565 = vsel %vm556, %v562, %v564
        %v566 = vrot.slane %v555, 1
        %v567 = vsel %vm556, %v564, %v566
        %v589 = vunpack.c.l.b16 %v350
        %v590 = vunpack.c.l.b16 %v351
        %v591 = vunpack.c.l.b16 %v352
        %v592 = vunpack.c.l.b16 %v353
        %v593 = vunpack.c.l.b16 %v354
        %v594 = vunpack.c.l.b16 %v355
        %v595 = vunpack.c.l.b16 %v356
        %v596 = vunpack.c.l.b16 %v357
        %v597 = vunpack.c.l.b16 %v358
        %v598 = vunpack.c.l.b16 %v359
        %v599 = vunpack.c.l.b16 %v360
        %v600 = vunpack.c.l.b16 %v361
        %v601 = vunpack.c.l.b16 %v362
        %v602 = vunpack.c.l.b16 %v363
        %v603 = vunpack.c.l.b16 %v364
        %v604 = vunpack.c.l.b16 %v365
        %v605 = vpack.c.b16 %v590, %v589
        %v606 = vpack.c.b16 %v592, %v591
        %v607 = vpack.c.b16 %v594, %v593
        %v608 = vpack.c.b16 %v596, %v595
        %v609 = vpack.c.b16 %v598, %v597
        %v610 = vpack.c.b16 %v600, %v599
        %v611 = vpack.c.b16 %v602, %v601
        %v612 = vpack.c.b16 %v604, %v603
        %621 = vmatpush.bf16.msra.mxu0 %v612
        %622 = vmatpush.bf16.msra.mxu0 %v611
        %623 = vmatpush.bf16.msra.mxu0 %v610
        %624 = vmatpush.bf16.msra.mxu0 %v609
        %625 = vmatpush.bf16.msra.mxu0 %v608
        %626 = vmatpush.bf16.msra.mxu0 %v607
        %627 = vmatpush.bf16.msra.mxu0 %v606
        %628 = vmatpush.bf16.msra.mxu0 %v605
        %629 = vmatmul.bf16.gmra.mxu0 %v559
        %v630 = vpop.f32.mrf.mxu0
        %v631 = vadd.f32 %v529, %v630
        %v632 = vpop.f32.mrf.mxu0
        %v633 = vadd.f32 %v531, %v632
        %634 = vmatmul.bf16.gmra.mxu0 %v561
        %v635 = vpop.f32.mrf.mxu0
        %v636 = vadd.f32 %v534, %v635
        %v637 = vpop.f32.mrf.mxu0
        %v638 = vadd.f32 %v536, %v637
        %639 = vmatmul.bf16.gmra.mxu0 %v563
        %v640 = vpop.f32.mrf.mxu0
        %v641 = vadd.f32 %v539, %v640
        %v642 = vpop.f32.mrf.mxu0
        %v643 = vadd.f32 %v541, %v642
        %644 = vmatmul.bf16.gmra.mxu0 %v565
        %v645 = vpop.f32.mrf.mxu0
        %v646 = vadd.f32 %v544, %v645
        %v647 = vpop.f32.mrf.mxu0
        %v648 = vadd.f32 %v546, %v647
        %649 = vmatmul.bf16.gmra.mxu0 %v567
        %v650 = vpop.f32.mrf.mxu0
        %v651 = vadd.f32 %v549, %v650
        %v652 = vpop.f32.mrf.mxu0
        %v653 = vadd.f32 %v551, %v652
        %654 = vdwg.mxu0
        %v655 = vld [vmem:[#allocation2 + $0x4] sm:$0xc]
        %s656 = scalar_lea.vmem [#allocation4], 128
        %v657 = vld [vmem:[%s656] sm:$0xf]
        %v658 = vld [vmem:[%s656 + $0x4] sm:$0xf]
        %v659 = vld [vmem:[%s656 + $0x8] sm:$0xf]
        %v660 = vld [vmem:[%s656 + $0xc] sm:$0xf]
        %v661 = vld [vmem:[%s656 + $0x10] sm:$0xf]
        %v662 = vld [vmem:[%s656 + $0x14] sm:$0xf]
        %v663 = vld [vmem:[%s656 + $0x18] sm:$0xf]
        %v664 = vld [vmem:[%s656 + $0x1c] sm:$0xf]
        %v665 = vld [vmem:[%s656 + $0x20] sm:$0xf]
        %v666 = vld [vmem:[%s656 + $0x24] sm:$0xf]
        %v667 = vld [vmem:[%s656 + $0x28] sm:$0xf]
        %v668 = vld [vmem:[%s656 + $0x2c] sm:$0xf]
        %v669 = vld [vmem:[%s656 + $0x30] sm:$0xf]
        %v670 = vld [vmem:[%s656 + $0x34] sm:$0xf]
        %v671 = vld [vmem:[%s656 + $0x38] sm:$0xf]
        %v672 = vld [vmem:[%s656 + $0x3c] sm:$0xf]
        %v674 = vunpack.c.l.b16 %v655
        %v675 = vpack.c.b16 %v396, %v674
        %vm676 = vcmask 1045504
        %v677 = vrot.slane %v675, 2
        %v678 = vrot.slane %v407, 2
        %v679 = vsel %vm676, %v677, %v678
        %v680 = vrot.slane %v408, 2
        %v681 = vsel %vm676, %v678, %v680
        %v682 = vrot.slane %v409, 2
        %v683 = vsel %vm676, %v680, %v682
        %v684 = vrot.slane %v410, 2
        %v685 = vsel %vm676, %v682, %v684
        %v686 = vrot.slane %v411, 2
        %v687 = vsel %vm676, %v684, %v686
        %v709 = vunpack.c.l.b16 %v657
        %v710 = vunpack.c.l.b16 %v658
        %v711 = vunpack.c.l.b16 %v659
        %v712 = vunpack.c.l.b16 %v660
        %v713 = vunpack.c.l.b16 %v661
        %v714 = vunpack.c.l.b16 %v662
        %v715 = vunpack.c.l.b16 %v663
        %v716 = vunpack.c.l.b16 %v664
        %v717 = vunpack.c.l.b16 %v665
        %v718 = vunpack.c.l.b16 %v666
        %v719 = vunpack.c.l.b16 %v667
        %v720 = vunpack.c.l.b16 %v668
        %v721 = vunpack.c.l.b16 %v669
        %v722 = vunpack.c.l.b16 %v670
        %v723 = vunpack.c.l.b16 %v671
        %v724 = vunpack.c.l.b16 %v672
        %v725 = vpack.c.b16 %v710, %v709
        %v726 = vpack.c.b16 %v712, %v711
        %v727 = vpack.c.b16 %v714, %v713
        %v728 = vpack.c.b16 %v716, %v715
        %v729 = vpack.c.b16 %v718, %v717
        %v730 = vpack.c.b16 %v720, %v719
        %v731 = vpack.c.b16 %v722, %v721
        %v732 = vpack.c.b16 %v724, %v723
        %741 = vmatpush.bf16.msra.mxu0 %v732
        %742 = vmatpush.bf16.msra.mxu0 %v731
        %743 = vmatpush.bf16.msra.mxu0 %v730
        %744 = vmatpush.bf16.msra.mxu0 %v729
        %745 = vmatpush.bf16.msra.mxu0 %v728
        %746 = vmatpush.bf16.msra.mxu0 %v727
        %747 = vmatpush.bf16.msra.mxu0 %v726
        %748 = vmatpush.bf16.msra.mxu0 %v725
        %749 = vmatmul.bf16.gmra.mxu0 %v679
        %v750 = vpop.f32.mrf.mxu0
        %v751 = vadd.f32 0.0, %v750
        %v752 = vpop.f32.mrf.mxu0
        %v753 = vadd.f32 0.0, %v752
        %754 = vmatmul.bf16.gmra.mxu0 %v681
        %v755 = vpop.f32.mrf.mxu0
        %v756 = vadd.f32 0.0, %v755
        %v757 = vpop.f32.mrf.mxu0
        %v758 = vadd.f32 0.0, %v757
        %759 = vmatmul.bf16.gmra.mxu0 %v683
        %v760 = vpop.f32.mrf.mxu0
        %v761 = vadd.f32 0.0, %v760
        %v762 = vpop.f32.mrf.mxu0
        %v763 = vadd.f32 0.0, %v762
        %764 = vmatmul.bf16.gmra.mxu0 %v685
        %v765 = vpop.f32.mrf.mxu0
        %v766 = vadd.f32 0.0, %v765
        %v767 = vpop.f32.mrf.mxu0
        %v768 = vadd.f32 0.0, %v767
        %769 = vmatmul.bf16.gmra.mxu0 %v687
        %v770 = vpop.f32.mrf.mxu0
        %v771 = vadd.f32 0.0, %v770
        %v772 = vpop.f32.mrf.mxu0
        %v773 = vadd.f32 0.0, %v772
        %774 = vdwg.mxu0
        %v775 = vadd.f32 %v631, %v751
        %v776 = vadd.f32 %v633, %v753
        %v777 = vadd.f32 %v636, %v756
        %v778 = vadd.f32 %v638, %v758
        %v779 = vadd.f32 %v641, %v761
        %v780 = vadd.f32 %v643, %v763
        %v781 = vadd.f32 %v646, %v766
        %v782 = vadd.f32 %v648, %v768
        %v783 = vadd.f32 %v651, %v771
        %v784 = vadd.f32 %v653, %v773
        %v785 = vld [vmem:[#allocation2 + $0x4] sm:$0x8]
        %v786 = vld [vmem:[#allocation2 + $0x2c] sm:$0xf]
        %s787 = scalar_lea.vmem [#allocation4], 192
        %v788 = vld [vmem:[%s787] sm:$0xf]
        %v789 = vld [vmem:[%s787 + $0x4] sm:$0xf]
        %v790 = vld [vmem:[%s787 + $0x8] sm:$0xf]
        %v791 = vld [vmem:[%s787 + $0xc] sm:$0xf]
        %v792 = vld [vmem:[%s787 + $0x10] sm:$0xf]
        %v793 = vld [vmem:[%s787 + $0x14] sm:$0xf]
        %v794 = vld [vmem:[%s787 + $0x18] sm:$0xf]
        %v795 = vld [vmem:[%s787 + $0x1c] sm:$0xf]
        %v796 = vld [vmem:[%s787 + $0x20] sm:$0xf]
        %v797 = vld [vmem:[%s787 + $0x24] sm:$0xf]
        %v798 = vld [vmem:[%s787 + $0x28] sm:$0xf]
        %v799 = vld [vmem:[%s787 + $0x2c] sm:$0xf]
        %v800 = vld [vmem:[%s787 + $0x30] sm:$0xf]
        %v801 = vld [vmem:[%s787 + $0x34] sm:$0xf]
        %v802 = vld [vmem:[%s787 + $0x38] sm:$0xf]
        %v803 = vld [vmem:[%s787 + $0x3c] sm:$0xf]
        %v806 = vunpack.c.l.b16 %v785
        %v807 = vunpack.c.l.b16 %v786
        %v808 = vpack.c.b16 %v396, %v806
        %v809 = vpack.c.b16 %v807, %v807
        %vm810 = vsmask.f32 4352
        %v812 = vshrl.u32 %v808, 16
        %v814 = vrot.slane %v812, 3
        %v815 = vshll.u32 %v808, 16
        %v817 = vrot.slane %v815, 4
        %v818 = vor.u32 %v814, %v817
        %v819 = vrot.slane %v422, 3
        %v820 = vrot.slane %v425, 4
        %v821 = vor.u32 %v819, %v820
        %v822 = vsel %vm810, %v818, %v821
        %v823 = vrot.slane %v431, 3
        %v824 = vrot.slane %v434, 4
        %v825 = vor.u32 %v823, %v824
        %v826 = vsel %vm810, %v821, %v825
        %v827 = vrot.slane %v440, 3
        %v828 = vrot.slane %v443, 4
        %v829 = vor.u32 %v827, %v828
        %v830 = vsel %vm810, %v825, %v829
        %v831 = vrot.slane %v449, 3
        %v832 = vrot.slane %v452, 4
        %v833 = vor.u32 %v831, %v832
        %v834 = vsel %vm810, %v829, %v833
        %v836 = vshrl.u32 %v809, 16
        %v838 = vrot.slane %v836, 3
        %v839 = vshll.u32 %v809, 16
        %v841 = vrot.slane %v839, 4
        %v842 = vor.u32 %v838, %v841
        %v843 = vsel %vm810, %v833, %v842
        %v865 = vunpack.c.l.b16 %v788
        %v866 = vunpack.c.l.b16 %v789
        %v867 = vunpack.c.l.b16 %v790
        %v868 = vunpack.c.l.b16 %v791
        %v869 = vunpack.c.l.b16 %v792
        %v870 = vunpack.c.l.b16 %v793
        %v871 = vunpack.c.l.b16 %v794
        %v872 = vunpack.c.l.b16 %v795
        %v873 = vunpack.c.l.b16 %v796
        %v874 = vunpack.c.l.b16 %v797
        %v875 = vunpack.c.l.b16 %v798
        %v876 = vunpack.c.l.b16 %v799
        %v877 = vunpack.c.l.b16 %v800
        %v878 = vunpack.c.l.b16 %v801
        %v879 = vunpack.c.l.b16 %v802
        %v880 = vunpack.c.l.b16 %v803
        %v881 = vpack.c.b16 %v866, %v865
        %v882 = vpack.c.b16 %v868, %v867
        %v883 = vpack.c.b16 %v870, %v869
        %v884 = vpack.c.b16 %v872, %v871
        %v885 = vpack.c.b16 %v874, %v873
        %v886 = vpack.c.b16 %v876, %v875
        %v887 = vpack.c.b16 %v878, %v877
        %v888 = vpack.c.b16 %v880, %v879
        %897 = vmatpush.bf16.msra.mxu0 %v888
        %898 = vmatpush.bf16.msra.mxu0 %v887
        %899 = vmatpush.bf16.msra.mxu0 %v886
        %900 = vmatpush.bf16.msra.mxu0 %v885
        %901 = vmatpush.bf16.msra.mxu0 %v884
        %902 = vmatpush.bf16.msra.mxu0 %v883
        %903 = vmatpush.bf16.msra.mxu0 %v882
        %904 = vmatpush.bf16.msra.mxu0 %v881
        %905 = vmatmul.bf16.gmra.mxu0 %v822
        %v906 = vpop.f32.mrf.mxu0
        %v907 = vadd.f32 0.0, %v906
        %v908 = vpop.f32.mrf.mxu0
        %v909 = vadd.f32 0.0, %v908
        %910 = vmatmul.bf16.gmra.mxu0 %v826
        %v911 = vpop.f32.mrf.mxu0
        %v912 = vadd.f32 0.0, %v911
        %v913 = vpop.f32.mrf.mxu0
        %v914 = vadd.f32 0.0, %v913
        %915 = vmatmul.bf16.gmra.mxu0 %v830
        %v916 = vpop.f32.mrf.mxu0
        %v917 = vadd.f32 0.0, %v916
        %v918 = vpop.f32.mrf.mxu0
        %v919 = vadd.f32 0.0, %v918
        %920 = vmatmul.bf16.gmra.mxu0 %v834
        %v921 = vpop.f32.mrf.mxu0
        %v922 = vadd.f32 0.0, %v921
        %v923 = vpop.f32.mrf.mxu0
        %v924 = vadd.f32 0.0, %v923
        %925 = vmatmul.bf16.gmra.mxu0 %v843
        %v926 = vpop.f32.mrf.mxu0
        %v927 = vadd.f32 0.0, %v926
        %v928 = vpop.f32.mrf.mxu0
        %v929 = vadd.f32 0.0, %v928
        %930 = vdwg.mxu0
        %v931 = vadd.f32 %v775, %v907
        %v932 = vadd.f32 %v776, %v909
        %v933 = vadd.f32 %v777, %v912
        %v934 = vadd.f32 %v778, %v914
        %v935 = vadd.f32 %v779, %v917
        %v936 = vadd.f32 %v780, %v919
        %v937 = vadd.f32 %v781, %v922
        %v938 = vadd.f32 %v782, %v924
        %v939 = vadd.f32 %v783, %v927
        %v940 = vadd.f32 %v784, %v929
        %s941 = scalar_lea.vmem [#allocation4], 256
        %v942 = vld [vmem:[%s941] sm:$0xf]
        %v943 = vld [vmem:[%s941 + $0x4] sm:$0xf]
        %v944 = vld [vmem:[%s941 + $0x8] sm:$0xf]
        %v945 = vld [vmem:[%s941 + $0xc] sm:$0xf]
        %v946 = vld [vmem:[%s941 + $0x10] sm:$0xf]
        %v947 = vld [vmem:[%s941 + $0x14] sm:$0xf]
        %v948 = vld [vmem:[%s941 + $0x18] sm:$0xf]
        %v949 = vld [vmem:[%s941 + $0x1c] sm:$0xf]
        %v950 = vld [vmem:[%s941 + $0x20] sm:$0xf]
        %v951 = vld [vmem:[%s941 + $0x24] sm:$0xf]
        %v952 = vld [vmem:[%s941 + $0x28] sm:$0xf]
        %v953 = vld [vmem:[%s941 + $0x2c] sm:$0xf]
        %v954 = vld [vmem:[%s941 + $0x30] sm:$0xf]
        %v955 = vld [vmem:[%s941 + $0x34] sm:$0xf]
        %v956 = vld [vmem:[%s941 + $0x38] sm:$0xf]
        %v957 = vld [vmem:[%s941 + $0x3c] sm:$0xf]
        %v958 = vpack.c.b16 %v397, %v396
        %v959 = vpack.c.b16 %v399, %v398
        %v960 = vpack.c.b16 %v401, %v400
        %v961 = vpack.c.b16 %v403, %v402
        %v962 = vpack.c.b16 %v807, %v404
        %v984 = vunpack.c.l.b16 %v942
        %v985 = vunpack.c.l.b16 %v943
        %v986 = vunpack.c.l.b16 %v944
        %v987 = vunpack.c.l.b16 %v945
        %v988 = vunpack.c.l.b16 %v946
        %v989 = vunpack.c.l.b16 %v947
        %v990 = vunpack.c.l.b16 %v948
        %v991 = vunpack.c.l.b16 %v949
        %v992 = vunpack.c.l.b16 %v950
        %v993 = vunpack.c.l.b16 %v951
        %v994 = vunpack.c.l.b16 %v952
        %v995 = vunpack.c.l.b16 %v953
        %v996 = vunpack.c.l.b16 %v954
        %v997 = vunpack.c.l.b16 %v955
        %v998 = vunpack.c.l.b16 %v956
        %v999 = vunpack.c.l.b16 %v957
        %v1000 = vpack.c.b16 %v985, %v984
        %v1001 = vpack.c.b16 %v987, %v986
        %v1002 = vpack.c.b16 %v989, %v988
        %v1003 = vpack.c.b16 %v991, %v990
        %v1004 = vpack.c.b16 %v993, %v992
        %v1005 = vpack.c.b16 %v995, %v994
        %v1006 = vpack.c.b16 %v997, %v996
        %v1007 = vpack.c.b16 %v999, %v998
        %1016 = vmatpush.bf16.msra.mxu0 %v1007
        %1017 = vmatpush.bf16.msra.mxu0 %v1006
        %1018 = vmatpush.bf16.msra.mxu0 %v1005
        %1019 = vmatpush.bf16.msra.mxu0 %v1004
        %1020 = vmatpush.bf16.msra.mxu0 %v1003
        %1021 = vmatpush.bf16.msra.mxu0 %v1002
        %1022 = vmatpush.bf16.msra.mxu0 %v1001
        %1023 = vmatpush.bf16.msra.mxu0 %v1000
        %1024 = vmatmul.bf16.gmra.mxu0 %v958
        %v1025 = vpop.f32.mrf.mxu0
        %v1026 = vadd.f32 0.0, %v1025
        %v1027 = vpop.f32.mrf.mxu0
        %v1028 = vadd.f32 0.0, %v1027
        %1029 = vmatmul.bf16.gmra.mxu0 %v959
        %v1030 = vpop.f32.mrf.mxu0
        %v1031 = vadd.f32 0.0, %v1030
        %v1032 = vpop.f32.mrf.mxu0
        %v1033 = vadd.f32 0.0, %v1032
        %1034 = vmatmul.bf16.gmra.mxu0 %v960
        %v1035 = vpop.f32.mrf.mxu0
        %v1036 = vadd.f32 0.0, %v1035
        %v1037 = vpop.f32.mrf.mxu0
        %v1038 = vadd.f32 0.0, %v1037
        %1039 = vmatmul.bf16.gmra.mxu0 %v961
        %v1040 = vpop.f32.mrf.mxu0
        %v1041 = vadd.f32 0.0, %v1040
        %v1042 = vpop.f32.mrf.mxu0
        %v1043 = vadd.f32 0.0, %v1042
        %1044 = vmatmul.bf16.gmra.mxu0 %v962
        %v1045 = vpop.f32.mrf.mxu0
        %v1046 = vadd.f32 0.0, %v1045
        %v1047 = vpop.f32.mrf.mxu0
        %v1048 = vadd.f32 0.0, %v1047
        %1049 = vdwg.mxu0
        %v1050 = vadd.f32 %v931, %v1026
        %v1051 = vadd.f32 %v932, %v1028
        %v1052 = vadd.f32 %v933, %v1031
        %v1053 = vadd.f32 %v934, %v1033
        %v1054 = vadd.f32 %v935, %v1036
        %v1055 = vadd.f32 %v936, %v1038
        %v1056 = vadd.f32 %v937, %v1041
        %v1057 = vadd.f32 %v938, %v1043
        %v1058 = vadd.f32 %v939, %v1046
        %v1059 = vadd.f32 %v940, %v1048
        %v1060 = vld [vmem:[#allocation2 + $0x8] sm:$0xf]
        %v1061 = vld [vmem:[#allocation2 + $0xc] sm:$0xf]
        %v1062 = vld [vmem:[#allocation2 + $0x10] sm:$0xf]
        %v1063 = vld [vmem:[#allocation2 + $0x14] sm:$0xf]
        %v1064 = vld [vmem:[#allocation2 + $0x18] sm:$0xf]
        %v1065 = vld [vmem:[#allocation2 + $0x1c] sm:$0xf]
        %v1066 = vld [vmem:[#allocation2 + $0x20] sm:$0xf]
        %v1067 = vld [vmem:[#allocation2 + $0x24] sm:$0xf]
        %v1068 = vld [vmem:[#allocation2 + $0x28] sm:$0xf]
        %v1069 = vld [vmem:[#allocation2 + $0x2c] sm:$0xf]
        %v1070 = vld [vmem:[#allocation2 + $0x30] sm:$0x1]
        %s1071 = scalar_lea.vmem [#allocation4], 320
        %v1072 = vld [vmem:[%s1071] sm:$0xf]
        %v1073 = vld [vmem:[%s1071 + $0x4] sm:$0xf]
        %v1074 = vld [vmem:[%s1071 + $0x8] sm:$0xf]
        %v1075 = vld [vmem:[%s1071 + $0xc] sm:$0xf]
        %v1076 = vld [vmem:[%s1071 + $0x10] sm:$0xf]
        %v1077 = vld [vmem:[%s1071 + $0x14] sm:$0xf]
        %v1078 = vld [vmem:[%s1071 + $0x18] sm:$0xf]
        %v1079 = vld [vmem:[%s1071 + $0x1c] sm:$0xf]
        %v1080 = vld [vmem:[%s1071 + $0x20] sm:$0xf]
        %v1081 = vld [vmem:[%s1071 + $0x24] sm:$0xf]
        %v1082 = vld [vmem:[%s1071 + $0x28] sm:$0xf]
        %v1083 = vld [vmem:[%s1071 + $0x2c] sm:$0xf]
        %v1084 = vld [vmem:[%s1071 + $0x30] sm:$0xf]
        %v1085 = vld [vmem:[%s1071 + $0x34] sm:$0xf]
        %v1086 = vld [vmem:[%s1071 + $0x38] sm:$0xf]
        %v1087 = vld [vmem:[%s1071 + $0x3c] sm:$0xf]
        %v1099 = vunpack.c.l.b16 %v1060
        %v1100 = vunpack.c.l.b16 %v1061
        %v1101 = vunpack.c.l.b16 %v1062
        %v1102 = vunpack.c.l.b16 %v1063
        %v1103 = vunpack.c.l.b16 %v1064
        %v1104 = vunpack.c.l.b16 %v1065
        %v1105 = vunpack.c.l.b16 %v1066
        %v1106 = vunpack.c.l.b16 %v1067
        %v1107 = vunpack.c.l.b16 %v1068
        %v1108 = vunpack.c.l.b16 %v1069
        %v1109 = vunpack.c.l.b16 %v1070
        %v1110 = vpack.c.b16 %v1100, %v1099
        %v1111 = vpack.c.b16 %v1102, %v1101
        %v1112 = vpack.c.b16 %v1104, %v1103
        %v1113 = vpack.c.b16 %v1106, %v1105
        %v1114 = vpack.c.b16 %v1108, %v1107
        %v1115 = vpack.c.b16 %v1109, %v1109
        %vm1116 = vsmask.f32 7424
        %v1118 = vshrl.u32 %v1110, 16
        %v1120 = vshll.u32 %v1110, 16
        %v1122 = vrot.slane %v1120, 1
        %v1123 = vor.u32 %v1118, %v1122
        %v1125 = vshll.u32 %v1111, 16
        %v1127 = vrot.slane %v1125, 1
        %v1128 = vsel %vm1116, %v1123, %v1127
        %v1129 = vshrl.u32 %v1111, 16
        %v1131 = vor.u32 %v1129, %v1127
        %v1133 = vshll.u32 %v1112, 16
        %v1135 = vrot.slane %v1133, 1
        %v1136 = vsel %vm1116, %v1131, %v1135
        %v1137 = vshrl.u32 %v1112, 16
        %v1139 = vor.u32 %v1137, %v1135
        %v1141 = vshll.u32 %v1113, 16
        %v1143 = vrot.slane %v1141, 1
        %v1144 = vsel %vm1116, %v1139, %v1143
        %v1145 = vshrl.u32 %v1113, 16
        %v1147 = vor.u32 %v1145, %v1143
        %v1149 = vshll.u32 %v1114, 16
        %v1151 = vrot.slane %v1149, 1
        %v1152 = vsel %vm1116, %v1147, %v1151
        %v1153 = vshrl.u32 %v1114, 16
        %v1155 = vor.u32 %v1153, %v1151
        %v1157 = vshll.u32 %v1115, 16
        %v1159 = vrot.slane %v1157, 1
        %v1160 = vsel %vm1116, %v1155, %v1159
        %v1182 = vunpack.c.l.b16 %v1072
        %v1183 = vunpack.c.l.b16 %v1073
        %v1184 = vunpack.c.l.b16 %v1074
        %v1185 = vunpack.c.l.b16 %v1075
        %v1186 = vunpack.c.l.b16 %v1076
        %v1187 = vunpack.c.l.b16 %v1077
        %v1188 = vunpack.c.l.b16 %v1078
        %v1189 = vunpack.c.l.b16 %v1079
        %v1190 = vunpack.c.l.b16 %v1080
        %v1191 = vunpack.c.l.b16 %v1081
        %v1192 = vunpack.c.l.b16 %v1082
        %v1193 = vunpack.c.l.b16 %v1083
        %v1194 = vunpack.c.l.b16 %v1084
        %v1195 = vunpack.c.l.b16 %v1085
        %v1196 = vunpack.c.l.b16 %v1086
        %v1197 = vunpack.c.l.b16 %v1087
        %v1198 = vpack.c.b16 %v1183, %v1182
        %v1199 = vpack.c.b16 %v1185, %v1184
        %v1200 = vpack.c.b16 %v1187, %v1186
        %v1201 = vpack.c.b16 %v1189, %v1188
        %v1202 = vpack.c.b16 %v1191, %v1190
        %v1203 = vpack.c.b16 %v1193, %v1192
        %v1204 = vpack.c.b16 %v1195, %v1194
        %v1205 = vpack.c.b16 %v1197, %v1196
        %1214 = vmatpush.bf16.msra.mxu0 %v1205
        %1215 = vmatpush.bf16.msra.mxu0 %v1204
        %1216 = vmatpush.bf16.msra.mxu0 %v1203
        %1217 = vmatpush.bf16.msra.mxu0 %v1202
        %1218 = vmatpush.bf16.msra.mxu0 %v1201
        %1219 = vmatpush.bf16.msra.mxu0 %v1200
        %1220 = vmatpush.bf16.msra.mxu0 %v1199
        %1221 = vmatpush.bf16.msra.mxu0 %v1198
        %1222 = vmatmul.bf16.gmra.mxu0 %v1128
        %v1223 = vpop.f32.mrf.mxu0
        %v1224 = vadd.f32 0.0, %v1223
        %v1225 = vpop.f32.mrf.mxu0
        %v1226 = vadd.f32 0.0, %v1225
        %1227 = vmatmul.bf16.gmra.mxu0 %v1136
        %v1228 = vpop.f32.mrf.mxu0
        %v1229 = vadd.f32 0.0, %v1228
        %v1230 = vpop.f32.mrf.mxu0
        %v1231 = vadd.f32 0.0, %v1230
        %1232 = vmatmul.bf16.gmra.mxu0 %v1144
        %v1233 = vpop.f32.mrf.mxu0
        %v1234 = vadd.f32 0.0, %v1233
        %v1235 = vpop.f32.mrf.mxu0
        %v1236 = vadd.f32 0.0, %v1235
        %1237 = vmatmul.bf16.gmra.mxu0 %v1152
        %v1238 = vpop.f32.mrf.mxu0
        %v1239 = vadd.f32 0.0, %v1238
        %v1240 = vpop.f32.mrf.mxu0
        %v1241 = vadd.f32 0.0, %v1240
        %1242 = vmatmul.bf16.gmra.mxu0 %v1160
        %v1243 = vpop.f32.mrf.mxu0
        %v1244 = vadd.f32 0.0, %v1243
        %v1245 = vpop.f32.mrf.mxu0
        %v1246 = vadd.f32 0.0, %v1245
        %1247 = vdwg.mxu0
        %v1248 = vadd.f32 %v1050, %v1224
        %v1249 = vadd.f32 %v1051, %v1226
        %v1250 = vadd.f32 %v1052, %v1229
        %v1251 = vadd.f32 %v1053, %v1231
        %v1252 = vadd.f32 %v1054, %v1234
        %v1253 = vadd.f32 %v1055, %v1236
        %v1254 = vadd.f32 %v1056, %v1239
        %v1255 = vadd.f32 %v1057, %v1241
        %v1256 = vadd.f32 %v1058, %v1244
        %v1257 = vadd.f32 %v1059, %v1246
        %v1258 = vld [vmem:[#allocation2 + $0x8] sm:$0xc]
        %v1259 = vld [vmem:[#allocation2 + $0x30] sm:$0x3]
        %s1260 = scalar_lea.vmem [#allocation4], 384
        %v1261 = vld [vmem:[%s1260] sm:$0xf]
        %v1262 = vld [vmem:[%s1260 + $0x4] sm:$0xf]
        %v1263 = vld [vmem:[%s1260 + $0x8] sm:$0xf]
        %v1264 = vld [vmem:[%s1260 + $0xc] sm:$0xf]
        %v1265 = vld [vmem:[%s1260 + $0x10] sm:$0xf]
        %v1266 = vld [vmem:[%s1260 + $0x14] sm:$0xf]
        %v1267 = vld [vmem:[%s1260 + $0x18] sm:$0xf]
        %v1268 = vld [vmem:[%s1260 + $0x1c] sm:$0xf]
        %v1269 = vld [vmem:[%s1260 + $0x20] sm:$0xf]
        %v1270 = vld [vmem:[%s1260 + $0x24] sm:$0xf]
        %v1271 = vld [vmem:[%s1260 + $0x28] sm:$0xf]
        %v1272 = vld [vmem:[%s1260 + $0x2c] sm:$0xf]
        %v1273 = vld [vmem:[%s1260 + $0x30] sm:$0xf]
        %v1274 = vld [vmem:[%s1260 + $0x34] sm:$0xf]
        %v1275 = vld [vmem:[%s1260 + $0x38] sm:$0xf]
        %v1276 = vld [vmem:[%s1260 + $0x3c] sm:$0xf]
        %v1279 = vunpack.c.l.b16 %v1258
        %v1280 = vunpack.c.l.b16 %v1259
        %v1281 = vpack.c.b16 %v1100, %v1279
        %v1282 = vpack.c.b16 %v1280, %v1280
        %v1283 = vrot.slane %v1281, 2
        %v1284 = vrot.slane %v1111, 2
        %v1285 = vsel %vm676, %v1283, %v1284
        %v1286 = vrot.slane %v1112, 2
        %v1287 = vsel %vm676, %v1284, %v1286
        %v1288 = vrot.slane %v1113, 2
        %v1289 = vsel %vm676, %v1286, %v1288
        %v1290 = vrot.slane %v1114, 2
        %v1291 = vsel %vm676, %v1288, %v1290
        %v1292 = vrot.slane %v1282, 2
        %v1293 = vsel %vm676, %v1290, %v1292
        %v1315 = vunpack.c.l.b16 %v1261
        %v1316 = vunpack.c.l.b16 %v1262
        %v1317 = vunpack.c.l.b16 %v1263
        %v1318 = vunpack.c.l.b16 %v1264
        %v1319 = vunpack.c.l.b16 %v1265
        %v1320 = vunpack.c.l.b16 %v1266
        %v1321 = vunpack.c.l.b16 %v1267
        %v1322 = vunpack.c.l.b16 %v1268
        %v1323 = vunpack.c.l.b16 %v1269
        %v1324 = vunpack.c.l.b16 %v1270
        %v1325 = vunpack.c.l.b16 %v1271
        %v1326 = vunpack.c.l.b16 %v1272
        %v1327 = vunpack.c.l.b16 %v1273
        %v1328 = vunpack.c.l.b16 %v1274
        %v1329 = vunpack.c.l.b16 %v1275
        %v1330 = vunpack.c.l.b16 %v1276
        %v1331 = vpack.c.b16 %v1316, %v1315
        %v1332 = vpack.c.b16 %v1318, %v1317
        %v1333 = vpack.c.b16 %v1320, %v1319
        %v1334 = vpack.c.b16 %v1322, %v1321
        %v1335 = vpack.c.b16 %v1324, %v1323
        %v1336 = vpack.c.b16 %v1326, %v1325
        %v1337 = vpack.c.b16 %v1328, %v1327
        %v1338 = vpack.c.b16 %v1330, %v1329
        %1347 = vmatpush.bf16.msra.mxu0 %v1338
        %1348 = vmatpush.bf16.msra.mxu0 %v1337
        %1349 = vmatpush.bf16.msra.mxu0 %v1336
        %1350 = vmatpush.bf16.msra.mxu0 %v1335
        %1351 = vmatpush.bf16.msra.mxu0 %v1334
        %1352 = vmatpush.bf16.msra.mxu0 %v1333
        %1353 = vmatpush.bf16.msra.mxu0 %v1332
        %1354 = vmatpush.bf16.msra.mxu0 %v1331
        %1355 = vmatmul.bf16.gmra.mxu0 %v1285
        %v1356 = vpop.f32.mrf.mxu0
        %v1357 = vadd.f32 0.0, %v1356
        %v1358 = vpop.f32.mrf.mxu0
        %v1359 = vadd.f32 0.0, %v1358
        %1360 = vmatmul.bf16.gmra.mxu0 %v1287
        %v1361 = vpop.f32.mrf.mxu0
        %v1362 = vadd.f32 0.0, %v1361
        %v1363 = vpop.f32.mrf.mxu0
        %v1364 = vadd.f32 0.0, %v1363
        %1365 = vmatmul.bf16.gmra.mxu0 %v1289
        %v1366 = vpop.f32.mrf.mxu0
        %v1367 = vadd.f32 0.0, %v1366
        %v1368 = vpop.f32.mrf.mxu0
        %v1369 = vadd.f32 0.0, %v1368
        %1370 = vmatmul.bf16.gmra.mxu0 %v1291
        %v1371 = vpop.f32.mrf.mxu0
        %v1372 = vadd.f32 0.0, %v1371
        %v1373 = vpop.f32.mrf.mxu0
        %v1374 = vadd.f32 0.0, %v1373
        %1375 = vmatmul.bf16.gmra.mxu0 %v1293
        %v1376 = vpop.f32.mrf.mxu0
        %v1377 = vadd.f32 0.0, %v1376
        %v1378 = vpop.f32.mrf.mxu0
        %v1379 = vadd.f32 0.0, %v1378
        %1380 = vdwg.mxu0
        %v1381 = vadd.f32 %v1248, %v1357
        %v1382 = vadd.f32 %v1249, %v1359
        %v1383 = vadd.f32 %v1250, %v1362
        %v1384 = vadd.f32 %v1251, %v1364
        %v1385 = vadd.f32 %v1252, %v1367
        %v1386 = vadd.f32 %v1253, %v1369
        %v1387 = vadd.f32 %v1254, %v1372
        %v1388 = vadd.f32 %v1255, %v1374
        %v1389 = vadd.f32 %v1256, %v1377
        %v1390 = vadd.f32 %v1257, %v1379
        %v1391 = vld [vmem:[#allocation2 + $0x30] sm:$0x7]
        %s1392 = scalar_lea.vmem [#allocation4], 448
        %v1393 = vld [vmem:[%s1392] sm:$0xf]
        %v1394 = vld [vmem:[%s1392 + $0x4] sm:$0xf]
        %v1395 = vld [vmem:[%s1392 + $0x8] sm:$0xf]
        %v1396 = vld [vmem:[%s1392 + $0xc] sm:$0xf]
        %v1397 = vld [vmem:[%s1392 + $0x10] sm:$0xf]
        %v1398 = vld [vmem:[%s1392 + $0x14] sm:$0xf]
        %v1399 = vld [vmem:[%s1392 + $0x18] sm:$0xf]
        %v1400 = vld [vmem:[%s1392 + $0x1c] sm:$0xf]
        %v1401 = vld [vmem:[%s1392 + $0x20] sm:$0xf]
        %v1402 = vld [vmem:[%s1392 + $0x24] sm:$0xf]
        %v1403 = vld [vmem:[%s1392 + $0x28] sm:$0xf]
        %v1404 = vld [vmem:[%s1392 + $0x2c] sm:$0xf]
        %v1405 = vld [vmem:[%s1392 + $0x30] sm:$0xf]
        %v1406 = vld [vmem:[%s1392 + $0x34] sm:$0xf]
        %v1407 = vld [vmem:[%s1392 + $0x38] sm:$0xf]
        %v1408 = vld [vmem:[%s1392 + $0x3c] sm:$0xf]
        %v1410 = vunpack.c.l.b16 %v1391
        %v1411 = vpack.c.b16 %v1410, %v1410
        %vm1412 = vsmask.f32 5376
        %v1414 = vshrl.u32 %v1281, 16
        %v1416 = vrot.slane %v1414, 2
        %v1417 = vshll.u32 %v1281, 16
        %v1419 = vrot.slane %v1417, 3
        %v1420 = vor.u32 %v1416, %v1419
        %v1421 = vrot.slane %v1129, 2
        %v1422 = vrot.slane %v1125, 3
        %v1423 = vor.u32 %v1421, %v1422
        %v1424 = vsel %vm1412, %v1420, %v1423
        %v1425 = vrot.slane %v1137, 2
        %v1426 = vrot.slane %v1133, 3
        %v1427 = vor.u32 %v1425, %v1426
        %v1428 = vsel %vm1412, %v1423, %v1427
        %v1429 = vrot.slane %v1145, 2
        %v1430 = vrot.slane %v1141, 3
        %v1431 = vor.u32 %v1429, %v1430
        %v1432 = vsel %vm1412, %v1427, %v1431
        %v1433 = vrot.slane %v1153, 2
        %v1434 = vrot.slane %v1149, 3
        %v1435 = vor.u32 %v1433, %v1434
        %v1436 = vsel %vm1412, %v1431, %v1435
        %v1438 = vshrl.u32 %v1411, 16
        %v1440 = vrot.slane %v1438, 2
        %v1441 = vshll.u32 %v1411, 16
        %v1443 = vrot.slane %v1441, 3
        %v1444 = vor.u32 %v1440, %v1443
        %v1445 = vsel %vm1412, %v1435, %v1444
        %v1467 = vunpack.c.l.b16 %v1393
        %v1468 = vunpack.c.l.b16 %v1394
        %v1469 = vunpack.c.l.b16 %v1395
        %v1470 = vunpack.c.l.b16 %v1396
        %v1471 = vunpack.c.l.b16 %v1397
        %v1472 = vunpack.c.l.b16 %v1398
        %v1473 = vunpack.c.l.b16 %v1399
        %v1474 = vunpack.c.l.b16 %v1400
        %v1475 = vunpack.c.l.b16 %v1401
        %v1476 = vunpack.c.l.b16 %v1402
        %v1477 = vunpack.c.l.b16 %v1403
        %v1478 = vunpack.c.l.b16 %v1404
        %v1479 = vunpack.c.l.b16 %v1405
        %v1480 = vunpack.c.l.b16 %v1406
        %v1481 = vunpack.c.l.b16 %v1407
        %v1482 = vunpack.c.l.b16 %v1408
        %v1483 = vpack.c.b16 %v1468, %v1467
        %v1484 = vpack.c.b16 %v1470, %v1469
        %v1485 = vpack.c.b16 %v1472, %v1471
        %v1486 = vpack.c.b16 %v1474, %v1473
        %v1487 = vpack.c.b16 %v1476, %v1475
        %v1488 = vpack.c.b16 %v1478, %v1477
        %v1489 = vpack.c.b16 %v1480, %v1479
        %v1490 = vpack.c.b16 %v1482, %v1481
        %1499 = vmatpush.bf16.msra.mxu0 %v1490
        %1500 = vmatpush.bf16.msra.mxu0 %v1489
        %1501 = vmatpush.bf16.msra.mxu0 %v1488
        %1502 = vmatpush.bf16.msra.mxu0 %v1487
        %1503 = vmatpush.bf16.msra.mxu0 %v1486
        %1504 = vmatpush.bf16.msra.mxu0 %v1485
        %1505 = vmatpush.bf16.msra.mxu0 %v1484
        %1506 = vmatpush.bf16.msra.mxu0 %v1483
        %1507 = vmatmul.bf16.gmra.mxu0 %v1424
        %v1508 = vpop.f32.mrf.mxu0
        %v1509 = vadd.f32 0.0, %v1508
        %v1510 = vpop.f32.mrf.mxu0
        %v1511 = vadd.f32 0.0, %v1510
        %1512 = vmatmul.bf16.gmra.mxu0 %v1428
        %v1513 = vpop.f32.mrf.mxu0
        %v1514 = vadd.f32 0.0, %v1513
        %v1515 = vpop.f32.mrf.mxu0
        %v1516 = vadd.f32 0.0, %v1515
        %1517 = vmatmul.bf16.gmra.mxu0 %v1432
        %v1518 = vpop.f32.mrf.mxu0
        %v1519 = vadd.f32 0.0, %v1518
        %v1520 = vpop.f32.mrf.mxu0
        %v1521 = vadd.f32 0.0, %v1520
        %1522 = vmatmul.bf16.gmra.mxu0 %v1436
        %v1523 = vpop.f32.mrf.mxu0
        %v1524 = vadd.f32 0.0, %v1523
        %v1525 = vpop.f32.mrf.mxu0
        %v1526 = vadd.f32 0.0, %v1525
        %1527 = vmatmul.bf16.gmra.mxu0 %v1445
        %v1528 = vpop.f32.mrf.mxu0
        %v1529 = vadd.f32 0.0, %v1528
        %v1530 = vpop.f32.mrf.mxu0
        %v1531 = vadd.f32 0.0, %v1530
        %1532 = vdwg.mxu0
        %v1533 = vadd.f32 %v1381, %v1509
        %v1534 = vadd.f32 %v1382, %v1511
        %v1535 = vadd.f32 %v1383, %v1514
        %v1536 = vadd.f32 %v1384, %v1516
        %v1537 = vadd.f32 %v1385, %v1519
        %v1538 = vadd.f32 %v1386, %v1521
        %v1539 = vadd.f32 %v1387, %v1524
        %v1540 = vadd.f32 %v1388, %v1526
        %v1541 = vadd.f32 %v1389, %v1529
        %v1542 = vadd.f32 %v1390, %v1531
        %v1543 = vld [vmem:[#allocation2 + $0x8] sm:$0x8]
        %s1544 = scalar_lea.vmem [#allocation4], 512
        %v1545 = vld [vmem:[%s1544] sm:$0xf]
        %v1546 = vld [vmem:[%s1544 + $0x4] sm:$0xf]
        %v1547 = vld [vmem:[%s1544 + $0x8] sm:$0xf]
        %v1548 = vld [vmem:[%s1544 + $0xc] sm:$0xf]
        %v1549 = vld [vmem:[%s1544 + $0x10] sm:$0xf]
        %v1550 = vld [vmem:[%s1544 + $0x14] sm:$0xf]
        %v1551 = vld [vmem:[%s1544 + $0x18] sm:$0xf]
        %v1552 = vld [vmem:[%s1544 + $0x1c] sm:$0xf]
        %v1553 = vld [vmem:[%s1544 + $0x20] sm:$0xf]
        %v1554 = vld [vmem:[%s1544 + $0x24] sm:$0xf]
        %v1555 = vld [vmem:[%s1544 + $0x28] sm:$0xf]
        %v1556 = vld [vmem:[%s1544 + $0x2c] sm:$0xf]
        %v1557 = vld [vmem:[%s1544 + $0x30] sm:$0xf]
        %v1558 = vld [vmem:[%s1544 + $0x34] sm:$0xf]
        %v1559 = vld [vmem:[%s1544 + $0x38] sm:$0xf]
        %v1560 = vld [vmem:[%s1544 + $0x3c] sm:$0xf]
        %v1562 = vunpack.c.l.b16 %v1543
        %v1563 = vpack.c.b16 %v1100, %v1562
        %vm1564 = vcmask 1044480
        %v1565 = vrot.slane %v1563, 3
        %v1566 = vrot.slane %v1111, 3
        %v1567 = vsel %vm1564, %v1565, %v1566
        %v1568 = vrot.slane %v1112, 3
        %v1569 = vsel %vm1564, %v1566, %v1568
        %v1570 = vrot.slane %v1113, 3
        %v1571 = vsel %vm1564, %v1568, %v1570
        %v1572 = vrot.slane %v1114, 3
        %v1573 = vsel %vm1564, %v1570, %v1572
        %v1574 = vrot.slane %v1411, 3
        %v1575 = vsel %vm1564, %v1572, %v1574
        %v1597 = vunpack.c.l.b16 %v1545
        %v1598 = vunpack.c.l.b16 %v1546
        %v1599 = vunpack.c.l.b16 %v1547
        %v1600 = vunpack.c.l.b16 %v1548
        %v1601 = vunpack.c.l.b16 %v1549
        %v1602 = vunpack.c.l.b16 %v1550
        %v1603 = vunpack.c.l.b16 %v1551
        %v1604 = vunpack.c.l.b16 %v1552
        %v1605 = vunpack.c.l.b16 %v1553
        %v1606 = vunpack.c.l.b16 %v1554
        %v1607 = vunpack.c.l.b16 %v1555
        %v1608 = vunpack.c.l.b16 %v1556
        %v1609 = vunpack.c.l.b16 %v1557
        %v1610 = vunpack.c.l.b16 %v1558
        %v1611 = vunpack.c.l.b16 %v1559
        %v1612 = vunpack.c.l.b16 %v1560
        %v1613 = vpack.c.b16 %v1598, %v1597
        %v1614 = vpack.c.b16 %v1600, %v1599
        %v1615 = vpack.c.b16 %v1602, %v1601
        %v1616 = vpack.c.b16 %v1604, %v1603
        %v1617 = vpack.c.b16 %v1606, %v1605
        %v1618 = vpack.c.b16 %v1608, %v1607
        %v1619 = vpack.c.b16 %v1610, %v1609
        %v1620 = vpack.c.b16 %v1612, %v1611
        %1629 = vmatpush.bf16.msra.mxu0 %v1620
        %1630 = vmatpush.bf16.msra.mxu0 %v1619
        %1631 = vmatpush.bf16.msra.mxu0 %v1618
        %1632 = vmatpush.bf16.msra.mxu0 %v1617
        %1633 = vmatpush.bf16.msra.mxu0 %v1616
        %1634 = vmatpush.bf16.msra.mxu0 %v1615
        %1635 = vmatpush.bf16.msra.mxu0 %v1614
        %1636 = vmatpush.bf16.msra.mxu0 %v1613
        %1637 = vmatmul.bf16.gmra.mxu0 %v1567
        %v1638 = vpop.f32.mrf.mxu0
        %v1639 = vadd.f32 0.0, %v1638
        %v1640 = vpop.f32.mrf.mxu0
        %v1641 = vadd.f32 0.0, %v1640
        %1642 = vmatmul.bf16.gmra.mxu0 %v1569
        %v1643 = vpop.f32.mrf.mxu0
        %v1644 = vadd.f32 0.0, %v1643
        %v1645 = vpop.f32.mrf.mxu0
        %v1646 = vadd.f32 0.0, %v1645
        %1647 = vmatmul.bf16.gmra.mxu0 %v1571
        %v1648 = vpop.f32.mrf.mxu0
        %v1649 = vadd.f32 0.0, %v1648
        %v1650 = vpop.f32.mrf.mxu0
        %v1651 = vadd.f32 0.0, %v1650
        %1652 = vmatmul.bf16.gmra.mxu0 %v1573
        %v1653 = vpop.f32.mrf.mxu0
        %v1654 = vadd.f32 0.0, %v1653
        %v1655 = vpop.f32.mrf.mxu0
        %v1656 = vadd.f32 0.0, %v1655
        %1657 = vmatmul.bf16.gmra.mxu0 %v1575
        %v1658 = vpop.f32.mrf.mxu0
        %v1659 = vadd.f32 0.0, %v1658
        %v1660 = vpop.f32.mrf.mxu0
        %v1661 = vadd.f32 0.0, %v1660
        %1662 = vdwg.mxu0
        %v1663 = vadd.f32 %v1533, %v1639
        %v1664 = vadd.f32 %v1534, %v1641
        %v1665 = vadd.f32 %v1535, %v1644
        %v1666 = vadd.f32 %v1536, %v1646
        %v1667 = vadd.f32 %v1537, %v1649
        %v1668 = vadd.f32 %v1538, %v1651
        %v1669 = vadd.f32 %v1539, %v1654
        %v1670 = vadd.f32 %v1540, %v1656
        %v1671 = vadd.f32 %v1541, %v1659
        %v1672 = vadd.f32 %v1542, %v1661
        %v1673 = vld [vmem:[#allocation6] sm:$0x1]
        %v1675 = vperm.slane %v1673, 0
        %v1677 = vmul.f32 %v1663, %v1675
        %v1678 = vmul.f32 %v1664, %v1675
        %v1679 = vmul.f32 %v1665, %v1675
        %v1680 = vmul.f32 %v1666, %v1675
        %v1681 = vmul.f32 %v1667, %v1675
        %v1682 = vmul.f32 %v1668, %v1675
        %v1683 = vmul.f32 %v1669, %v1675
        %v1684 = vmul.f32 %v1670, %v1675
        %v1685 = vmul.f32 %v1671, %v1675
        %v1686 = vmul.f32 %v1672, %v1675
        %v1687 = vld [vmem:[#allocation8] sm:$0x1]
        %v1689 = vperm.slane %v1687, 0
        %v1691 = vadd.f32 %v1677, %v1689
        %v1692 = vadd.f32 %v1678, %v1689
        %v1693 = vadd.f32 %v1679, %v1689
        %v1694 = vadd.f32 %v1680, %v1689
        %v1695 = vadd.f32 %v1681, %v1689
        %v1696 = vadd.f32 %v1682, %v1689
        %v1697 = vadd.f32 %v1683, %v1689
        %v1698 = vadd.f32 %v1684, %v1689
        %v1699 = vadd.f32 %v1685, %v1689
        %v1700 = vadd.f32 %v1686, %v1689
        %v1701 = vmax.f32 %v1691, 0.0
        %v1702 = vmax.f32 %v1692, 0.0
        %v1703 = vmax.f32 %v1693, 0.0
        %v1704 = vmax.f32 %v1694, 0.0
        %v1705 = vmax.f32 %v1695, 0.0
        %v1706 = vmax.f32 %v1696, 0.0
        %v1707 = vmax.f32 %v1697, 0.0
        %v1708 = vmax.f32 %v1698, 0.0
        %v1709 = vmax.f32 %v1699, 0.0
        %v1710 = vmax.f32 %v1700, 0.0
        %v1711 = vmul.f32 %v1701, %v329
        %v1712 = vmul.f32 %v1702, %v330
        %v1713 = vmul.f32 %v1703, %v331
        %v1714 = vmul.f32 %v1704, %v332
        %v1715 = vmul.f32 %v1705, %v333
        %v1716 = vmul.f32 %v1706, %v334
        %v1717 = vmul.f32 %v1707, %v335
        %v1718 = vmul.f32 %v1708, %v336
        %v1719 = vmul.f32 %v1709, %v337
        %v1720 = vmul.f32 %v1710, %v338
        %v1721 = vpack.c.bf16 %v1711, %v1711
        %v1722 = vpack.c.bf16 %v1712, %v1712
        %v1723 = vpack.c.bf16 %v1713, %v1713
        %v1724 = vpack.c.bf16 %v1714, %v1714
        %v1725 = vpack.c.bf16 %v1715, %v1715
        %v1726 = vpack.c.bf16 %v1716, %v1716
        %v1727 = vpack.c.bf16 %v1717, %v1717
        %v1728 = vpack.c.bf16 %v1718, %v1718
        %v1729 = vpack.c.bf16 %v1719, %v1719
        %v1730 = vpack.c.bf16 %v1720, %v1720
        %1731 = vst [vmem:[#allocation3 + $0x8] sm:$0xf] %v1721
        %1732 = vst [vmem:[#allocation3 + $0xc] sm:$0xf] %v1722
        %1733 = vst [vmem:[#allocation3 + $0x10] sm:$0xf] %v1723
        %1734 = vst [vmem:[#allocation3 + $0x14] sm:$0xf] %v1724
        %1735 = vst [vmem:[#allocation3 + $0x18] sm:$0xf] %v1725
        %1736 = vst [vmem:[#allocation3 + $0x1c] sm:$0xf] %v1726
        %1737 = vst [vmem:[#allocation3 + $0x20] sm:$0xf] %v1727
        %1738 = vst [vmem:[#allocation3 + $0x24] sm:$0xf] %v1728
        %1739 = vst [vmem:[#allocation3 + $0x28] sm:$0xf] %v1729
        %1740 = vst [vmem:[#allocation3 + $0x2c] sm:$0xf] %v1730
        %v1741 = vld [vmem:[#allocation3 + $0x4] sm:$0xe]
        %v1742 = vld [vmem:[#allocation3 + $0x8] sm:$0xf]
        %v1743 = vld [vmem:[#allocation3 + $0xc] sm:$0xf]
        %v1744 = vld [vmem:[#allocation3 + $0x10] sm:$0xf]
        %v1745 = vld [vmem:[#allocation3 + $0x14] sm:$0xf]
        %v1746 = vld [vmem:[#allocation3 + $0x18] sm:$0xf]
        %v1747 = vld [vmem:[#allocation3 + $0x1c] sm:$0xf]
        %v1748 = vld [vmem:[#allocation3 + $0x20] sm:$0xf]
        %v1749 = vld [vmem:[#allocation3 + $0x24] sm:$0xf]
        %v1750 = vld [vmem:[#allocation3 + $0x28] sm:$0xf]
        %v1751 = vld [vmem:[#allocation3 + $0x2c] sm:$0x1]
        %s1752 = scalar_lea.vmem [#allocation4], 576
        %v1753 = vld [vmem:[%s1752] sm:$0xf]
        %v1754 = vld [vmem:[%s1752 + $0x4] sm:$0xf]
        %v1755 = vld [vmem:[%s1752 + $0x8] sm:$0xf]
        %v1756 = vld [vmem:[%s1752 + $0xc] sm:$0xf]
        %v1757 = vld [vmem:[%s1752 + $0x10] sm:$0xf]
        %v1758 = vld [vmem:[%s1752 + $0x14] sm:$0xf]
        %v1759 = vld [vmem:[%s1752 + $0x18] sm:$0xf]
        %v1760 = vld [vmem:[%s1752 + $0x1c] sm:$0xf]
        %v1761 = vld [vmem:[%s1752 + $0x20] sm:$0xf]
        %v1762 = vld [vmem:[%s1752 + $0x24] sm:$0xf]
        %v1763 = vld [vmem:[%s1752 + $0x28] sm:$0xf]
        %v1764 = vld [vmem:[%s1752 + $0x2c] sm:$0xf]
        %v1765 = vld [vmem:[%s1752 + $0x30] sm:$0xf]
        %v1766 = vld [vmem:[%s1752 + $0x34] sm:$0xf]
        %v1767 = vld [vmem:[%s1752 + $0x38] sm:$0xf]
        %v1768 = vld [vmem:[%s1752 + $0x3c] sm:$0xf]
        %v1769 = vld [vmem:[#allocation3 + $0x2c] sm:$0x3]
        %s1770 = scalar_lea.vmem [#allocation4], 640
        %v1771 = vld [vmem:[%s1770] sm:$0xf]
        %v1772 = vld [vmem:[%s1770 + $0x4] sm:$0xf]
        %v1773 = vld [vmem:[%s1770 + $0x8] sm:$0xf]
        %v1774 = vld [vmem:[%s1770 + $0xc] sm:$0xf]
        %v1775 = vld [vmem:[%s1770 + $0x10] sm:$0xf]
        %v1776 = vld [vmem:[%s1770 + $0x14] sm:$0xf]
        %v1777 = vld [vmem:[%s1770 + $0x18] sm:$0xf]
        %v1778 = vld [vmem:[%s1770 + $0x1c] sm:$0xf]
        %v1779 = vld [vmem:[%s1770 + $0x20] sm:$0xf]
        %v1780 = vld [vmem:[%s1770 + $0x24] sm:$0xf]
        %v1781 = vld [vmem:[%s1770 + $0x28] sm:$0xf]
        %v1782 = vld [vmem:[%s1770 + $0x2c] sm:$0xf]
        %v1783 = vld [vmem:[%s1770 + $0x30] sm:$0xf]
        %v1784 = vld [vmem:[%s1770 + $0x34] sm:$0xf]
        %v1785 = vld [vmem:[%s1770 + $0x38] sm:$0xf]
        %v1786 = vld [vmem:[%s1770 + $0x3c] sm:$0xf]
        %v1798 = vunpack.c.l.b16 %v1741
        %v1799 = vunpack.c.l.b16 %v1742
        %v1800 = vunpack.c.l.b16 %v1743
        %v1801 = vunpack.c.l.b16 %v1744
        %v1802 = vunpack.c.l.b16 %v1745
        %v1803 = vunpack.c.l.b16 %v1746
        %v1804 = vunpack.c.l.b16 %v1747
        %v1805 = vunpack.c.l.b16 %v1748
        %v1806 = vunpack.c.l.b16 %v1749
        %v1807 = vunpack.c.l.b16 %v1750
        %v1808 = vunpack.c.l.b16 %v1769
        %v1809 = vpack.c.b16 %v1799, %v1798
        %v1810 = vpack.c.b16 %v1801, %v1800
        %v1811 = vpack.c.b16 %v1803, %v1802
        %v1812 = vpack.c.b16 %v1805, %v1804
        %v1813 = vpack.c.b16 %v1807, %v1806
        %v1814 = vpack.c.b16 %v1808, %v1808
        %v1816 = vshrl.u32 %v1809, 16
        %v1818 = vrot.slane %v1816, 1
        %v1819 = vshll.u32 %v1809, 16
        %v1821 = vrot.slane %v1819, 2
        %v1822 = vor.u32 %v1818, %v1821
        %v1824 = vshrl.u32 %v1810, 16
        %v1826 = vrot.slane %v1824, 1
        %v1827 = vshll.u32 %v1810, 16
        %v1829 = vrot.slane %v1827, 2
        %v1830 = vor.u32 %v1826, %v1829
        %v1831 = vsel %vm412, %v1822, %v1830
        %v1833 = vshrl.u32 %v1811, 16
        %v1835 = vrot.slane %v1833, 1
        %v1836 = vshll.u32 %v1811, 16
        %v1838 = vrot.slane %v1836, 2
        %v1839 = vor.u32 %v1835, %v1838
        %v1840 = vsel %vm412, %v1830, %v1839
        %v1842 = vshrl.u32 %v1812, 16
        %v1844 = vrot.slane %v1842, 1
        %v1845 = vshll.u32 %v1812, 16
        %v1847 = vrot.slane %v1845, 2
        %v1848 = vor.u32 %v1844, %v1847
        %v1849 = vsel %vm412, %v1839, %v1848
        %v1851 = vshrl.u32 %v1813, 16
        %v1853 = vrot.slane %v1851, 1
        %v1854 = vshll.u32 %v1813, 16
        %v1856 = vrot.slane %v1854, 2
        %v1857 = vor.u32 %v1853, %v1856
        %v1858 = vsel %vm412, %v1848, %v1857
        %v1860 = vshrl.u32 %v1814, 16
        %v1862 = vrot.slane %v1860, 1
        %v1863 = vshll.u32 %v1814, 16
        %v1865 = vrot.slane %v1863, 2
        %v1866 = vor.u32 %v1862, %v1865
        %v1867 = vsel %vm412, %v1857, %v1866
        %v1889 = vunpack.c.l.b16 %v1771
        %v1890 = vunpack.c.l.b16 %v1772
        %v1891 = vunpack.c.l.b16 %v1773
        %v1892 = vunpack.c.l.b16 %v1774
        %v1893 = vunpack.c.l.b16 %v1775
        %v1894 = vunpack.c.l.b16 %v1776
        %v1895 = vunpack.c.l.b16 %v1777
        %v1896 = vunpack.c.l.b16 %v1778
        %v1897 = vunpack.c.l.b16 %v1779
        %v1898 = vunpack.c.l.b16 %v1780
        %v1899 = vunpack.c.l.b16 %v1781
        %v1900 = vunpack.c.l.b16 %v1782
        %v1901 = vunpack.c.l.b16 %v1783
        %v1902 = vunpack.c.l.b16 %v1784
        %v1903 = vunpack.c.l.b16 %v1785
        %v1904 = vunpack.c.l.b16 %v1786
        %v1905 = vpack.c.b16 %v1890, %v1889
        %v1906 = vpack.c.b16 %v1892, %v1891
        %v1907 = vpack.c.b16 %v1894, %v1893
        %v1908 = vpack.c.b16 %v1896, %v1895
        %v1909 = vpack.c.b16 %v1898, %v1897
        %v1910 = vpack.c.b16 %v1900, %v1899
        %v1911 = vpack.c.b16 %v1902, %v1901
        %v1912 = vpack.c.b16 %v1904, %v1903
        %1921 = vmatpush.bf16.msra.mxu0 %v1912
        %1922 = vmatpush.bf16.msra.mxu0 %v1911
        %1923 = vmatpush.bf16.msra.mxu0 %v1910
        %1924 = vmatpush.bf16.msra.mxu0 %v1909
        %1925 = vmatpush.bf16.msra.mxu0 %v1908
        %1926 = vmatpush.bf16.msra.mxu0 %v1907
        %1927 = vmatpush.bf16.msra.mxu0 %v1906
        %1928 = vmatpush.bf16.msra.mxu0 %v1905
        %1929 = vmatmul.bf16.gmra.mxu0 %v1831
        %v1930 = vpop.f32.mrf.mxu0
        %v1931 = vadd.f32 0.0, %v1930
        %v1932 = vpop.f32.mrf.mxu0
        %v1933 = vadd.f32 0.0, %v1932
        %1934 = vmatmul.bf16.gmra.mxu0 %v1840
        %v1935 = vpop.f32.mrf.mxu0
        %v1936 = vadd.f32 0.0, %v1935
        %v1937 = vpop.f32.mrf.mxu0
        %v1938 = vadd.f32 0.0, %v1937
        %1939 = vmatmul.bf16.gmra.mxu0 %v1849
        %v1940 = vpop.f32.mrf.mxu0
        %v1941 = vadd.f32 0.0, %v1940
        %v1942 = vpop.f32.mrf.mxu0
        %v1943 = vadd.f32 0.0, %v1942
        %1944 = vmatmul.bf16.gmra.mxu0 %v1858
        %v1945 = vpop.f32.mrf.mxu0
        %v1946 = vadd.f32 0.0, %v1945
        %v1947 = vpop.f32.mrf.mxu0
        %v1948 = vadd.f32 0.0, %v1947
        %1949 = vmatmul.bf16.gmra.mxu0 %v1867
        %v1950 = vpop.f32.mrf.mxu0
        %v1951 = vadd.f32 0.0, %v1950
        %v1952 = vpop.f32.mrf.mxu0
        %v1953 = vadd.f32 0.0, %v1952
        %1954 = vdwg.mxu0
        %v1956 = vunpack.c.l.b16 %v1751
        %v1957 = vpack.c.b16 %v1956, %v1956
        %v1958 = vrot.slane %v1809, 1
        %v1959 = vrot.slane %v1810, 1
        %v1960 = vsel %vm556, %v1958, %v1959
        %v1961 = vrot.slane %v1811, 1
        %v1962 = vsel %vm556, %v1959, %v1961
        %v1963 = vrot.slane %v1812, 1
        %v1964 = vsel %vm556, %v1961, %v1963
        %v1965 = vrot.slane %v1813, 1
        %v1966 = vsel %vm556, %v1963, %v1965
        %v1967 = vrot.slane %v1957, 1
        %v1968 = vsel %vm556, %v1965, %v1967
        %v1990 = vunpack.c.l.b16 %v1753
        %v1991 = vunpack.c.l.b16 %v1754
        %v1992 = vunpack.c.l.b16 %v1755
        %v1993 = vunpack.c.l.b16 %v1756
        %v1994 = vunpack.c.l.b16 %v1757
        %v1995 = vunpack.c.l.b16 %v1758
        %v1996 = vunpack.c.l.b16 %v1759
        %v1997 = vunpack.c.l.b16 %v1760
        %v1998 = vunpack.c.l.b16 %v1761
        %v1999 = vunpack.c.l.b16 %v1762
        %v2000 = vunpack.c.l.b16 %v1763
        %v2001 = vunpack.c.l.b16 %v1764
        %v2002 = vunpack.c.l.b16 %v1765
        %v2003 = vunpack.c.l.b16 %v1766
        %v2004 = vunpack.c.l.b16 %v1767
        %v2005 = vunpack.c.l.b16 %v1768
        %v2006 = vpack.c.b16 %v1991, %v1990
        %v2007 = vpack.c.b16 %v1993, %v1992
        %v2008 = vpack.c.b16 %v1995, %v1994
        %v2009 = vpack.c.b16 %v1997, %v1996
        %v2010 = vpack.c.b16 %v1999, %v1998
        %v2011 = vpack.c.b16 %v2001, %v2000
        %v2012 = vpack.c.b16 %v2003, %v2002
        %v2013 = vpack.c.b16 %v2005, %v2004
        %2022 = vmatpush.bf16.msra.mxu0 %v2013
        %2023 = vmatpush.bf16.msra.mxu0 %v2012
        %2024 = vmatpush.bf16.msra.mxu0 %v2011
        %2025 = vmatpush.bf16.msra.mxu0 %v2010
        %2026 = vmatpush.bf16.msra.mxu0 %v2009
        %2027 = vmatpush.bf16.msra.mxu0 %v2008
        %2028 = vmatpush.bf16.msra.mxu0 %v2007
        %2029 = vmatpush.bf16.msra.mxu0 %v2006
        %2030 = vmatmul.bf16.gmra.mxu0 %v1960
        %v2031 = vpop.f32.mrf.mxu0
        %v2032 = vadd.f32 %v1931, %v2031
        %v2033 = vpop.f32.mrf.mxu0
        %v2034 = vadd.f32 %v1933, %v2033
        %2035 = vmatmul.bf16.gmra.mxu0 %v1962
        %v2036 = vpop.f32.mrf.mxu0
        %v2037 = vadd.f32 %v1936, %v2036
        %v2038 = vpop.f32.mrf.mxu0
        %v2039 = vadd.f32 %v1938, %v2038
        %2040 = vmatmul.bf16.gmra.mxu0 %v1964
        %v2041 = vpop.f32.mrf.mxu0
        %v2042 = vadd.f32 %v1941, %v2041
        %v2043 = vpop.f32.mrf.mxu0
        %v2044 = vadd.f32 %v1943, %v2043
        %2045 = vmatmul.bf16.gmra.mxu0 %v1966
        %v2046 = vpop.f32.mrf.mxu0
        %v2047 = vadd.f32 %v1946, %v2046
        %v2048 = vpop.f32.mrf.mxu0
        %v2049 = vadd.f32 %v1948, %v2048
        %2050 = vmatmul.bf16.gmra.mxu0 %v1968
        %v2051 = vpop.f32.mrf.mxu0
        %v2052 = vadd.f32 %v1951, %v2051
        %v2053 = vpop.f32.mrf.mxu0
        %v2054 = vadd.f32 %v1953, %v2053
        %2055 = vdwg.mxu0
        %v2056 = vld [vmem:[#allocation3 + $0x4] sm:$0xc]
        %s2057 = scalar_lea.vmem [#allocation4], 704
        %v2058 = vld [vmem:[%s2057] sm:$0xf]
        %v2059 = vld [vmem:[%s2057 + $0x4] sm:$0xf]
        %v2060 = vld [vmem:[%s2057 + $0x8] sm:$0xf]
        %v2061 = vld [vmem:[%s2057 + $0xc] sm:$0xf]
        %v2062 = vld [vmem:[%s2057 + $0x10] sm:$0xf]
        %v2063 = vld [vmem:[%s2057 + $0x14] sm:$0xf]
        %v2064 = vld [vmem:[%s2057 + $0x18] sm:$0xf]
        %v2065 = vld [vmem:[%s2057 + $0x1c] sm:$0xf]
        %v2066 = vld [vmem:[%s2057 + $0x20] sm:$0xf]
        %v2067 = vld [vmem:[%s2057 + $0x24] sm:$0xf]
        %v2068 = vld [vmem:[%s2057 + $0x28] sm:$0xf]
        %v2069 = vld [vmem:[%s2057 + $0x2c] sm:$0xf]
        %v2070 = vld [vmem:[%s2057 + $0x30] sm:$0xf]
        %v2071 = vld [vmem:[%s2057 + $0x34] sm:$0xf]
        %v2072 = vld [vmem:[%s2057 + $0x38] sm:$0xf]
        %v2073 = vld [vmem:[%s2057 + $0x3c] sm:$0xf]
        %v2075 = vunpack.c.l.b16 %v2056
        %v2076 = vpack.c.b16 %v1799, %v2075
        %v2077 = vrot.slane %v2076, 2
        %v2078 = vrot.slane %v1810, 2
        %v2079 = vsel %vm676, %v2077, %v2078
        %v2080 = vrot.slane %v1811, 2
        %v2081 = vsel %vm676, %v2078, %v2080
        %v2082 = vrot.slane %v1812, 2
        %v2083 = vsel %vm676, %v2080, %v2082
        %v2084 = vrot.slane %v1813, 2
        %v2085 = vsel %vm676, %v2082, %v2084
        %v2086 = vrot.slane %v1814, 2
        %v2087 = vsel %vm676, %v2084, %v2086
        %v2109 = vunpack.c.l.b16 %v2058
        %v2110 = vunpack.c.l.b16 %v2059
        %v2111 = vunpack.c.l.b16 %v2060
        %v2112 = vunpack.c.l.b16 %v2061
        %v2113 = vunpack.c.l.b16 %v2062
        %v2114 = vunpack.c.l.b16 %v2063
        %v2115 = vunpack.c.l.b16 %v2064
        %v2116 = vunpack.c.l.b16 %v2065
        %v2117 = vunpack.c.l.b16 %v2066
        %v2118 = vunpack.c.l.b16 %v2067
        %v2119 = vunpack.c.l.b16 %v2068
        %v2120 = vunpack.c.l.b16 %v2069
        %v2121 = vunpack.c.l.b16 %v2070
        %v2122 = vunpack.c.l.b16 %v2071
        %v2123 = vunpack.c.l.b16 %v2072
        %v2124 = vunpack.c.l.b16 %v2073
        %v2125 = vpack.c.b16 %v2110, %v2109
        %v2126 = vpack.c.b16 %v2112, %v2111
        %v2127 = vpack.c.b16 %v2114, %v2113
        %v2128 = vpack.c.b16 %v2116, %v2115
        %v2129 = vpack.c.b16 %v2118, %v2117
        %v2130 = vpack.c.b16 %v2120, %v2119
        %v2131 = vpack.c.b16 %v2122, %v2121
        %v2132 = vpack.c.b16 %v2124, %v2123
        %2141 = vmatpush.bf16.msra.mxu0 %v2132
        %2142 = vmatpush.bf16.msra.mxu0 %v2131
        %2143 = vmatpush.bf16.msra.mxu0 %v2130
        %2144 = vmatpush.bf16.msra.mxu0 %v2129
        %2145 = vmatpush.bf16.msra.mxu0 %v2128
        %2146 = vmatpush.bf16.msra.mxu0 %v2127
        %2147 = vmatpush.bf16.msra.mxu0 %v2126
        %2148 = vmatpush.bf16.msra.mxu0 %v2125
        %2149 = vmatmul.bf16.gmra.mxu0 %v2079
        %v2150 = vpop.f32.mrf.mxu0
        %v2151 = vadd.f32 0.0, %v2150
        %v2152 = vpop.f32.mrf.mxu0
        %v2153 = vadd.f32 0.0, %v2152
        %2154 = vmatmul.bf16.gmra.mxu0 %v2081
        %v2155 = vpop.f32.mrf.mxu0
        %v2156 = vadd.f32 0.0, %v2155
        %v2157 = vpop.f32.mrf.mxu0
        %v2158 = vadd.f32 0.0, %v2157
        %2159 = vmatmul.bf16.gmra.mxu0 %v2083
        %v2160 = vpop.f32.mrf.mxu0
        %v2161 = vadd.f32 0.0, %v2160
        %v2162 = vpop.f32.mrf.mxu0
        %v2163 = vadd.f32 0.0, %v2162
        %2164 = vmatmul.bf16.gmra.mxu0 %v2085
        %v2165 = vpop.f32.mrf.mxu0
        %v2166 = vadd.f32 0.0, %v2165
        %v2167 = vpop.f32.mrf.mxu0
        %v2168 = vadd.f32 0.0, %v2167
        %2169 = vmatmul.bf16.gmra.mxu0 %v2087
        %v2170 = vpop.f32.mrf.mxu0
        %v2171 = vadd.f32 0.0, %v2170
        %v2172 = vpop.f32.mrf.mxu0
        %v2173 = vadd.f32 0.0, %v2172
        %2174 = vdwg.mxu0
        %v2175 = vadd.f32 %v2032, %v2151
        %v2176 = vadd.f32 %v2034, %v2153
        %v2177 = vadd.f32 %v2037, %v2156
        %v2178 = vadd.f32 %v2039, %v2158
        %v2179 = vadd.f32 %v2042, %v2161
        %v2180 = vadd.f32 %v2044, %v2163
        %v2181 = vadd.f32 %v2047, %v2166
        %v2182 = vadd.f32 %v2049, %v2168
        %v2183 = vadd.f32 %v2052, %v2171
        %v2184 = vadd.f32 %v2054, %v2173
        %v2185 = vld [vmem:[#allocation3 + $0x4] sm:$0x8]
        %v2186 = vld [vmem:[#allocation3 + $0x2c] sm:$0xf]
        %s2187 = scalar_lea.vmem [#allocation4], 768
        %v2188 = vld [vmem:[%s2187] sm:$0xf]
        %v2189 = vld [vmem:[%s2187 + $0x4] sm:$0xf]
        %v2190 = vld [vmem:[%s2187 + $0x8] sm:$0xf]
        %v2191 = vld [vmem:[%s2187 + $0xc] sm:$0xf]
        %v2192 = vld [vmem:[%s2187 + $0x10] sm:$0xf]
        %v2193 = vld [vmem:[%s2187 + $0x14] sm:$0xf]
        %v2194 = vld [vmem:[%s2187 + $0x18] sm:$0xf]
        %v2195 = vld [vmem:[%s2187 + $0x1c] sm:$0xf]
        %v2196 = vld [vmem:[%s2187 + $0x20] sm:$0xf]
        %v2197 = vld [vmem:[%s2187 + $0x24] sm:$0xf]
        %v2198 = vld [vmem:[%s2187 + $0x28] sm:$0xf]
        %v2199 = vld [vmem:[%s2187 + $0x2c] sm:$0xf]
        %v2200 = vld [vmem:[%s2187 + $0x30] sm:$0xf]
        %v2201 = vld [vmem:[%s2187 + $0x34] sm:$0xf]
        %v2202 = vld [vmem:[%s2187 + $0x38] sm:$0xf]
        %v2203 = vld [vmem:[%s2187 + $0x3c] sm:$0xf]
        %v2206 = vunpack.c.l.b16 %v2185
        %v2207 = vunpack.c.l.b16 %v2186
        %v2208 = vpack.c.b16 %v1799, %v2206
        %v2209 = vpack.c.b16 %v2207, %v2207
        %v2211 = vshrl.u32 %v2208, 16
        %v2213 = vrot.slane %v2211, 3
        %v2214 = vshll.u32 %v2208, 16
        %v2216 = vrot.slane %v2214, 4
        %v2217 = vor.u32 %v2213, %v2216
        %v2218 = vrot.slane %v1824, 3
        %v2219 = vrot.slane %v1827, 4
        %v2220 = vor.u32 %v2218, %v2219
        %v2221 = vsel %vm810, %v2217, %v2220
        %v2222 = vrot.slane %v1833, 3
        %v2223 = vrot.slane %v1836, 4
        %v2224 = vor.u32 %v2222, %v2223
        %v2225 = vsel %vm810, %v2220, %v2224
        %v2226 = vrot.slane %v1842, 3
        %v2227 = vrot.slane %v1845, 4
        %v2228 = vor.u32 %v2226, %v2227
        %v2229 = vsel %vm810, %v2224, %v2228
        %v2230 = vrot.slane %v1851, 3
        %v2231 = vrot.slane %v1854, 4
        %v2232 = vor.u32 %v2230, %v2231
        %v2233 = vsel %vm810, %v2228, %v2232
        %v2235 = vshrl.u32 %v2209, 16
        %v2237 = vrot.slane %v2235, 3
        %v2238 = vshll.u32 %v2209, 16
        %v2240 = vrot.slane %v2238, 4
        %v2241 = vor.u32 %v2237, %v2240
        %v2242 = vsel %vm810, %v2232, %v2241
        %v2264 = vunpack.c.l.b16 %v2188
        %v2265 = vunpack.c.l.b16 %v2189
        %v2266 = vunpack.c.l.b16 %v2190
        %v2267 = vunpack.c.l.b16 %v2191
        %v2268 = vunpack.c.l.b16 %v2192
        %v2269 = vunpack.c.l.b16 %v2193
        %v2270 = vunpack.c.l.b16 %v2194
        %v2271 = vunpack.c.l.b16 %v2195
        %v2272 = vunpack.c.l.b16 %v2196
        %v2273 = vunpack.c.l.b16 %v2197
        %v2274 = vunpack.c.l.b16 %v2198
        %v2275 = vunpack.c.l.b16 %v2199
        %v2276 = vunpack.c.l.b16 %v2200
        %v2277 = vunpack.c.l.b16 %v2201
        %v2278 = vunpack.c.l.b16 %v2202
        %v2279 = vunpack.c.l.b16 %v2203
        %v2280 = vpack.c.b16 %v2265, %v2264
        %v2281 = vpack.c.b16 %v2267, %v2266
        %v2282 = vpack.c.b16 %v2269, %v2268
        %v2283 = vpack.c.b16 %v2271, %v2270
        %v2284 = vpack.c.b16 %v2273, %v2272
        %v2285 = vpack.c.b16 %v2275, %v2274
        %v2286 = vpack.c.b16 %v2277, %v2276
        %v2287 = vpack.c.b16 %v2279, %v2278
        %2296 = vmatpush.bf16.msra.mxu0 %v2287
        %2297 = vmatpush.bf16.msra.mxu0 %v2286
        %2298 = vmatpush.bf16.msra.mxu0 %v2285
        %2299 = vmatpush.bf16.msra.mxu0 %v2284
        %2300 = vmatpush.bf16.msra.mxu0 %v2283
        %2301 = vmatpush.bf16.msra.mxu0 %v2282
        %2302 = vmatpush.bf16.msra.mxu0 %v2281
        %2303 = vmatpush.bf16.msra.mxu0 %v2280
        %2304 = vmatmul.bf16.gmra.mxu0 %v2221
        %v2305 = vpop.f32.mrf.mxu0
        %v2306 = vadd.f32 0.0, %v2305
        %v2307 = vpop.f32.mrf.mxu0
        %v2308 = vadd.f32 0.0, %v2307
        %2309 = vmatmul.bf16.gmra.mxu0 %v2225
        %v2310 = vpop.f32.mrf.mxu0
        %v2311 = vadd.f32 0.0, %v2310
        %v2312 = vpop.f32.mrf.mxu0
        %v2313 = vadd.f32 0.0, %v2312
        %2314 = vmatmul.bf16.gmra.mxu0 %v2229
        %v2315 = vpop.f32.mrf.mxu0
        %v2316 = vadd.f32 0.0, %v2315
        %v2317 = vpop.f32.mrf.mxu0
        %v2318 = vadd.f32 0.0, %v2317
        %2319 = vmatmul.bf16.gmra.mxu0 %v2233
        %v2320 = vpop.f32.mrf.mxu0
        %v2321 = vadd.f32 0.0, %v2320
        %v2322 = vpop.f32.mrf.mxu0
        %v2323 = vadd.f32 0.0, %v2322
        %2324 = vmatmul.bf16.gmra.mxu0 %v2242
        %v2325 = vpop.f32.mrf.mxu0
        %v2326 = vadd.f32 0.0, %v2325
        %v2327 = vpop.f32.mrf.mxu0
        %v2328 = vadd.f32 0.0, %v2327
        %2329 = vdwg.mxu0
        %v2330 = vadd.f32 %v2175, %v2306
        %v2331 = vadd.f32 %v2176, %v2308
        %v2332 = vadd.f32 %v2177, %v2311
        %v2333 = vadd.f32 %v2178, %v2313
        %v2334 = vadd.f32 %v2179, %v2316
        %v2335 = vadd.f32 %v2180, %v2318
        %v2336 = vadd.f32 %v2181, %v2321
        %v2337 = vadd.f32 %v2182, %v2323
        %v2338 = vadd.f32 %v2183, %v2326
        %v2339 = vadd.f32 %v2184, %v2328
        %s2340 = scalar_lea.vmem [#allocation4], 832
        %v2341 = vld [vmem:[%s2340] sm:$0xf]
        %v2342 = vld [vmem:[%s2340 + $0x4] sm:$0xf]
        %v2343 = vld [vmem:[%s2340 + $0x8] sm:$0xf]
        %v2344 = vld [vmem:[%s2340 + $0xc] sm:$0xf]
        %v2345 = vld [vmem:[%s2340 + $0x10] sm:$0xf]
        %v2346 = vld [vmem:[%s2340 + $0x14] sm:$0xf]
        %v2347 = vld [vmem:[%s2340 + $0x18] sm:$0xf]
        %v2348 = vld [vmem:[%s2340 + $0x1c] sm:$0xf]
        %v2349 = vld [vmem:[%s2340 + $0x20] sm:$0xf]
        %v2350 = vld [vmem:[%s2340 + $0x24] sm:$0xf]
        %v2351 = vld [vmem:[%s2340 + $0x28] sm:$0xf]
        %v2352 = vld [vmem:[%s2340 + $0x2c] sm:$0xf]
        %v2353 = vld [vmem:[%s2340 + $0x30] sm:$0xf]
        %v2354 = vld [vmem:[%s2340 + $0x34] sm:$0xf]
        %v2355 = vld [vmem:[%s2340 + $0x38] sm:$0xf]
        %v2356 = vld [vmem:[%s2340 + $0x3c] sm:$0xf]
        %v2357 = vpack.c.b16 %v1800, %v1799
        %v2358 = vpack.c.b16 %v1802, %v1801
        %v2359 = vpack.c.b16 %v1804, %v1803
        %v2360 = vpack.c.b16 %v1806, %v1805
        %v2361 = vpack.c.b16 %v2207, %v1807
        %v2383 = vunpack.c.l.b16 %v2341
        %v2384 = vunpack.c.l.b16 %v2342
        %v2385 = vunpack.c.l.b16 %v2343
        %v2386 = vunpack.c.l.b16 %v2344
        %v2387 = vunpack.c.l.b16 %v2345
        %v2388 = vunpack.c.l.b16 %v2346
        %v2389 = vunpack.c.l.b16 %v2347
        %v2390 = vunpack.c.l.b16 %v2348
        %v2391 = vunpack.c.l.b16 %v2349
        %v2392 = vunpack.c.l.b16 %v2350
        %v2393 = vunpack.c.l.b16 %v2351
        %v2394 = vunpack.c.l.b16 %v2352
        %v2395 = vunpack.c.l.b16 %v2353
        %v2396 = vunpack.c.l.b16 %v2354
        %v2397 = vunpack.c.l.b16 %v2355
        %v2398 = vunpack.c.l.b16 %v2356
        %v2399 = vpack.c.b16 %v2384, %v2383
        %v2400 = vpack.c.b16 %v2386, %v2385
        %v2401 = vpack.c.b16 %v2388, %v2387
        %v2402 = vpack.c.b16 %v2390, %v2389
        %v2403 = vpack.c.b16 %v2392, %v2391
        %v2404 = vpack.c.b16 %v2394, %v2393
        %v2405 = vpack.c.b16 %v2396, %v2395
        %v2406 = vpack.c.b16 %v2398, %v2397
        %2415 = vmatpush.bf16.msra.mxu0 %v2406
        %2416 = vmatpush.bf16.msra.mxu0 %v2405
        %2417 = vmatpush.bf16.msra.mxu0 %v2404
        %2418 = vmatpush.bf16.msra.mxu0 %v2403
        %2419 = vmatpush.bf16.msra.mxu0 %v2402
        %2420 = vmatpush.bf16.msra.mxu0 %v2401
        %2421 = vmatpush.bf16.msra.mxu0 %v2400
        %2422 = vmatpush.bf16.msra.mxu0 %v2399
        %2423 = vmatmul.bf16.gmra.mxu0 %v2357
        %v2424 = vpop.f32.mrf.mxu0
        %v2425 = vadd.f32 0.0, %v2424
        %v2426 = vpop.f32.mrf.mxu0
        %v2427 = vadd.f32 0.0, %v2426
        %2428 = vmatmul.bf16.gmra.mxu0 %v2358
        %v2429 = vpop.f32.mrf.mxu0
        %v2430 = vadd.f32 0.0, %v2429
        %v2431 = vpop.f32.mrf.mxu0
        %v2432 = vadd.f32 0.0, %v2431
        %2433 = vmatmul.bf16.gmra.mxu0 %v2359
        %v2434 = vpop.f32.mrf.mxu0
        %v2435 = vadd.f32 0.0, %v2434
        %v2436 = vpop.f32.mrf.mxu0
        %v2437 = vadd.f32 0.0, %v2436
        %2438 = vmatmul.bf16.gmra.mxu0 %v2360
        %v2439 = vpop.f32.mrf.mxu0
        %v2440 = vadd.f32 0.0, %v2439
        %v2441 = vpop.f32.mrf.mxu0
        %v2442 = vadd.f32 0.0, %v2441
        %2443 = vmatmul.bf16.gmra.mxu0 %v2361
        %v2444 = vpop.f32.mrf.mxu0
        %v2445 = vadd.f32 0.0, %v2444
        %v2446 = vpop.f32.mrf.mxu0
        %v2447 = vadd.f32 0.0, %v2446
        %2448 = vdwg.mxu0
        %v2449 = vadd.f32 %v2330, %v2425
        %v2450 = vadd.f32 %v2331, %v2427
        %v2451 = vadd.f32 %v2332, %v2430
        %v2452 = vadd.f32 %v2333, %v2432
        %v2453 = vadd.f32 %v2334, %v2435
        %v2454 = vadd.f32 %v2335, %v2437
        %v2455 = vadd.f32 %v2336, %v2440
        %v2456 = vadd.f32 %v2337, %v2442
        %v2457 = vadd.f32 %v2338, %v2445
        %v2458 = vadd.f32 %v2339, %v2447
        %v2459 = vld [vmem:[#allocation3 + $0x8] sm:$0xf]
        %v2460 = vld [vmem:[#allocation3 + $0xc] sm:$0xf]
        %v2461 = vld [vmem:[#allocation3 + $0x10] sm:$0xf]
        %v2462 = vld [vmem:[#allocation3 + $0x14] sm:$0xf]
        %v2463 = vld [vmem:[#allocation3 + $0x18] sm:$0xf]
        %v2464 = vld [vmem:[#allocation3 + $0x1c] sm:$0xf]
        %v2465 = vld [vmem:[#allocation3 + $0x20] sm:$0xf]
        %v2466 = vld [vmem:[#allocation3 + $0x24] sm:$0xf]
        %v2467 = vld [vmem:[#allocation3 + $0x28] sm:$0xf]
        %v2468 = vld [vmem:[#allocation3 + $0x2c] sm:$0xf]
        %v2469 = vld [vmem:[#allocation3 + $0x30] sm:$0x1]
        %s2470 = scalar_lea.vmem [#allocation4], 896
        %v2471 = vld [vmem:[%s2470] sm:$0xf]
        %v2472 = vld [vmem:[%s2470 + $0x4] sm:$0xf]
        %v2473 = vld [vmem:[%s2470 + $0x8] sm:$0xf]
        %v2474 = vld [vmem:[%s2470 + $0xc] sm:$0xf]
        %v2475 = vld [vmem:[%s2470 + $0x10] sm:$0xf]
        %v2476 = vld [vmem:[%s2470 + $0x14] sm:$0xf]
        %v2477 = vld [vmem:[%s2470 + $0x18] sm:$0xf]
        %v2478 = vld [vmem:[%s2470 + $0x1c] sm:$0xf]
        %v2479 = vld [vmem:[%s2470 + $0x20] sm:$0xf]
        %v2480 = vld [vmem:[%s2470 + $0x24] sm:$0xf]
        %v2481 = vld [vmem:[%s2470 + $0x28] sm:$0xf]
        %v2482 = vld [vmem:[%s2470 + $0x2c] sm:$0xf]
        %v2483 = vld [vmem:[%s2470 + $0x30] sm:$0xf]
        %v2484 = vld [vmem:[%s2470 + $0x34] sm:$0xf]
        %v2485 = vld [vmem:[%s2470 + $0x38] sm:$0xf]
        %v2486 = vld [vmem:[%s2470 + $0x3c] sm:$0xf]
        %v2498 = vunpack.c.l.b16 %v2459
        %v2499 = vunpack.c.l.b16 %v2460
        %v2500 = vunpack.c.l.b16 %v2461
        %v2501 = vunpack.c.l.b16 %v2462
        %v2502 = vunpack.c.l.b16 %v2463
        %v2503 = vunpack.c.l.b16 %v2464
        %v2504 = vunpack.c.l.b16 %v2465
        %v2505 = vunpack.c.l.b16 %v2466
        %v2506 = vunpack.c.l.b16 %v2467
        %v2507 = vunpack.c.l.b16 %v2468
        %v2508 = vunpack.c.l.b16 %v2469
        %v2509 = vpack.c.b16 %v2499, %v2498
        %v2510 = vpack.c.b16 %v2501, %v2500
        %v2511 = vpack.c.b16 %v2503, %v2502
        %v2512 = vpack.c.b16 %v2505, %v2504
        %v2513 = vpack.c.b16 %v2507, %v2506
        %v2514 = vpack.c.b16 %v2508, %v2508
        %v2516 = vshrl.u32 %v2509, 16
        %v2518 = vshll.u32 %v2509, 16
        %v2520 = vrot.slane %v2518, 1
        %v2521 = vor.u32 %v2516, %v2520
        %v2523 = vshll.u32 %v2510, 16
        %v2525 = vrot.slane %v2523, 1
        %v2526 = vsel %vm1116, %v2521, %v2525
        %v2527 = vshrl.u32 %v2510, 16
        %v2529 = vor.u32 %v2527, %v2525
        %v2531 = vshll.u32 %v2511, 16
        %v2533 = vrot.slane %v2531, 1
        %v2534 = vsel %vm1116, %v2529, %v2533
        %v2535 = vshrl.u32 %v2511, 16
        %v2537 = vor.u32 %v2535, %v2533
        %v2539 = vshll.u32 %v2512, 16
        %v2541 = vrot.slane %v2539, 1
        %v2542 = vsel %vm1116, %v2537, %v2541
        %v2543 = vshrl.u32 %v2512, 16
        %v2545 = vor.u32 %v2543, %v2541
        %v2547 = vshll.u32 %v2513, 16
        %v2549 = vrot.slane %v2547, 1
        %v2550 = vsel %vm1116, %v2545, %v2549
        %v2551 = vshrl.u32 %v2513, 16
        %v2553 = vor.u32 %v2551, %v2549
        %v2555 = vshll.u32 %v2514, 16
        %v2557 = vrot.slane %v2555, 1
        %v2558 = vsel %vm1116, %v2553, %v2557
        %v2580 = vunpack.c.l.b16 %v2471
        %v2581 = vunpack.c.l.b16 %v2472
        %v2582 = vunpack.c.l.b16 %v2473
        %v2583 = vunpack.c.l.b16 %v2474
        %v2584 = vunpack.c.l.b16 %v2475
        %v2585 = vunpack.c.l.b16 %v2476
        %v2586 = vunpack.c.l.b16 %v2477
        %v2587 = vunpack.c.l.b16 %v2478
        %v2588 = vunpack.c.l.b16 %v2479
        %v2589 = vunpack.c.l.b16 %v2480
        %v2590 = vunpack.c.l.b16 %v2481
        %v2591 = vunpack.c.l.b16 %v2482
        %v2592 = vunpack.c.l.b16 %v2483
        %v2593 = vunpack.c.l.b16 %v2484
        %v2594 = vunpack.c.l.b16 %v2485
        %v2595 = vunpack.c.l.b16 %v2486
        %v2596 = vpack.c.b16 %v2581, %v2580
        %v2597 = vpack.c.b16 %v2583, %v2582
        %v2598 = vpack.c.b16 %v2585, %v2584
        %v2599 = vpack.c.b16 %v2587, %v2586
        %v2600 = vpack.c.b16 %v2589, %v2588
        %v2601 = vpack.c.b16 %v2591, %v2590
        %v2602 = vpack.c.b16 %v2593, %v2592
        %v2603 = vpack.c.b16 %v2595, %v2594
        %2612 = vmatpush.bf16.msra.mxu0 %v2603
        %2613 = vmatpush.bf16.msra.mxu0 %v2602
        %2614 = vmatpush.bf16.msra.mxu0 %v2601
        %2615 = vmatpush.bf16.msra.mxu0 %v2600
        %2616 = vmatpush.bf16.msra.mxu0 %v2599
        %2617 = vmatpush.bf16.msra.mxu0 %v2598
        %2618 = vmatpush.bf16.msra.mxu0 %v2597
        %2619 = vmatpush.bf16.msra.mxu0 %v2596
        %2620 = vmatmul.bf16.gmra.mxu0 %v2526
        %v2621 = vpop.f32.mrf.mxu0
        %v2622 = vadd.f32 0.0, %v2621
        %v2623 = vpop.f32.mrf.mxu0
        %v2624 = vadd.f32 0.0, %v2623
        %2625 = vmatmul.bf16.gmra.mxu0 %v2534
        %v2626 = vpop.f32.mrf.mxu0
        %v2627 = vadd.f32 0.0, %v2626
        %v2628 = vpop.f32.mrf.mxu0
        %v2629 = vadd.f32 0.0, %v2628
        %2630 = vmatmul.bf16.gmra.mxu0 %v2542
        %v2631 = vpop.f32.mrf.mxu0
        %v2632 = vadd.f32 0.0, %v2631
        %v2633 = vpop.f32.mrf.mxu0
        %v2634 = vadd.f32 0.0, %v2633
        %2635 = vmatmul.bf16.gmra.mxu0 %v2550
        %v2636 = vpop.f32.mrf.mxu0
        %v2637 = vadd.f32 0.0, %v2636
        %v2638 = vpop.f32.mrf.mxu0
        %v2639 = vadd.f32 0.0, %v2638
        %2640 = vmatmul.bf16.gmra.mxu0 %v2558
        %v2641 = vpop.f32.mrf.mxu0
        %v2642 = vadd.f32 0.0, %v2641
        %v2643 = vpop.f32.mrf.mxu0
        %v2644 = vadd.f32 0.0, %v2643
        %2645 = vdwg.mxu0
        %v2646 = vadd.f32 %v2449, %v2622
        %v2647 = vadd.f32 %v2450, %v2624
        %v2648 = vadd.f32 %v2451, %v2627
        %v2649 = vadd.f32 %v2452, %v2629
        %v2650 = vadd.f32 %v2453, %v2632
        %v2651 = vadd.f32 %v2454, %v2634
        %v2652 = vadd.f32 %v2455, %v2637
        %v2653 = vadd.f32 %v2456, %v2639
        %v2654 = vadd.f32 %v2457, %v2642
        %v2655 = vadd.f32 %v2458, %v2644
        %v2656 = vld [vmem:[#allocation3 + $0x8] sm:$0xc]
        %v2657 = vld [vmem:[#allocation3 + $0x30] sm:$0x3]
        %s2658 = scalar_lea.vmem [#allocation4], 960
        %v2659 = vld [vmem:[%s2658] sm:$0xf]
        %v2660 = vld [vmem:[%s2658 + $0x4] sm:$0xf]
        %v2661 = vld [vmem:[%s2658 + $0x8] sm:$0xf]
        %v2662 = vld [vmem:[%s2658 + $0xc] sm:$0xf]
        %v2663 = vld [vmem:[%s2658 + $0x10] sm:$0xf]
        %v2664 = vld [vmem:[%s2658 + $0x14] sm:$0xf]
        %v2665 = vld [vmem:[%s2658 + $0x18] sm:$0xf]
        %v2666 = vld [vmem:[%s2658 + $0x1c] sm:$0xf]
        %v2667 = vld [vmem:[%s2658 + $0x20] sm:$0xf]
        %v2668 = vld [vmem:[%s2658 + $0x24] sm:$0xf]
        %v2669 = vld [vmem:[%s2658 + $0x28] sm:$0xf]
        %v2670 = vld [vmem:[%s2658 + $0x2c] sm:$0xf]
        %v2671 = vld [vmem:[%s2658 + $0x30] sm:$0xf]
        %v2672 = vld [vmem:[%s2658 + $0x34] sm:$0xf]
        %v2673 = vld [vmem:[%s2658 + $0x38] sm:$0xf]
        %v2674 = vld [vmem:[%s2658 + $0x3c] sm:$0xf]
        %v2677 = vunpack.c.l.b16 %v2656
        %v2678 = vunpack.c.l.b16 %v2657
        %v2679 = vpack.c.b16 %v2499, %v2677
        %v2680 = vpack.c.b16 %v2678, %v2678
        %v2681 = vrot.slane %v2679, 2
        %v2682 = vrot.slane %v2510, 2
        %v2683 = vsel %vm676, %v2681, %v2682
        %v2684 = vrot.slane %v2511, 2
        %v2685 = vsel %vm676, %v2682, %v2684
        %v2686 = vrot.slane %v2512, 2
        %v2687 = vsel %vm676, %v2684, %v2686
        %v2688 = vrot.slane %v2513, 2
        %v2689 = vsel %vm676, %v2686, %v2688
        %v2690 = vrot.slane %v2680, 2
        %v2691 = vsel %vm676, %v2688, %v2690
        %v2713 = vunpack.c.l.b16 %v2659
        %v2714 = vunpack.c.l.b16 %v2660
        %v2715 = vunpack.c.l.b16 %v2661
        %v2716 = vunpack.c.l.b16 %v2662
        %v2717 = vunpack.c.l.b16 %v2663
        %v2718 = vunpack.c.l.b16 %v2664
        %v2719 = vunpack.c.l.b16 %v2665
        %v2720 = vunpack.c.l.b16 %v2666
        %v2721 = vunpack.c.l.b16 %v2667
        %v2722 = vunpack.c.l.b16 %v2668
        %v2723 = vunpack.c.l.b16 %v2669
        %v2724 = vunpack.c.l.b16 %v2670
        %v2725 = vunpack.c.l.b16 %v2671
        %v2726 = vunpack.c.l.b16 %v2672
        %v2727 = vunpack.c.l.b16 %v2673
        %v2728 = vunpack.c.l.b16 %v2674
        %v2729 = vpack.c.b16 %v2714, %v2713
        %v2730 = vpack.c.b16 %v2716, %v2715
        %v2731 = vpack.c.b16 %v2718, %v2717
        %v2732 = vpack.c.b16 %v2720, %v2719
        %v2733 = vpack.c.b16 %v2722, %v2721
        %v2734 = vpack.c.b16 %v2724, %v2723
        %v2735 = vpack.c.b16 %v2726, %v2725
        %v2736 = vpack.c.b16 %v2728, %v2727
        %2745 = vmatpush.bf16.msra.mxu0 %v2736
        %2746 = vmatpush.bf16.msra.mxu0 %v2735
        %2747 = vmatpush.bf16.msra.mxu0 %v2734
        %2748 = vmatpush.bf16.msra.mxu0 %v2733
        %2749 = vmatpush.bf16.msra.mxu0 %v2732
        %2750 = vmatpush.bf16.msra.mxu0 %v2731
        %2751 = vmatpush.bf16.msra.mxu0 %v2730
        %2752 = vmatpush.bf16.msra.mxu0 %v2729
        %2753 = vmatmul.bf16.gmra.mxu0 %v2683
        %v2754 = vpop.f32.mrf.mxu0
        %v2755 = vadd.f32 0.0, %v2754
        %v2756 = vpop.f32.mrf.mxu0
        %v2757 = vadd.f32 0.0, %v2756
        %2758 = vmatmul.bf16.gmra.mxu0 %v2685
        %v2759 = vpop.f32.mrf.mxu0
        %v2760 = vadd.f32 0.0, %v2759
        %v2761 = vpop.f32.mrf.mxu0
        %v2762 = vadd.f32 0.0, %v2761
        %2763 = vmatmul.bf16.gmra.mxu0 %v2687
        %v2764 = vpop.f32.mrf.mxu0
        %v2765 = vadd.f32 0.0, %v2764
        %v2766 = vpop.f32.mrf.mxu0
        %v2767 = vadd.f32 0.0, %v2766
        %2768 = vmatmul.bf16.gmra.mxu0 %v2689
        %v2769 = vpop.f32.mrf.mxu0
        %v2770 = vadd.f32 0.0, %v2769
        %v2771 = vpop.f32.mrf.mxu0
        %v2772 = vadd.f32 0.0, %v2771
        %2773 = vmatmul.bf16.gmra.mxu0 %v2691
        %v2774 = vpop.f32.mrf.mxu0
        %v2775 = vadd.f32 0.0, %v2774
        %v2776 = vpop.f32.mrf.mxu0
        %v2777 = vadd.f32 0.0, %v2776
        %2778 = vdwg.mxu0
        %v2779 = vadd.f32 %v2646, %v2755
        %v2780 = vadd.f32 %v2647, %v2757
        %v2781 = vadd.f32 %v2648, %v2760
        %v2782 = vadd.f32 %v2649, %v2762
        %v2783 = vadd.f32 %v2650, %v2765
        %v2784 = vadd.f32 %v2651, %v2767
        %v2785 = vadd.f32 %v2652, %v2770
        %v2786 = vadd.f32 %v2653, %v2772
        %v2787 = vadd.f32 %v2654, %v2775
        %v2788 = vadd.f32 %v2655, %v2777
        %v2789 = vld [vmem:[#allocation3 + $0x30] sm:$0x7]
        %s2790 = scalar_lea.vmem [#allocation4], 1024
        %v2791 = vld [vmem:[%s2790] sm:$0xf]
        %v2792 = vld [vmem:[%s2790 + $0x4] sm:$0xf]
        %v2793 = vld [vmem:[%s2790 + $0x8] sm:$0xf]
        %v2794 = vld [vmem:[%s2790 + $0xc] sm:$0xf]
        %v2795 = vld [vmem:[%s2790 + $0x10] sm:$0xf]
        %v2796 = vld [vmem:[%s2790 + $0x14] sm:$0xf]
        %v2797 = vld [vmem:[%s2790 + $0x18] sm:$0xf]
        %v2798 = vld [vmem:[%s2790 + $0x1c] sm:$0xf]
        %v2799 = vld [vmem:[%s2790 + $0x20] sm:$0xf]
        %v2800 = vld [vmem:[%s2790 + $0x24] sm:$0xf]
        %v2801 = vld [vmem:[%s2790 + $0x28] sm:$0xf]
        %v2802 = vld [vmem:[%s2790 + $0x2c] sm:$0xf]
        %v2803 = vld [vmem:[%s2790 + $0x30] sm:$0xf]
        %v2804 = vld [vmem:[%s2790 + $0x34] sm:$0xf]
        %v2805 = vld [vmem:[%s2790 + $0x38] sm:$0xf]
        %v2806 = vld [vmem:[%s2790 + $0x3c] sm:$0xf]
        %v2808 = vunpack.c.l.b16 %v2789
        %v2809 = vpack.c.b16 %v2808, %v2808
        %v2811 = vshrl.u32 %v2679, 16
        %v2813 = vrot.slane %v2811, 2
        %v2814 = vshll.u32 %v2679, 16
        %v2816 = vrot.slane %v2814, 3
        %v2817 = vor.u32 %v2813, %v2816
        %v2818 = vrot.slane %v2527, 2
        %v2819 = vrot.slane %v2523, 3
        %v2820 = vor.u32 %v2818, %v2819
        %v2821 = vsel %vm1412, %v2817, %v2820
        %v2822 = vrot.slane %v2535, 2
        %v2823 = vrot.slane %v2531, 3
        %v2824 = vor.u32 %v2822, %v2823
        %v2825 = vsel %vm1412, %v2820, %v2824
        %v2826 = vrot.slane %v2543, 2
        %v2827 = vrot.slane %v2539, 3
        %v2828 = vor.u32 %v2826, %v2827
        %v2829 = vsel %vm1412, %v2824, %v2828
        %v2830 = vrot.slane %v2551, 2
        %v2831 = vrot.slane %v2547, 3
        %v2832 = vor.u32 %v2830, %v2831
        %v2833 = vsel %vm1412, %v2828, %v2832
        %v2835 = vshrl.u32 %v2809, 16
        %v2837 = vrot.slane %v2835, 2
        %v2838 = vshll.u32 %v2809, 16
        %v2840 = vrot.slane %v2838, 3
        %v2841 = vor.u32 %v2837, %v2840
        %v2842 = vsel %vm1412, %v2832, %v2841
        %v2864 = vunpack.c.l.b16 %v2791
        %v2865 = vunpack.c.l.b16 %v2792
        %v2866 = vunpack.c.l.b16 %v2793
        %v2867 = vunpack.c.l.b16 %v2794
        %v2868 = vunpack.c.l.b16 %v2795
        %v2869 = vunpack.c.l.b16 %v2796
        %v2870 = vunpack.c.l.b16 %v2797
        %v2871 = vunpack.c.l.b16 %v2798
        %v2872 = vunpack.c.l.b16 %v2799
        %v2873 = vunpack.c.l.b16 %v2800
        %v2874 = vunpack.c.l.b16 %v2801
        %v2875 = vunpack.c.l.b16 %v2802
        %v2876 = vunpack.c.l.b16 %v2803
        %v2877 = vunpack.c.l.b16 %v2804
        %v2878 = vunpack.c.l.b16 %v2805
        %v2879 = vunpack.c.l.b16 %v2806
        %v2880 = vpack.c.b16 %v2865, %v2864
        %v2881 = vpack.c.b16 %v2867, %v2866
        %v2882 = vpack.c.b16 %v2869, %v2868
        %v2883 = vpack.c.b16 %v2871, %v2870
        %v2884 = vpack.c.b16 %v2873, %v2872
        %v2885 = vpack.c.b16 %v2875, %v2874
        %v2886 = vpack.c.b16 %v2877, %v2876
        %v2887 = vpack.c.b16 %v2879, %v2878
        %2896 = vmatpush.bf16.msra.mxu0 %v2887
        %2897 = vmatpush.bf16.msra.mxu0 %v2886
        %2898 = vmatpush.bf16.msra.mxu0 %v2885
        %2899 = vmatpush.bf16.msra.mxu0 %v2884
        %2900 = vmatpush.bf16.msra.mxu0 %v2883
        %2901 = vmatpush.bf16.msra.mxu0 %v2882
        %2902 = vmatpush.bf16.msra.mxu0 %v2881
        %2903 = vmatpush.bf16.msra.mxu0 %v2880
        %2904 = vmatmul.bf16.gmra.mxu0 %v2821
        %v2905 = vpop.f32.mrf.mxu0
        %v2906 = vadd.f32 0.0, %v2905
        %v2907 = vpop.f32.mrf.mxu0
        %v2908 = vadd.f32 0.0, %v2907
        %2909 = vmatmul.bf16.gmra.mxu0 %v2825
        %v2910 = vpop.f32.mrf.mxu0
        %v2911 = vadd.f32 0.0, %v2910
        %v2912 = vpop.f32.mrf.mxu0
        %v2913 = vadd.f32 0.0, %v2912
        %2914 = vmatmul.bf16.gmra.mxu0 %v2829
        %v2915 = vpop.f32.mrf.mxu0
        %v2916 = vadd.f32 0.0, %v2915
        %v2917 = vpop.f32.mrf.mxu0
        %v2918 = vadd.f32 0.0, %v2917
        %2919 = vmatmul.bf16.gmra.mxu0 %v2833
        %v2920 = vpop.f32.mrf.mxu0
        %v2921 = vadd.f32 0.0, %v2920
        %v2922 = vpop.f32.mrf.mxu0
        %v2923 = vadd.f32 0.0, %v2922
        %2924 = vmatmul.bf16.gmra.mxu0 %v2842
        %v2925 = vpop.f32.mrf.mxu0
        %v2926 = vadd.f32 0.0, %v2925
        %v2927 = vpop.f32.mrf.mxu0
        %v2928 = vadd.f32 0.0, %v2927
        %2929 = vdwg.mxu0
        %v2930 = vadd.f32 %v2779, %v2906
        %v2931 = vadd.f32 %v2780, %v2908
        %v2932 = vadd.f32 %v2781, %v2911
        %v2933 = vadd.f32 %v2782, %v2913
        %v2934 = vadd.f32 %v2783, %v2916
        %v2935 = vadd.f32 %v2784, %v2918
        %v2936 = vadd.f32 %v2785, %v2921
        %v2937 = vadd.f32 %v2786, %v2923
        %v2938 = vadd.f32 %v2787, %v2926
        %v2939 = vadd.f32 %v2788, %v2928
        %v2940 = vld [vmem:[#allocation3 + $0x8] sm:$0x8]
        %s2941 = scalar_lea.vmem [#allocation4], 1088
        %v2942 = vld [vmem:[%s2941] sm:$0xf]
        %v2943 = vld [vmem:[%s2941 + $0x4] sm:$0xf]
        %v2944 = vld [vmem:[%s2941 + $0x8] sm:$0xf]
        %v2945 = vld [vmem:[%s2941 + $0xc] sm:$0xf]
        %v2946 = vld [vmem:[%s2941 + $0x10] sm:$0xf]
        %v2947 = vld [vmem:[%s2941 + $0x14] sm:$0xf]
        %v2948 = vld [vmem:[%s2941 + $0x18] sm:$0xf]
        %v2949 = vld [vmem:[%s2941 + $0x1c] sm:$0xf]
        %v2950 = vld [vmem:[%s2941 + $0x20] sm:$0xf]
        %v2951 = vld [vmem:[%s2941 + $0x24] sm:$0xf]
        %v2952 = vld [vmem:[%s2941 + $0x28] sm:$0xf]
        %v2953 = vld [vmem:[%s2941 + $0x2c] sm:$0xf]
        %v2954 = vld [vmem:[%s2941 + $0x30] sm:$0xf]
        %v2955 = vld [vmem:[%s2941 + $0x34] sm:$0xf]
        %v2956 = vld [vmem:[%s2941 + $0x38] sm:$0xf]
        %v2957 = vld [vmem:[%s2941 + $0x3c] sm:$0xf]
        %v2959 = vunpack.c.l.b16 %v2940
        %v2960 = vpack.c.b16 %v2499, %v2959
        %v2961 = vrot.slane %v2960, 3
        %v2962 = vrot.slane %v2510, 3
        %v2963 = vsel %vm1564, %v2961, %v2962
        %v2964 = vrot.slane %v2511, 3
        %v2965 = vsel %vm1564, %v2962, %v2964
        %v2966 = vrot.slane %v2512, 3
        %v2967 = vsel %vm1564, %v2964, %v2966
        %v2968 = vrot.slane %v2513, 3
        %v2969 = vsel %vm1564, %v2966, %v2968
        %v2970 = vrot.slane %v2809, 3
        %v2971 = vsel %vm1564, %v2968, %v2970
        %v2993 = vunpack.c.l.b16 %v2942
        %v2994 = vunpack.c.l.b16 %v2943
        %v2995 = vunpack.c.l.b16 %v2944
        %v2996 = vunpack.c.l.b16 %v2945
        %v2997 = vunpack.c.l.b16 %v2946
        %v2998 = vunpack.c.l.b16 %v2947
        %v2999 = vunpack.c.l.b16 %v2948
        %v3000 = vunpack.c.l.b16 %v2949
        %v3001 = vunpack.c.l.b16 %v2950
        %v3002 = vunpack.c.l.b16 %v2951
        %v3003 = vunpack.c.l.b16 %v2952
        %v3004 = vunpack.c.l.b16 %v2953
        %v3005 = vunpack.c.l.b16 %v2954
        %v3006 = vunpack.c.l.b16 %v2955
        %v3007 = vunpack.c.l.b16 %v2956
        %v3008 = vunpack.c.l.b16 %v2957
        %v3009 = vpack.c.b16 %v2994, %v2993
        %v3010 = vpack.c.b16 %v2996, %v2995
        %v3011 = vpack.c.b16 %v2998, %v2997
        %v3012 = vpack.c.b16 %v3000, %v2999
        %v3013 = vpack.c.b16 %v3002, %v3001
        %v3014 = vpack.c.b16 %v3004, %v3003
        %v3015 = vpack.c.b16 %v3006, %v3005
        %v3016 = vpack.c.b16 %v3008, %v3007
        %3025 = vmatpush.bf16.msra.mxu0 %v3016
        %3026 = vmatpush.bf16.msra.mxu0 %v3015
        %3027 = vmatpush.bf16.msra.mxu0 %v3014
        %3028 = vmatpush.bf16.msra.mxu0 %v3013
        %3029 = vmatpush.bf16.msra.mxu0 %v3012
        %3030 = vmatpush.bf16.msra.mxu0 %v3011
        %3031 = vmatpush.bf16.msra.mxu0 %v3010
        %3032 = vmatpush.bf16.msra.mxu0 %v3009
        %3033 = vmatmul.bf16.gmra.mxu0 %v2963
        %v3034 = vpop.f32.mrf.mxu0
        %v3035 = vadd.f32 0.0, %v3034
        %v3036 = vpop.f32.mrf.mxu0
        %v3037 = vadd.f32 0.0, %v3036
        %3038 = vmatmul.bf16.gmra.mxu0 %v2965
        %v3039 = vpop.f32.mrf.mxu0
        %v3040 = vadd.f32 0.0, %v3039
        %v3041 = vpop.f32.mrf.mxu0
        %v3042 = vadd.f32 0.0, %v3041
        %3043 = vmatmul.bf16.gmra.mxu0 %v2967
        %v3044 = vpop.f32.mrf.mxu0
        %v3045 = vadd.f32 0.0, %v3044
        %v3046 = vpop.f32.mrf.mxu0
        %v3047 = vadd.f32 0.0, %v3046
        %3048 = vmatmul.bf16.gmra.mxu0 %v2969
        %v3049 = vpop.f32.mrf.mxu0
        %v3050 = vadd.f32 0.0, %v3049
        %v3051 = vpop.f32.mrf.mxu0
        %v3052 = vadd.f32 0.0, %v3051
        %3053 = vmatmul.bf16.gmra.mxu0 %v2971
        %v3054 = vpop.f32.mrf.mxu0
        %v3055 = vadd.f32 0.0, %v3054
        %v3056 = vpop.f32.mrf.mxu0
        %v3057 = vadd.f32 0.0, %v3056
        %3058 = vdwg.mxu0
        %v3059 = vadd.f32 %v2930, %v3035
        %v3060 = vadd.f32 %v2931, %v3037
        %v3061 = vadd.f32 %v2932, %v3040
        %v3062 = vadd.f32 %v2933, %v3042
        %v3063 = vadd.f32 %v2934, %v3045
        %v3064 = vadd.f32 %v2935, %v3047
        %v3065 = vadd.f32 %v2936, %v3050
        %v3066 = vadd.f32 %v2937, %v3052
        %v3067 = vadd.f32 %v2938, %v3055
        %v3068 = vadd.f32 %v2939, %v3057
        %s3069 = scalar_lea.vmem [#allocation6], 1
        %v3070 = vld [vmem:[%s3069] sm:$0x1]
        %v3072 = vperm.slane %v3070, 0
        %v3074 = vmul.f32 %v3059, %v3072
        %v3075 = vmul.f32 %v3060, %v3072
        %v3076 = vmul.f32 %v3061, %v3072
        %v3077 = vmul.f32 %v3062, %v3072
        %v3078 = vmul.f32 %v3063, %v3072
        %v3079 = vmul.f32 %v3064, %v3072
        %v3080 = vmul.f32 %v3065, %v3072
        %v3081 = vmul.f32 %v3066, %v3072
        %v3082 = vmul.f32 %v3067, %v3072
        %v3083 = vmul.f32 %v3068, %v3072
        %s3084 = scalar_lea.vmem [#allocation8], 1
        %v3085 = vld [vmem:[%s3084] sm:$0x1]
        %v3087 = vperm.slane %v3085, 0
        %v3089 = vadd.f32 %v3074, %v3087
        %v3090 = vadd.f32 %v3075, %v3087
        %v3091 = vadd.f32 %v3076, %v3087
        %v3092 = vadd.f32 %v3077, %v3087
        %v3093 = vadd.f32 %v3078, %v3087
        %v3094 = vadd.f32 %v3079, %v3087
        %v3095 = vadd.f32 %v3080, %v3087
        %v3096 = vadd.f32 %v3081, %v3087
        %v3097 = vadd.f32 %v3082, %v3087
        %v3098 = vadd.f32 %v3083, %v3087
        %v3099 = vmax.f32 %v3089, 0.0
        %v3100 = vmax.f32 %v3090, 0.0
        %v3101 = vmax.f32 %v3091, 0.0
        %v3102 = vmax.f32 %v3092, 0.0
        %v3103 = vmax.f32 %v3093, 0.0
        %v3104 = vmax.f32 %v3094, 0.0
        %v3105 = vmax.f32 %v3095, 0.0
        %v3106 = vmax.f32 %v3096, 0.0
        %v3107 = vmax.f32 %v3097, 0.0
        %v3108 = vmax.f32 %v3098, 0.0
        %v3109 = vmul.f32 %v3099, %v329
        %v3110 = vmul.f32 %v3100, %v330
        %v3111 = vmul.f32 %v3101, %v331
        %v3112 = vmul.f32 %v3102, %v332
        %v3113 = vmul.f32 %v3103, %v333
        %v3114 = vmul.f32 %v3104, %v334
        %v3115 = vmul.f32 %v3105, %v335
        %v3116 = vmul.f32 %v3106, %v336
        %v3117 = vmul.f32 %v3107, %v337
        %v3118 = vmul.f32 %v3108, %v338
        %v3119 = vpack.c.bf16 %v3109, %v3109
        %v3120 = vpack.c.bf16 %v3110, %v3110
        %v3121 = vpack.c.bf16 %v3111, %v3111
        %v3122 = vpack.c.bf16 %v3112, %v3112
        %v3123 = vpack.c.bf16 %v3113, %v3113
        %v3124 = vpack.c.bf16 %v3114, %v3114
        %v3125 = vpack.c.bf16 %v3115, %v3115
        %v3126 = vpack.c.bf16 %v3116, %v3116
        %v3127 = vpack.c.bf16 %v3117, %v3117
        %v3128 = vpack.c.bf16 %v3118, %v3118
        %3129 = vst [vmem:[#allocation2 + $0x8] sm:$0xf] %v3119
        %3130 = vst [vmem:[#allocation2 + $0xc] sm:$0xf] %v3120
        %3131 = vst [vmem:[#allocation2 + $0x10] sm:$0xf] %v3121
        %3132 = vst [vmem:[#allocation2 + $0x14] sm:$0xf] %v3122
        %3133 = vst [vmem:[#allocation2 + $0x18] sm:$0xf] %v3123
        %3134 = vst [vmem:[#allocation2 + $0x1c] sm:$0xf] %v3124
        %3135 = vst [vmem:[#allocation2 + $0x20] sm:$0xf] %v3125
        %3136 = vst [vmem:[#allocation2 + $0x24] sm:$0xf] %v3126
        %3137 = vst [vmem:[#allocation2 + $0x28] sm:$0xf] %v3127
        %3138 = vst [vmem:[#allocation2 + $0x2c] sm:$0xf] %v3128
        %v3139 = vld [vmem:[#allocation2 + $0x4] sm:$0xe]
        %v3140 = vld [vmem:[#allocation2 + $0x8] sm:$0xf]
        %v3141 = vld [vmem:[#allocation2 + $0xc] sm:$0xf]
        %v3142 = vld [vmem:[#allocation2 + $0x10] sm:$0xf]
        %v3143 = vld [vmem:[#allocation2 + $0x14] sm:$0xf]
        %v3144 = vld [vmem:[#allocation2 + $0x18] sm:$0xf]
        %v3145 = vld [vmem:[#allocation2 + $0x1c] sm:$0xf]
        %v3146 = vld [vmem:[#allocation2 + $0x20] sm:$0xf]
        %v3147 = vld [vmem:[#allocation2 + $0x24] sm:$0xf]
        %v3148 = vld [vmem:[#allocation2 + $0x28] sm:$0xf]
        %v3149 = vld [vmem:[#allocation2 + $0x2c] sm:$0x1]
        %s3150 = scalar_lea.vmem [#allocation4], 1152
        %v3151 = vld [vmem:[%s3150] sm:$0xf]
        %v3152 = vld [vmem:[%s3150 + $0x4] sm:$0xf]
        %v3153 = vld [vmem:[%s3150 + $0x8] sm:$0xf]
        %v3154 = vld [vmem:[%s3150 + $0xc] sm:$0xf]
        %v3155 = vld [vmem:[%s3150 + $0x10] sm:$0xf]
        %v3156 = vld [vmem:[%s3150 + $0x14] sm:$0xf]
        %v3157 = vld [vmem:[%s3150 + $0x18] sm:$0xf]
        %v3158 = vld [vmem:[%s3150 + $0x1c] sm:$0xf]
        %v3159 = vld [vmem:[%s3150 + $0x20] sm:$0xf]
        %v3160 = vld [vmem:[%s3150 + $0x24] sm:$0xf]
        %v3161 = vld [vmem:[%s3150 + $0x28] sm:$0xf]
        %v3162 = vld [vmem:[%s3150 + $0x2c] sm:$0xf]
        %v3163 = vld [vmem:[%s3150 + $0x30] sm:$0xf]
        %v3164 = vld [vmem:[%s3150 + $0x34] sm:$0xf]
        %v3165 = vld [vmem:[%s3150 + $0x38] sm:$0xf]
        %v3166 = vld [vmem:[%s3150 + $0x3c] sm:$0xf]
        %v3167 = vld [vmem:[#allocation2 + $0x2c] sm:$0x3]
        %s3168 = scalar_lea.vmem [#allocation4], 1216
        %v3169 = vld [vmem:[%s3168] sm:$0xf]
        %v3170 = vld [vmem:[%s3168 + $0x4] sm:$0xf]
        %v3171 = vld [vmem:[%s3168 + $0x8] sm:$0xf]
        %v3172 = vld [vmem:[%s3168 + $0xc] sm:$0xf]
        %v3173 = vld [vmem:[%s3168 + $0x10] sm:$0xf]
        %v3174 = vld [vmem:[%s3168 + $0x14] sm:$0xf]
        %v3175 = vld [vmem:[%s3168 + $0x18] sm:$0xf]
        %v3176 = vld [vmem:[%s3168 + $0x1c] sm:$0xf]
        %v3177 = vld [vmem:[%s3168 + $0x20] sm:$0xf]
        %v3178 = vld [vmem:[%s3168 + $0x24] sm:$0xf]
        %v3179 = vld [vmem:[%s3168 + $0x28] sm:$0xf]
        %v3180 = vld [vmem:[%s3168 + $0x2c] sm:$0xf]
        %v3181 = vld [vmem:[%s3168 + $0x30] sm:$0xf]
        %v3182 = vld [vmem:[%s3168 + $0x34] sm:$0xf]
        %v3183 = vld [vmem:[%s3168 + $0x38] sm:$0xf]
        %v3184 = vld [vmem:[%s3168 + $0x3c] sm:$0xf]
        %v3196 = vunpack.c.l.b16 %v3139
        %v3197 = vunpack.c.l.b16 %v3140
        %v3198 = vunpack.c.l.b16 %v3141
        %v3199 = vunpack.c.l.b16 %v3142
        %v3200 = vunpack.c.l.b16 %v3143
        %v3201 = vunpack.c.l.b16 %v3144
        %v3202 = vunpack.c.l.b16 %v3145
        %v3203 = vunpack.c.l.b16 %v3146
        %v3204 = vunpack.c.l.b16 %v3147
        %v3205 = vunpack.c.l.b16 %v3148
        %v3206 = vunpack.c.l.b16 %v3167
        %v3207 = vpack.c.b16 %v3197, %v3196
        %v3208 = vpack.c.b16 %v3199, %v3198
        %v3209 = vpack.c.b16 %v3201, %v3200
        %v3210 = vpack.c.b16 %v3203, %v3202
        %v3211 = vpack.c.b16 %v3205, %v3204
        %v3212 = vpack.c.b16 %v3206, %v3206
        %v3214 = vshrl.u32 %v3207, 16
        %v3216 = vrot.slane %v3214, 1
        %v3217 = vshll.u32 %v3207, 16
        %v3219 = vrot.slane %v3217, 2
        %v3220 = vor.u32 %v3216, %v3219
        %v3222 = vshrl.u32 %v3208, 16
        %v3224 = vrot.slane %v3222, 1
        %v3225 = vshll.u32 %v3208, 16
        %v3227 = vrot.slane %v3225, 2
        %v3228 = vor.u32 %v3224, %v3227
        %v3229 = vsel %vm412, %v3220, %v3228
        %v3231 = vshrl.u32 %v3209, 16
        %v3233 = vrot.slane %v3231, 1
        %v3234 = vshll.u32 %v3209, 16
        %v3236 = vrot.slane %v3234, 2
        %v3237 = vor.u32 %v3233, %v3236
        %v3238 = vsel %vm412, %v3228, %v3237
        %v3240 = vshrl.u32 %v3210, 16
        %v3242 = vrot.slane %v3240, 1
        %v3243 = vshll.u32 %v3210, 16
        %v3245 = vrot.slane %v3243, 2
        %v3246 = vor.u32 %v3242, %v3245
        %v3247 = vsel %vm412, %v3237, %v3246
        %v3249 = vshrl.u32 %v3211, 16
        %v3251 = vrot.slane %v3249, 1
        %v3252 = vshll.u32 %v3211, 16
        %v3254 = vrot.slane %v3252, 2
        %v3255 = vor.u32 %v3251, %v3254
        %v3256 = vsel %vm412, %v3246, %v3255
        %v3258 = vshrl.u32 %v3212, 16
        %v3260 = vrot.slane %v3258, 1
        %v3261 = vshll.u32 %v3212, 16
        %v3263 = vrot.slane %v3261, 2
        %v3264 = vor.u32 %v3260, %v3263
        %v3265 = vsel %vm412, %v3255, %v3264
        %v3287 = vunpack.c.l.b16 %v3169
        %v3288 = vunpack.c.l.b16 %v3170
        %v3289 = vunpack.c.l.b16 %v3171
        %v3290 = vunpack.c.l.b16 %v3172
        %v3291 = vunpack.c.l.b16 %v3173
        %v3292 = vunpack.c.l.b16 %v3174
        %v3293 = vunpack.c.l.b16 %v3175
        %v3294 = vunpack.c.l.b16 %v3176
        %v3295 = vunpack.c.l.b16 %v3177
        %v3296 = vunpack.c.l.b16 %v3178
        %v3297 = vunpack.c.l.b16 %v3179
        %v3298 = vunpack.c.l.b16 %v3180
        %v3299 = vunpack.c.l.b16 %v3181
        %v3300 = vunpack.c.l.b16 %v3182
        %v3301 = vunpack.c.l.b16 %v3183
        %v3302 = vunpack.c.l.b16 %v3184
        %v3303 = vpack.c.b16 %v3288, %v3287
        %v3304 = vpack.c.b16 %v3290, %v3289
        %v3305 = vpack.c.b16 %v3292, %v3291
        %v3306 = vpack.c.b16 %v3294, %v3293
        %v3307 = vpack.c.b16 %v3296, %v3295
        %v3308 = vpack.c.b16 %v3298, %v3297
        %v3309 = vpack.c.b16 %v3300, %v3299
        %v3310 = vpack.c.b16 %v3302, %v3301
        %3319 = vmatpush.bf16.msra.mxu0 %v3310
        %3320 = vmatpush.bf16.msra.mxu0 %v3309
        %3321 = vmatpush.bf16.msra.mxu0 %v3308
        %3322 = vmatpush.bf16.msra.mxu0 %v3307
        %3323 = vmatpush.bf16.msra.mxu0 %v3306
        %3324 = vmatpush.bf16.msra.mxu0 %v3305
        %3325 = vmatpush.bf16.msra.mxu0 %v3304
        %3326 = vmatpush.bf16.msra.mxu0 %v3303
        %3327 = vmatmul.bf16.gmra.mxu0 %v3229
        %v3328 = vpop.f32.mrf.mxu0
        %v3329 = vadd.f32 0.0, %v3328
        %v3330 = vpop.f32.mrf.mxu0
        %v3331 = vadd.f32 0.0, %v3330
        %3332 = vmatmul.bf16.gmra.mxu0 %v3238
        %v3333 = vpop.f32.mrf.mxu0
        %v3334 = vadd.f32 0.0, %v3333
        %v3335 = vpop.f32.mrf.mxu0
        %v3336 = vadd.f32 0.0, %v3335
        %3337 = vmatmul.bf16.gmra.mxu0 %v3247
        %v3338 = vpop.f32.mrf.mxu0
        %v3339 = vadd.f32 0.0, %v3338
        %v3340 = vpop.f32.mrf.mxu0
        %v3341 = vadd.f32 0.0, %v3340
        %3342 = vmatmul.bf16.gmra.mxu0 %v3256
        %v3343 = vpop.f32.mrf.mxu0
        %v3344 = vadd.f32 0.0, %v3343
        %v3345 = vpop.f32.mrf.mxu0
        %v3346 = vadd.f32 0.0, %v3345
        %3347 = vmatmul.bf16.gmra.mxu0 %v3265
        %v3348 = vpop.f32.mrf.mxu0
        %v3349 = vadd.f32 0.0, %v3348
        %v3350 = vpop.f32.mrf.mxu0
        %v3351 = vadd.f32 0.0, %v3350
        %3352 = vdwg.mxu0
        %v3354 = vunpack.c.l.b16 %v3149
        %v3355 = vpack.c.b16 %v3354, %v3354
        %v3356 = vrot.slane %v3207, 1
        %v3357 = vrot.slane %v3208, 1
        %v3358 = vsel %vm556, %v3356, %v3357
        %v3359 = vrot.slane %v3209, 1
        %v3360 = vsel %vm556, %v3357, %v3359
        %v3361 = vrot.slane %v3210, 1
        %v3362 = vsel %vm556, %v3359, %v3361
        %v3363 = vrot.slane %v3211, 1
        %v3364 = vsel %vm556, %v3361, %v3363
        %v3365 = vrot.slane %v3355, 1
        %v3366 = vsel %vm556, %v3363, %v3365
        %v3388 = vunpack.c.l.b16 %v3151
        %v3389 = vunpack.c.l.b16 %v3152
        %v3390 = vunpack.c.l.b16 %v3153
        %v3391 = vunpack.c.l.b16 %v3154
        %v3392 = vunpack.c.l.b16 %v3155
        %v3393 = vunpack.c.l.b16 %v3156
        %v3394 = vunpack.c.l.b16 %v3157
        %v3395 = vunpack.c.l.b16 %v3158
        %v3396 = vunpack.c.l.b16 %v3159
        %v3397 = vunpack.c.l.b16 %v3160
        %v3398 = vunpack.c.l.b16 %v3161
        %v3399 = vunpack.c.l.b16 %v3162
        %v3400 = vunpack.c.l.b16 %v3163
        %v3401 = vunpack.c.l.b16 %v3164
        %v3402 = vunpack.c.l.b16 %v3165
        %v3403 = vunpack.c.l.b16 %v3166
        %v3404 = vpack.c.b16 %v3389, %v3388
        %v3405 = vpack.c.b16 %v3391, %v3390
        %v3406 = vpack.c.b16 %v3393, %v3392
        %v3407 = vpack.c.b16 %v3395, %v3394
        %v3408 = vpack.c.b16 %v3397, %v3396
        %v3409 = vpack.c.b16 %v3399, %v3398
        %v3410 = vpack.c.b16 %v3401, %v3400
        %v3411 = vpack.c.b16 %v3403, %v3402
        %3420 = vmatpush.bf16.msra.mxu0 %v3411
        %3421 = vmatpush.bf16.msra.mxu0 %v3410
        %3422 = vmatpush.bf16.msra.mxu0 %v3409
        %3423 = vmatpush.bf16.msra.mxu0 %v3408
        %3424 = vmatpush.bf16.msra.mxu0 %v3407
        %3425 = vmatpush.bf16.msra.mxu0 %v3406
        %3426 = vmatpush.bf16.msra.mxu0 %v3405
        %3427 = vmatpush.bf16.msra.mxu0 %v3404
        %3428 = vmatmul.bf16.gmra.mxu0 %v3358
        %v3429 = vpop.f32.mrf.mxu0
        %v3430 = vadd.f32 %v3329, %v3429
        %v3431 = vpop.f32.mrf.mxu0
        %v3432 = vadd.f32 %v3331, %v3431
        %3433 = vmatmul.bf16.gmra.mxu0 %v3360
        %v3434 = vpop.f32.mrf.mxu0
        %v3435 = vadd.f32 %v3334, %v3434
        %v3436 = vpop.f32.mrf.mxu0
        %v3437 = vadd.f32 %v3336, %v3436
        %3438 = vmatmul.bf16.gmra.mxu0 %v3362
        %v3439 = vpop.f32.mrf.mxu0
        %v3440 = vadd.f32 %v3339, %v3439
        %v3441 = vpop.f32.mrf.mxu0
        %v3442 = vadd.f32 %v3341, %v3441
        %3443 = vmatmul.bf16.gmra.mxu0 %v3364
        %v3444 = vpop.f32.mrf.mxu0
        %v3445 = vadd.f32 %v3344, %v3444
        %v3446 = vpop.f32.mrf.mxu0
        %v3447 = vadd.f32 %v3346, %v3446
        %3448 = vmatmul.bf16.gmra.mxu0 %v3366
        %v3449 = vpop.f32.mrf.mxu0
        %v3450 = vadd.f32 %v3349, %v3449
        %v3451 = vpop.f32.mrf.mxu0
        %v3452 = vadd.f32 %v3351, %v3451
        %3453 = vdwg.mxu0
        %v3454 = vld [vmem:[#allocation2 + $0x4] sm:$0xc]
        %s3455 = scalar_lea.vmem [#allocation4], 1280
        %v3456 = vld [vmem:[%s3455] sm:$0xf]
        %v3457 = vld [vmem:[%s3455 + $0x4] sm:$0xf]
        %v3458 = vld [vmem:[%s3455 + $0x8] sm:$0xf]
        %v3459 = vld [vmem:[%s3455 + $0xc] sm:$0xf]
        %v3460 = vld [vmem:[%s3455 + $0x10] sm:$0xf]
        %v3461 = vld [vmem:[%s3455 + $0x14] sm:$0xf]
        %v3462 = vld [vmem:[%s3455 + $0x18] sm:$0xf]
        %v3463 = vld [vmem:[%s3455 + $0x1c] sm:$0xf]
        %v3464 = vld [vmem:[%s3455 + $0x20] sm:$0xf]
        %v3465 = vld [vmem:[%s3455 + $0x24] sm:$0xf]
        %v3466 = vld [vmem:[%s3455 + $0x28] sm:$0xf]
        %v3467 = vld [vmem:[%s3455 + $0x2c] sm:$0xf]
        %v3468 = vld [vmem:[%s3455 + $0x30] sm:$0xf]
        %v3469 = vld [vmem:[%s3455 + $0x34] sm:$0xf]
        %v3470 = vld [vmem:[%s3455 + $0x38] sm:$0xf]
        %v3471 = vld [vmem:[%s3455 + $0x3c] sm:$0xf]
        %v3473 = vunpack.c.l.b16 %v3454
        %v3474 = vpack.c.b16 %v3197, %v3473
        %v3475 = vrot.slane %v3474, 2
        %v3476 = vrot.slane %v3208, 2
        %v3477 = vsel %vm676, %v3475, %v3476
        %v3478 = vrot.slane %v3209, 2
        %v3479 = vsel %vm676, %v3476, %v3478
        %v3480 = vrot.slane %v3210, 2
        %v3481 = vsel %vm676, %v3478, %v3480
        %v3482 = vrot.slane %v3211, 2
        %v3483 = vsel %vm676, %v3480, %v3482
        %v3484 = vrot.slane %v3212, 2
        %v3485 = vsel %vm676, %v3482, %v3484
        %v3507 = vunpack.c.l.b16 %v3456
        %v3508 = vunpack.c.l.b16 %v3457
        %v3509 = vunpack.c.l.b16 %v3458
        %v3510 = vunpack.c.l.b16 %v3459
        %v3511 = vunpack.c.l.b16 %v3460
        %v3512 = vunpack.c.l.b16 %v3461
        %v3513 = vunpack.c.l.b16 %v3462
        %v3514 = vunpack.c.l.b16 %v3463
        %v3515 = vunpack.c.l.b16 %v3464
        %v3516 = vunpack.c.l.b16 %v3465
        %v3517 = vunpack.c.l.b16 %v3466
        %v3518 = vunpack.c.l.b16 %v3467
        %v3519 = vunpack.c.l.b16 %v3468
        %v3520 = vunpack.c.l.b16 %v3469
        %v3521 = vunpack.c.l.b16 %v3470
        %v3522 = vunpack.c.l.b16 %v3471
        %v3523 = vpack.c.b16 %v3508, %v3507
        %v3524 = vpack.c.b16 %v3510, %v3509
        %v3525 = vpack.c.b16 %v3512, %v3511
        %v3526 = vpack.c.b16 %v3514, %v3513
        %v3527 = vpack.c.b16 %v3516, %v3515
        %v3528 = vpack.c.b16 %v3518, %v3517
        %v3529 = vpack.c.b16 %v3520, %v3519
        %v3530 = vpack.c.b16 %v3522, %v3521
        %3539 = vmatpush.bf16.msra.mxu0 %v3530
        %3540 = vmatpush.bf16.msra.mxu0 %v3529
        %3541 = vmatpush.bf16.msra.mxu0 %v3528
        %3542 = vmatpush.bf16.msra.mxu0 %v3527
        %3543 = vmatpush.bf16.msra.mxu0 %v3526
        %3544 = vmatpush.bf16.msra.mxu0 %v3525
        %3545 = vmatpush.bf16.msra.mxu0 %v3524
        %3546 = vmatpush.bf16.msra.mxu0 %v3523
        %3547 = vmatmul.bf16.gmra.mxu0 %v3477
        %v3548 = vpop.f32.mrf.mxu0
        %v3549 = vadd.f32 0.0, %v3548
        %v3550 = vpop.f32.mrf.mxu0
        %v3551 = vadd.f32 0.0, %v3550
        %3552 = vmatmul.bf16.gmra.mxu0 %v3479
        %v3553 = vpop.f32.mrf.mxu0
        %v3554 = vadd.f32 0.0, %v3553
        %v3555 = vpop.f32.mrf.mxu0
        %v3556 = vadd.f32 0.0, %v3555
        %3557 = vmatmul.bf16.gmra.mxu0 %v3481
        %v3558 = vpop.f32.mrf.mxu0
        %v3559 = vadd.f32 0.0, %v3558
        %v3560 = vpop.f32.mrf.mxu0
        %v3561 = vadd.f32 0.0, %v3560
        %3562 = vmatmul.bf16.gmra.mxu0 %v3483
        %v3563 = vpop.f32.mrf.mxu0
        %v3564 = vadd.f32 0.0, %v3563
        %v3565 = vpop.f32.mrf.mxu0
        %v3566 = vadd.f32 0.0, %v3565
        %3567 = vmatmul.bf16.gmra.mxu0 %v3485
        %v3568 = vpop.f32.mrf.mxu0
        %v3569 = vadd.f32 0.0, %v3568
        %v3570 = vpop.f32.mrf.mxu0
        %v3571 = vadd.f32 0.0, %v3570
        %3572 = vdwg.mxu0
        %v3573 = vadd.f32 %v3430, %v3549
        %v3574 = vadd.f32 %v3432, %v3551
        %v3575 = vadd.f32 %v3435, %v3554
        %v3576 = vadd.f32 %v3437, %v3556
        %v3577 = vadd.f32 %v3440, %v3559
        %v3578 = vadd.f32 %v3442, %v3561
        %v3579 = vadd.f32 %v3445, %v3564
        %v3580 = vadd.f32 %v3447, %v3566
        %v3581 = vadd.f32 %v3450, %v3569
        %v3582 = vadd.f32 %v3452, %v3571
        %v3583 = vld [vmem:[#allocation2 + $0x4] sm:$0x8]
        %v3584 = vld [vmem:[#allocation2 + $0x2c] sm:$0xf]
        %s3585 = scalar_lea.vmem [#allocation4], 1344
        %v3586 = vld [vmem:[%s3585] sm:$0xf]
        %v3587 = vld [vmem:[%s3585 + $0x4] sm:$0xf]
        %v3588 = vld [vmem:[%s3585 + $0x8] sm:$0xf]
        %v3589 = vld [vmem:[%s3585 + $0xc] sm:$0xf]
        %v3590 = vld [vmem:[%s3585 + $0x10] sm:$0xf]
        %v3591 = vld [vmem:[%s3585 + $0x14] sm:$0xf]
        %v3592 = vld [vmem:[%s3585 + $0x18] sm:$0xf]
        %v3593 = vld [vmem:[%s3585 + $0x1c] sm:$0xf]
        %v3594 = vld [vmem:[%s3585 + $0x20] sm:$0xf]
        %v3595 = vld [vmem:[%s3585 + $0x24] sm:$0xf]
        %v3596 = vld [vmem:[%s3585 + $0x28] sm:$0xf]
        %v3597 = vld [vmem:[%s3585 + $0x2c] sm:$0xf]
        %v3598 = vld [vmem:[%s3585 + $0x30] sm:$0xf]
        %v3599 = vld [vmem:[%s3585 + $0x34] sm:$0xf]
        %v3600 = vld [vmem:[%s3585 + $0x38] sm:$0xf]
        %v3601 = vld [vmem:[%s3585 + $0x3c] sm:$0xf]
        %v3604 = vunpack.c.l.b16 %v3583
        %v3605 = vunpack.c.l.b16 %v3584
        %v3606 = vpack.c.b16 %v3197, %v3604
        %v3607 = vpack.c.b16 %v3605, %v3605
        %v3609 = vshrl.u32 %v3606, 16
        %v3611 = vrot.slane %v3609, 3
        %v3612 = vshll.u32 %v3606, 16
        %v3614 = vrot.slane %v3612, 4
        %v3615 = vor.u32 %v3611, %v3614
        %v3616 = vrot.slane %v3222, 3
        %v3617 = vrot.slane %v3225, 4
        %v3618 = vor.u32 %v3616, %v3617
        %v3619 = vsel %vm810, %v3615, %v3618
        %v3620 = vrot.slane %v3231, 3
        %v3621 = vrot.slane %v3234, 4
        %v3622 = vor.u32 %v3620, %v3621
        %v3623 = vsel %vm810, %v3618, %v3622
        %v3624 = vrot.slane %v3240, 3
        %v3625 = vrot.slane %v3243, 4
        %v3626 = vor.u32 %v3624, %v3625
        %v3627 = vsel %vm810, %v3622, %v3626
        %v3628 = vrot.slane %v3249, 3
        %v3629 = vrot.slane %v3252, 4
        %v3630 = vor.u32 %v3628, %v3629
        %v3631 = vsel %vm810, %v3626, %v3630
        %v3633 = vshrl.u32 %v3607, 16
        %v3635 = vrot.slane %v3633, 3
        %v3636 = vshll.u32 %v3607, 16
        %v3638 = vrot.slane %v3636, 4
        %v3639 = vor.u32 %v3635, %v3638
        %v3640 = vsel %vm810, %v3630, %v3639
        %v3662 = vunpack.c.l.b16 %v3586
        %v3663 = vunpack.c.l.b16 %v3587
        %v3664 = vunpack.c.l.b16 %v3588
        %v3665 = vunpack.c.l.b16 %v3589
        %v3666 = vunpack.c.l.b16 %v3590
        %v3667 = vunpack.c.l.b16 %v3591
        %v3668 = vunpack.c.l.b16 %v3592
        %v3669 = vunpack.c.l.b16 %v3593
        %v3670 = vunpack.c.l.b16 %v3594
        %v3671 = vunpack.c.l.b16 %v3595
        %v3672 = vunpack.c.l.b16 %v3596
        %v3673 = vunpack.c.l.b16 %v3597
        %v3674 = vunpack.c.l.b16 %v3598
        %v3675 = vunpack.c.l.b16 %v3599
        %v3676 = vunpack.c.l.b16 %v3600
        %v3677 = vunpack.c.l.b16 %v3601
        %v3678 = vpack.c.b16 %v3663, %v3662
        %v3679 = vpack.c.b16 %v3665, %v3664
        %v3680 = vpack.c.b16 %v3667, %v3666
        %v3681 = vpack.c.b16 %v3669, %v3668
        %v3682 = vpack.c.b16 %v3671, %v3670
        %v3683 = vpack.c.b16 %v3673, %v3672
        %v3684 = vpack.c.b16 %v3675, %v3674
        %v3685 = vpack.c.b16 %v3677, %v3676
        %3694 = vmatpush.bf16.msra.mxu0 %v3685
        %3695 = vmatpush.bf16.msra.mxu0 %v3684
        %3696 = vmatpush.bf16.msra.mxu0 %v3683
        %3697 = vmatpush.bf16.msra.mxu0 %v3682
        %3698 = vmatpush.bf16.msra.mxu0 %v3681
        %3699 = vmatpush.bf16.msra.mxu0 %v3680
        %3700 = vmatpush.bf16.msra.mxu0 %v3679
        %3701 = vmatpush.bf16.msra.mxu0 %v3678
        %3702 = vmatmul.bf16.gmra.mxu0 %v3619
        %v3703 = vpop.f32.mrf.mxu0
        %v3704 = vadd.f32 0.0, %v3703
        %v3705 = vpop.f32.mrf.mxu0
        %v3706 = vadd.f32 0.0, %v3705
        %3707 = vmatmul.bf16.gmra.mxu0 %v3623
        %v3708 = vpop.f32.mrf.mxu0
        %v3709 = vadd.f32 0.0, %v3708
        %v3710 = vpop.f32.mrf.mxu0
        %v3711 = vadd.f32 0.0, %v3710
        %3712 = vmatmul.bf16.gmra.mxu0 %v3627
        %v3713 = vpop.f32.mrf.mxu0
        %v3714 = vadd.f32 0.0, %v3713
        %v3715 = vpop.f32.mrf.mxu0
        %v3716 = vadd.f32 0.0, %v3715
        %3717 = vmatmul.bf16.gmra.mxu0 %v3631
        %v3718 = vpop.f32.mrf.mxu0
        %v3719 = vadd.f32 0.0, %v3718
        %v3720 = vpop.f32.mrf.mxu0
        %v3721 = vadd.f32 0.0, %v3720
        %3722 = vmatmul.bf16.gmra.mxu0 %v3640
        %v3723 = vpop.f32.mrf.mxu0
        %v3724 = vadd.f32 0.0, %v3723
        %v3725 = vpop.f32.mrf.mxu0
        %v3726 = vadd.f32 0.0, %v3725
        %3727 = vdwg.mxu0
        %v3728 = vadd.f32 %v3573, %v3704
        %v3729 = vadd.f32 %v3574, %v3706
        %v3730 = vadd.f32 %v3575, %v3709
        %v3731 = vadd.f32 %v3576, %v3711
        %v3732 = vadd.f32 %v3577, %v3714
        %v3733 = vadd.f32 %v3578, %v3716
        %v3734 = vadd.f32 %v3579, %v3719
        %v3735 = vadd.f32 %v3580, %v3721
        %v3736 = vadd.f32 %v3581, %v3724
        %v3737 = vadd.f32 %v3582, %v3726
        %s3738 = scalar_lea.vmem [#allocation4], 1408
        %v3739 = vld [vmem:[%s3738] sm:$0xf]
        %v3740 = vld [vmem:[%s3738 + $0x4] sm:$0xf]
        %v3741 = vld [vmem:[%s3738 + $0x8] sm:$0xf]
        %v3742 = vld [vmem:[%s3738 + $0xc] sm:$0xf]
        %v3743 = vld [vmem:[%s3738 + $0x10] sm:$0xf]
        %v3744 = vld [vmem:[%s3738 + $0x14] sm:$0xf]
        %v3745 = vld [vmem:[%s3738 + $0x18] sm:$0xf]
        %v3746 = vld [vmem:[%s3738 + $0x1c] sm:$0xf]
        %v3747 = vld [vmem:[%s3738 + $0x20] sm:$0xf]
        %v3748 = vld [vmem:[%s3738 + $0x24] sm:$0xf]
        %v3749 = vld [vmem:[%s3738 + $0x28] sm:$0xf]
        %v3750 = vld [vmem:[%s3738 + $0x2c] sm:$0xf]
        %v3751 = vld [vmem:[%s3738 + $0x30] sm:$0xf]
        %v3752 = vld [vmem:[%s3738 + $0x34] sm:$0xf]
        %v3753 = vld [vmem:[%s3738 + $0x38] sm:$0xf]
        %v3754 = vld [vmem:[%s3738 + $0x3c] sm:$0xf]
        %v3755 = vpack.c.b16 %v3198, %v3197
        %v3756 = vpack.c.b16 %v3200, %v3199
        %v3757 = vpack.c.b16 %v3202, %v3201
        %v3758 = vpack.c.b16 %v3204, %v3203
        %v3759 = vpack.c.b16 %v3605, %v3205
        %v3781 = vunpack.c.l.b16 %v3739
        %v3782 = vunpack.c.l.b16 %v3740
        %v3783 = vunpack.c.l.b16 %v3741
        %v3784 = vunpack.c.l.b16 %v3742
        %v3785 = vunpack.c.l.b16 %v3743
        %v3786 = vunpack.c.l.b16 %v3744
        %v3787 = vunpack.c.l.b16 %v3745
        %v3788 = vunpack.c.l.b16 %v3746
        %v3789 = vunpack.c.l.b16 %v3747
        %v3790 = vunpack.c.l.b16 %v3748
        %v3791 = vunpack.c.l.b16 %v3749
        %v3792 = vunpack.c.l.b16 %v3750
        %v3793 = vunpack.c.l.b16 %v3751
        %v3794 = vunpack.c.l.b16 %v3752
        %v3795 = vunpack.c.l.b16 %v3753
        %v3796 = vunpack.c.l.b16 %v3754
        %v3797 = vpack.c.b16 %v3782, %v3781
        %v3798 = vpack.c.b16 %v3784, %v3783
        %v3799 = vpack.c.b16 %v3786, %v3785
        %v3800 = vpack.c.b16 %v3788, %v3787
        %v3801 = vpack.c.b16 %v3790, %v3789
        %v3802 = vpack.c.b16 %v3792, %v3791
        %v3803 = vpack.c.b16 %v3794, %v3793
        %v3804 = vpack.c.b16 %v3796, %v3795
        %3813 = vmatpush.bf16.msra.mxu0 %v3804
        %3814 = vmatpush.bf16.msra.mxu0 %v3803
        %3815 = vmatpush.bf16.msra.mxu0 %v3802
        %3816 = vmatpush.bf16.msra.mxu0 %v3801
        %3817 = vmatpush.bf16.msra.mxu0 %v3800
        %3818 = vmatpush.bf16.msra.mxu0 %v3799
        %3819 = vmatpush.bf16.msra.mxu0 %v3798
        %3820 = vmatpush.bf16.msra.mxu0 %v3797
        %3821 = vmatmul.bf16.gmra.mxu0 %v3755
        %v3822 = vpop.f32.mrf.mxu0
        %v3823 = vadd.f32 0.0, %v3822
        %v3824 = vpop.f32.mrf.mxu0
        %v3825 = vadd.f32 0.0, %v3824
        %3826 = vmatmul.bf16.gmra.mxu0 %v3756
        %v3827 = vpop.f32.mrf.mxu0
        %v3828 = vadd.f32 0.0, %v3827
        %v3829 = vpop.f32.mrf.mxu0
        %v3830 = vadd.f32 0.0, %v3829
        %3831 = vmatmul.bf16.gmra.mxu0 %v3757
        %v3832 = vpop.f32.mrf.mxu0
        %v3833 = vadd.f32 0.0, %v3832
        %v3834 = vpop.f32.mrf.mxu0
        %v3835 = vadd.f32 0.0, %v3834
        %3836 = vmatmul.bf16.gmra.mxu0 %v3758
        %v3837 = vpop.f32.mrf.mxu0
        %v3838 = vadd.f32 0.0, %v3837
        %v3839 = vpop.f32.mrf.mxu0
        %v3840 = vadd.f32 0.0, %v3839
        %3841 = vmatmul.bf16.gmra.mxu0 %v3759
        %v3842 = vpop.f32.mrf.mxu0
        %v3843 = vadd.f32 0.0, %v3842
        %v3844 = vpop.f32.mrf.mxu0
        %v3845 = vadd.f32 0.0, %v3844
        %3846 = vdwg.mxu0
        %v3847 = vadd.f32 %v3728, %v3823
        %v3848 = vadd.f32 %v3729, %v3825
        %v3849 = vadd.f32 %v3730, %v3828
        %v3850 = vadd.f32 %v3731, %v3830
        %v3851 = vadd.f32 %v3732, %v3833
        %v3852 = vadd.f32 %v3733, %v3835
        %v3853 = vadd.f32 %v3734, %v3838
        %v3854 = vadd.f32 %v3735, %v3840
        %v3855 = vadd.f32 %v3736, %v3843
        %v3856 = vadd.f32 %v3737, %v3845
        %v3857 = vld [vmem:[#allocation2 + $0x8] sm:$0xf]
        %v3858 = vld [vmem:[#allocation2 + $0xc] sm:$0xf]
        %v3859 = vld [vmem:[#allocation2 + $0x10] sm:$0xf]
        %v3860 = vld [vmem:[#allocation2 + $0x14] sm:$0xf]
        %v3861 = vld [vmem:[#allocation2 + $0x18] sm:$0xf]
        %v3862 = vld [vmem:[#allocation2 + $0x1c] sm:$0xf]
        %v3863 = vld [vmem:[#allocation2 + $0x20] sm:$0xf]
        %v3864 = vld [vmem:[#allocation2 + $0x24] sm:$0xf]
        %v3865 = vld [vmem:[#allocation2 + $0x28] sm:$0xf]
        %v3866 = vld [vmem:[#allocation2 + $0x2c] sm:$0xf]
        %v3867 = vld [vmem:[#allocation2 + $0x30] sm:$0x1]
        %s3868 = scalar_lea.vmem [#allocation4], 1472
        %v3869 = vld [vmem:[%s3868] sm:$0xf]
        %v3870 = vld [vmem:[%s3868 + $0x4] sm:$0xf]
        %v3871 = vld [vmem:[%s3868 + $0x8] sm:$0xf]
        %v3872 = vld [vmem:[%s3868 + $0xc] sm:$0xf]
        %v3873 = vld [vmem:[%s3868 + $0x10] sm:$0xf]
        %v3874 = vld [vmem:[%s3868 + $0x14] sm:$0xf]
        %v3875 = vld [vmem:[%s3868 + $0x18] sm:$0xf]
        %v3876 = vld [vmem:[%s3868 + $0x1c] sm:$0xf]
        %v3877 = vld [vmem:[%s3868 + $0x20] sm:$0xf]
        %v3878 = vld [vmem:[%s3868 + $0x24] sm:$0xf]
        %v3879 = vld [vmem:[%s3868 + $0x28] sm:$0xf]
        %v3880 = vld [vmem:[%s3868 + $0x2c] sm:$0xf]
        %v3881 = vld [vmem:[%s3868 + $0x30] sm:$0xf]
        %v3882 = vld [vmem:[%s3868 + $0x34] sm:$0xf]
        %v3883 = vld [vmem:[%s3868 + $0x38] sm:$0xf]
        %v3884 = vld [vmem:[%s3868 + $0x3c] sm:$0xf]
        %v3896 = vunpack.c.l.b16 %v3857
        %v3897 = vunpack.c.l.b16 %v3858
        %v3898 = vunpack.c.l.b16 %v3859
        %v3899 = vunpack.c.l.b16 %v3860
        %v3900 = vunpack.c.l.b16 %v3861
        %v3901 = vunpack.c.l.b16 %v3862
        %v3902 = vunpack.c.l.b16 %v3863
        %v3903 = vunpack.c.l.b16 %v3864
        %v3904 = vunpack.c.l.b16 %v3865
        %v3905 = vunpack.c.l.b16 %v3866
        %v3906 = vunpack.c.l.b16 %v3867
        %v3907 = vpack.c.b16 %v3897, %v3896
        %v3908 = vpack.c.b16 %v3899, %v3898
        %v3909 = vpack.c.b16 %v3901, %v3900
        %v3910 = vpack.c.b16 %v3903, %v3902
        %v3911 = vpack.c.b16 %v3905, %v3904
        %v3912 = vpack.c.b16 %v3906, %v3906
        %v3914 = vshrl.u32 %v3907, 16
        %v3916 = vshll.u32 %v3907, 16
        %v3918 = vrot.slane %v3916, 1
        %v3919 = vor.u32 %v3914, %v3918
        %v3921 = vshll.u32 %v3908, 16
        %v3923 = vrot.slane %v3921, 1
        %v3924 = vsel %vm1116, %v3919, %v3923
        %v3925 = vshrl.u32 %v3908, 16
        %v3927 = vor.u32 %v3925, %v3923
        %v3929 = vshll.u32 %v3909, 16
        %v3931 = vrot.slane %v3929, 1
        %v3932 = vsel %vm1116, %v3927, %v3931
        %v3933 = vshrl.u32 %v3909, 16
        %v3935 = vor.u32 %v3933, %v3931
        %v3937 = vshll.u32 %v3910, 16
        %v3939 = vrot.slane %v3937, 1
        %v3940 = vsel %vm1116, %v3935, %v3939
        %v3941 = vshrl.u32 %v3910, 16
        %v3943 = vor.u32 %v3941, %v3939
        %v3945 = vshll.u32 %v3911, 16
        %v3947 = vrot.slane %v3945, 1
        %v3948 = vsel %vm1116, %v3943, %v3947
        %v3949 = vshrl.u32 %v3911, 16
        %v3951 = vor.u32 %v3949, %v3947
        %v3953 = vshll.u32 %v3912, 16
        %v3955 = vrot.slane %v3953, 1
        %v3956 = vsel %vm1116, %v3951, %v3955
        %v3978 = vunpack.c.l.b16 %v3869
        %v3979 = vunpack.c.l.b16 %v3870
        %v3980 = vunpack.c.l.b16 %v3871
        %v3981 = vunpack.c.l.b16 %v3872
        %v3982 = vunpack.c.l.b16 %v3873
        %v3983 = vunpack.c.l.b16 %v3874
        %v3984 = vunpack.c.l.b16 %v3875
        %v3985 = vunpack.c.l.b16 %v3876
        %v3986 = vunpack.c.l.b16 %v3877
        %v3987 = vunpack.c.l.b16 %v3878
        %v3988 = vunpack.c.l.b16 %v3879
        %v3989 = vunpack.c.l.b16 %v3880
        %v3990 = vunpack.c.l.b16 %v3881
        %v3991 = vunpack.c.l.b16 %v3882
        %v3992 = vunpack.c.l.b16 %v3883
        %v3993 = vunpack.c.l.b16 %v3884
        %v3994 = vpack.c.b16 %v3979, %v3978
        %v3995 = vpack.c.b16 %v3981, %v3980
        %v3996 = vpack.c.b16 %v3983, %v3982
        %v3997 = vpack.c.b16 %v3985, %v3984
        %v3998 = vpack.c.b16 %v3987, %v3986
        %v3999 = vpack.c.b16 %v3989, %v3988
        %v4000 = vpack.c.b16 %v3991, %v3990
        %v4001 = vpack.c.b16 %v3993, %v3992
        %4010 = vmatpush.bf16.msra.mxu0 %v4001
        %4011 = vmatpush.bf16.msra.mxu0 %v4000
        %4012 = vmatpush.bf16.msra.mxu0 %v3999
        %4013 = vmatpush.bf16.msra.mxu0 %v3998
        %4014 = vmatpush.bf16.msra.mxu0 %v3997
        %4015 = vmatpush.bf16.msra.mxu0 %v3996
        %4016 = vmatpush.bf16.msra.mxu0 %v3995
        %4017 = vmatpush.bf16.msra.mxu0 %v3994
        %4018 = vmatmul.bf16.gmra.mxu0 %v3924
        %v4019 = vpop.f32.mrf.mxu0
        %v4020 = vadd.f32 0.0, %v4019
        %v4021 = vpop.f32.mrf.mxu0
        %v4022 = vadd.f32 0.0, %v4021
        %4023 = vmatmul.bf16.gmra.mxu0 %v3932
        %v4024 = vpop.f32.mrf.mxu0
        %v4025 = vadd.f32 0.0, %v4024
        %v4026 = vpop.f32.mrf.mxu0
        %v4027 = vadd.f32 0.0, %v4026
        %4028 = vmatmul.bf16.gmra.mxu0 %v3940
        %v4029 = vpop.f32.mrf.mxu0
        %v4030 = vadd.f32 0.0, %v4029
        %v4031 = vpop.f32.mrf.mxu0
        %v4032 = vadd.f32 0.0, %v4031
        %4033 = vmatmul.bf16.gmra.mxu0 %v3948
        %v4034 = vpop.f32.mrf.mxu0
        %v4035 = vadd.f32 0.0, %v4034
        %v4036 = vpop.f32.mrf.mxu0
        %v4037 = vadd.f32 0.0, %v4036
        %4038 = vmatmul.bf16.gmra.mxu0 %v3956
        %v4039 = vpop.f32.mrf.mxu0
        %v4040 = vadd.f32 0.0, %v4039
        %v4041 = vpop.f32.mrf.mxu0
        %v4042 = vadd.f32 0.0, %v4041
        %4043 = vdwg.mxu0
        %v4044 = vadd.f32 %v3847, %v4020
        %v4045 = vadd.f32 %v3848, %v4022
        %v4046 = vadd.f32 %v3849, %v4025
        %v4047 = vadd.f32 %v3850, %v4027
        %v4048 = vadd.f32 %v3851, %v4030
        %v4049 = vadd.f32 %v3852, %v4032
        %v4050 = vadd.f32 %v3853, %v4035
        %v4051 = vadd.f32 %v3854, %v4037
        %v4052 = vadd.f32 %v3855, %v4040
        %v4053 = vadd.f32 %v3856, %v4042
        %v4054 = vld [vmem:[#allocation2 + $0x8] sm:$0xc]
        %v4055 = vld [vmem:[#allocation2 + $0x30] sm:$0x3]
        %s4056 = scalar_lea.vmem [#allocation4], 1536
        %v4057 = vld [vmem:[%s4056] sm:$0xf]
        %v4058 = vld [vmem:[%s4056 + $0x4] sm:$0xf]
        %v4059 = vld [vmem:[%s4056 + $0x8] sm:$0xf]
        %v4060 = vld [vmem:[%s4056 + $0xc] sm:$0xf]
        %v4061 = vld [vmem:[%s4056 + $0x10] sm:$0xf]
        %v4062 = vld [vmem:[%s4056 + $0x14] sm:$0xf]
        %v4063 = vld [vmem:[%s4056 + $0x18] sm:$0xf]
        %v4064 = vld [vmem:[%s4056 + $0x1c] sm:$0xf]
        %v4065 = vld [vmem:[%s4056 + $0x20] sm:$0xf]
        %v4066 = vld [vmem:[%s4056 + $0x24] sm:$0xf]
        %v4067 = vld [vmem:[%s4056 + $0x28] sm:$0xf]
        %v4068 = vld [vmem:[%s4056 + $0x2c] sm:$0xf]
        %v4069 = vld [vmem:[%s4056 + $0x30] sm:$0xf]
        %v4070 = vld [vmem:[%s4056 + $0x34] sm:$0xf]
        %v4071 = vld [vmem:[%s4056 + $0x38] sm:$0xf]
        %v4072 = vld [vmem:[%s4056 + $0x3c] sm:$0xf]
        %v4075 = vunpack.c.l.b16 %v4054
        %v4076 = vunpack.c.l.b16 %v4055
        %v4077 = vpack.c.b16 %v3897, %v4075
        %v4078 = vpack.c.b16 %v4076, %v4076
        %v4079 = vrot.slane %v4077, 2
        %v4080 = vrot.slane %v3908, 2
        %v4081 = vsel %vm676, %v4079, %v4080
        %v4082 = vrot.slane %v3909, 2
        %v4083 = vsel %vm676, %v4080, %v4082
        %v4084 = vrot.slane %v3910, 2
        %v4085 = vsel %vm676, %v4082, %v4084
        %v4086 = vrot.slane %v3911, 2
        %v4087 = vsel %vm676, %v4084, %v4086
        %v4088 = vrot.slane %v4078, 2
        %v4089 = vsel %vm676, %v4086, %v4088
        %v4111 = vunpack.c.l.b16 %v4057
        %v4112 = vunpack.c.l.b16 %v4058
        %v4113 = vunpack.c.l.b16 %v4059
        %v4114 = vunpack.c.l.b16 %v4060
        %v4115 = vunpack.c.l.b16 %v4061
        %v4116 = vunpack.c.l.b16 %v4062
        %v4117 = vunpack.c.l.b16 %v4063
        %v4118 = vunpack.c.l.b16 %v4064
        %v4119 = vunpack.c.l.b16 %v4065
        %v4120 = vunpack.c.l.b16 %v4066
        %v4121 = vunpack.c.l.b16 %v4067
        %v4122 = vunpack.c.l.b16 %v4068
        %v4123 = vunpack.c.l.b16 %v4069
        %v4124 = vunpack.c.l.b16 %v4070
        %v4125 = vunpack.c.l.b16 %v4071
        %v4126 = vunpack.c.l.b16 %v4072
        %v4127 = vpack.c.b16 %v4112, %v4111
        %v4128 = vpack.c.b16 %v4114, %v4113
        %v4129 = vpack.c.b16 %v4116, %v4115
        %v4130 = vpack.c.b16 %v4118, %v4117
        %v4131 = vpack.c.b16 %v4120, %v4119
        %v4132 = vpack.c.b16 %v4122, %v4121
        %v4133 = vpack.c.b16 %v4124, %v4123
        %v4134 = vpack.c.b16 %v4126, %v4125
        %4143 = vmatpush.bf16.msra.mxu0 %v4134
        %4144 = vmatpush.bf16.msra.mxu0 %v4133
        %4145 = vmatpush.bf16.msra.mxu0 %v4132
        %4146 = vmatpush.bf16.msra.mxu0 %v4131
        %4147 = vmatpush.bf16.msra.mxu0 %v4130
        %4148 = vmatpush.bf16.msra.mxu0 %v4129
        %4149 = vmatpush.bf16.msra.mxu0 %v4128
        %4150 = vmatpush.bf16.msra.mxu0 %v4127
        %4151 = vmatmul.bf16.gmra.mxu0 %v4081
        %v4152 = vpop.f32.mrf.mxu0
        %v4153 = vadd.f32 0.0, %v4152
        %v4154 = vpop.f32.mrf.mxu0
        %v4155 = vadd.f32 0.0, %v4154
        %4156 = vmatmul.bf16.gmra.mxu0 %v4083
        %v4157 = vpop.f32.mrf.mxu0
        %v4158 = vadd.f32 0.0, %v4157
        %v4159 = vpop.f32.mrf.mxu0
        %v4160 = vadd.f32 0.0, %v4159
        %4161 = vmatmul.bf16.gmra.mxu0 %v4085
        %v4162 = vpop.f32.mrf.mxu0
        %v4163 = vadd.f32 0.0, %v4162
        %v4164 = vpop.f32.mrf.mxu0
        %v4165 = vadd.f32 0.0, %v4164
        %4166 = vmatmul.bf16.gmra.mxu0 %v4087
        %v4167 = vpop.f32.mrf.mxu0
        %v4168 = vadd.f32 0.0, %v4167
        %v4169 = vpop.f32.mrf.mxu0
        %v4170 = vadd.f32 0.0, %v4169
        %4171 = vmatmul.bf16.gmra.mxu0 %v4089
        %v4172 = vpop.f32.mrf.mxu0
        %v4173 = vadd.f32 0.0, %v4172
        %v4174 = vpop.f32.mrf.mxu0
        %v4175 = vadd.f32 0.0, %v4174
        %4176 = vdwg.mxu0
        %v4177 = vadd.f32 %v4044, %v4153
        %v4178 = vadd.f32 %v4045, %v4155
        %v4179 = vadd.f32 %v4046, %v4158
        %v4180 = vadd.f32 %v4047, %v4160
        %v4181 = vadd.f32 %v4048, %v4163
        %v4182 = vadd.f32 %v4049, %v4165
        %v4183 = vadd.f32 %v4050, %v4168
        %v4184 = vadd.f32 %v4051, %v4170
        %v4185 = vadd.f32 %v4052, %v4173
        %v4186 = vadd.f32 %v4053, %v4175
        %v4187 = vld [vmem:[#allocation2 + $0x30] sm:$0x7]
        %s4188 = scalar_lea.vmem [#allocation4], 1600
        %v4189 = vld [vmem:[%s4188] sm:$0xf]
        %v4190 = vld [vmem:[%s4188 + $0x4] sm:$0xf]
        %v4191 = vld [vmem:[%s4188 + $0x8] sm:$0xf]
        %v4192 = vld [vmem:[%s4188 + $0xc] sm:$0xf]
        %v4193 = vld [vmem:[%s4188 + $0x10] sm:$0xf]
        %v4194 = vld [vmem:[%s4188 + $0x14] sm:$0xf]
        %v4195 = vld [vmem:[%s4188 + $0x18] sm:$0xf]
        %v4196 = vld [vmem:[%s4188 + $0x1c] sm:$0xf]
        %v4197 = vld [vmem:[%s4188 + $0x20] sm:$0xf]
        %v4198 = vld [vmem:[%s4188 + $0x24] sm:$0xf]
        %v4199 = vld [vmem:[%s4188 + $0x28] sm:$0xf]
        %v4200 = vld [vmem:[%s4188 + $0x2c] sm:$0xf]
        %v4201 = vld [vmem:[%s4188 + $0x30] sm:$0xf]
        %v4202 = vld [vmem:[%s4188 + $0x34] sm:$0xf]
        %v4203 = vld [vmem:[%s4188 + $0x38] sm:$0xf]
        %v4204 = vld [vmem:[%s4188 + $0x3c] sm:$0xf]
        %v4206 = vunpack.c.l.b16 %v4187
        %v4207 = vpack.c.b16 %v4206, %v4206
        %v4209 = vshrl.u32 %v4077, 16
        %v4211 = vrot.slane %v4209, 2
        %v4212 = vshll.u32 %v4077, 16
        %v4214 = vrot.slane %v4212, 3
        %v4215 = vor.u32 %v4211, %v4214
        %v4216 = vrot.slane %v3925, 2
        %v4217 = vrot.slane %v3921, 3
        %v4218 = vor.u32 %v4216, %v4217
        %v4219 = vsel %vm1412, %v4215, %v4218
        %v4220 = vrot.slane %v3933, 2
        %v4221 = vrot.slane %v3929, 3
        %v4222 = vor.u32 %v4220, %v4221
        %v4223 = vsel %vm1412, %v4218, %v4222
        %v4224 = vrot.slane %v3941, 2
        %v4225 = vrot.slane %v3937, 3
        %v4226 = vor.u32 %v4224, %v4225
        %v4227 = vsel %vm1412, %v4222, %v4226
        %v4228 = vrot.slane %v3949, 2
        %v4229 = vrot.slane %v3945, 3
        %v4230 = vor.u32 %v4228, %v4229
        %v4231 = vsel %vm1412, %v4226, %v4230
        %v4233 = vshrl.u32 %v4207, 16
        %v4235 = vrot.slane %v4233, 2
        %v4236 = vshll.u32 %v4207, 16
        %v4238 = vrot.slane %v4236, 3
        %v4239 = vor.u32 %v4235, %v4238
        %v4240 = vsel %vm1412, %v4230, %v4239
        %v4262 = vunpack.c.l.b16 %v4189
        %v4263 = vunpack.c.l.b16 %v4190
        %v4264 = vunpack.c.l.b16 %v4191
        %v4265 = vunpack.c.l.b16 %v4192
        %v4266 = vunpack.c.l.b16 %v4193
        %v4267 = vunpack.c.l.b16 %v4194
        %v4268 = vunpack.c.l.b16 %v4195
        %v4269 = vunpack.c.l.b16 %v4196
        %v4270 = vunpack.c.l.b16 %v4197
        %v4271 = vunpack.c.l.b16 %v4198
        %v4272 = vunpack.c.l.b16 %v4199
        %v4273 = vunpack.c.l.b16 %v4200
        %v4274 = vunpack.c.l.b16 %v4201
        %v4275 = vunpack.c.l.b16 %v4202
        %v4276 = vunpack.c.l.b16 %v4203
        %v4277 = vunpack.c.l.b16 %v4204
        %v4278 = vpack.c.b16 %v4263, %v4262
        %v4279 = vpack.c.b16 %v4265, %v4264
        %v4280 = vpack.c.b16 %v4267, %v4266
        %v4281 = vpack.c.b16 %v4269, %v4268
        %v4282 = vpack.c.b16 %v4271, %v4270
        %v4283 = vpack.c.b16 %v4273, %v4272
        %v4284 = vpack.c.b16 %v4275, %v4274
        %v4285 = vpack.c.b16 %v4277, %v4276
        %4294 = vmatpush.bf16.msra.mxu0 %v4285
        %4295 = vmatpush.bf16.msra.mxu0 %v4284
        %4296 = vmatpush.bf16.msra.mxu0 %v4283
        %4297 = vmatpush.bf16.msra.mxu0 %v4282
        %4298 = vmatpush.bf16.msra.mxu0 %v4281
        %4299 = vmatpush.bf16.msra.mxu0 %v4280
        %4300 = vmatpush.bf16.msra.mxu0 %v4279
        %4301 = vmatpush.bf16.msra.mxu0 %v4278
        %4302 = vmatmul.bf16.gmra.mxu0 %v4219
        %v4303 = vpop.f32.mrf.mxu0
        %v4304 = vadd.f32 0.0, %v4303
        %v4305 = vpop.f32.mrf.mxu0
        %v4306 = vadd.f32 0.0, %v4305
        %4307 = vmatmul.bf16.gmra.mxu0 %v4223
        %v4308 = vpop.f32.mrf.mxu0
        %v4309 = vadd.f32 0.0, %v4308
        %v4310 = vpop.f32.mrf.mxu0
        %v4311 = vadd.f32 0.0, %v4310
        %4312 = vmatmul.bf16.gmra.mxu0 %v4227
        %v4313 = vpop.f32.mrf.mxu0
        %v4314 = vadd.f32 0.0, %v4313
        %v4315 = vpop.f32.mrf.mxu0
        %v4316 = vadd.f32 0.0, %v4315
        %4317 = vmatmul.bf16.gmra.mxu0 %v4231
        %v4318 = vpop.f32.mrf.mxu0
        %v4319 = vadd.f32 0.0, %v4318
        %v4320 = vpop.f32.mrf.mxu0
        %v4321 = vadd.f32 0.0, %v4320
        %4322 = vmatmul.bf16.gmra.mxu0 %v4240
        %v4323 = vpop.f32.mrf.mxu0
        %v4324 = vadd.f32 0.0, %v4323
        %v4325 = vpop.f32.mrf.mxu0
        %v4326 = vadd.f32 0.0, %v4325
        %4327 = vdwg.mxu0
        %v4328 = vadd.f32 %v4177, %v4304
        %v4329 = vadd.f32 %v4178, %v4306
        %v4330 = vadd.f32 %v4179, %v4309
        %v4331 = vadd.f32 %v4180, %v4311
        %v4332 = vadd.f32 %v4181, %v4314
        %v4333 = vadd.f32 %v4182, %v4316
        %v4334 = vadd.f32 %v4183, %v4319
        %v4335 = vadd.f32 %v4184, %v4321
        %v4336 = vadd.f32 %v4185, %v4324
        %v4337 = vadd.f32 %v4186, %v4326
        %v4338 = vld [vmem:[#allocation2 + $0x8] sm:$0x8]
        %s4339 = scalar_lea.vmem [#allocation4], 1664
        %v4340 = vld [vmem:[%s4339] sm:$0xf]
        %v4341 = vld [vmem:[%s4339 + $0x4] sm:$0xf]
        %v4342 = vld [vmem:[%s4339 + $0x8] sm:$0xf]
        %v4343 = vld [vmem:[%s4339 + $0xc] sm:$0xf]
        %v4344 = vld [vmem:[%s4339 + $0x10] sm:$0xf]
        %v4345 = vld [vmem:[%s4339 + $0x14] sm:$0xf]
        %v4346 = vld [vmem:[%s4339 + $0x18] sm:$0xf]
        %v4347 = vld [vmem:[%s4339 + $0x1c] sm:$0xf]
        %v4348 = vld [vmem:[%s4339 + $0x20] sm:$0xf]
        %v4349 = vld [vmem:[%s4339 + $0x24] sm:$0xf]
        %v4350 = vld [vmem:[%s4339 + $0x28] sm:$0xf]
        %v4351 = vld [vmem:[%s4339 + $0x2c] sm:$0xf]
        %v4352 = vld [vmem:[%s4339 + $0x30] sm:$0xf]
        %v4353 = vld [vmem:[%s4339 + $0x34] sm:$0xf]
        %v4354 = vld [vmem:[%s4339 + $0x38] sm:$0xf]
        %v4355 = vld [vmem:[%s4339 + $0x3c] sm:$0xf]
        %v4357 = vunpack.c.l.b16 %v4338
        %v4358 = vpack.c.b16 %v3897, %v4357
        %v4359 = vrot.slane %v4358, 3
        %v4360 = vrot.slane %v3908, 3
        %v4361 = vsel %vm1564, %v4359, %v4360
        %v4362 = vrot.slane %v3909, 3
        %v4363 = vsel %vm1564, %v4360, %v4362
        %v4364 = vrot.slane %v3910, 3
        %v4365 = vsel %vm1564, %v4362, %v4364
        %v4366 = vrot.slane %v3911, 3
        %v4367 = vsel %vm1564, %v4364, %v4366
        %v4368 = vrot.slane %v4207, 3
        %v4369 = vsel %vm1564, %v4366, %v4368
        %v4391 = vunpack.c.l.b16 %v4340
        %v4392 = vunpack.c.l.b16 %v4341
        %v4393 = vunpack.c.l.b16 %v4342
        %v4394 = vunpack.c.l.b16 %v4343
        %v4395 = vunpack.c.l.b16 %v4344
        %v4396 = vunpack.c.l.b16 %v4345
        %v4397 = vunpack.c.l.b16 %v4346
        %v4398 = vunpack.c.l.b16 %v4347
        %v4399 = vunpack.c.l.b16 %v4348
        %v4400 = vunpack.c.l.b16 %v4349
        %v4401 = vunpack.c.l.b16 %v4350
        %v4402 = vunpack.c.l.b16 %v4351
        %v4403 = vunpack.c.l.b16 %v4352
        %v4404 = vunpack.c.l.b16 %v4353
        %v4405 = vunpack.c.l.b16 %v4354
        %v4406 = vunpack.c.l.b16 %v4355
        %v4407 = vpack.c.b16 %v4392, %v4391
        %v4408 = vpack.c.b16 %v4394, %v4393
        %v4409 = vpack.c.b16 %v4396, %v4395
        %v4410 = vpack.c.b16 %v4398, %v4397
        %v4411 = vpack.c.b16 %v4400, %v4399
        %v4412 = vpack.c.b16 %v4402, %v4401
        %v4413 = vpack.c.b16 %v4404, %v4403
        %v4414 = vpack.c.b16 %v4406, %v4405
        %4423 = vmatpush.bf16.msra.mxu0 %v4414
        %4424 = vmatpush.bf16.msra.mxu0 %v4413
        %4425 = vmatpush.bf16.msra.mxu0 %v4412
        %4426 = vmatpush.bf16.msra.mxu0 %v4411
        %4427 = vmatpush.bf16.msra.mxu0 %v4410
        %4428 = vmatpush.bf16.msra.mxu0 %v4409
        %4429 = vmatpush.bf16.msra.mxu0 %v4408
        %4430 = vmatpush.bf16.msra.mxu0 %v4407
        %4431 = vmatmul.bf16.gmra.mxu0 %v4361
        %v4432 = vpop.f32.mrf.mxu0
        %v4433 = vadd.f32 0.0, %v4432
        %v4434 = vpop.f32.mrf.mxu0
        %v4435 = vadd.f32 0.0, %v4434
        %4436 = vmatmul.bf16.gmra.mxu0 %v4363
        %v4437 = vpop.f32.mrf.mxu0
        %v4438 = vadd.f32 0.0, %v4437
        %v4439 = vpop.f32.mrf.mxu0
        %v4440 = vadd.f32 0.0, %v4439
        %4441 = vmatmul.bf16.gmra.mxu0 %v4365
        %v4442 = vpop.f32.mrf.mxu0
        %v4443 = vadd.f32 0.0, %v4442
        %v4444 = vpop.f32.mrf.mxu0
        %v4445 = vadd.f32 0.0, %v4444
        %4446 = vmatmul.bf16.gmra.mxu0 %v4367
        %v4447 = vpop.f32.mrf.mxu0
        %v4448 = vadd.f32 0.0, %v4447
        %v4449 = vpop.f32.mrf.mxu0
        %v4450 = vadd.f32 0.0, %v4449
        %4451 = vmatmul.bf16.gmra.mxu0 %v4369
        %v4452 = vpop.f32.mrf.mxu0
        %v4453 = vadd.f32 0.0, %v4452
        %v4454 = vpop.f32.mrf.mxu0
        %v4455 = vadd.f32 0.0, %v4454
        %4456 = vdwg.mxu0
        %v4457 = vadd.f32 %v4328, %v4433
        %v4458 = vadd.f32 %v4329, %v4435
        %v4459 = vadd.f32 %v4330, %v4438
        %v4460 = vadd.f32 %v4331, %v4440
        %v4461 = vadd.f32 %v4332, %v4443
        %v4462 = vadd.f32 %v4333, %v4445
        %v4463 = vadd.f32 %v4334, %v4448
        %v4464 = vadd.f32 %v4335, %v4450
        %v4465 = vadd.f32 %v4336, %v4453
        %v4466 = vadd.f32 %v4337, %v4455
        %s4467 = scalar_lea.vmem [#allocation6], 2
        %v4468 = vld [vmem:[%s4467] sm:$0x1]
        %v4470 = vperm.slane %v4468, 0
        %v4472 = vmul.f32 %v4457, %v4470
        %v4473 = vmul.f32 %v4458, %v4470
        %v4474 = vmul.f32 %v4459, %v4470
        %v4475 = vmul.f32 %v4460, %v4470
        %v4476 = vmul.f32 %v4461, %v4470
        %v4477 = vmul.f32 %v4462, %v4470
        %v4478 = vmul.f32 %v4463, %v4470
        %v4479 = vmul.f32 %v4464, %v4470
        %v4480 = vmul.f32 %v4465, %v4470
        %v4481 = vmul.f32 %v4466, %v4470
        %s4482 = scalar_lea.vmem [#allocation8], 2
        %v4483 = vld [vmem:[%s4482] sm:$0x1]
        %v4485 = vperm.slane %v4483, 0
        %v4487 = vadd.f32 %v4472, %v4485
        %v4488 = vadd.f32 %v4473, %v4485
        %v4489 = vadd.f32 %v4474, %v4485
        %v4490 = vadd.f32 %v4475, %v4485
        %v4491 = vadd.f32 %v4476, %v4485
        %v4492 = vadd.f32 %v4477, %v4485
        %v4493 = vadd.f32 %v4478, %v4485
        %v4494 = vadd.f32 %v4479, %v4485
        %v4495 = vadd.f32 %v4480, %v4485
        %v4496 = vadd.f32 %v4481, %v4485
        %v4497 = vmax.f32 %v4487, 0.0
        %v4498 = vmax.f32 %v4488, 0.0
        %v4499 = vmax.f32 %v4489, 0.0
        %v4500 = vmax.f32 %v4490, 0.0
        %v4501 = vmax.f32 %v4491, 0.0
        %v4502 = vmax.f32 %v4492, 0.0
        %v4503 = vmax.f32 %v4493, 0.0
        %v4504 = vmax.f32 %v4494, 0.0
        %v4505 = vmax.f32 %v4495, 0.0
        %v4506 = vmax.f32 %v4496, 0.0
        %v4507 = vmul.f32 %v4497, %v329
        %v4508 = vmul.f32 %v4498, %v330
        %v4509 = vmul.f32 %v4499, %v331
        %v4510 = vmul.f32 %v4500, %v332
        %v4511 = vmul.f32 %v4501, %v333
        %v4512 = vmul.f32 %v4502, %v334
        %v4513 = vmul.f32 %v4503, %v335
        %v4514 = vmul.f32 %v4504, %v336
        %v4515 = vmul.f32 %v4505, %v337
        %v4516 = vmul.f32 %v4506, %v338
        %v4517 = vpack.c.bf16 %v4507, %v4507
        %v4518 = vpack.c.bf16 %v4508, %v4508
        %v4519 = vpack.c.bf16 %v4509, %v4509
        %v4520 = vpack.c.bf16 %v4510, %v4510
        %v4521 = vpack.c.bf16 %v4511, %v4511
        %v4522 = vpack.c.bf16 %v4512, %v4512
        %v4523 = vpack.c.bf16 %v4513, %v4513
        %v4524 = vpack.c.bf16 %v4514, %v4514
        %v4525 = vpack.c.bf16 %v4515, %v4515
        %v4526 = vpack.c.bf16 %v4516, %v4516
        %4527 = vst [vmem:[#allocation3 + $0x8] sm:$0xf] %v4517
        %4528 = vst [vmem:[#allocation3 + $0xc] sm:$0xf] %v4518
        %4529 = vst [vmem:[#allocation3 + $0x10] sm:$0xf] %v4519
        %4530 = vst [vmem:[#allocation3 + $0x14] sm:$0xf] %v4520
        %4531 = vst [vmem:[#allocation3 + $0x18] sm:$0xf] %v4521
        %4532 = vst [vmem:[#allocation3 + $0x1c] sm:$0xf] %v4522
        %4533 = vst [vmem:[#allocation3 + $0x20] sm:$0xf] %v4523
        %4534 = vst [vmem:[#allocation3 + $0x24] sm:$0xf] %v4524
        %4535 = vst [vmem:[#allocation3 + $0x28] sm:$0xf] %v4525
        %4536 = vst [vmem:[#allocation3 + $0x2c] sm:$0xf] %v4526
        %v4537 = vld [vmem:[#allocation3 + $0x4] sm:$0xe]
        %v4538 = vld [vmem:[#allocation3 + $0x8] sm:$0xf]
        %v4539 = vld [vmem:[#allocation3 + $0xc] sm:$0xf]
        %v4540 = vld [vmem:[#allocation3 + $0x10] sm:$0xf]
        %v4541 = vld [vmem:[#allocation3 + $0x14] sm:$0xf]
        %v4542 = vld [vmem:[#allocation3 + $0x18] sm:$0xf]
        %v4543 = vld [vmem:[#allocation3 + $0x1c] sm:$0xf]
        %v4544 = vld [vmem:[#allocation3 + $0x20] sm:$0xf]
        %v4545 = vld [vmem:[#allocation3 + $0x24] sm:$0xf]
        %v4546 = vld [vmem:[#allocation3 + $0x28] sm:$0xf]
        %v4547 = vld [vmem:[#allocation3 + $0x2c] sm:$0x1]
        %s4548 = scalar_lea.vmem [#allocation4], 1728
        %v4549 = vld [vmem:[%s4548] sm:$0xf]
        %v4550 = vld [vmem:[%s4548 + $0x4] sm:$0xf]
        %v4551 = vld [vmem:[%s4548 + $0x8] sm:$0xf]
        %v4552 = vld [vmem:[%s4548 + $0xc] sm:$0xf]
        %v4553 = vld [vmem:[%s4548 + $0x10] sm:$0xf]
        %v4554 = vld [vmem:[%s4548 + $0x14] sm:$0xf]
        %v4555 = vld [vmem:[%s4548 + $0x18] sm:$0xf]
        %v4556 = vld [vmem:[%s4548 + $0x1c] sm:$0xf]
        %v4557 = vld [vmem:[%s4548 + $0x20] sm:$0xf]
        %v4558 = vld [vmem:[%s4548 + $0x24] sm:$0xf]
        %v4559 = vld [vmem:[%s4548 + $0x28] sm:$0xf]
        %v4560 = vld [vmem:[%s4548 + $0x2c] sm:$0xf]
        %v4561 = vld [vmem:[%s4548 + $0x30] sm:$0xf]
        %v4562 = vld [vmem:[%s4548 + $0x34] sm:$0xf]
        %v4563 = vld [vmem:[%s4548 + $0x38] sm:$0xf]
        %v4564 = vld [vmem:[%s4548 + $0x3c] sm:$0xf]
        %v4565 = vld [vmem:[#allocation3 + $0x2c] sm:$0x3]
        %s4566 = scalar_lea.vmem [#allocation4], 1792
        %v4567 = vld [vmem:[%s4566] sm:$0xf]
        %v4568 = vld [vmem:[%s4566 + $0x4] sm:$0xf]
        %v4569 = vld [vmem:[%s4566 + $0x8] sm:$0xf]
        %v4570 = vld [vmem:[%s4566 + $0xc] sm:$0xf]
        %v4571 = vld [vmem:[%s4566 + $0x10] sm:$0xf]
        %v4572 = vld [vmem:[%s4566 + $0x14] sm:$0xf]
        %v4573 = vld [vmem:[%s4566 + $0x18] sm:$0xf]
        %v4574 = vld [vmem:[%s4566 + $0x1c] sm:$0xf]
        %v4575 = vld [vmem:[%s4566 + $0x20] sm:$0xf]
        %v4576 = vld [vmem:[%s4566 + $0x24] sm:$0xf]
        %v4577 = vld [vmem:[%s4566 + $0x28] sm:$0xf]
        %v4578 = vld [vmem:[%s4566 + $0x2c] sm:$0xf]
        %v4579 = vld [vmem:[%s4566 + $0x30] sm:$0xf]
        %v4580 = vld [vmem:[%s4566 + $0x34] sm:$0xf]
        %v4581 = vld [vmem:[%s4566 + $0x38] sm:$0xf]
        %v4582 = vld [vmem:[%s4566 + $0x3c] sm:$0xf]
        %v4594 = vunpack.c.l.b16 %v4537
        %v4595 = vunpack.c.l.b16 %v4538
        %v4596 = vunpack.c.l.b16 %v4539
        %v4597 = vunpack.c.l.b16 %v4540
        %v4598 = vunpack.c.l.b16 %v4541
        %v4599 = vunpack.c.l.b16 %v4542
        %v4600 = vunpack.c.l.b16 %v4543
        %v4601 = vunpack.c.l.b16 %v4544
        %v4602 = vunpack.c.l.b16 %v4545
        %v4603 = vunpack.c.l.b16 %v4546
        %v4604 = vunpack.c.l.b16 %v4565
        %v4605 = vpack.c.b16 %v4595, %v4594
        %v4606 = vpack.c.b16 %v4597, %v4596
        %v4607 = vpack.c.b16 %v4599, %v4598
        %v4608 = vpack.c.b16 %v4601, %v4600
        %v4609 = vpack.c.b16 %v4603, %v4602
        %v4610 = vpack.c.b16 %v4604, %v4604
        %v4612 = vshrl.u32 %v4605, 16
        %v4614 = vrot.slane %v4612, 1
        %v4615 = vshll.u32 %v4605, 16
        %v4617 = vrot.slane %v4615, 2
        %v4618 = vor.u32 %v4614, %v4617
        %v4620 = vshrl.u32 %v4606, 16
        %v4622 = vrot.slane %v4620, 1
        %v4623 = vshll.u32 %v4606, 16
        %v4625 = vrot.slane %v4623, 2
        %v4626 = vor.u32 %v4622, %v4625
        %v4627 = vsel %vm412, %v4618, %v4626
        %v4629 = vshrl.u32 %v4607, 16
        %v4631 = vrot.slane %v4629, 1
        %v4632 = vshll.u32 %v4607, 16
        %v4634 = vrot.slane %v4632, 2
        %v4635 = vor.u32 %v4631, %v4634
        %v4636 = vsel %vm412, %v4626, %v4635
        %v4638 = vshrl.u32 %v4608, 16
        %v4640 = vrot.slane %v4638, 1
        %v4641 = vshll.u32 %v4608, 16
        %v4643 = vrot.slane %v4641, 2
        %v4644 = vor.u32 %v4640, %v4643
        %v4645 = vsel %vm412, %v4635, %v4644
        %v4647 = vshrl.u32 %v4609, 16
        %v4649 = vrot.slane %v4647, 1
        %v4650 = vshll.u32 %v4609, 16
        %v4652 = vrot.slane %v4650, 2
        %v4653 = vor.u32 %v4649, %v4652
        %v4654 = vsel %vm412, %v4644, %v4653
        %v4656 = vshrl.u32 %v4610, 16
        %v4658 = vrot.slane %v4656, 1
        %v4659 = vshll.u32 %v4610, 16
        %v4661 = vrot.slane %v4659, 2
        %v4662 = vor.u32 %v4658, %v4661
        %v4663 = vsel %vm412, %v4653, %v4662
        %v4685 = vunpack.c.l.b16 %v4567
        %v4686 = vunpack.c.l.b16 %v4568
        %v4687 = vunpack.c.l.b16 %v4569
        %v4688 = vunpack.c.l.b16 %v4570
        %v4689 = vunpack.c.l.b16 %v4571
        %v4690 = vunpack.c.l.b16 %v4572
        %v4691 = vunpack.c.l.b16 %v4573
        %v4692 = vunpack.c.l.b16 %v4574
        %v4693 = vunpack.c.l.b16 %v4575
        %v4694 = vunpack.c.l.b16 %v4576
        %v4695 = vunpack.c.l.b16 %v4577
        %v4696 = vunpack.c.l.b16 %v4578
        %v4697 = vunpack.c.l.b16 %v4579
        %v4698 = vunpack.c.l.b16 %v4580
        %v4699 = vunpack.c.l.b16 %v4581
        %v4700 = vunpack.c.l.b16 %v4582
        %v4701 = vpack.c.b16 %v4686, %v4685
        %v4702 = vpack.c.b16 %v4688, %v4687
        %v4703 = vpack.c.b16 %v4690, %v4689
        %v4704 = vpack.c.b16 %v4692, %v4691
        %v4705 = vpack.c.b16 %v4694, %v4693
        %v4706 = vpack.c.b16 %v4696, %v4695
        %v4707 = vpack.c.b16 %v4698, %v4697
        %v4708 = vpack.c.b16 %v4700, %v4699
        %4717 = vmatpush.bf16.msra.mxu0 %v4708
        %4718 = vmatpush.bf16.msra.mxu0 %v4707
        %4719 = vmatpush.bf16.msra.mxu0 %v4706
        %4720 = vmatpush.bf16.msra.mxu0 %v4705
        %4721 = vmatpush.bf16.msra.mxu0 %v4704
        %4722 = vmatpush.bf16.msra.mxu0 %v4703
        %4723 = vmatpush.bf16.msra.mxu0 %v4702
        %4724 = vmatpush.bf16.msra.mxu0 %v4701
        %4725 = vmatmul.bf16.gmra.mxu0 %v4627
        %v4726 = vpop.f32.mrf.mxu0
        %v4727 = vadd.f32 0.0, %v4726
        %v4728 = vpop.f32.mrf.mxu0
        %v4729 = vadd.f32 0.0, %v4728
        %4730 = vmatmul.bf16.gmra.mxu0 %v4636
        %v4731 = vpop.f32.mrf.mxu0
        %v4732 = vadd.f32 0.0, %v4731
        %v4733 = vpop.f32.mrf.mxu0
        %v4734 = vadd.f32 0.0, %v4733
        %4735 = vmatmul.bf16.gmra.mxu0 %v4645
        %v4736 = vpop.f32.mrf.mxu0
        %v4737 = vadd.f32 0.0, %v4736
        %v4738 = vpop.f32.mrf.mxu0
        %v4739 = vadd.f32 0.0, %v4738
        %4740 = vmatmul.bf16.gmra.mxu0 %v4654
        %v4741 = vpop.f32.mrf.mxu0
        %v4742 = vadd.f32 0.0, %v4741
        %v4743 = vpop.f32.mrf.mxu0
        %v4744 = vadd.f32 0.0, %v4743
        %4745 = vmatmul.bf16.gmra.mxu0 %v4663
        %v4746 = vpop.f32.mrf.mxu0
        %v4747 = vadd.f32 0.0, %v4746
        %v4748 = vpop.f32.mrf.mxu0
        %v4749 = vadd.f32 0.0, %v4748
        %4750 = vdwg.mxu0
        %v4752 = vunpack.c.l.b16 %v4547
        %v4753 = vpack.c.b16 %v4752, %v4752
        %v4754 = vrot.slane %v4605, 1
        %v4755 = vrot.slane %v4606, 1
        %v4756 = vsel %vm556, %v4754, %v4755
        %v4757 = vrot.slane %v4607, 1
        %v4758 = vsel %vm556, %v4755, %v4757
        %v4759 = vrot.slane %v4608, 1
        %v4760 = vsel %vm556, %v4757, %v4759
        %v4761 = vrot.slane %v4609, 1
        %v4762 = vsel %vm556, %v4759, %v4761
        %v4763 = vrot.slane %v4753, 1
        %v4764 = vsel %vm556, %v4761, %v4763
        %v4786 = vunpack.c.l.b16 %v4549
        %v4787 = vunpack.c.l.b16 %v4550
        %v4788 = vunpack.c.l.b16 %v4551
        %v4789 = vunpack.c.l.b16 %v4552
        %v4790 = vunpack.c.l.b16 %v4553
        %v4791 = vunpack.c.l.b16 %v4554
        %v4792 = vunpack.c.l.b16 %v4555
        %v4793 = vunpack.c.l.b16 %v4556
        %v4794 = vunpack.c.l.b16 %v4557
        %v4795 = vunpack.c.l.b16 %v4558
        %v4796 = vunpack.c.l.b16 %v4559
        %v4797 = vunpack.c.l.b16 %v4560
        %v4798 = vunpack.c.l.b16 %v4561
        %v4799 = vunpack.c.l.b16 %v4562
        %v4800 = vunpack.c.l.b16 %v4563
        %v4801 = vunpack.c.l.b16 %v4564
        %v4802 = vpack.c.b16 %v4787, %v4786
        %v4803 = vpack.c.b16 %v4789, %v4788
        %v4804 = vpack.c.b16 %v4791, %v4790
        %v4805 = vpack.c.b16 %v4793, %v4792
        %v4806 = vpack.c.b16 %v4795, %v4794
        %v4807 = vpack.c.b16 %v4797, %v4796
        %v4808 = vpack.c.b16 %v4799, %v4798
        %v4809 = vpack.c.b16 %v4801, %v4800
        %4818 = vmatpush.bf16.msra.mxu0 %v4809
        %4819 = vmatpush.bf16.msra.mxu0 %v4808
        %4820 = vmatpush.bf16.msra.mxu0 %v4807
        %4821 = vmatpush.bf16.msra.mxu0 %v4806
        %4822 = vmatpush.bf16.msra.mxu0 %v4805
        %4823 = vmatpush.bf16.msra.mxu0 %v4804
        %4824 = vmatpush.bf16.msra.mxu0 %v4803
        %4825 = vmatpush.bf16.msra.mxu0 %v4802
        %4826 = vmatmul.bf16.gmra.mxu0 %v4756
        %v4827 = vpop.f32.mrf.mxu0
        %v4828 = vadd.f32 %v4727, %v4827
        %v4829 = vpop.f32.mrf.mxu0
        %v4830 = vadd.f32 %v4729, %v4829
        %4831 = vmatmul.bf16.gmra.mxu0 %v4758
        %v4832 = vpop.f32.mrf.mxu0
        %v4833 = vadd.f32 %v4732, %v4832
        %v4834 = vpop.f32.mrf.mxu0
        %v4835 = vadd.f32 %v4734, %v4834
        %4836 = vmatmul.bf16.gmra.mxu0 %v4760
        %v4837 = vpop.f32.mrf.mxu0
        %v4838 = vadd.f32 %v4737, %v4837
        %v4839 = vpop.f32.mrf.mxu0
        %v4840 = vadd.f32 %v4739, %v4839
        %4841 = vmatmul.bf16.gmra.mxu0 %v4762
        %v4842 = vpop.f32.mrf.mxu0
        %v4843 = vadd.f32 %v4742, %v4842
        %v4844 = vpop.f32.mrf.mxu0
        %v4845 = vadd.f32 %v4744, %v4844
        %4846 = vmatmul.bf16.gmra.mxu0 %v4764
        %v4847 = vpop.f32.mrf.mxu0
        %v4848 = vadd.f32 %v4747, %v4847
        %v4849 = vpop.f32.mrf.mxu0
        %v4850 = vadd.f32 %v4749, %v4849
        %4851 = vdwg.mxu0
        %v4852 = vld [vmem:[#allocation3 + $0x4] sm:$0xc]
        %s4853 = scalar_lea.vmem [#allocation4], 1856
        %v4854 = vld [vmem:[%s4853] sm:$0xf]
        %v4855 = vld [vmem:[%s4853 + $0x4] sm:$0xf]
        %v4856 = vld [vmem:[%s4853 + $0x8] sm:$0xf]
        %v4857 = vld [vmem:[%s4853 + $0xc] sm:$0xf]
        %v4858 = vld [vmem:[%s4853 + $0x10] sm:$0xf]
        %v4859 = vld [vmem:[%s4853 + $0x14] sm:$0xf]
        %v4860 = vld [vmem:[%s4853 + $0x18] sm:$0xf]
        %v4861 = vld [vmem:[%s4853 + $0x1c] sm:$0xf]
        %v4862 = vld [vmem:[%s4853 + $0x20] sm:$0xf]
        %v4863 = vld [vmem:[%s4853 + $0x24] sm:$0xf]
        %v4864 = vld [vmem:[%s4853 + $0x28] sm:$0xf]
        %v4865 = vld [vmem:[%s4853 + $0x2c] sm:$0xf]
        %v4866 = vld [vmem:[%s4853 + $0x30] sm:$0xf]
        %v4867 = vld [vmem:[%s4853 + $0x34] sm:$0xf]
        %v4868 = vld [vmem:[%s4853 + $0x38] sm:$0xf]
        %v4869 = vld [vmem:[%s4853 + $0x3c] sm:$0xf]
        %v4871 = vunpack.c.l.b16 %v4852
        %v4872 = vpack.c.b16 %v4595, %v4871
        %v4873 = vrot.slane %v4872, 2
        %v4874 = vrot.slane %v4606, 2
        %v4875 = vsel %vm676, %v4873, %v4874
        %v4876 = vrot.slane %v4607, 2
        %v4877 = vsel %vm676, %v4874, %v4876
        %v4878 = vrot.slane %v4608, 2
        %v4879 = vsel %vm676, %v4876, %v4878
        %v4880 = vrot.slane %v4609, 2
        %v4881 = vsel %vm676, %v4878, %v4880
        %v4882 = vrot.slane %v4610, 2
        %v4883 = vsel %vm676, %v4880, %v4882
        %v4905 = vunpack.c.l.b16 %v4854
        %v4906 = vunpack.c.l.b16 %v4855
        %v4907 = vunpack.c.l.b16 %v4856
        %v4908 = vunpack.c.l.b16 %v4857
        %v4909 = vunpack.c.l.b16 %v4858
        %v4910 = vunpack.c.l.b16 %v4859
        %v4911 = vunpack.c.l.b16 %v4860
        %v4912 = vunpack.c.l.b16 %v4861
        %v4913 = vunpack.c.l.b16 %v4862
        %v4914 = vunpack.c.l.b16 %v4863
        %v4915 = vunpack.c.l.b16 %v4864
        %v4916 = vunpack.c.l.b16 %v4865
        %v4917 = vunpack.c.l.b16 %v4866
        %v4918 = vunpack.c.l.b16 %v4867
        %v4919 = vunpack.c.l.b16 %v4868
        %v4920 = vunpack.c.l.b16 %v4869
        %v4921 = vpack.c.b16 %v4906, %v4905
        %v4922 = vpack.c.b16 %v4908, %v4907
        %v4923 = vpack.c.b16 %v4910, %v4909
        %v4924 = vpack.c.b16 %v4912, %v4911
        %v4925 = vpack.c.b16 %v4914, %v4913
        %v4926 = vpack.c.b16 %v4916, %v4915
        %v4927 = vpack.c.b16 %v4918, %v4917
        %v4928 = vpack.c.b16 %v4920, %v4919
        %4937 = vmatpush.bf16.msra.mxu0 %v4928
        %4938 = vmatpush.bf16.msra.mxu0 %v4927
        %4939 = vmatpush.bf16.msra.mxu0 %v4926
        %4940 = vmatpush.bf16.msra.mxu0 %v4925
        %4941 = vmatpush.bf16.msra.mxu0 %v4924
        %4942 = vmatpush.bf16.msra.mxu0 %v4923
        %4943 = vmatpush.bf16.msra.mxu0 %v4922
        %4944 = vmatpush.bf16.msra.mxu0 %v4921
        %4945 = vmatmul.bf16.gmra.mxu0 %v4875
        %v4946 = vpop.f32.mrf.mxu0
        %v4947 = vadd.f32 0.0, %v4946
        %v4948 = vpop.f32.mrf.mxu0
        %v4949 = vadd.f32 0.0, %v4948
        %4950 = vmatmul.bf16.gmra.mxu0 %v4877
        %v4951 = vpop.f32.mrf.mxu0
        %v4952 = vadd.f32 0.0, %v4951
        %v4953 = vpop.f32.mrf.mxu0
        %v4954 = vadd.f32 0.0, %v4953
        %4955 = vmatmul.bf16.gmra.mxu0 %v4879
        %v4956 = vpop.f32.mrf.mxu0
        %v4957 = vadd.f32 0.0, %v4956
        %v4958 = vpop.f32.mrf.mxu0
        %v4959 = vadd.f32 0.0, %v4958
        %4960 = vmatmul.bf16.gmra.mxu0 %v4881
        %v4961 = vpop.f32.mrf.mxu0
        %v4962 = vadd.f32 0.0, %v4961
        %v4963 = vpop.f32.mrf.mxu0
        %v4964 = vadd.f32 0.0, %v4963
        %4965 = vmatmul.bf16.gmra.mxu0 %v4883
        %v4966 = vpop.f32.mrf.mxu0
        %v4967 = vadd.f32 0.0, %v4966
        %v4968 = vpop.f32.mrf.mxu0
        %v4969 = vadd.f32 0.0, %v4968
        %4970 = vdwg.mxu0
        %v4971 = vadd.f32 %v4828, %v4947
        %v4972 = vadd.f32 %v4830, %v4949
        %v4973 = vadd.f32 %v4833, %v4952
        %v4974 = vadd.f32 %v4835, %v4954
        %v4975 = vadd.f32 %v4838, %v4957
        %v4976 = vadd.f32 %v4840, %v4959
        %v4977 = vadd.f32 %v4843, %v4962
        %v4978 = vadd.f32 %v4845, %v4964
        %v4979 = vadd.f32 %v4848, %v4967
        %v4980 = vadd.f32 %v4850, %v4969
        %v4981 = vld [vmem:[#allocation3 + $0x4] sm:$0x8]
        %v4982 = vld [vmem:[#allocation3 + $0x2c] sm:$0xf]
        %s4983 = scalar_lea.vmem [#allocation4], 1920
        %v4984 = vld [vmem:[%s4983] sm:$0xf]
        %v4985 = vld [vmem:[%s4983 + $0x4] sm:$0xf]
        %v4986 = vld [vmem:[%s4983 + $0x8] sm:$0xf]
        %v4987 = vld [vmem:[%s4983 + $0xc] sm:$0xf]
        %v4988 = vld [vmem:[%s4983 + $0x10] sm:$0xf]
        %v4989 = vld [vmem:[%s4983 + $0x14] sm:$0xf]
        %v4990 = vld [vmem:[%s4983 + $0x18] sm:$0xf]
        %v4991 = vld [vmem:[%s4983 + $0x1c] sm:$0xf]
        %v4992 = vld [vmem:[%s4983 + $0x20] sm:$0xf]
        %v4993 = vld [vmem:[%s4983 + $0x24] sm:$0xf]
        %v4994 = vld [vmem:[%s4983 + $0x28] sm:$0xf]
        %v4995 = vld [vmem:[%s4983 + $0x2c] sm:$0xf]
        %v4996 = vld [vmem:[%s4983 + $0x30] sm:$0xf]
        %v4997 = vld [vmem:[%s4983 + $0x34] sm:$0xf]
        %v4998 = vld [vmem:[%s4983 + $0x38] sm:$0xf]
        %v4999 = vld [vmem:[%s4983 + $0x3c] sm:$0xf]
        %v5002 = vunpack.c.l.b16 %v4981
        %v5003 = vunpack.c.l.b16 %v4982
        %v5004 = vpack.c.b16 %v4595, %v5002
        %v5005 = vpack.c.b16 %v5003, %v5003
        %v5007 = vshrl.u32 %v5004, 16
        %v5009 = vrot.slane %v5007, 3
        %v5010 = vshll.u32 %v5004, 16
        %v5012 = vrot.slane %v5010, 4
        %v5013 = vor.u32 %v5009, %v5012
        %v5014 = vrot.slane %v4620, 3
        %v5015 = vrot.slane %v4623, 4
        %v5016 = vor.u32 %v5014, %v5015
        %v5017 = vsel %vm810, %v5013, %v5016
        %v5018 = vrot.slane %v4629, 3
        %v5019 = vrot.slane %v4632, 4
        %v5020 = vor.u32 %v5018, %v5019
        %v5021 = vsel %vm810, %v5016, %v5020
        %v5022 = vrot.slane %v4638, 3
        %v5023 = vrot.slane %v4641, 4
        %v5024 = vor.u32 %v5022, %v5023
        %v5025 = vsel %vm810, %v5020, %v5024
        %v5026 = vrot.slane %v4647, 3
        %v5027 = vrot.slane %v4650, 4
        %v5028 = vor.u32 %v5026, %v5027
        %v5029 = vsel %vm810, %v5024, %v5028
        %v5031 = vshrl.u32 %v5005, 16
        %v5033 = vrot.slane %v5031, 3
        %v5034 = vshll.u32 %v5005, 16
        %v5036 = vrot.slane %v5034, 4
        %v5037 = vor.u32 %v5033, %v5036
        %v5038 = vsel %vm810, %v5028, %v5037
        %v5060 = vunpack.c.l.b16 %v4984
        %v5061 = vunpack.c.l.b16 %v4985
        %v5062 = vunpack.c.l.b16 %v4986
        %v5063 = vunpack.c.l.b16 %v4987
        %v5064 = vunpack.c.l.b16 %v4988
        %v5065 = vunpack.c.l.b16 %v4989
        %v5066 = vunpack.c.l.b16 %v4990
        %v5067 = vunpack.c.l.b16 %v4991
        %v5068 = vunpack.c.l.b16 %v4992
        %v5069 = vunpack.c.l.b16 %v4993
        %v5070 = vunpack.c.l.b16 %v4994
        %v5071 = vunpack.c.l.b16 %v4995
        %v5072 = vunpack.c.l.b16 %v4996
        %v5073 = vunpack.c.l.b16 %v4997
        %v5074 = vunpack.c.l.b16 %v4998
        %v5075 = vunpack.c.l.b16 %v4999
        %v5076 = vpack.c.b16 %v5061, %v5060
        %v5077 = vpack.c.b16 %v5063, %v5062
        %v5078 = vpack.c.b16 %v5065, %v5064
        %v5079 = vpack.c.b16 %v5067, %v5066
        %v5080 = vpack.c.b16 %v5069, %v5068
        %v5081 = vpack.c.b16 %v5071, %v5070
        %v5082 = vpack.c.b16 %v5073, %v5072
        %v5083 = vpack.c.b16 %v5075, %v5074
        %5092 = vmatpush.bf16.msra.mxu0 %v5083
        %5093 = vmatpush.bf16.msra.mxu0 %v5082
        %5094 = vmatpush.bf16.msra.mxu0 %v5081
        %5095 = vmatpush.bf16.msra.mxu0 %v5080
        %5096 = vmatpush.bf16.msra.mxu0 %v5079
        %5097 = vmatpush.bf16.msra.mxu0 %v5078
        %5098 = vmatpush.bf16.msra.mxu0 %v5077
        %5099 = vmatpush.bf16.msra.mxu0 %v5076
        %5100 = vmatmul.bf16.gmra.mxu0 %v5017
        %v5101 = vpop.f32.mrf.mxu0
        %v5102 = vadd.f32 0.0, %v5101
        %v5103 = vpop.f32.mrf.mxu0
        %v5104 = vadd.f32 0.0, %v5103
        %5105 = vmatmul.bf16.gmra.mxu0 %v5021
        %v5106 = vpop.f32.mrf.mxu0
        %v5107 = vadd.f32 0.0, %v5106
        %v5108 = vpop.f32.mrf.mxu0
        %v5109 = vadd.f32 0.0, %v5108
        %5110 = vmatmul.bf16.gmra.mxu0 %v5025
        %v5111 = vpop.f32.mrf.mxu0
        %v5112 = vadd.f32 0.0, %v5111
        %v5113 = vpop.f32.mrf.mxu0
        %v5114 = vadd.f32 0.0, %v5113
        %5115 = vmatmul.bf16.gmra.mxu0 %v5029
        %v5116 = vpop.f32.mrf.mxu0
        %v5117 = vadd.f32 0.0, %v5116
        %v5118 = vpop.f32.mrf.mxu0
        %v5119 = vadd.f32 0.0, %v5118
        %5120 = vmatmul.bf16.gmra.mxu0 %v5038
        %v5121 = vpop.f32.mrf.mxu0
        %v5122 = vadd.f32 0.0, %v5121
        %v5123 = vpop.f32.mrf.mxu0
        %v5124 = vadd.f32 0.0, %v5123
        %5125 = vdwg.mxu0
        %v5126 = vadd.f32 %v4971, %v5102
        %v5127 = vadd.f32 %v4972, %v5104
        %v5128 = vadd.f32 %v4973, %v5107
        %v5129 = vadd.f32 %v4974, %v5109
        %v5130 = vadd.f32 %v4975, %v5112
        %v5131 = vadd.f32 %v4976, %v5114
        %v5132 = vadd.f32 %v4977, %v5117
        %v5133 = vadd.f32 %v4978, %v5119
        %v5134 = vadd.f32 %v4979, %v5122
        %v5135 = vadd.f32 %v4980, %v5124
        %s5136 = scalar_lea.vmem [#allocation4], 1984
        %v5137 = vld [vmem:[%s5136] sm:$0xf]
        %v5138 = vld [vmem:[%s5136 + $0x4] sm:$0xf]
        %v5139 = vld [vmem:[%s5136 + $0x8] sm:$0xf]
        %v5140 = vld [vmem:[%s5136 + $0xc] sm:$0xf]
        %v5141 = vld [vmem:[%s5136 + $0x10] sm:$0xf]
        %v5142 = vld [vmem:[%s5136 + $0x14] sm:$0xf]
        %v5143 = vld [vmem:[%s5136 + $0x18] sm:$0xf]
        %v5144 = vld [vmem:[%s5136 + $0x1c] sm:$0xf]
        %v5145 = vld [vmem:[%s5136 + $0x20] sm:$0xf]
        %v5146 = vld [vmem:[%s5136 + $0x24] sm:$0xf]
        %v5147 = vld [vmem:[%s5136 + $0x28] sm:$0xf]
        %v5148 = vld [vmem:[%s5136 + $0x2c] sm:$0xf]
        %v5149 = vld [vmem:[%s5136 + $0x30] sm:$0xf]
        %v5150 = vld [vmem:[%s5136 + $0x34] sm:$0xf]
        %v5151 = vld [vmem:[%s5136 + $0x38] sm:$0xf]
        %v5152 = vld [vmem:[%s5136 + $0x3c] sm:$0xf]
        %v5153 = vpack.c.b16 %v4596, %v4595
        %v5154 = vpack.c.b16 %v4598, %v4597
        %v5155 = vpack.c.b16 %v4600, %v4599
        %v5156 = vpack.c.b16 %v4602, %v4601
        %v5157 = vpack.c.b16 %v5003, %v4603
        %v5179 = vunpack.c.l.b16 %v5137
        %v5180 = vunpack.c.l.b16 %v5138
        %v5181 = vunpack.c.l.b16 %v5139
        %v5182 = vunpack.c.l.b16 %v5140
        %v5183 = vunpack.c.l.b16 %v5141
        %v5184 = vunpack.c.l.b16 %v5142
        %v5185 = vunpack.c.l.b16 %v5143
        %v5186 = vunpack.c.l.b16 %v5144
        %v5187 = vunpack.c.l.b16 %v5145
        %v5188 = vunpack.c.l.b16 %v5146
        %v5189 = vunpack.c.l.b16 %v5147
        %v5190 = vunpack.c.l.b16 %v5148
        %v5191 = vunpack.c.l.b16 %v5149
        %v5192 = vunpack.c.l.b16 %v5150
        %v5193 = vunpack.c.l.b16 %v5151
        %v5194 = vunpack.c.l.b16 %v5152
        %v5195 = vpack.c.b16 %v5180, %v5179
        %v5196 = vpack.c.b16 %v5182, %v5181
        %v5197 = vpack.c.b16 %v5184, %v5183
        %v5198 = vpack.c.b16 %v5186, %v5185
        %v5199 = vpack.c.b16 %v5188, %v5187
        %v5200 = vpack.c.b16 %v5190, %v5189
        %v5201 = vpack.c.b16 %v5192, %v5191
        %v5202 = vpack.c.b16 %v5194, %v5193
        %5211 = vmatpush.bf16.msra.mxu0 %v5202
        %5212 = vmatpush.bf16.msra.mxu0 %v5201
        %5213 = vmatpush.bf16.msra.mxu0 %v5200
        %5214 = vmatpush.bf16.msra.mxu0 %v5199
        %5215 = vmatpush.bf16.msra.mxu0 %v5198
        %5216 = vmatpush.bf16.msra.mxu0 %v5197
        %5217 = vmatpush.bf16.msra.mxu0 %v5196
        %5218 = vmatpush.bf16.msra.mxu0 %v5195
        %5219 = vmatmul.bf16.gmra.mxu0 %v5153
        %v5220 = vpop.f32.mrf.mxu0
        %v5221 = vadd.f32 0.0, %v5220
        %v5222 = vpop.f32.mrf.mxu0
        %v5223 = vadd.f32 0.0, %v5222
        %5224 = vmatmul.bf16.gmra.mxu0 %v5154
        %v5225 = vpop.f32.mrf.mxu0
        %v5226 = vadd.f32 0.0, %v5225
        %v5227 = vpop.f32.mrf.mxu0
        %v5228 = vadd.f32 0.0, %v5227
        %5229 = vmatmul.bf16.gmra.mxu0 %v5155
        %v5230 = vpop.f32.mrf.mxu0
        %v5231 = vadd.f32 0.0, %v5230
        %v5232 = vpop.f32.mrf.mxu0
        %v5233 = vadd.f32 0.0, %v5232
        %5234 = vmatmul.bf16.gmra.mxu0 %v5156
        %v5235 = vpop.f32.mrf.mxu0
        %v5236 = vadd.f32 0.0, %v5235
        %v5237 = vpop.f32.mrf.mxu0
        %v5238 = vadd.f32 0.0, %v5237
        %5239 = vmatmul.bf16.gmra.mxu0 %v5157
        %v5240 = vpop.f32.mrf.mxu0
        %v5241 = vadd.f32 0.0, %v5240
        %v5242 = vpop.f32.mrf.mxu0
        %v5243 = vadd.f32 0.0, %v5242
        %5244 = vdwg.mxu0
        %v5245 = vadd.f32 %v5126, %v5221
        %v5246 = vadd.f32 %v5127, %v5223
        %v5247 = vadd.f32 %v5128, %v5226
        %v5248 = vadd.f32 %v5129, %v5228
        %v5249 = vadd.f32 %v5130, %v5231
        %v5250 = vadd.f32 %v5131, %v5233
        %v5251 = vadd.f32 %v5132, %v5236
        %v5252 = vadd.f32 %v5133, %v5238
        %v5253 = vadd.f32 %v5134, %v5241
        %v5254 = vadd.f32 %v5135, %v5243
        %v5255 = vld [vmem:[#allocation3 + $0x8] sm:$0xf]
        %v5256 = vld [vmem:[#allocation3 + $0xc] sm:$0xf]
        %v5257 = vld [vmem:[#allocation3 + $0x10] sm:$0xf]
        %v5258 = vld [vmem:[#allocation3 + $0x14] sm:$0xf]
        %v5259 = vld [vmem:[#allocation3 + $0x18] sm:$0xf]
        %v5260 = vld [vmem:[#allocation3 + $0x1c] sm:$0xf]
        %v5261 = vld [vmem:[#allocation3 + $0x20] sm:$0xf]
        %v5262 = vld [vmem:[#allocation3 + $0x24] sm:$0xf]
        %v5263 = vld [vmem:[#allocation3 + $0x28] sm:$0xf]
        %v5264 = vld [vmem:[#allocation3 + $0x2c] sm:$0xf]
        %v5265 = vld [vmem:[#allocation3 + $0x30] sm:$0x1]
        %s5266 = scalar_lea.vmem [#allocation4], 2048
        %v5267 = vld [vmem:[%s5266] sm:$0xf]
        %v5268 = vld [vmem:[%s5266 + $0x4] sm:$0xf]
        %v5269 = vld [vmem:[%s5266 + $0x8] sm:$0xf]
        %v5270 = vld [vmem:[%s5266 + $0xc] sm:$0xf]
        %v5271 = vld [vmem:[%s5266 + $0x10] sm:$0xf]
        %v5272 = vld [vmem:[%s5266 + $0x14] sm:$0xf]
        %v5273 = vld [vmem:[%s5266 + $0x18] sm:$0xf]
        %v5274 = vld [vmem:[%s5266 + $0x1c] sm:$0xf]
        %v5275 = vld [vmem:[%s5266 + $0x20] sm:$0xf]
        %v5276 = vld [vmem:[%s5266 + $0x24] sm:$0xf]
        %v5277 = vld [vmem:[%s5266 + $0x28] sm:$0xf]
        %v5278 = vld [vmem:[%s5266 + $0x2c] sm:$0xf]
        %v5279 = vld [vmem:[%s5266 + $0x30] sm:$0xf]
        %v5280 = vld [vmem:[%s5266 + $0x34] sm:$0xf]
        %v5281 = vld [vmem:[%s5266 + $0x38] sm:$0xf]
        %v5282 = vld [vmem:[%s5266 + $0x3c] sm:$0xf]
        %v5294 = vunpack.c.l.b16 %v5255
        %v5295 = vunpack.c.l.b16 %v5256
        %v5296 = vunpack.c.l.b16 %v5257
        %v5297 = vunpack.c.l.b16 %v5258
        %v5298 = vunpack.c.l.b16 %v5259
        %v5299 = vunpack.c.l.b16 %v5260
        %v5300 = vunpack.c.l.b16 %v5261
        %v5301 = vunpack.c.l.b16 %v5262
        %v5302 = vunpack.c.l.b16 %v5263
        %v5303 = vunpack.c.l.b16 %v5264
        %v5304 = vunpack.c.l.b16 %v5265
        %v5305 = vpack.c.b16 %v5295, %v5294
        %v5306 = vpack.c.b16 %v5297, %v5296
        %v5307 = vpack.c.b16 %v5299, %v5298
        %v5308 = vpack.c.b16 %v5301, %v5300
        %v5309 = vpack.c.b16 %v5303, %v5302
        %v5310 = vpack.c.b16 %v5304, %v5304
        %v5312 = vshrl.u32 %v5305, 16
        %v5314 = vshll.u32 %v5305, 16
        %v5316 = vrot.slane %v5314, 1
        %v5317 = vor.u32 %v5312, %v5316
        %v5319 = vshll.u32 %v5306, 16
        %v5321 = vrot.slane %v5319, 1
        %v5322 = vsel %vm1116, %v5317, %v5321
        %v5323 = vshrl.u32 %v5306, 16
        %v5325 = vor.u32 %v5323, %v5321
        %v5327 = vshll.u32 %v5307, 16
        %v5329 = vrot.slane %v5327, 1
        %v5330 = vsel %vm1116, %v5325, %v5329
        %v5331 = vshrl.u32 %v5307, 16
        %v5333 = vor.u32 %v5331, %v5329
        %v5335 = vshll.u32 %v5308, 16
        %v5337 = vrot.slane %v5335, 1
        %v5338 = vsel %vm1116, %v5333, %v5337
        %v5339 = vshrl.u32 %v5308, 16
        %v5341 = vor.u32 %v5339, %v5337
        %v5343 = vshll.u32 %v5309, 16
        %v5345 = vrot.slane %v5343, 1
        %v5346 = vsel %vm1116, %v5341, %v5345
        %v5347 = vshrl.u32 %v5309, 16
        %v5349 = vor.u32 %v5347, %v5345
        %v5351 = vshll.u32 %v5310, 16
        %v5353 = vrot.slane %v5351, 1
        %v5354 = vsel %vm1116, %v5349, %v5353
        %v5376 = vunpack.c.l.b16 %v5267
        %v5377 = vunpack.c.l.b16 %v5268
        %v5378 = vunpack.c.l.b16 %v5269
        %v5379 = vunpack.c.l.b16 %v5270
        %v5380 = vunpack.c.l.b16 %v5271
        %v5381 = vunpack.c.l.b16 %v5272
        %v5382 = vunpack.c.l.b16 %v5273
        %v5383 = vunpack.c.l.b16 %v5274
        %v5384 = vunpack.c.l.b16 %v5275
        %v5385 = vunpack.c.l.b16 %v5276
        %v5386 = vunpack.c.l.b16 %v5277
        %v5387 = vunpack.c.l.b16 %v5278
        %v5388 = vunpack.c.l.b16 %v5279
        %v5389 = vunpack.c.l.b16 %v5280
        %v5390 = vunpack.c.l.b16 %v5281
        %v5391 = vunpack.c.l.b16 %v5282
        %v5392 = vpack.c.b16 %v5377, %v5376
        %v5393 = vpack.c.b16 %v5379, %v5378
        %v5394 = vpack.c.b16 %v5381, %v5380
        %v5395 = vpack.c.b16 %v5383, %v5382
        %v5396 = vpack.c.b16 %v5385, %v5384
        %v5397 = vpack.c.b16 %v5387, %v5386
        %v5398 = vpack.c.b16 %v5389, %v5388
        %v5399 = vpack.c.b16 %v5391, %v5390
        %5408 = vmatpush.bf16.msra.mxu0 %v5399
        %5409 = vmatpush.bf16.msra.mxu0 %v5398
        %5410 = vmatpush.bf16.msra.mxu0 %v5397
        %5411 = vmatpush.bf16.msra.mxu0 %v5396
        %5412 = vmatpush.bf16.msra.mxu0 %v5395
        %5413 = vmatpush.bf16.msra.mxu0 %v5394
        %5414 = vmatpush.bf16.msra.mxu0 %v5393
        %5415 = vmatpush.bf16.msra.mxu0 %v5392
        %5416 = vmatmul.bf16.gmra.mxu0 %v5322
        %v5417 = vpop.f32.mrf.mxu0
        %v5418 = vadd.f32 0.0, %v5417
        %v5419 = vpop.f32.mrf.mxu0
        %v5420 = vadd.f32 0.0, %v5419
        %5421 = vmatmul.bf16.gmra.mxu0 %v5330
        %v5422 = vpop.f32.mrf.mxu0
        %v5423 = vadd.f32 0.0, %v5422
        %v5424 = vpop.f32.mrf.mxu0
        %v5425 = vadd.f32 0.0, %v5424
        %5426 = vmatmul.bf16.gmra.mxu0 %v5338
        %v5427 = vpop.f32.mrf.mxu0
        %v5428 = vadd.f32 0.0, %v5427
        %v5429 = vpop.f32.mrf.mxu0
        %v5430 = vadd.f32 0.0, %v5429
        %5431 = vmatmul.bf16.gmra.mxu0 %v5346
        %v5432 = vpop.f32.mrf.mxu0
        %v5433 = vadd.f32 0.0, %v5432
        %v5434 = vpop.f32.mrf.mxu0
        %v5435 = vadd.f32 0.0, %v5434
        %5436 = vmatmul.bf16.gmra.mxu0 %v5354
        %v5437 = vpop.f32.mrf.mxu0
        %v5438 = vadd.f32 0.0, %v5437
        %v5439 = vpop.f32.mrf.mxu0
        %v5440 = vadd.f32 0.0, %v5439
        %5441 = vdwg.mxu0
        %v5442 = vadd.f32 %v5245, %v5418
        %v5443 = vadd.f32 %v5246, %v5420
        %v5444 = vadd.f32 %v5247, %v5423
        %v5445 = vadd.f32 %v5248, %v5425
        %v5446 = vadd.f32 %v5249, %v5428
        %v5447 = vadd.f32 %v5250, %v5430
        %v5448 = vadd.f32 %v5251, %v5433
        %v5449 = vadd.f32 %v5252, %v5435
        %v5450 = vadd.f32 %v5253, %v5438
        %v5451 = vadd.f32 %v5254, %v5440
        %v5452 = vld [vmem:[#allocation3 + $0x8] sm:$0xc]
        %v5453 = vld [vmem:[#allocation3 + $0x30] sm:$0x3]
        %s5454 = scalar_lea.vmem [#allocation4], 2112
        %v5455 = vld [vmem:[%s5454] sm:$0xf]
        %v5456 = vld [vmem:[%s5454 + $0x4] sm:$0xf]
        %v5457 = vld [vmem:[%s5454 + $0x8] sm:$0xf]
        %v5458 = vld [vmem:[%s5454 + $0xc] sm:$0xf]
        %v5459 = vld [vmem:[%s5454 + $0x10] sm:$0xf]
        %v5460 = vld [vmem:[%s5454 + $0x14] sm:$0xf]
        %v5461 = vld [vmem:[%s5454 + $0x18] sm:$0xf]
        %v5462 = vld [vmem:[%s5454 + $0x1c] sm:$0xf]
        %v5463 = vld [vmem:[%s5454 + $0x20] sm:$0xf]
        %v5464 = vld [vmem:[%s5454 + $0x24] sm:$0xf]
        %v5465 = vld [vmem:[%s5454 + $0x28] sm:$0xf]
        %v5466 = vld [vmem:[%s5454 + $0x2c] sm:$0xf]
        %v5467 = vld [vmem:[%s5454 + $0x30] sm:$0xf]
        %v5468 = vld [vmem:[%s5454 + $0x34] sm:$0xf]
        %v5469 = vld [vmem:[%s5454 + $0x38] sm:$0xf]
        %v5470 = vld [vmem:[%s5454 + $0x3c] sm:$0xf]
        %v5473 = vunpack.c.l.b16 %v5452
        %v5474 = vunpack.c.l.b16 %v5453
        %v5475 = vpack.c.b16 %v5295, %v5473
        %v5476 = vpack.c.b16 %v5474, %v5474
        %v5477 = vrot.slane %v5475, 2
        %v5478 = vrot.slane %v5306, 2
        %v5479 = vsel %vm676, %v5477, %v5478
        %v5480 = vrot.slane %v5307, 2
        %v5481 = vsel %vm676, %v5478, %v5480
        %v5482 = vrot.slane %v5308, 2
        %v5483 = vsel %vm676, %v5480, %v5482
        %v5484 = vrot.slane %v5309, 2
        %v5485 = vsel %vm676, %v5482, %v5484
        %v5486 = vrot.slane %v5476, 2
        %v5487 = vsel %vm676, %v5484, %v5486
        %v5509 = vunpack.c.l.b16 %v5455
        %v5510 = vunpack.c.l.b16 %v5456
        %v5511 = vunpack.c.l.b16 %v5457
        %v5512 = vunpack.c.l.b16 %v5458
        %v5513 = vunpack.c.l.b16 %v5459
        %v5514 = vunpack.c.l.b16 %v5460
        %v5515 = vunpack.c.l.b16 %v5461
        %v5516 = vunpack.c.l.b16 %v5462
        %v5517 = vunpack.c.l.b16 %v5463
        %v5518 = vunpack.c.l.b16 %v5464
        %v5519 = vunpack.c.l.b16 %v5465
        %v5520 = vunpack.c.l.b16 %v5466
        %v5521 = vunpack.c.l.b16 %v5467
        %v5522 = vunpack.c.l.b16 %v5468
        %v5523 = vunpack.c.l.b16 %v5469
        %v5524 = vunpack.c.l.b16 %v5470
        %v5525 = vpack.c.b16 %v5510, %v5509
        %v5526 = vpack.c.b16 %v5512, %v5511
        %v5527 = vpack.c.b16 %v5514, %v5513
        %v5528 = vpack.c.b16 %v5516, %v5515
        %v5529 = vpack.c.b16 %v5518, %v5517
        %v5530 = vpack.c.b16 %v5520, %v5519
        %v5531 = vpack.c.b16 %v5522, %v5521
        %v5532 = vpack.c.b16 %v5524, %v5523
        %5541 = vmatpush.bf16.msra.mxu0 %v5532
        %5542 = vmatpush.bf16.msra.mxu0 %v5531
        %5543 = vmatpush.bf16.msra.mxu0 %v5530
        %5544 = vmatpush.bf16.msra.mxu0 %v5529
        %5545 = vmatpush.bf16.msra.mxu0 %v5528
        %5546 = vmatpush.bf16.msra.mxu0 %v5527
        %5547 = vmatpush.bf16.msra.mxu0 %v5526
        %5548 = vmatpush.bf16.msra.mxu0 %v5525
        %5549 = vmatmul.bf16.gmra.mxu0 %v5479
        %v5550 = vpop.f32.mrf.mxu0
        %v5551 = vadd.f32 0.0, %v5550
        %v5552 = vpop.f32.mrf.mxu0
        %v5553 = vadd.f32 0.0, %v5552
        %5554 = vmatmul.bf16.gmra.mxu0 %v5481
        %v5555 = vpop.f32.mrf.mxu0
        %v5556 = vadd.f32 0.0, %v5555
        %v5557 = vpop.f32.mrf.mxu0
        %v5558 = vadd.f32 0.0, %v5557
        %5559 = vmatmul.bf16.gmra.mxu0 %v5483
        %v5560 = vpop.f32.mrf.mxu0
        %v5561 = vadd.f32 0.0, %v5560
        %v5562 = vpop.f32.mrf.mxu0
        %v5563 = vadd.f32 0.0, %v5562
        %5564 = vmatmul.bf16.gmra.mxu0 %v5485
        %v5565 = vpop.f32.mrf.mxu0
        %v5566 = vadd.f32 0.0, %v5565
        %v5567 = vpop.f32.mrf.mxu0
        %v5568 = vadd.f32 0.0, %v5567
        %5569 = vmatmul.bf16.gmra.mxu0 %v5487
        %v5570 = vpop.f32.mrf.mxu0
        %v5571 = vadd.f32 0.0, %v5570
        %v5572 = vpop.f32.mrf.mxu0
        %v5573 = vadd.f32 0.0, %v5572
        %5574 = vdwg.mxu0
        %v5575 = vadd.f32 %v5442, %v5551
        %v5576 = vadd.f32 %v5443, %v5553
        %v5577 = vadd.f32 %v5444, %v5556
        %v5578 = vadd.f32 %v5445, %v5558
        %v5579 = vadd.f32 %v5446, %v5561
        %v5580 = vadd.f32 %v5447, %v5563
        %v5581 = vadd.f32 %v5448, %v5566
        %v5582 = vadd.f32 %v5449, %v5568
        %v5583 = vadd.f32 %v5450, %v5571
        %v5584 = vadd.f32 %v5451, %v5573
        %v5585 = vld [vmem:[#allocation3 + $0x30] sm:$0x7]
        %s5586 = scalar_lea.vmem [#allocation4], 2176
        %v5587 = vld [vmem:[%s5586] sm:$0xf]
        %v5588 = vld [vmem:[%s5586 + $0x4] sm:$0xf]
        %v5589 = vld [vmem:[%s5586 + $0x8] sm:$0xf]
        %v5590 = vld [vmem:[%s5586 + $0xc] sm:$0xf]
        %v5591 = vld [vmem:[%s5586 + $0x10] sm:$0xf]
        %v5592 = vld [vmem:[%s5586 + $0x14] sm:$0xf]
        %v5593 = vld [vmem:[%s5586 + $0x18] sm:$0xf]
        %v5594 = vld [vmem:[%s5586 + $0x1c] sm:$0xf]
        %v5595 = vld [vmem:[%s5586 + $0x20] sm:$0xf]
        %v5596 = vld [vmem:[%s5586 + $0x24] sm:$0xf]
        %v5597 = vld [vmem:[%s5586 + $0x28] sm:$0xf]
        %v5598 = vld [vmem:[%s5586 + $0x2c] sm:$0xf]
        %v5599 = vld [vmem:[%s5586 + $0x30] sm:$0xf]
        %v5600 = vld [vmem:[%s5586 + $0x34] sm:$0xf]
        %v5601 = vld [vmem:[%s5586 + $0x38] sm:$0xf]
        %v5602 = vld [vmem:[%s5586 + $0x3c] sm:$0xf]
        %v5604 = vunpack.c.l.b16 %v5585
        %v5605 = vpack.c.b16 %v5604, %v5604
        %v5607 = vshrl.u32 %v5475, 16
        %v5609 = vrot.slane %v5607, 2
        %v5610 = vshll.u32 %v5475, 16
        %v5612 = vrot.slane %v5610, 3
        %v5613 = vor.u32 %v5609, %v5612
        %v5614 = vrot.slane %v5323, 2
        %v5615 = vrot.slane %v5319, 3
        %v5616 = vor.u32 %v5614, %v5615
        %v5617 = vsel %vm1412, %v5613, %v5616
        %v5618 = vrot.slane %v5331, 2
        %v5619 = vrot.slane %v5327, 3
        %v5620 = vor.u32 %v5618, %v5619
        %v5621 = vsel %vm1412, %v5616, %v5620
        %v5622 = vrot.slane %v5339, 2
        %v5623 = vrot.slane %v5335, 3
        %v5624 = vor.u32 %v5622, %v5623
        %v5625 = vsel %vm1412, %v5620, %v5624
        %v5626 = vrot.slane %v5347, 2
        %v5627 = vrot.slane %v5343, 3
        %v5628 = vor.u32 %v5626, %v5627
        %v5629 = vsel %vm1412, %v5624, %v5628
        %v5631 = vshrl.u32 %v5605, 16
        %v5633 = vrot.slane %v5631, 2
        %v5634 = vshll.u32 %v5605, 16
        %v5636 = vrot.slane %v5634, 3
        %v5637 = vor.u32 %v5633, %v5636
        %v5638 = vsel %vm1412, %v5628, %v5637
        %v5660 = vunpack.c.l.b16 %v5587
        %v5661 = vunpack.c.l.b16 %v5588
        %v5662 = vunpack.c.l.b16 %v5589
        %v5663 = vunpack.c.l.b16 %v5590
        %v5664 = vunpack.c.l.b16 %v5591
        %v5665 = vunpack.c.l.b16 %v5592
        %v5666 = vunpack.c.l.b16 %v5593
        %v5667 = vunpack.c.l.b16 %v5594
        %v5668 = vunpack.c.l.b16 %v5595
        %v5669 = vunpack.c.l.b16 %v5596
        %v5670 = vunpack.c.l.b16 %v5597
        %v5671 = vunpack.c.l.b16 %v5598
        %v5672 = vunpack.c.l.b16 %v5599
        %v5673 = vunpack.c.l.b16 %v5600
        %v5674 = vunpack.c.l.b16 %v5601
        %v5675 = vunpack.c.l.b16 %v5602
        %v5676 = vpack.c.b16 %v5661, %v5660
        %v5677 = vpack.c.b16 %v5663, %v5662
        %v5678 = vpack.c.b16 %v5665, %v5664
        %v5679 = vpack.c.b16 %v5667, %v5666
        %v5680 = vpack.c.b16 %v5669, %v5668
        %v5681 = vpack.c.b16 %v5671, %v5670
        %v5682 = vpack.c.b16 %v5673, %v5672
        %v5683 = vpack.c.b16 %v5675, %v5674
        %5692 = vmatpush.bf16.msra.mxu0 %v5683
        %5693 = vmatpush.bf16.msra.mxu0 %v5682
        %5694 = vmatpush.bf16.msra.mxu0 %v5681
        %5695 = vmatpush.bf16.msra.mxu0 %v5680
        %5696 = vmatpush.bf16.msra.mxu0 %v5679
        %5697 = vmatpush.bf16.msra.mxu0 %v5678
        %5698 = vmatpush.bf16.msra.mxu0 %v5677
        %5699 = vmatpush.bf16.msra.mxu0 %v5676
        %5700 = vmatmul.bf16.gmra.mxu0 %v5617
        %v5701 = vpop.f32.mrf.mxu0
        %v5702 = vadd.f32 0.0, %v5701
        %v5703 = vpop.f32.mrf.mxu0
        %v5704 = vadd.f32 0.0, %v5703
        %5705 = vmatmul.bf16.gmra.mxu0 %v5621
        %v5706 = vpop.f32.mrf.mxu0
        %v5707 = vadd.f32 0.0, %v5706
        %v5708 = vpop.f32.mrf.mxu0
        %v5709 = vadd.f32 0.0, %v5708
        %5710 = vmatmul.bf16.gmra.mxu0 %v5625
        %v5711 = vpop.f32.mrf.mxu0
        %v5712 = vadd.f32 0.0, %v5711
        %v5713 = vpop.f32.mrf.mxu0
        %v5714 = vadd.f32 0.0, %v5713
        %5715 = vmatmul.bf16.gmra.mxu0 %v5629
        %v5716 = vpop.f32.mrf.mxu0
        %v5717 = vadd.f32 0.0, %v5716
        %v5718 = vpop.f32.mrf.mxu0
        %v5719 = vadd.f32 0.0, %v5718
        %5720 = vmatmul.bf16.gmra.mxu0 %v5638
        %v5721 = vpop.f32.mrf.mxu0
        %v5722 = vadd.f32 0.0, %v5721
        %v5723 = vpop.f32.mrf.mxu0
        %v5724 = vadd.f32 0.0, %v5723
        %5725 = vdwg.mxu0
        %v5726 = vadd.f32 %v5575, %v5702
        %v5727 = vadd.f32 %v5576, %v5704
        %v5728 = vadd.f32 %v5577, %v5707
        %v5729 = vadd.f32 %v5578, %v5709
        %v5730 = vadd.f32 %v5579, %v5712
        %v5731 = vadd.f32 %v5580, %v5714
        %v5732 = vadd.f32 %v5581, %v5717
        %v5733 = vadd.f32 %v5582, %v5719
        %v5734 = vadd.f32 %v5583, %v5722
        %v5735 = vadd.f32 %v5584, %v5724
        %v5736 = vld [vmem:[#allocation3 + $0x8] sm:$0x8]
        %s5737 = scalar_lea.vmem [#allocation4], 2240
        %v5738 = vld [vmem:[%s5737] sm:$0xf]
        %v5739 = vld [vmem:[%s5737 + $0x4] sm:$0xf]
        %v5740 = vld [vmem:[%s5737 + $0x8] sm:$0xf]
        %v5741 = vld [vmem:[%s5737 + $0xc] sm:$0xf]
        %v5742 = vld [vmem:[%s5737 + $0x10] sm:$0xf]
        %v5743 = vld [vmem:[%s5737 + $0x14] sm:$0xf]
        %v5744 = vld [vmem:[%s5737 + $0x18] sm:$0xf]
        %v5745 = vld [vmem:[%s5737 + $0x1c] sm:$0xf]
        %v5746 = vld [vmem:[%s5737 + $0x20] sm:$0xf]
        %v5747 = vld [vmem:[%s5737 + $0x24] sm:$0xf]
        %v5748 = vld [vmem:[%s5737 + $0x28] sm:$0xf]
        %v5749 = vld [vmem:[%s5737 + $0x2c] sm:$0xf]
        %v5750 = vld [vmem:[%s5737 + $0x30] sm:$0xf]
        %v5751 = vld [vmem:[%s5737 + $0x34] sm:$0xf]
        %v5752 = vld [vmem:[%s5737 + $0x38] sm:$0xf]
        %v5753 = vld [vmem:[%s5737 + $0x3c] sm:$0xf]
        %v5755 = vunpack.c.l.b16 %v5736
        %v5756 = vpack.c.b16 %v5295, %v5755
        %v5757 = vrot.slane %v5756, 3
        %v5758 = vrot.slane %v5306, 3
        %v5759 = vsel %vm1564, %v5757, %v5758
        %v5760 = vrot.slane %v5307, 3
        %v5761 = vsel %vm1564, %v5758, %v5760
        %v5762 = vrot.slane %v5308, 3
        %v5763 = vsel %vm1564, %v5760, %v5762
        %v5764 = vrot.slane %v5309, 3
        %v5765 = vsel %vm1564, %v5762, %v5764
        %v5766 = vrot.slane %v5605, 3
        %v5767 = vsel %vm1564, %v5764, %v5766
        %v5789 = vunpack.c.l.b16 %v5738
        %v5790 = vunpack.c.l.b16 %v5739
        %v5791 = vunpack.c.l.b16 %v5740
        %v5792 = vunpack.c.l.b16 %v5741
        %v5793 = vunpack.c.l.b16 %v5742
        %v5794 = vunpack.c.l.b16 %v5743
        %v5795 = vunpack.c.l.b16 %v5744
        %v5796 = vunpack.c.l.b16 %v5745
        %v5797 = vunpack.c.l.b16 %v5746
        %v5798 = vunpack.c.l.b16 %v5747
        %v5799 = vunpack.c.l.b16 %v5748
        %v5800 = vunpack.c.l.b16 %v5749
        %v5801 = vunpack.c.l.b16 %v5750
        %v5802 = vunpack.c.l.b16 %v5751
        %v5803 = vunpack.c.l.b16 %v5752
        %v5804 = vunpack.c.l.b16 %v5753
        %v5805 = vpack.c.b16 %v5790, %v5789
        %v5806 = vpack.c.b16 %v5792, %v5791
        %v5807 = vpack.c.b16 %v5794, %v5793
        %v5808 = vpack.c.b16 %v5796, %v5795
        %v5809 = vpack.c.b16 %v5798, %v5797
        %v5810 = vpack.c.b16 %v5800, %v5799
        %v5811 = vpack.c.b16 %v5802, %v5801
        %v5812 = vpack.c.b16 %v5804, %v5803
        %5821 = vmatpush.bf16.msra.mxu0 %v5812
        %5822 = vmatpush.bf16.msra.mxu0 %v5811
        %5823 = vmatpush.bf16.msra.mxu0 %v5810
        %5824 = vmatpush.bf16.msra.mxu0 %v5809
        %5825 = vmatpush.bf16.msra.mxu0 %v5808
        %5826 = vmatpush.bf16.msra.mxu0 %v5807
        %5827 = vmatpush.bf16.msra.mxu0 %v5806
        %5828 = vmatpush.bf16.msra.mxu0 %v5805
        %5829 = vmatmul.bf16.gmra.mxu0 %v5759
        %v5830 = vpop.f32.mrf.mxu0
        %v5831 = vadd.f32 0.0, %v5830
        %v5832 = vpop.f32.mrf.mxu0
        %v5833 = vadd.f32 0.0, %v5832
        %5834 = vmatmul.bf16.gmra.mxu0 %v5761
        %v5835 = vpop.f32.mrf.mxu0
        %v5836 = vadd.f32 0.0, %v5835
        %v5837 = vpop.f32.mrf.mxu0
        %v5838 = vadd.f32 0.0, %v5837
        %5839 = vmatmul.bf16.gmra.mxu0 %v5763
        %v5840 = vpop.f32.mrf.mxu0
        %v5841 = vadd.f32 0.0, %v5840
        %v5842 = vpop.f32.mrf.mxu0
        %v5843 = vadd.f32 0.0, %v5842
        %5844 = vmatmul.bf16.gmra.mxu0 %v5765
        %v5845 = vpop.f32.mrf.mxu0
        %v5846 = vadd.f32 0.0, %v5845
        %v5847 = vpop.f32.mrf.mxu0
        %v5848 = vadd.f32 0.0, %v5847
        %5849 = vmatmul.bf16.gmra.mxu0 %v5767
        %v5850 = vpop.f32.mrf.mxu0
        %v5851 = vadd.f32 0.0, %v5850
        %v5852 = vpop.f32.mrf.mxu0
        %v5853 = vadd.f32 0.0, %v5852
        %5854 = vdwg.mxu0
        %v5855 = vadd.f32 %v5726, %v5831
        %v5856 = vadd.f32 %v5727, %v5833
        %v5857 = vadd.f32 %v5728, %v5836
        %v5858 = vadd.f32 %v5729, %v5838
        %v5859 = vadd.f32 %v5730, %v5841
        %v5860 = vadd.f32 %v5731, %v5843
        %v5861 = vadd.f32 %v5732, %v5846
        %v5862 = vadd.f32 %v5733, %v5848
        %v5863 = vadd.f32 %v5734, %v5851
        %v5864 = vadd.f32 %v5735, %v5853
        %s5865 = scalar_lea.vmem [#allocation6], 3
        %v5866 = vld [vmem:[%s5865] sm:$0x1]
        %v5868 = vperm.slane %v5866, 0
        %v5870 = vmul.f32 %v5855, %v5868
        %v5871 = vmul.f32 %v5856, %v5868
        %v5872 = vmul.f32 %v5857, %v5868
        %v5873 = vmul.f32 %v5858, %v5868
        %v5874 = vmul.f32 %v5859, %v5868
        %v5875 = vmul.f32 %v5860, %v5868
        %v5876 = vmul.f32 %v5861, %v5868
        %v5877 = vmul.f32 %v5862, %v5868
        %v5878 = vmul.f32 %v5863, %v5868
        %v5879 = vmul.f32 %v5864, %v5868
        %s5880 = scalar_lea.vmem [#allocation8], 3
        %v5881 = vld [vmem:[%s5880] sm:$0x1]
        %v5883 = vperm.slane %v5881, 0
        %v5885 = vadd.f32 %v5870, %v5883
        %v5886 = vadd.f32 %v5871, %v5883
        %v5887 = vadd.f32 %v5872, %v5883
        %v5888 = vadd.f32 %v5873, %v5883
        %v5889 = vadd.f32 %v5874, %v5883
        %v5890 = vadd.f32 %v5875, %v5883
        %v5891 = vadd.f32 %v5876, %v5883
        %v5892 = vadd.f32 %v5877, %v5883
        %v5893 = vadd.f32 %v5878, %v5883
        %v5894 = vadd.f32 %v5879, %v5883
        %v5895 = vmax.f32 %v5885, 0.0
        %v5896 = vmax.f32 %v5886, 0.0
        %v5897 = vmax.f32 %v5887, 0.0
        %v5898 = vmax.f32 %v5888, 0.0
        %v5899 = vmax.f32 %v5889, 0.0
        %v5900 = vmax.f32 %v5890, 0.0
        %v5901 = vmax.f32 %v5891, 0.0
        %v5902 = vmax.f32 %v5892, 0.0
        %v5903 = vmax.f32 %v5893, 0.0
        %v5904 = vmax.f32 %v5894, 0.0
        %v5905 = vmul.f32 %v5895, %v329
        %v5906 = vmul.f32 %v5896, %v330
        %v5907 = vmul.f32 %v5897, %v331
        %v5908 = vmul.f32 %v5898, %v332
        %v5909 = vmul.f32 %v5899, %v333
        %v5910 = vmul.f32 %v5900, %v334
        %v5911 = vmul.f32 %v5901, %v335
        %v5912 = vmul.f32 %v5902, %v336
        %v5913 = vmul.f32 %v5903, %v337
        %v5914 = vmul.f32 %v5904, %v338
        %v5915 = vpack.c.bf16 %v5905, %v5905
        %v5916 = vpack.c.bf16 %v5906, %v5906
        %v5917 = vpack.c.bf16 %v5907, %v5907
        %v5918 = vpack.c.bf16 %v5908, %v5908
        %v5919 = vpack.c.bf16 %v5909, %v5909
        %v5920 = vpack.c.bf16 %v5910, %v5910
        %v5921 = vpack.c.bf16 %v5911, %v5911
        %v5922 = vpack.c.bf16 %v5912, %v5912
        %v5923 = vpack.c.bf16 %v5913, %v5913
        %v5924 = vpack.c.bf16 %v5914, %v5914
        %5925 = vst [vmem:[#allocation2 + $0x8] sm:$0xf] %v5915
        %5926 = vst [vmem:[#allocation2 + $0xc] sm:$0xf] %v5916
        %5927 = vst [vmem:[#allocation2 + $0x10] sm:$0xf] %v5917
        %5928 = vst [vmem:[#allocation2 + $0x14] sm:$0xf] %v5918
        %5929 = vst [vmem:[#allocation2 + $0x18] sm:$0xf] %v5919
        %5930 = vst [vmem:[#allocation2 + $0x1c] sm:$0xf] %v5920
        %5931 = vst [vmem:[#allocation2 + $0x20] sm:$0xf] %v5921
        %5932 = vst [vmem:[#allocation2 + $0x24] sm:$0xf] %v5922
        %5933 = vst [vmem:[#allocation2 + $0x28] sm:$0xf] %v5923
        %5934 = vst [vmem:[#allocation2 + $0x2c] sm:$0xf] %v5924
        %v5935 = vld [vmem:[#allocation2 + $0x4] sm:$0xe]
        %v5936 = vld [vmem:[#allocation2 + $0x8] sm:$0xf]
        %v5937 = vld [vmem:[#allocation2 + $0xc] sm:$0xf]
        %v5938 = vld [vmem:[#allocation2 + $0x10] sm:$0xf]
        %v5939 = vld [vmem:[#allocation2 + $0x14] sm:$0xf]
        %v5940 = vld [vmem:[#allocation2 + $0x18] sm:$0xf]
        %v5941 = vld [vmem:[#allocation2 + $0x1c] sm:$0xf]
        %v5942 = vld [vmem:[#allocation2 + $0x20] sm:$0xf]
        %v5943 = vld [vmem:[#allocation2 + $0x24] sm:$0xf]
        %v5944 = vld [vmem:[#allocation2 + $0x28] sm:$0xf]
        %v5945 = vld [vmem:[#allocation2 + $0x2c] sm:$0x1]
        %s5946 = scalar_lea.vmem [#allocation4], 2304
        %v5947 = vld [vmem:[%s5946] sm:$0xf]
        %v5948 = vld [vmem:[%s5946 + $0x4] sm:$0xf]
        %v5949 = vld [vmem:[%s5946 + $0x8] sm:$0xf]
        %v5950 = vld [vmem:[%s5946 + $0xc] sm:$0xf]
        %v5951 = vld [vmem:[%s5946 + $0x10] sm:$0xf]
        %v5952 = vld [vmem:[%s5946 + $0x14] sm:$0xf]
        %v5953 = vld [vmem:[%s5946 + $0x18] sm:$0xf]
        %v5954 = vld [vmem:[%s5946 + $0x1c] sm:$0xf]
        %v5955 = vld [vmem:[%s5946 + $0x20] sm:$0xf]
        %v5956 = vld [vmem:[%s5946 + $0x24] sm:$0xf]
        %v5957 = vld [vmem:[%s5946 + $0x28] sm:$0xf]
        %v5958 = vld [vmem:[%s5946 + $0x2c] sm:$0xf]
        %v5959 = vld [vmem:[%s5946 + $0x30] sm:$0xf]
        %v5960 = vld [vmem:[%s5946 + $0x34] sm:$0xf]
        %v5961 = vld [vmem:[%s5946 + $0x38] sm:$0xf]
        %v5962 = vld [vmem:[%s5946 + $0x3c] sm:$0xf]
        %v5963 = vld [vmem:[#allocation2 + $0x2c] sm:$0x3]
        %s5964 = scalar_lea.vmem [#allocation4], 2368
        %v5965 = vld [vmem:[%s5964] sm:$0xf]
        %v5966 = vld [vmem:[%s5964 + $0x4] sm:$0xf]
        %v5967 = vld [vmem:[%s5964 + $0x8] sm:$0xf]
        %v5968 = vld [vmem:[%s5964 + $0xc] sm:$0xf]
        %v5969 = vld [vmem:[%s5964 + $0x10] sm:$0xf]
        %v5970 = vld [vmem:[%s5964 + $0x14] sm:$0xf]
        %v5971 = vld [vmem:[%s5964 + $0x18] sm:$0xf]
        %v5972 = vld [vmem:[%s5964 + $0x1c] sm:$0xf]
        %v5973 = vld [vmem:[%s5964 + $0x20] sm:$0xf]
        %v5974 = vld [vmem:[%s5964 + $0x24] sm:$0xf]
        %v5975 = vld [vmem:[%s5964 + $0x28] sm:$0xf]
        %v5976 = vld [vmem:[%s5964 + $0x2c] sm:$0xf]
        %v5977 = vld [vmem:[%s5964 + $0x30] sm:$0xf]
        %v5978 = vld [vmem:[%s5964 + $0x34] sm:$0xf]
        %v5979 = vld [vmem:[%s5964 + $0x38] sm:$0xf]
        %v5980 = vld [vmem:[%s5964 + $0x3c] sm:$0xf]
        %v5992 = vunpack.c.l.b16 %v5935
        %v5993 = vunpack.c.l.b16 %v5936
        %v5994 = vunpack.c.l.b16 %v5937
        %v5995 = vunpack.c.l.b16 %v5938
        %v5996 = vunpack.c.l.b16 %v5939
        %v5997 = vunpack.c.l.b16 %v5940
        %v5998 = vunpack.c.l.b16 %v5941
        %v5999 = vunpack.c.l.b16 %v5942
        %v6000 = vunpack.c.l.b16 %v5943
        %v6001 = vunpack.c.l.b16 %v5944
        %v6002 = vunpack.c.l.b16 %v5963
        %v6003 = vpack.c.b16 %v5993, %v5992
        %v6004 = vpack.c.b16 %v5995, %v5994
        %v6005 = vpack.c.b16 %v5997, %v5996
        %v6006 = vpack.c.b16 %v5999, %v5998
        %v6007 = vpack.c.b16 %v6001, %v6000
        %v6008 = vpack.c.b16 %v6002, %v6002
        %v6010 = vshrl.u32 %v6003, 16
        %v6012 = vrot.slane %v6010, 1
        %v6013 = vshll.u32 %v6003, 16
        %v6015 = vrot.slane %v6013, 2
        %v6016 = vor.u32 %v6012, %v6015
        %v6018 = vshrl.u32 %v6004, 16
        %v6020 = vrot.slane %v6018, 1
        %v6021 = vshll.u32 %v6004, 16
        %v6023 = vrot.slane %v6021, 2
        %v6024 = vor.u32 %v6020, %v6023
        %v6025 = vsel %vm412, %v6016, %v6024
        %v6027 = vshrl.u32 %v6005, 16
        %v6029 = vrot.slane %v6027, 1
        %v6030 = vshll.u32 %v6005, 16
        %v6032 = vrot.slane %v6030, 2
        %v6033 = vor.u32 %v6029, %v6032
        %v6034 = vsel %vm412, %v6024, %v6033
        %v6036 = vshrl.u32 %v6006, 16
        %v6038 = vrot.slane %v6036, 1
        %v6039 = vshll.u32 %v6006, 16
        %v6041 = vrot.slane %v6039, 2
        %v6042 = vor.u32 %v6038, %v6041
        %v6043 = vsel %vm412, %v6033, %v6042
        %v6045 = vshrl.u32 %v6007, 16
        %v6047 = vrot.slane %v6045, 1
        %v6048 = vshll.u32 %v6007, 16
        %v6050 = vrot.slane %v6048, 2
        %v6051 = vor.u32 %v6047, %v6050
        %v6052 = vsel %vm412, %v6042, %v6051
        %v6054 = vshrl.u32 %v6008, 16
        %v6056 = vrot.slane %v6054, 1
        %v6057 = vshll.u32 %v6008, 16
        %v6059 = vrot.slane %v6057, 2
        %v6060 = vor.u32 %v6056, %v6059
        %v6061 = vsel %vm412, %v6051, %v6060
        %v6083 = vunpack.c.l.b16 %v5965
        %v6084 = vunpack.c.l.b16 %v5966
        %v6085 = vunpack.c.l.b16 %v5967
        %v6086 = vunpack.c.l.b16 %v5968
        %v6087 = vunpack.c.l.b16 %v5969
        %v6088 = vunpack.c.l.b16 %v5970
        %v6089 = vunpack.c.l.b16 %v5971
        %v6090 = vunpack.c.l.b16 %v5972
        %v6091 = vunpack.c.l.b16 %v5973
        %v6092 = vunpack.c.l.b16 %v5974
        %v6093 = vunpack.c.l.b16 %v5975
        %v6094 = vunpack.c.l.b16 %v5976
        %v6095 = vunpack.c.l.b16 %v5977
        %v6096 = vunpack.c.l.b16 %v5978
        %v6097 = vunpack.c.l.b16 %v5979
        %v6098 = vunpack.c.l.b16 %v5980
        %v6099 = vpack.c.b16 %v6084, %v6083
        %v6100 = vpack.c.b16 %v6086, %v6085
        %v6101 = vpack.c.b16 %v6088, %v6087
        %v6102 = vpack.c.b16 %v6090, %v6089
        %v6103 = vpack.c.b16 %v6092, %v6091
        %v6104 = vpack.c.b16 %v6094, %v6093
        %v6105 = vpack.c.b16 %v6096, %v6095
        %v6106 = vpack.c.b16 %v6098, %v6097
        %6115 = vmatpush.bf16.msra.mxu0 %v6106
        %6116 = vmatpush.bf16.msra.mxu0 %v6105
        %6117 = vmatpush.bf16.msra.mxu0 %v6104
        %6118 = vmatpush.bf16.msra.mxu0 %v6103
        %6119 = vmatpush.bf16.msra.mxu0 %v6102
        %6120 = vmatpush.bf16.msra.mxu0 %v6101
        %6121 = vmatpush.bf16.msra.mxu0 %v6100
        %6122 = vmatpush.bf16.msra.mxu0 %v6099
        %6123 = vmatmul.bf16.gmra.mxu0 %v6025
        %v6124 = vpop.f32.mrf.mxu0
        %v6125 = vadd.f32 0.0, %v6124
        %v6126 = vpop.f32.mrf.mxu0
        %v6127 = vadd.f32 0.0, %v6126
        %6128 = vmatmul.bf16.gmra.mxu0 %v6034
        %v6129 = vpop.f32.mrf.mxu0
        %v6130 = vadd.f32 0.0, %v6129
        %v6131 = vpop.f32.mrf.mxu0
        %v6132 = vadd.f32 0.0, %v6131
        %6133 = vmatmul.bf16.gmra.mxu0 %v6043
        %v6134 = vpop.f32.mrf.mxu0
        %v6135 = vadd.f32 0.0, %v6134
        %v6136 = vpop.f32.mrf.mxu0
        %v6137 = vadd.f32 0.0, %v6136
        %6138 = vmatmul.bf16.gmra.mxu0 %v6052
        %v6139 = vpop.f32.mrf.mxu0
        %v6140 = vadd.f32 0.0, %v6139
        %v6141 = vpop.f32.mrf.mxu0
        %v6142 = vadd.f32 0.0, %v6141
        %6143 = vmatmul.bf16.gmra.mxu0 %v6061
        %v6144 = vpop.f32.mrf.mxu0
        %v6145 = vadd.f32 0.0, %v6144
        %v6146 = vpop.f32.mrf.mxu0
        %v6147 = vadd.f32 0.0, %v6146
        %6148 = vdwg.mxu0
        %v6150 = vunpack.c.l.b16 %v5945
        %v6151 = vpack.c.b16 %v6150, %v6150
        %v6152 = vrot.slane %v6003, 1
        %v6153 = vrot.slane %v6004, 1
        %v6154 = vsel %vm556, %v6152, %v6153
        %v6155 = vrot.slane %v6005, 1
        %v6156 = vsel %vm556, %v6153, %v6155
        %v6157 = vrot.slane %v6006, 1
        %v6158 = vsel %vm556, %v6155, %v6157
        %v6159 = vrot.slane %v6007, 1
        %v6160 = vsel %vm556, %v6157, %v6159
        %v6161 = vrot.slane %v6151, 1
        %v6162 = vsel %vm556, %v6159, %v6161
        %v6184 = vunpack.c.l.b16 %v5947
        %v6185 = vunpack.c.l.b16 %v5948
        %v6186 = vunpack.c.l.b16 %v5949
        %v6187 = vunpack.c.l.b16 %v5950
        %v6188 = vunpack.c.l.b16 %v5951
        %v6189 = vunpack.c.l.b16 %v5952
        %v6190 = vunpack.c.l.b16 %v5953
        %v6191 = vunpack.c.l.b16 %v5954
        %v6192 = vunpack.c.l.b16 %v5955
        %v6193 = vunpack.c.l.b16 %v5956
        %v6194 = vunpack.c.l.b16 %v5957
        %v6195 = vunpack.c.l.b16 %v5958
        %v6196 = vunpack.c.l.b16 %v5959
        %v6197 = vunpack.c.l.b16 %v5960
        %v6198 = vunpack.c.l.b16 %v5961
        %v6199 = vunpack.c.l.b16 %v5962
        %v6200 = vpack.c.b16 %v6185, %v6184
        %v6201 = vpack.c.b16 %v6187, %v6186
        %v6202 = vpack.c.b16 %v6189, %v6188
        %v6203 = vpack.c.b16 %v6191, %v6190
        %v6204 = vpack.c.b16 %v6193, %v6192
        %v6205 = vpack.c.b16 %v6195, %v6194
        %v6206 = vpack.c.b16 %v6197, %v6196
        %v6207 = vpack.c.b16 %v6199, %v6198
        %6216 = vmatpush.bf16.msra.mxu0 %v6207
        %6217 = vmatpush.bf16.msra.mxu0 %v6206
        %6218 = vmatpush.bf16.msra.mxu0 %v6205
        %6219 = vmatpush.bf16.msra.mxu0 %v6204
        %6220 = vmatpush.bf16.msra.mxu0 %v6203
        %6221 = vmatpush.bf16.msra.mxu0 %v6202
        %6222 = vmatpush.bf16.msra.mxu0 %v6201
        %6223 = vmatpush.bf16.msra.mxu0 %v6200
        %6224 = vmatmul.bf16.gmra.mxu0 %v6154
        %v6225 = vpop.f32.mrf.mxu0
        %v6226 = vadd.f32 %v6125, %v6225
        %v6227 = vpop.f32.mrf.mxu0
        %v6228 = vadd.f32 %v6127, %v6227
        %6229 = vmatmul.bf16.gmra.mxu0 %v6156
        %v6230 = vpop.f32.mrf.mxu0
        %v6231 = vadd.f32 %v6130, %v6230
        %v6232 = vpop.f32.mrf.mxu0
        %v6233 = vadd.f32 %v6132, %v6232
        %6234 = vmatmul.bf16.gmra.mxu0 %v6158
        %v6235 = vpop.f32.mrf.mxu0
        %v6236 = vadd.f32 %v6135, %v6235
        %v6237 = vpop.f32.mrf.mxu0
        %v6238 = vadd.f32 %v6137, %v6237
        %6239 = vmatmul.bf16.gmra.mxu0 %v6160
        %v6240 = vpop.f32.mrf.mxu0
        %v6241 = vadd.f32 %v6140, %v6240
        %v6242 = vpop.f32.mrf.mxu0
        %v6243 = vadd.f32 %v6142, %v6242
        %6244 = vmatmul.bf16.gmra.mxu0 %v6162
        %v6245 = vpop.f32.mrf.mxu0
        %v6246 = vadd.f32 %v6145, %v6245
        %v6247 = vpop.f32.mrf.mxu0
        %v6248 = vadd.f32 %v6147, %v6247
        %6249 = vdwg.mxu0
        %v6250 = vld [vmem:[#allocation2 + $0x4] sm:$0xc]
        %s6251 = scalar_lea.vmem [#allocation4], 2432
        %v6252 = vld [vmem:[%s6251] sm:$0xf]
        %v6253 = vld [vmem:[%s6251 + $0x4] sm:$0xf]
        %v6254 = vld [vmem:[%s6251 + $0x8] sm:$0xf]
        %v6255 = vld [vmem:[%s6251 + $0xc] sm:$0xf]
        %v6256 = vld [vmem:[%s6251 + $0x10] sm:$0xf]
        %v6257 = vld [vmem:[%s6251 + $0x14] sm:$0xf]
        %v6258 = vld [vmem:[%s6251 + $0x18] sm:$0xf]
        %v6259 = vld [vmem:[%s6251 + $0x1c] sm:$0xf]
        %v6260 = vld [vmem:[%s6251 + $0x20] sm:$0xf]
        %v6261 = vld [vmem:[%s6251 + $0x24] sm:$0xf]
        %v6262 = vld [vmem:[%s6251 + $0x28] sm:$0xf]
        %v6263 = vld [vmem:[%s6251 + $0x2c] sm:$0xf]
        %v6264 = vld [vmem:[%s6251 + $0x30] sm:$0xf]
        %v6265 = vld [vmem:[%s6251 + $0x34] sm:$0xf]
        %v6266 = vld [vmem:[%s6251 + $0x38] sm:$0xf]
        %v6267 = vld [vmem:[%s6251 + $0x3c] sm:$0xf]
        %v6269 = vunpack.c.l.b16 %v6250
        %v6270 = vpack.c.b16 %v5993, %v6269
        %v6271 = vrot.slane %v6270, 2
        %v6272 = vrot.slane %v6004, 2
        %v6273 = vsel %vm676, %v6271, %v6272
        %v6274 = vrot.slane %v6005, 2
        %v6275 = vsel %vm676, %v6272, %v6274
        %v6276 = vrot.slane %v6006, 2
        %v6277 = vsel %vm676, %v6274, %v6276
        %v6278 = vrot.slane %v6007, 2
        %v6279 = vsel %vm676, %v6276, %v6278
        %v6280 = vrot.slane %v6008, 2
        %v6281 = vsel %vm676, %v6278, %v6280
        %v6303 = vunpack.c.l.b16 %v6252
        %v6304 = vunpack.c.l.b16 %v6253
        %v6305 = vunpack.c.l.b16 %v6254
        %v6306 = vunpack.c.l.b16 %v6255
        %v6307 = vunpack.c.l.b16 %v6256
        %v6308 = vunpack.c.l.b16 %v6257
        %v6309 = vunpack.c.l.b16 %v6258
        %v6310 = vunpack.c.l.b16 %v6259
        %v6311 = vunpack.c.l.b16 %v6260
        %v6312 = vunpack.c.l.b16 %v6261
        %v6313 = vunpack.c.l.b16 %v6262
        %v6314 = vunpack.c.l.b16 %v6263
        %v6315 = vunpack.c.l.b16 %v6264
        %v6316 = vunpack.c.l.b16 %v6265
        %v6317 = vunpack.c.l.b16 %v6266
        %v6318 = vunpack.c.l.b16 %v6267
        %v6319 = vpack.c.b16 %v6304, %v6303
        %v6320 = vpack.c.b16 %v6306, %v6305
        %v6321 = vpack.c.b16 %v6308, %v6307
        %v6322 = vpack.c.b16 %v6310, %v6309
        %v6323 = vpack.c.b16 %v6312, %v6311
        %v6324 = vpack.c.b16 %v6314, %v6313
        %v6325 = vpack.c.b16 %v6316, %v6315
        %v6326 = vpack.c.b16 %v6318, %v6317
        %6335 = vmatpush.bf16.msra.mxu0 %v6326
        %6336 = vmatpush.bf16.msra.mxu0 %v6325
        %6337 = vmatpush.bf16.msra.mxu0 %v6324
        %6338 = vmatpush.bf16.msra.mxu0 %v6323
        %6339 = vmatpush.bf16.msra.mxu0 %v6322
        %6340 = vmatpush.bf16.msra.mxu0 %v6321
        %6341 = vmatpush.bf16.msra.mxu0 %v6320
        %6342 = vmatpush.bf16.msra.mxu0 %v6319
        %6343 = vmatmul.bf16.gmra.mxu0 %v6273
        %v6344 = vpop.f32.mrf.mxu0
        %v6345 = vadd.f32 0.0, %v6344
        %v6346 = vpop.f32.mrf.mxu0
        %v6347 = vadd.f32 0.0, %v6346
        %6348 = vmatmul.bf16.gmra.mxu0 %v6275
        %v6349 = vpop.f32.mrf.mxu0
        %v6350 = vadd.f32 0.0, %v6349
        %v6351 = vpop.f32.mrf.mxu0
        %v6352 = vadd.f32 0.0, %v6351
        %6353 = vmatmul.bf16.gmra.mxu0 %v6277
        %v6354 = vpop.f32.mrf.mxu0
        %v6355 = vadd.f32 0.0, %v6354
        %v6356 = vpop.f32.mrf.mxu0
        %v6357 = vadd.f32 0.0, %v6356
        %6358 = vmatmul.bf16.gmra.mxu0 %v6279
        %v6359 = vpop.f32.mrf.mxu0
        %v6360 = vadd.f32 0.0, %v6359
        %v6361 = vpop.f32.mrf.mxu0
        %v6362 = vadd.f32 0.0, %v6361
        %6363 = vmatmul.bf16.gmra.mxu0 %v6281
        %v6364 = vpop.f32.mrf.mxu0
        %v6365 = vadd.f32 0.0, %v6364
        %v6366 = vpop.f32.mrf.mxu0
        %v6367 = vadd.f32 0.0, %v6366
        %6368 = vdwg.mxu0
        %v6369 = vadd.f32 %v6226, %v6345
        %v6370 = vadd.f32 %v6228, %v6347
        %v6371 = vadd.f32 %v6231, %v6350
        %v6372 = vadd.f32 %v6233, %v6352
        %v6373 = vadd.f32 %v6236, %v6355
        %v6374 = vadd.f32 %v6238, %v6357
        %v6375 = vadd.f32 %v6241, %v6360
        %v6376 = vadd.f32 %v6243, %v6362
        %v6377 = vadd.f32 %v6246, %v6365
        %v6378 = vadd.f32 %v6248, %v6367
        %v6379 = vld [vmem:[#allocation2 + $0x4] sm:$0x8]
        %v6380 = vld [vmem:[#allocation2 + $0x2c] sm:$0xf]
        %s6381 = scalar_lea.vmem [#allocation4], 2496
        %v6382 = vld [vmem:[%s6381] sm:$0xf]
        %v6383 = vld [vmem:[%s6381 + $0x4] sm:$0xf]
        %v6384 = vld [vmem:[%s6381 + $0x8] sm:$0xf]
        %v6385 = vld [vmem:[%s6381 + $0xc] sm:$0xf]
        %v6386 = vld [vmem:[%s6381 + $0x10] sm:$0xf]
        %v6387 = vld [vmem:[%s6381 + $0x14] sm:$0xf]
        %v6388 = vld [vmem:[%s6381 + $0x18] sm:$0xf]
        %v6389 = vld [vmem:[%s6381 + $0x1c] sm:$0xf]
        %v6390 = vld [vmem:[%s6381 + $0x20] sm:$0xf]
        %v6391 = vld [vmem:[%s6381 + $0x24] sm:$0xf]
        %v6392 = vld [vmem:[%s6381 + $0x28] sm:$0xf]
        %v6393 = vld [vmem:[%s6381 + $0x2c] sm:$0xf]
        %v6394 = vld [vmem:[%s6381 + $0x30] sm:$0xf]
        %v6395 = vld [vmem:[%s6381 + $0x34] sm:$0xf]
        %v6396 = vld [vmem:[%s6381 + $0x38] sm:$0xf]
        %v6397 = vld [vmem:[%s6381 + $0x3c] sm:$0xf]
        %v6400 = vunpack.c.l.b16 %v6379
        %v6401 = vunpack.c.l.b16 %v6380
        %v6402 = vpack.c.b16 %v5993, %v6400
        %v6403 = vpack.c.b16 %v6401, %v6401
        %v6405 = vshrl.u32 %v6402, 16
        %v6407 = vrot.slane %v6405, 3
        %v6408 = vshll.u32 %v6402, 16
        %v6410 = vrot.slane %v6408, 4
        %v6411 = vor.u32 %v6407, %v6410
        %v6412 = vrot.slane %v6018, 3
        %v6413 = vrot.slane %v6021, 4
        %v6414 = vor.u32 %v6412, %v6413
        %v6415 = vsel %vm810, %v6411, %v6414
        %v6416 = vrot.slane %v6027, 3
        %v6417 = vrot.slane %v6030, 4
        %v6418 = vor.u32 %v6416, %v6417
        %v6419 = vsel %vm810, %v6414, %v6418
        %v6420 = vrot.slane %v6036, 3
        %v6421 = vrot.slane %v6039, 4
        %v6422 = vor.u32 %v6420, %v6421
        %v6423 = vsel %vm810, %v6418, %v6422
        %v6424 = vrot.slane %v6045, 3
        %v6425 = vrot.slane %v6048, 4
        %v6426 = vor.u32 %v6424, %v6425
        %v6427 = vsel %vm810, %v6422, %v6426
        %v6429 = vshrl.u32 %v6403, 16
        %v6431 = vrot.slane %v6429, 3
        %v6432 = vshll.u32 %v6403, 16
        %v6434 = vrot.slane %v6432, 4
        %v6435 = vor.u32 %v6431, %v6434
        %v6436 = vsel %vm810, %v6426, %v6435
        %v6458 = vunpack.c.l.b16 %v6382
        %v6459 = vunpack.c.l.b16 %v6383
        %v6460 = vunpack.c.l.b16 %v6384
        %v6461 = vunpack.c.l.b16 %v6385
        %v6462 = vunpack.c.l.b16 %v6386
        %v6463 = vunpack.c.l.b16 %v6387
        %v6464 = vunpack.c.l.b16 %v6388
        %v6465 = vunpack.c.l.b16 %v6389
        %v6466 = vunpack.c.l.b16 %v6390
        %v6467 = vunpack.c.l.b16 %v6391
        %v6468 = vunpack.c.l.b16 %v6392
        %v6469 = vunpack.c.l.b16 %v6393
        %v6470 = vunpack.c.l.b16 %v6394
        %v6471 = vunpack.c.l.b16 %v6395
        %v6472 = vunpack.c.l.b16 %v6396
        %v6473 = vunpack.c.l.b16 %v6397
        %v6474 = vpack.c.b16 %v6459, %v6458
        %v6475 = vpack.c.b16 %v6461, %v6460
        %v6476 = vpack.c.b16 %v6463, %v6462
        %v6477 = vpack.c.b16 %v6465, %v6464
        %v6478 = vpack.c.b16 %v6467, %v6466
        %v6479 = vpack.c.b16 %v6469, %v6468
        %v6480 = vpack.c.b16 %v6471, %v6470
        %v6481 = vpack.c.b16 %v6473, %v6472
        %6490 = vmatpush.bf16.msra.mxu0 %v6481
        %6491 = vmatpush.bf16.msra.mxu0 %v6480
        %6492 = vmatpush.bf16.msra.mxu0 %v6479
        %6493 = vmatpush.bf16.msra.mxu0 %v6478
        %6494 = vmatpush.bf16.msra.mxu0 %v6477
        %6495 = vmatpush.bf16.msra.mxu0 %v6476
        %6496 = vmatpush.bf16.msra.mxu0 %v6475
        %6497 = vmatpush.bf16.msra.mxu0 %v6474
        %6498 = vmatmul.bf16.gmra.mxu0 %v6415
        %v6499 = vpop.f32.mrf.mxu0
        %v6500 = vadd.f32 0.0, %v6499
        %v6501 = vpop.f32.mrf.mxu0
        %v6502 = vadd.f32 0.0, %v6501
        %6503 = vmatmul.bf16.gmra.mxu0 %v6419
        %v6504 = vpop.f32.mrf.mxu0
        %v6505 = vadd.f32 0.0, %v6504
        %v6506 = vpop.f32.mrf.mxu0
        %v6507 = vadd.f32 0.0, %v6506
        %6508 = vmatmul.bf16.gmra.mxu0 %v6423
        %v6509 = vpop.f32.mrf.mxu0
        %v6510 = vadd.f32 0.0, %v6509
        %v6511 = vpop.f32.mrf.mxu0
        %v6512 = vadd.f32 0.0, %v6511
        %6513 = vmatmul.bf16.gmra.mxu0 %v6427
        %v6514 = vpop.f32.mrf.mxu0
        %v6515 = vadd.f32 0.0, %v6514
        %v6516 = vpop.f32.mrf.mxu0
        %v6517 = vadd.f32 0.0, %v6516
        %6518 = vmatmul.bf16.gmra.mxu0 %v6436
        %v6519 = vpop.f32.mrf.mxu0
        %v6520 = vadd.f32 0.0, %v6519
        %v6521 = vpop.f32.mrf.mxu0
        %v6522 = vadd.f32 0.0, %v6521
        %6523 = vdwg.mxu0
        %v6524 = vadd.f32 %v6369, %v6500
        %v6525 = vadd.f32 %v6370, %v6502
        %v6526 = vadd.f32 %v6371, %v6505
        %v6527 = vadd.f32 %v6372, %v6507
        %v6528 = vadd.f32 %v6373, %v6510
        %v6529 = vadd.f32 %v6374, %v6512
        %v6530 = vadd.f32 %v6375, %v6515
        %v6531 = vadd.f32 %v6376, %v6517
        %v6532 = vadd.f32 %v6377, %v6520
        %v6533 = vadd.f32 %v6378, %v6522
        %s6534 = scalar_lea.vmem [#allocation4], 2560
        %v6535 = vld [vmem:[%s6534] sm:$0xf]
        %v6536 = vld [vmem:[%s6534 + $0x4] sm:$0xf]
        %v6537 = vld [vmem:[%s6534 + $0x8] sm:$0xf]
        %v6538 = vld [vmem:[%s6534 + $0xc] sm:$0xf]
        %v6539 = vld [vmem:[%s6534 + $0x10] sm:$0xf]
        %v6540 = vld [vmem:[%s6534 + $0x14] sm:$0xf]
        %v6541 = vld [vmem:[%s6534 + $0x18] sm:$0xf]
        %v6542 = vld [vmem:[%s6534 + $0x1c] sm:$0xf]
        %v6543 = vld [vmem:[%s6534 + $0x20] sm:$0xf]
        %v6544 = vld [vmem:[%s6534 + $0x24] sm:$0xf]
        %v6545 = vld [vmem:[%s6534 + $0x28] sm:$0xf]
        %v6546 = vld [vmem:[%s6534 + $0x2c] sm:$0xf]
        %v6547 = vld [vmem:[%s6534 + $0x30] sm:$0xf]
        %v6548 = vld [vmem:[%s6534 + $0x34] sm:$0xf]
        %v6549 = vld [vmem:[%s6534 + $0x38] sm:$0xf]
        %v6550 = vld [vmem:[%s6534 + $0x3c] sm:$0xf]
        %v6551 = vpack.c.b16 %v5994, %v5993
        %v6552 = vpack.c.b16 %v5996, %v5995
        %v6553 = vpack.c.b16 %v5998, %v5997
        %v6554 = vpack.c.b16 %v6000, %v5999
        %v6555 = vpack.c.b16 %v6401, %v6001
        %v6577 = vunpack.c.l.b16 %v6535
        %v6578 = vunpack.c.l.b16 %v6536
        %v6579 = vunpack.c.l.b16 %v6537
        %v6580 = vunpack.c.l.b16 %v6538
        %v6581 = vunpack.c.l.b16 %v6539
        %v6582 = vunpack.c.l.b16 %v6540
        %v6583 = vunpack.c.l.b16 %v6541
        %v6584 = vunpack.c.l.b16 %v6542
        %v6585 = vunpack.c.l.b16 %v6543
        %v6586 = vunpack.c.l.b16 %v6544
        %v6587 = vunpack.c.l.b16 %v6545
        %v6588 = vunpack.c.l.b16 %v6546
        %v6589 = vunpack.c.l.b16 %v6547
        %v6590 = vunpack.c.l.b16 %v6548
        %v6591 = vunpack.c.l.b16 %v6549
        %v6592 = vunpack.c.l.b16 %v6550
        %v6593 = vpack.c.b16 %v6578, %v6577
        %v6594 = vpack.c.b16 %v6580, %v6579
        %v6595 = vpack.c.b16 %v6582, %v6581
        %v6596 = vpack.c.b16 %v6584, %v6583
        %v6597 = vpack.c.b16 %v6586, %v6585
        %v6598 = vpack.c.b16 %v6588, %v6587
        %v6599 = vpack.c.b16 %v6590, %v6589
        %v6600 = vpack.c.b16 %v6592, %v6591
        %6609 = vmatpush.bf16.msra.mxu0 %v6600
        %6610 = vmatpush.bf16.msra.mxu0 %v6599
        %6611 = vmatpush.bf16.msra.mxu0 %v6598
        %6612 = vmatpush.bf16.msra.mxu0 %v6597
        %6613 = vmatpush.bf16.msra.mxu0 %v6596
        %6614 = vmatpush.bf16.msra.mxu0 %v6595
        %6615 = vmatpush.bf16.msra.mxu0 %v6594
        %6616 = vmatpush.bf16.msra.mxu0 %v6593
        %6617 = vmatmul.bf16.gmra.mxu0 %v6551
        %v6618 = vpop.f32.mrf.mxu0
        %v6619 = vadd.f32 0.0, %v6618
        %v6620 = vpop.f32.mrf.mxu0
        %v6621 = vadd.f32 0.0, %v6620
        %6622 = vmatmul.bf16.gmra.mxu0 %v6552
        %v6623 = vpop.f32.mrf.mxu0
        %v6624 = vadd.f32 0.0, %v6623
        %v6625 = vpop.f32.mrf.mxu0
        %v6626 = vadd.f32 0.0, %v6625
        %6627 = vmatmul.bf16.gmra.mxu0 %v6553
        %v6628 = vpop.f32.mrf.mxu0
        %v6629 = vadd.f32 0.0, %v6628
        %v6630 = vpop.f32.mrf.mxu0
        %v6631 = vadd.f32 0.0, %v6630
        %6632 = vmatmul.bf16.gmra.mxu0 %v6554
        %v6633 = vpop.f32.mrf.mxu0
        %v6634 = vadd.f32 0.0, %v6633
        %v6635 = vpop.f32.mrf.mxu0
        %v6636 = vadd.f32 0.0, %v6635
        %6637 = vmatmul.bf16.gmra.mxu0 %v6555
        %v6638 = vpop.f32.mrf.mxu0
        %v6639 = vadd.f32 0.0, %v6638
        %v6640 = vpop.f32.mrf.mxu0
        %v6641 = vadd.f32 0.0, %v6640
        %6642 = vdwg.mxu0
        %v6643 = vadd.f32 %v6524, %v6619
        %v6644 = vadd.f32 %v6525, %v6621
        %v6645 = vadd.f32 %v6526, %v6624
        %v6646 = vadd.f32 %v6527, %v6626
        %v6647 = vadd.f32 %v6528, %v6629
        %v6648 = vadd.f32 %v6529, %v6631
        %v6649 = vadd.f32 %v6530, %v6634
        %v6650 = vadd.f32 %v6531, %v6636
        %v6651 = vadd.f32 %v6532, %v6639
        %v6652 = vadd.f32 %v6533, %v6641
        %v6653 = vld [vmem:[#allocation2 + $0x8] sm:$0xf]
        %v6654 = vld [vmem:[#allocation2 + $0xc] sm:$0xf]
        %v6655 = vld [vmem:[#allocation2 + $0x10] sm:$0xf]
        %v6656 = vld [vmem:[#allocation2 + $0x14] sm:$0xf]
        %v6657 = vld [vmem:[#allocation2 + $0x18] sm:$0xf]
        %v6658 = vld [vmem:[#allocation2 + $0x1c] sm:$0xf]
        %v6659 = vld [vmem:[#allocation2 + $0x20] sm:$0xf]
        %v6660 = vld [vmem:[#allocation2 + $0x24] sm:$0xf]
        %v6661 = vld [vmem:[#allocation2 + $0x28] sm:$0xf]
        %v6662 = vld [vmem:[#allocation2 + $0x2c] sm:$0xf]
        %v6663 = vld [vmem:[#allocation2 + $0x30] sm:$0x1]
        %s6664 = scalar_lea.vmem [#allocation4], 2624
        %v6665 = vld [vmem:[%s6664] sm:$0xf]
        %v6666 = vld [vmem:[%s6664 + $0x4] sm:$0xf]
        %v6667 = vld [vmem:[%s6664 + $0x8] sm:$0xf]
        %v6668 = vld [vmem:[%s6664 + $0xc] sm:$0xf]
        %v6669 = vld [vmem:[%s6664 + $0x10] sm:$0xf]
        %v6670 = vld [vmem:[%s6664 + $0x14] sm:$0xf]
        %v6671 = vld [vmem:[%s6664 + $0x18] sm:$0xf]
        %v6672 = vld [vmem:[%s6664 + $0x1c] sm:$0xf]
        %v6673 = vld [vmem:[%s6664 + $0x20] sm:$0xf]
        %v6674 = vld [vmem:[%s6664 + $0x24] sm:$0xf]
        %v6675 = vld [vmem:[%s6664 + $0x28] sm:$0xf]
        %v6676 = vld [vmem:[%s6664 + $0x2c] sm:$0xf]
        %v6677 = vld [vmem:[%s6664 + $0x30] sm:$0xf]
        %v6678 = vld [vmem:[%s6664 + $0x34] sm:$0xf]
        %v6679 = vld [vmem:[%s6664 + $0x38] sm:$0xf]
        %v6680 = vld [vmem:[%s6664 + $0x3c] sm:$0xf]
        %v6692 = vunpack.c.l.b16 %v6653
        %v6693 = vunpack.c.l.b16 %v6654
        %v6694 = vunpack.c.l.b16 %v6655
        %v6695 = vunpack.c.l.b16 %v6656
        %v6696 = vunpack.c.l.b16 %v6657
        %v6697 = vunpack.c.l.b16 %v6658
        %v6698 = vunpack.c.l.b16 %v6659
        %v6699 = vunpack.c.l.b16 %v6660
        %v6700 = vunpack.c.l.b16 %v6661
        %v6701 = vunpack.c.l.b16 %v6662
        %v6702 = vunpack.c.l.b16 %v6663
        %v6703 = vpack.c.b16 %v6693, %v6692
        %v6704 = vpack.c.b16 %v6695, %v6694
        %v6705 = vpack.c.b16 %v6697, %v6696
        %v6706 = vpack.c.b16 %v6699, %v6698
        %v6707 = vpack.c.b16 %v6701, %v6700
        %v6708 = vpack.c.b16 %v6702, %v6702
        %v6710 = vshrl.u32 %v6703, 16
        %v6712 = vshll.u32 %v6703, 16
        %v6714 = vrot.slane %v6712, 1
        %v6715 = vor.u32 %v6710, %v6714
        %v6717 = vshll.u32 %v6704, 16
        %v6719 = vrot.slane %v6717, 1
        %v6720 = vsel %vm1116, %v6715, %v6719
        %v6721 = vshrl.u32 %v6704, 16
        %v6723 = vor.u32 %v6721, %v6719
        %v6725 = vshll.u32 %v6705, 16
        %v6727 = vrot.slane %v6725, 1
        %v6728 = vsel %vm1116, %v6723, %v6727
        %v6729 = vshrl.u32 %v6705, 16
        %v6731 = vor.u32 %v6729, %v6727
        %v6733 = vshll.u32 %v6706, 16
        %v6735 = vrot.slane %v6733, 1
        %v6736 = vsel %vm1116, %v6731, %v6735
        %v6737 = vshrl.u32 %v6706, 16
        %v6739 = vor.u32 %v6737, %v6735
        %v6741 = vshll.u32 %v6707, 16
        %v6743 = vrot.slane %v6741, 1
        %v6744 = vsel %vm1116, %v6739, %v6743
        %v6745 = vshrl.u32 %v6707, 16
        %v6747 = vor.u32 %v6745, %v6743
        %v6749 = vshll.u32 %v6708, 16
        %v6751 = vrot.slane %v6749, 1
        %v6752 = vsel %vm1116, %v6747, %v6751
        %v6774 = vunpack.c.l.b16 %v6665
        %v6775 = vunpack.c.l.b16 %v6666
        %v6776 = vunpack.c.l.b16 %v6667
        %v6777 = vunpack.c.l.b16 %v6668
        %v6778 = vunpack.c.l.b16 %v6669
        %v6779 = vunpack.c.l.b16 %v6670
        %v6780 = vunpack.c.l.b16 %v6671
        %v6781 = vunpack.c.l.b16 %v6672
        %v6782 = vunpack.c.l.b16 %v6673
        %v6783 = vunpack.c.l.b16 %v6674
        %v6784 = vunpack.c.l.b16 %v6675
        %v6785 = vunpack.c.l.b16 %v6676
        %v6786 = vunpack.c.l.b16 %v6677
        %v6787 = vunpack.c.l.b16 %v6678
        %v6788 = vunpack.c.l.b16 %v6679
        %v6789 = vunpack.c.l.b16 %v6680
        %v6790 = vpack.c.b16 %v6775, %v6774
        %v6791 = vpack.c.b16 %v6777, %v6776
        %v6792 = vpack.c.b16 %v6779, %v6778
        %v6793 = vpack.c.b16 %v6781, %v6780
        %v6794 = vpack.c.b16 %v6783, %v6782
        %v6795 = vpack.c.b16 %v6785, %v6784
        %v6796 = vpack.c.b16 %v6787, %v6786
        %v6797 = vpack.c.b16 %v6789, %v6788
        %6806 = vmatpush.bf16.msra.mxu0 %v6797
        %6807 = vmatpush.bf16.msra.mxu0 %v6796
        %6808 = vmatpush.bf16.msra.mxu0 %v6795
        %6809 = vmatpush.bf16.msra.mxu0 %v6794
        %6810 = vmatpush.bf16.msra.mxu0 %v6793
        %6811 = vmatpush.bf16.msra.mxu0 %v6792
        %6812 = vmatpush.bf16.msra.mxu0 %v6791
        %6813 = vmatpush.bf16.msra.mxu0 %v6790
        %6814 = vmatmul.bf16.gmra.mxu0 %v6720
        %v6815 = vpop.f32.mrf.mxu0
        %v6816 = vadd.f32 0.0, %v6815
        %v6817 = vpop.f32.mrf.mxu0
        %v6818 = vadd.f32 0.0, %v6817
        %6819 = vmatmul.bf16.gmra.mxu0 %v6728
        %v6820 = vpop.f32.mrf.mxu0
        %v6821 = vadd.f32 0.0, %v6820
        %v6822 = vpop.f32.mrf.mxu0
        %v6823 = vadd.f32 0.0, %v6822
        %6824 = vmatmul.bf16.gmra.mxu0 %v6736
        %v6825 = vpop.f32.mrf.mxu0
        %v6826 = vadd.f32 0.0, %v6825
        %v6827 = vpop.f32.mrf.mxu0
        %v6828 = vadd.f32 0.0, %v6827
        %6829 = vmatmul.bf16.gmra.mxu0 %v6744
        %v6830 = vpop.f32.mrf.mxu0
        %v6831 = vadd.f32 0.0, %v6830
        %v6832 = vpop.f32.mrf.mxu0
        %v6833 = vadd.f32 0.0, %v6832
        %6834 = vmatmul.bf16.gmra.mxu0 %v6752
        %v6835 = vpop.f32.mrf.mxu0
        %v6836 = vadd.f32 0.0, %v6835
        %v6837 = vpop.f32.mrf.mxu0
        %v6838 = vadd.f32 0.0, %v6837
        %6839 = vdwg.mxu0
        %v6840 = vadd.f32 %v6643, %v6816
        %v6841 = vadd.f32 %v6644, %v6818
        %v6842 = vadd.f32 %v6645, %v6821
        %v6843 = vadd.f32 %v6646, %v6823
        %v6844 = vadd.f32 %v6647, %v6826
        %v6845 = vadd.f32 %v6648, %v6828
        %v6846 = vadd.f32 %v6649, %v6831
        %v6847 = vadd.f32 %v6650, %v6833
        %v6848 = vadd.f32 %v6651, %v6836
        %v6849 = vadd.f32 %v6652, %v6838
        %v6850 = vld [vmem:[#allocation2 + $0x8] sm:$0xc]
        %v6851 = vld [vmem:[#allocation2 + $0x30] sm:$0x3]
        %s6852 = scalar_lea.vmem [#allocation4], 2688
        %v6853 = vld [vmem:[%s6852] sm:$0xf]
        %v6854 = vld [vmem:[%s6852 + $0x4] sm:$0xf]
        %v6855 = vld [vmem:[%s6852 + $0x8] sm:$0xf]
        %v6856 = vld [vmem:[%s6852 + $0xc] sm:$0xf]
        %v6857 = vld [vmem:[%s6852 + $0x10] sm:$0xf]
        %v6858 = vld [vmem:[%s6852 + $0x14] sm:$0xf]
        %v6859 = vld [vmem:[%s6852 + $0x18] sm:$0xf]
        %v6860 = vld [vmem:[%s6852 + $0x1c] sm:$0xf]
        %v6861 = vld [vmem:[%s6852 + $0x20] sm:$0xf]
        %v6862 = vld [vmem:[%s6852 + $0x24] sm:$0xf]
        %v6863 = vld [vmem:[%s6852 + $0x28] sm:$0xf]
        %v6864 = vld [vmem:[%s6852 + $0x2c] sm:$0xf]
        %v6865 = vld [vmem:[%s6852 + $0x30] sm:$0xf]
        %v6866 = vld [vmem:[%s6852 + $0x34] sm:$0xf]
        %v6867 = vld [vmem:[%s6852 + $0x38] sm:$0xf]
        %v6868 = vld [vmem:[%s6852 + $0x3c] sm:$0xf]
        %v6871 = vunpack.c.l.b16 %v6850
        %v6872 = vunpack.c.l.b16 %v6851
        %v6873 = vpack.c.b16 %v6693, %v6871
        %v6874 = vpack.c.b16 %v6872, %v6872
        %v6875 = vrot.slane %v6873, 2
        %v6876 = vrot.slane %v6704, 2
        %v6877 = vsel %vm676, %v6875, %v6876
        %v6878 = vrot.slane %v6705, 2
        %v6879 = vsel %vm676, %v6876, %v6878
        %v6880 = vrot.slane %v6706, 2
        %v6881 = vsel %vm676, %v6878, %v6880
        %v6882 = vrot.slane %v6707, 2
        %v6883 = vsel %vm676, %v6880, %v6882
        %v6884 = vrot.slane %v6874, 2
        %v6885 = vsel %vm676, %v6882, %v6884
        %v6907 = vunpack.c.l.b16 %v6853
        %v6908 = vunpack.c.l.b16 %v6854
        %v6909 = vunpack.c.l.b16 %v6855
        %v6910 = vunpack.c.l.b16 %v6856
        %v6911 = vunpack.c.l.b16 %v6857
        %v6912 = vunpack.c.l.b16 %v6858
        %v6913 = vunpack.c.l.b16 %v6859
        %v6914 = vunpack.c.l.b16 %v6860
        %v6915 = vunpack.c.l.b16 %v6861
        %v6916 = vunpack.c.l.b16 %v6862
        %v6917 = vunpack.c.l.b16 %v6863
        %v6918 = vunpack.c.l.b16 %v6864
        %v6919 = vunpack.c.l.b16 %v6865
        %v6920 = vunpack.c.l.b16 %v6866
        %v6921 = vunpack.c.l.b16 %v6867
        %v6922 = vunpack.c.l.b16 %v6868
        %v6923 = vpack.c.b16 %v6908, %v6907
        %v6924 = vpack.c.b16 %v6910, %v6909
        %v6925 = vpack.c.b16 %v6912, %v6911
        %v6926 = vpack.c.b16 %v6914, %v6913
        %v6927 = vpack.c.b16 %v6916, %v6915
        %v6928 = vpack.c.b16 %v6918, %v6917
        %v6929 = vpack.c.b16 %v6920, %v6919
        %v6930 = vpack.c.b16 %v6922, %v6921
        %6939 = vmatpush.bf16.msra.mxu0 %v6930
        %6940 = vmatpush.bf16.msra.mxu0 %v6929
        %6941 = vmatpush.bf16.msra.mxu0 %v6928
        %6942 = vmatpush.bf16.msra.mxu0 %v6927
        %6943 = vmatpush.bf16.msra.mxu0 %v6926
        %6944 = vmatpush.bf16.msra.mxu0 %v6925
        %6945 = vmatpush.bf16.msra.mxu0 %v6924
        %6946 = vmatpush.bf16.msra.mxu0 %v6923
        %6947 = vmatmul.bf16.gmra.mxu0 %v6877
        %v6948 = vpop.f32.mrf.mxu0
        %v6949 = vadd.f32 0.0, %v6948
        %v6950 = vpop.f32.mrf.mxu0
        %v6951 = vadd.f32 0.0, %v6950
        %6952 = vmatmul.bf16.gmra.mxu0 %v6879
        %v6953 = vpop.f32.mrf.mxu0
        %v6954 = vadd.f32 0.0, %v6953
        %v6955 = vpop.f32.mrf.mxu0
        %v6956 = vadd.f32 0.0, %v6955
        %6957 = vmatmul.bf16.gmra.mxu0 %v6881
        %v6958 = vpop.f32.mrf.mxu0
        %v6959 = vadd.f32 0.0, %v6958
        %v6960 = vpop.f32.mrf.mxu0
        %v6961 = vadd.f32 0.0, %v6960
        %6962 = vmatmul.bf16.gmra.mxu0 %v6883
        %v6963 = vpop.f32.mrf.mxu0
        %v6964 = vadd.f32 0.0, %v6963
        %v6965 = vpop.f32.mrf.mxu0
        %v6966 = vadd.f32 0.0, %v6965
        %6967 = vmatmul.bf16.gmra.mxu0 %v6885
        %v6968 = vpop.f32.mrf.mxu0
        %v6969 = vadd.f32 0.0, %v6968
        %v6970 = vpop.f32.mrf.mxu0
        %v6971 = vadd.f32 0.0, %v6970
        %6972 = vdwg.mxu0
        %v6973 = vadd.f32 %v6840, %v6949
        %v6974 = vadd.f32 %v6841, %v6951
        %v6975 = vadd.f32 %v6842, %v6954
        %v6976 = vadd.f32 %v6843, %v6956
        %v6977 = vadd.f32 %v6844, %v6959
        %v6978 = vadd.f32 %v6845, %v6961
        %v6979 = vadd.f32 %v6846, %v6964
        %v6980 = vadd.f32 %v6847, %v6966
        %v6981 = vadd.f32 %v6848, %v6969
        %v6982 = vadd.f32 %v6849, %v6971
        %v6983 = vld [vmem:[#allocation2 + $0x30] sm:$0x7]
        %s6984 = scalar_lea.vmem [#allocation4], 2752
        %v6985 = vld [vmem:[%s6984] sm:$0xf]
        %v6986 = vld [vmem:[%s6984 + $0x4] sm:$0xf]
        %v6987 = vld [vmem:[%s6984 + $0x8] sm:$0xf]
        %v6988 = vld [vmem:[%s6984 + $0xc] sm:$0xf]
        %v6989 = vld [vmem:[%s6984 + $0x10] sm:$0xf]
        %v6990 = vld [vmem:[%s6984 + $0x14] sm:$0xf]
        %v6991 = vld [vmem:[%s6984 + $0x18] sm:$0xf]
        %v6992 = vld [vmem:[%s6984 + $0x1c] sm:$0xf]
        %v6993 = vld [vmem:[%s6984 + $0x20] sm:$0xf]
        %v6994 = vld [vmem:[%s6984 + $0x24] sm:$0xf]
        %v6995 = vld [vmem:[%s6984 + $0x28] sm:$0xf]
        %v6996 = vld [vmem:[%s6984 + $0x2c] sm:$0xf]
        %v6997 = vld [vmem:[%s6984 + $0x30] sm:$0xf]
        %v6998 = vld [vmem:[%s6984 + $0x34] sm:$0xf]
        %v6999 = vld [vmem:[%s6984 + $0x38] sm:$0xf]
        %v7000 = vld [vmem:[%s6984 + $0x3c] sm:$0xf]
        %v7002 = vunpack.c.l.b16 %v6983
        %v7003 = vpack.c.b16 %v7002, %v7002
        %v7005 = vshrl.u32 %v6873, 16
        %v7007 = vrot.slane %v7005, 2
        %v7008 = vshll.u32 %v6873, 16
        %v7010 = vrot.slane %v7008, 3
        %v7011 = vor.u32 %v7007, %v7010
        %v7012 = vrot.slane %v6721, 2
        %v7013 = vrot.slane %v6717, 3
        %v7014 = vor.u32 %v7012, %v7013
        %v7015 = vsel %vm1412, %v7011, %v7014
        %v7016 = vrot.slane %v6729, 2
        %v7017 = vrot.slane %v6725, 3
        %v7018 = vor.u32 %v7016, %v7017
        %v7019 = vsel %vm1412, %v7014, %v7018
        %v7020 = vrot.slane %v6737, 2
        %v7021 = vrot.slane %v6733, 3
        %v7022 = vor.u32 %v7020, %v7021
        %v7023 = vsel %vm1412, %v7018, %v7022
        %v7024 = vrot.slane %v6745, 2
        %v7025 = vrot.slane %v6741, 3
        %v7026 = vor.u32 %v7024, %v7025
        %v7027 = vsel %vm1412, %v7022, %v7026
        %v7029 = vshrl.u32 %v7003, 16
        %v7031 = vrot.slane %v7029, 2
        %v7032 = vshll.u32 %v7003, 16
        %v7034 = vrot.slane %v7032, 3
        %v7035 = vor.u32 %v7031, %v7034
        %v7036 = vsel %vm1412, %v7026, %v7035
        %v7058 = vunpack.c.l.b16 %v6985
        %v7059 = vunpack.c.l.b16 %v6986
        %v7060 = vunpack.c.l.b16 %v6987
        %v7061 = vunpack.c.l.b16 %v6988
        %v7062 = vunpack.c.l.b16 %v6989
        %v7063 = vunpack.c.l.b16 %v6990
        %v7064 = vunpack.c.l.b16 %v6991
        %v7065 = vunpack.c.l.b16 %v6992
        %v7066 = vunpack.c.l.b16 %v6993
        %v7067 = vunpack.c.l.b16 %v6994
        %v7068 = vunpack.c.l.b16 %v6995
        %v7069 = vunpack.c.l.b16 %v6996
        %v7070 = vunpack.c.l.b16 %v6997
        %v7071 = vunpack.c.l.b16 %v6998
        %v7072 = vunpack.c.l.b16 %v6999
        %v7073 = vunpack.c.l.b16 %v7000
        %v7074 = vpack.c.b16 %v7059, %v7058
        %v7075 = vpack.c.b16 %v7061, %v7060
        %v7076 = vpack.c.b16 %v7063, %v7062
        %v7077 = vpack.c.b16 %v7065, %v7064
        %v7078 = vpack.c.b16 %v7067, %v7066
        %v7079 = vpack.c.b16 %v7069, %v7068
        %v7080 = vpack.c.b16 %v7071, %v7070
        %v7081 = vpack.c.b16 %v7073, %v7072
        %7090 = vmatpush.bf16.msra.mxu0 %v7081
        %7091 = vmatpush.bf16.msra.mxu0 %v7080
        %7092 = vmatpush.bf16.msra.mxu0 %v7079
        %7093 = vmatpush.bf16.msra.mxu0 %v7078
        %7094 = vmatpush.bf16.msra.mxu0 %v7077
        %7095 = vmatpush.bf16.msra.mxu0 %v7076
        %7096 = vmatpush.bf16.msra.mxu0 %v7075
        %7097 = vmatpush.bf16.msra.mxu0 %v7074
        %7098 = vmatmul.bf16.gmra.mxu0 %v7015
        %v7099 = vpop.f32.mrf.mxu0
        %v7100 = vadd.f32 0.0, %v7099
        %v7101 = vpop.f32.mrf.mxu0
        %v7102 = vadd.f32 0.0, %v7101
        %7103 = vmatmul.bf16.gmra.mxu0 %v7019
        %v7104 = vpop.f32.mrf.mxu0
        %v7105 = vadd.f32 0.0, %v7104
        %v7106 = vpop.f32.mrf.mxu0
        %v7107 = vadd.f32 0.0, %v7106
        %7108 = vmatmul.bf16.gmra.mxu0 %v7023
        %v7109 = vpop.f32.mrf.mxu0
        %v7110 = vadd.f32 0.0, %v7109
        %v7111 = vpop.f32.mrf.mxu0
        %v7112 = vadd.f32 0.0, %v7111
        %7113 = vmatmul.bf16.gmra.mxu0 %v7027
        %v7114 = vpop.f32.mrf.mxu0
        %v7115 = vadd.f32 0.0, %v7114
        %v7116 = vpop.f32.mrf.mxu0
        %v7117 = vadd.f32 0.0, %v7116
        %7118 = vmatmul.bf16.gmra.mxu0 %v7036
        %v7119 = vpop.f32.mrf.mxu0
        %v7120 = vadd.f32 0.0, %v7119
        %v7121 = vpop.f32.mrf.mxu0
        %v7122 = vadd.f32 0.0, %v7121
        %7123 = vdwg.mxu0
        %v7124 = vadd.f32 %v6973, %v7100
        %v7125 = vadd.f32 %v6974, %v7102
        %v7126 = vadd.f32 %v6975, %v7105
        %v7127 = vadd.f32 %v6976, %v7107
        %v7128 = vadd.f32 %v6977, %v7110
        %v7129 = vadd.f32 %v6978, %v7112
        %v7130 = vadd.f32 %v6979, %v7115
        %v7131 = vadd.f32 %v6980, %v7117
        %v7132 = vadd.f32 %v6981, %v7120
        %v7133 = vadd.f32 %v6982, %v7122
        %v7134 = vld [vmem:[#allocation2 + $0x8] sm:$0x8]
        %s7135 = scalar_lea.vmem [#allocation4], 2816
        %v7136 = vld [vmem:[%s7135] sm:$0xf]
        %v7137 = vld [vmem:[%s7135 + $0x4] sm:$0xf]
        %v7138 = vld [vmem:[%s7135 + $0x8] sm:$0xf]
        %v7139 = vld [vmem:[%s7135 + $0xc] sm:$0xf]
        %v7140 = vld [vmem:[%s7135 + $0x10] sm:$0xf]
        %v7141 = vld [vmem:[%s7135 + $0x14] sm:$0xf]
        %v7142 = vld [vmem:[%s7135 + $0x18] sm:$0xf]
        %v7143 = vld [vmem:[%s7135 + $0x1c] sm:$0xf]
        %v7144 = vld [vmem:[%s7135 + $0x20] sm:$0xf]
        %v7145 = vld [vmem:[%s7135 + $0x24] sm:$0xf]
        %v7146 = vld [vmem:[%s7135 + $0x28] sm:$0xf]
        %v7147 = vld [vmem:[%s7135 + $0x2c] sm:$0xf]
        %v7148 = vld [vmem:[%s7135 + $0x30] sm:$0xf]
        %v7149 = vld [vmem:[%s7135 + $0x34] sm:$0xf]
        %v7150 = vld [vmem:[%s7135 + $0x38] sm:$0xf]
        %v7151 = vld [vmem:[%s7135 + $0x3c] sm:$0xf]
        %v7153 = vunpack.c.l.b16 %v7134
        %v7154 = vpack.c.b16 %v6693, %v7153
        %v7155 = vrot.slane %v7154, 3
        %v7156 = vrot.slane %v6704, 3
        %v7157 = vsel %vm1564, %v7155, %v7156
        %v7158 = vrot.slane %v6705, 3
        %v7159 = vsel %vm1564, %v7156, %v7158
        %v7160 = vrot.slane %v6706, 3
        %v7161 = vsel %vm1564, %v7158, %v7160
        %v7162 = vrot.slane %v6707, 3
        %v7163 = vsel %vm1564, %v7160, %v7162
        %v7164 = vrot.slane %v7003, 3
        %v7165 = vsel %vm1564, %v7162, %v7164
        %v7187 = vunpack.c.l.b16 %v7136
        %v7188 = vunpack.c.l.b16 %v7137
        %v7189 = vunpack.c.l.b16 %v7138
        %v7190 = vunpack.c.l.b16 %v7139
        %v7191 = vunpack.c.l.b16 %v7140
        %v7192 = vunpack.c.l.b16 %v7141
        %v7193 = vunpack.c.l.b16 %v7142
        %v7194 = vunpack.c.l.b16 %v7143
        %v7195 = vunpack.c.l.b16 %v7144
        %v7196 = vunpack.c.l.b16 %v7145
        %v7197 = vunpack.c.l.b16 %v7146
        %v7198 = vunpack.c.l.b16 %v7147
        %v7199 = vunpack.c.l.b16 %v7148
        %v7200 = vunpack.c.l.b16 %v7149
        %v7201 = vunpack.c.l.b16 %v7150
        %v7202 = vunpack.c.l.b16 %v7151
        %v7203 = vpack.c.b16 %v7188, %v7187
        %v7204 = vpack.c.b16 %v7190, %v7189
        %v7205 = vpack.c.b16 %v7192, %v7191
        %v7206 = vpack.c.b16 %v7194, %v7193
        %v7207 = vpack.c.b16 %v7196, %v7195
        %v7208 = vpack.c.b16 %v7198, %v7197
        %v7209 = vpack.c.b16 %v7200, %v7199
        %v7210 = vpack.c.b16 %v7202, %v7201
        %7219 = vmatpush.bf16.msra.mxu0 %v7210
        %7220 = vmatpush.bf16.msra.mxu0 %v7209
        %7221 = vmatpush.bf16.msra.mxu0 %v7208
        %7222 = vmatpush.bf16.msra.mxu0 %v7207
        %7223 = vmatpush.bf16.msra.mxu0 %v7206
        %7224 = vmatpush.bf16.msra.mxu0 %v7205
        %7225 = vmatpush.bf16.msra.mxu0 %v7204
        %7226 = vmatpush.bf16.msra.mxu0 %v7203
        %7227 = vmatmul.bf16.gmra.mxu0 %v7157
        %v7228 = vpop.f32.mrf.mxu0
        %v7229 = vadd.f32 0.0, %v7228
        %v7230 = vpop.f32.mrf.mxu0
        %v7231 = vadd.f32 0.0, %v7230
        %7232 = vmatmul.bf16.gmra.mxu0 %v7159
        %v7233 = vpop.f32.mrf.mxu0
        %v7234 = vadd.f32 0.0, %v7233
        %v7235 = vpop.f32.mrf.mxu0
        %v7236 = vadd.f32 0.0, %v7235
        %7237 = vmatmul.bf16.gmra.mxu0 %v7161
        %v7238 = vpop.f32.mrf.mxu0
        %v7239 = vadd.f32 0.0, %v7238
        %v7240 = vpop.f32.mrf.mxu0
        %v7241 = vadd.f32 0.0, %v7240
        %7242 = vmatmul.bf16.gmra.mxu0 %v7163
        %v7243 = vpop.f32.mrf.mxu0
        %v7244 = vadd.f32 0.0, %v7243
        %v7245 = vpop.f32.mrf.mxu0
        %v7246 = vadd.f32 0.0, %v7245
        %7247 = vmatmul.bf16.gmra.mxu0 %v7165
        %v7248 = vpop.f32.mrf.mxu0
        %v7249 = vadd.f32 0.0, %v7248
        %v7250 = vpop.f32.mrf.mxu0
        %v7251 = vadd.f32 0.0, %v7250
        %7252 = vdwg.mxu0
        %v7253 = vadd.f32 %v7124, %v7229
        %v7254 = vadd.f32 %v7125, %v7231
        %v7255 = vadd.f32 %v7126, %v7234
        %v7256 = vadd.f32 %v7127, %v7236
        %v7257 = vadd.f32 %v7128, %v7239
        %v7258 = vadd.f32 %v7129, %v7241
        %v7259 = vadd.f32 %v7130, %v7244
        %v7260 = vadd.f32 %v7131, %v7246
        %v7261 = vadd.f32 %v7132, %v7249
        %v7262 = vadd.f32 %v7133, %v7251
        %s7263 = scalar_lea.vmem [#allocation6], 4
        %v7264 = vld [vmem:[%s7263] sm:$0x1]
        %v7266 = vperm.slane %v7264, 0
        %v7268 = vmul.f32 %v7253, %v7266
        %v7269 = vmul.f32 %v7254, %v7266
        %v7270 = vmul.f32 %v7255, %v7266
        %v7271 = vmul.f32 %v7256, %v7266
        %v7272 = vmul.f32 %v7257, %v7266
        %v7273 = vmul.f32 %v7258, %v7266
        %v7274 = vmul.f32 %v7259, %v7266
        %v7275 = vmul.f32 %v7260, %v7266
        %v7276 = vmul.f32 %v7261, %v7266
        %v7277 = vmul.f32 %v7262, %v7266
        %s7278 = scalar_lea.vmem [#allocation8], 4
        %v7279 = vld [vmem:[%s7278] sm:$0x1]
        %v7281 = vperm.slane %v7279, 0
        %v7283 = vadd.f32 %v7268, %v7281
        %v7284 = vadd.f32 %v7269, %v7281
        %v7285 = vadd.f32 %v7270, %v7281
        %v7286 = vadd.f32 %v7271, %v7281
        %v7287 = vadd.f32 %v7272, %v7281
        %v7288 = vadd.f32 %v7273, %v7281
        %v7289 = vadd.f32 %v7274, %v7281
        %v7290 = vadd.f32 %v7275, %v7281
        %v7291 = vadd.f32 %v7276, %v7281
        %v7292 = vadd.f32 %v7277, %v7281
        %v7293 = vld [vmem:[%s286] sm:$0xff]
        %v7294 = vld [vmem:[%s286 + $0x8] sm:$0xff]
        %v7295 = vld [vmem:[%s286 + $0x10] sm:$0xff]
        %v7296 = vld [vmem:[%s286 + $0x18] sm:$0xff]
        %v7297 = vld [vmem:[%s286 + $0x20] sm:$0xff]
        %v7298 = vld [vmem:[%s286 + $0x28] sm:$0xff]
        %v7299 = vld [vmem:[%s286 + $0x30] sm:$0xff]
        %v7300 = vld [vmem:[%s286 + $0x38] sm:$0xff]
        %v7301 = vld [vmem:[%s286 + $0x40] sm:$0xff]
        %v7302 = vld [vmem:[%s286 + $0x48] sm:$0xff]
        %v7303 = vsub.f32 %v7293, %v7283
        %v7304 = vsub.f32 %v7294, %v7284
        %v7305 = vsub.f32 %v7295, %v7285
        %v7306 = vsub.f32 %v7296, %v7286
        %v7307 = vsub.f32 %v7297, %v7287
        %v7308 = vsub.f32 %v7298, %v7288
        %v7309 = vsub.f32 %v7299, %v7289
        %v7310 = vsub.f32 %v7300, %v7290
        %v7311 = vsub.f32 %v7301, %v7291
        %v7312 = vsub.f32 %v7302, %v7292
        %v7313 = vmul.f32 %v7303, %v329
        %v7314 = vmul.f32 %v7304, %v330
        %v7315 = vmul.f32 %v7305, %v331
        %v7316 = vmul.f32 %v7306, %v332
        %v7317 = vmul.f32 %v7307, %v333
        %v7318 = vmul.f32 %v7308, %v334
        %v7319 = vmul.f32 %v7309, %v335
        %v7320 = vmul.f32 %v7310, %v336
        %v7321 = vmul.f32 %v7311, %v337
        %v7322 = vmul.f32 %v7312, %v338
        %7323 = vst [vmem:[%s291] sm:$0xff] %v7313
        %7324 = vst [vmem:[%s291 + $0x8] sm:$0xff] %v7314
        %7325 = vst [vmem:[%s291 + $0x10] sm:$0xff] %v7315
        %7326 = vst [vmem:[%s291 + $0x18] sm:$0xff] %v7316
        %7327 = vst [vmem:[%s291 + $0x20] sm:$0xff] %v7317
        %7328 = vst [vmem:[%s291 + $0x28] sm:$0xff] %v7318
        %7329 = vst [vmem:[%s291 + $0x30] sm:$0xff] %v7319
        %7330 = vst [vmem:[%s291 + $0x38] sm:$0xff] %v7320
        %7331 = vst [vmem:[%s291 + $0x40] sm:$0xff] %v7321
        %7332 = vst [vmem:[%s291 + $0x48] sm:$0xff] %v7322
        %p7333 = scmp.lt.s32.totalorder %s19, 1
        %s7334 = scalar_select %p7333, %s19, 1
        %s7335 = smul.addr %s7334, 10
        %s7336 = smul.addr %s7335, 8
        %s7337 = scalar_lea.vmem %s5, %s7336
        // Predicated region
        $region57: #{dncnn_forward.1} parent=39 // pred_check
          %p7338 = pneg %p147
        $region58: #{dncnn_forward.1} parent=39 // pred_check_branch
          %7340 = sbr.rel (%p7338) target = $region60
        $region59: #{dncnn_forward.1} parent=39 // pred_region
          _
        $region60: #{dncnn_forward.1} parent=39 // pred_fallthru
          _
      $region40: #{dncnn_forward.1} parent=5 // pred_fallthru
        _
      %p7341 = scmp.le.s32.totalorder 2, %s14
      // Predicated region
      $region61: #{dncnn_forward.1} parent=5 // pred_check
        %p7342 = pneg %p7341
      $region62: #{dncnn_forward.1} parent=5 // pred_check_branch
        %7344 = sbr.rel (%p7342) target = $region64
      $region63: #{dncnn_forward.1} parent=5 // pred_region
        %s7345 = ssub.s32 %s14, 2
        // Predicated region
        $region65: #{dncnn_forward.1} parent=63 // pred_check
          %p7346 = pneg %p153
        $region66: #{dncnn_forward.1} parent=63 // pred_check_branch
          %7348 = sbr.rel (%p7346) target = $region68
        $region67: #{dncnn_forward.1} parent=63 // pred_region
          %p7349 = scmp.lt.s32.totalorder %s20, 1
          %s7350 = scalar_select %p7349, %s20, 1
          %s7351 = smul.addr %s7350, 10
          %s7352 = smul.addr %s7351, 8
          %s7353 = scalar_lea.vmem %s5, %s7352
        $region68: #{dncnn_forward.1} parent=63 // pred_fallthru
          _
      $region64: #{dncnn_forward.1} parent=5 // pred_fallthru
        _
    $region6: #{dncnn_forward.1} parent=1 // loop_footer
      %s18 = sadd.s32 1, %s14
    $region7: #{dncnn_forward.1} parent=1 // loop_footer_branch
      %13 = sbr.rel target = $region3
    $region8: #{dncnn_forward.1} parent=1 // loop_exit
      _
    %7354 = vsyncpa [#allocation5], 1
    %s7355 = scalar_lea.sflag [#allocation5], 1
    %7356 = vsyncpa %s7355, 1
    %7357 = vsyncpa [#allocation7], 1
    %7358 = vsyncpa [#allocation10], 1

</llo_original>
